<compile_context>
chip_gen: v6e
topology: v6e:2x2x1
jax: 0.10.0
libtpu: 0.0.40
codegen_flags: <defaults>
</compile_context>

<pallas_src>
import functools

import jax
import jax.numpy as jnp
from jax import lax
from jax.experimental import pallas as pl
from jax.experimental.pallas import tpu as pltpu

LN_EPS = 1e-5          # nn.LayerNorm default eps
NORM_EPS = 1e-12       # F.normalize / l2_norm eps


def _layernorm(x, gamma, beta, eps=LN_EPS):
    mu = jnp.mean(x, axis=-1, keepdims=True)
    xc = x - mu
    var = jnp.mean(xc * xc, axis=-1, keepdims=True)
    return xc * lax.rsqrt(var + eps) * gamma + beta


# ----------------------------------------------------------------------------
# Kernel
# ----------------------------------------------------------------------------
def cmn_head_kernel(x_ref, g1_ref, be1_ref, w1t_ref, b1_ref, cv1t_ref, cv1_ref,
                    cv2n_ref, out_ref, *, flat_scores=True):
    # x_ref block: (block_b, R, F) bf16 -- a tile of images, features lane-dense.
    Bb, R, Fd = x_ref.shape
    E = cv2n_ref.shape[0]

    # bf16-streamed x, upcast once; LN math stays f32 (v5e-safe).
    x = x_ref[...].astype(jnp.float32)                                # (Bb, R, F)
    mu = jnp.mean(x, axis=-1, keepdims=True)
    xc = x - mu
    var = jnp.mean(xc * xc, axis=-1, keepdims=True)
    ln1 = xc * lax.rsqrt(var + LN_EPS) * g1_ref[...] + be1_ref[...]

    # MLP1: (Bb*R) folded into the MXU M dimension; bf16 operands, f32 acc.
    # Bias-add + downcast fused so the f32 (Bb*R, F) result is not a separately
    # live intermediate.
    y_flat = (jnp.dot(ln1.reshape(Bb * R, Fd).astype(jnp.bfloat16), w1t_ref[...],
                      preferred_element_type=jnp.float32)
              + b1_ref[...]).astype(jnp.bfloat16)                     # (Bb*R, F)
    y3 = y_flat.reshape(Bb, R, Fd)                                    # (Bb, R, F)

    if flat_scores:
        # Scores as one flat MXU matmul: (Bb*R, F) @ (F, E) -> (Bb, R, E).
        A = jnp.dot(y_flat, cv1t_ref[...],
                    preferred_element_type=jnp.float32).reshape(Bb, R, E)
        # F.normalize over the concept axis E (lane reduce), scale by R,
        # softmax over the spatial axis R (sublane reduce).
        inv_cn = lax.rsqrt(jnp.maximum(jnp.sum(A * A, axis=-1, keepdims=True),
                                       NORM_EPS * NORM_EPS))
        logits = A * inv_cn * R
        logits = logits - jnp.max(logits, axis=1, keepdims=True)
        e = jnp.exp(logits)
        A3 = e * pl.reciprocal(jnp.sum(e, axis=1, keepdims=True), approx=True)
        # F_p[b,i,f] = sum_r A3[b,r,i] * y[b,r,f]
        Fp = jnp.einsum('bri,brf->bif', A3.astype(jnp.bfloat16), y3,
                        preferred_element_type=jnp.float32)           # (Bb, E, F)
    else:
        # Fallback: batched einsum in the flash-attention-validated forms.
        cv1b = jnp.broadcast_to(cv1_ref[...], (Bb, E, Fd))            # bf16
        A = jnp.einsum('bif,brf->bir', cv1b, y3,
                       preferred_element_type=jnp.float32)            # (Bb, E, R)
        inv_cn = lax.rsqrt(jnp.maximum(jnp.sum(A * A, axis=1, keepdims=True),
                                       NORM_EPS * NORM_EPS))
        logits = A * inv_cn * R
        logits = logits - jnp.max(logits, axis=-1, keepdims=True)
        e = jnp.exp(logits)
        A3 = e * pl.reciprocal(jnp.sum(e, axis=-1, keepdims=True), approx=True)
        Fp = jnp.einsum('bir,brf->bif', A3.astype(jnp.bfloat16), y3,
                        preferred_element_type=jnp.float32)           # (Bb, E, F)

    # F.normalize(F_p, dim=1) (over E, sublane reduce), folded into rsqrt.
    Fpn = Fp * lax.rsqrt(jnp.maximum(jnp.sum(Fp * Fp, axis=1, keepdims=True),
                                     NORM_EPS * NORM_EPS))

    # Pred_concept[b,i] = sum_f cv2n[i,f] * Fpn[b,i,f]   (lane reduce)
    pred = jnp.sum(cv2n_ref[...].astype(jnp.float32) * Fpn, axis=-1)  # (Bb, E)

    # self.l2_norm: additive 1e-12 on the squared norm, exactly as in the module.
    out_ref[...] = pred * lax.rsqrt(
        jnp.sum(pred * pred, axis=-1, keepdims=True) + NORM_EPS)


# ----------------------------------------------------------------------------
# Host-side glue
# ----------------------------------------------------------------------------
def prepare_cmn_constants(params, concept_v):
    """Batch-independent work, done ONCE (outside the per-batch forward):
    concept branches MLP2/MLP3, W1 pre-transpose, bf16 casts."""
    cv = concept_v.astype(jnp.float32)
    cv1 = _layernorm(cv, params["g2"], params["be2"]) @ params["W2"].T   # (E, F)
    cv2 = _layernorm(cv, params["g3"], params["be3"]) @ params["W3"].T   # (E, F)
    cv2n = cv2 * lax.rsqrt(jnp.maximum(jnp.sum(cv2 * cv2, axis=-1, keepdims=True),
                                       NORM_EPS * NORM_EPS))
    return {
        "g1": params["g1"].reshape(1, -1).astype(jnp.float32),
        "be1": params["be1"].reshape(1, -1).astype(jnp.float32),
        "w1t": params["W1"].T.astype(jnp.bfloat16),     # (F, F) pre-transposed
        "b1": params["b1"].reshape(1, -1).astype(jnp.float32),
        "cv1t": cv1.T.astype(jnp.bfloat16),             # (F, E) for flat scores
        "cv1": cv1.astype(jnp.bfloat16),                # (E, F) for fallback path
        "cv2n": cv2n.astype(jnp.bfloat16),              # (E, F), upcast at use
    }


def _tpu_generation_params():
    """Return (VMEM capacity bytes, target folded MXU rows per grid step)."""
    try:
        kind = jax.devices()[0].device_kind.lower()
    except Exception:  # pragma: no cover - device query failed
        kind = ""
    if "v7" in kind or "tpu7" in kind:
        vmem = 64 * 1024 * 1024            # v7x: 64 MiB per TensorCore
    elif any(t in kind for t in ("v4", "v5", "v6")):
        vmem = 128 * 1024 * 1024           # v4 / v5e / v5p / v6e
    else:
        vmem = 64 * 1024 * 1024            # unknown: be conservative
    rows = 256 if "v5" in kind else 512    # v5e is HBM-bound; v6e/v7x want more
    return vmem, rows


def _pick_block_b(B, R, Fd, E, vmem_budget, const_bytes, row_target):
    """Pick the batch-tile size from the VMEM budget and folded-M target."""
    # rough per-image bytes: bf16 x tile (double-buffered) + f32/bf16 intermediates
    per_img = R * Fd * (2 * 2 + 4 + 2 + 4) + R * E * 12 + E * Fd * 12
    cap = max(1, int((vmem_budget - const_bytes) // max(per_img, 1)))
    bb = max(1, min(B, max(1, row_target // max(R, 1)), cap))
    if B >= 8:
        bb = max(8, (bb // 8) * 8)         # sublane-aligned output tile
        # keep >= 2 grid steps when the batch allows, so both v7x TensorCores /
        # megacore halves get work.
        while bb > 8 and -(-B // bb) < 2:
            bb -= 8
    else:
        bb = B                             # single tile == full (small) batch
    return bb


def _const_spec(arr, single_buffer):
    ndim = arr.ndim
    imap = lambda b: (0,) * ndim
    if single_buffer:
        # Constant-index blocks: no need to double-buffer (saves VMEM, esp. v7x).
        return pl.BlockSpec(arr.shape, imap, pipeline_mode=pl.Buffered(1))
    return pl.BlockSpec(arr.shape, imap)


@functools.partial(jax.jit,
                   static_argnames=("block_b", "single_buffer_consts", "flat_scores"))
def cmn_forward(x_feat, consts, block_b=None, single_buffer_consts=True,
                flat_scores=True):
    """CMN head forward.

    x_feat: (B, H, W, F) post-backbone feature map in NHWC (TPU conv-native).
    This is the same tensor the PyTorch module sees as NCHW; NHWC makes
    (B,H,W,F) -> (B, R=H*W, F) a free reshape (no transpose pre-pass).
    Returns the (B, E) l2-normalized concept predictions.
    """
    B, H, W, Fd = x_feat.shape
    R = H * W
    E = consts["cv2n"].shape[0]

    vmem_cap, row_target = _tpu_generation_params()
    vmem_budget = vmem_cap - 16 * 1024 * 1024   # headroom for compiler scratch

    bufs = 1 if single_buffer_consts else 2
    const_names = ("w1t", "cv1t", "cv1", "cv2n", "g1", "be1", "b1")
    const_bytes = bufs * sum(consts[k].size * consts[k].dtype.itemsize
                             for k in const_names)

    if block_b is None:
        block_b = _pick_block_b(B, R, Fd, E, vmem_budget, const_bytes, row_target)
    block_b = max(1, min(block_b, B))
    nb = -(-B // block_b)
    Bp = nb * block_b

    # Free reshape (NHWC), stream as bf16 (halves x's HBM/DMA bytes; upcast
    # in-kernel).  If the backbone already emits bf16 this astype is a no-op.
    x = x_feat.reshape(B, R, Fd).astype(jnp.bfloat16)
    if Bp != B:
        x = jnp.pad(x, ((0, Bp - B), (0, 0), (0, 0)))

    def cspec(name):
        return _const_spec(consts[name], single_buffer_consts)

    kernel = functools.partial(cmn_head_kernel, flat_scores=flat_scores)
    out = pl.pallas_call(
        kernel,
        out_shape=jax.ShapeDtypeStruct((Bp, E), jnp.float32),
        grid=(nb,),
        in_specs=[
            pl.BlockSpec((block_b, R, Fd), lambda b: (b, 0, 0)),   # x tile
            cspec("g1"), cspec("be1"),                             # lnorm1 affine
            cspec("w1t"), cspec("b1"),                             # MLP1
            cspec("cv1t"), cspec("cv1"), cspec("cv2n"),            # concept branches
        ],
        out_specs=pl.BlockSpec((block_b, E), lambda b: (b, 0)),
        compiler_params=pltpu.CompilerParams(
            dimension_semantics=("parallel",),
            vmem_limit_bytes=int(vmem_budget)),
    )(x, consts["g1"], consts["be1"], consts["w1t"], consts["b1"],
      consts["cv1t"], consts["cv1"], consts["cv2n"])
    return out[:B]


# ----------------------------------------------------------------------------
# Pure-JAX reference (mirrors the kernel's bf16/MXU precision choices)
# ----------------------------------------------------------------------------
def cmn_reference(x_feat, concept_v, params):
    bf16 = jnp.bfloat16
    B, H, W, Fd = x_feat.shape
    R = H * W
    # mirror bf16 streaming of x
    x = x_feat.reshape(B, R, Fd).astype(bf16).astype(jnp.float32)     # (B, R, F)
    ln1 = _layernorm(x, params["g1"], params["be1"])
    y = jnp.dot(ln1.astype(bf16), params["W1"].T.astype(bf16),
                preferred_element_type=jnp.float32) + params["b1"]
    yb = y.astype(bf16)                                               # (B, R, F)

    cv1 = _layernorm(concept_v, params["g2"], params["be2"]) @ params["W2"].T
    A = jnp.einsum('if,brf->bir', cv1.astype(bf16), yb,
                   preferred_element_type=jnp.float32)                # (B, E, R)
    An = A * lax.rsqrt(jnp.maximum(jnp.sum(A * A, axis=1, keepdims=True),
                                   NORM_EPS * NORM_EPS))
    logits = An * A.shape[-1]
    logits = logits - jnp.max(logits, axis=-1, keepdims=True)
    e = jnp.exp(logits)
    A3 = e / jnp.sum(e, axis=-1, keepdims=True)

    Fp = jnp.einsum('bir,brf->bif', A3.astype(bf16), yb,
                    preferred_element_type=jnp.float32)               # (B, E, F)

    cv2 = _layernorm(concept_v, params["g3"], params["be3"]) @ params["W3"].T
    cv2n = cv2 * lax.rsqrt(jnp.maximum(jnp.sum(cv2 * cv2, axis=-1, keepdims=True),
                                       NORM_EPS * NORM_EPS))
    cv2n = cv2n.astype(bf16).astype(jnp.float32)                      # mirror storage
    Fpn = Fp * lax.rsqrt(jnp.maximum(jnp.sum(Fp * Fp, axis=1, keepdims=True),
                                     NORM_EPS * NORM_EPS))
    pred = jnp.einsum('if,bif->bi', cv2n, Fpn)
    return pred * lax.rsqrt(jnp.sum(pred * pred, axis=-1, keepdims=True) + NORM_EPS)


if __name__ == "__main__":
    import numpy as np

    # Small shapes: B=16 images, num_ftrs F=64, spatial 4x4 (R=16),
    # embedding_size E=8, concept_dim C=16.
    B, F_dim, H, W = 16, 64, 4, 4
    E, C = 8, 16

    key = jax.random.PRNGKey(0)
    ks = jax.random.split(key, 6)

    # Post-backbone feature map in NHWC (TPU conv-native); equals the PyTorch
    # NCHW map via transpose(0, 2, 3, 1) -- no extra transpose pass needed.
    x_feat = jax.random.normal(ks[0], (B, H, W, F_dim), jnp.float32)
    concept_v = jax.random.normal(ks[1], (E, C), jnp.float32) * jnp.sqrt(2.0 / E)

    params = {
        # MLP1: Linear(F, F) kaiming fan_out, bias 0
        "W1": jax.random.normal(ks[2], (F_dim, F_dim), jnp.float32) * jnp.sqrt(2.0 / F_dim),
        "b1": jnp.zeros((F_dim,), jnp.float32),
        # MLP2 / MLP3: Linear(C, F, bias=False) kaiming fan_out
        "W2": jax.random.normal(ks[3], (F_dim, C), jnp.float32) * jnp.sqrt(2.0 / F_dim),
        "W3": jax.random.normal(ks[4], (F_dim, C), jnp.float32) * jnp.sqrt(2.0 / F_dim),
        # LayerNorms (elementwise_affine=True defaults)
        "g1": jnp.ones((F_dim,), jnp.float32), "be1": jnp.zeros((F_dim,), jnp.float32),
        "g2": jnp.ones((C,), jnp.float32),     "be2": jnp.zeros((C,), jnp.float32),
        "g3": jnp.ones((C,), jnp.float32),     "be3": jnp.zeros((C,), jnp.float32),
    }

    consts = prepare_cmn_constants(params, concept_v)

    # Try the most optimized configuration first; gracefully fall back if a
    # Pallas feature (single-buffered constants / flat-score dot form) is not
    # supported by the installed lowering.
    attempts = ((True, True), (False, True), (True, False), (False, False))
    out, last_err = None, None
    for single_buf, flat in attempts:
        try:
            out = jax.block_until_ready(
                cmn_forward(x_feat, consts,
                            single_buffer_consts=single_buf, flat_scores=flat))
            break
        except Exception as err:  # noqa: BLE001 - fall back to next config
            last_err = err
    if out is None:
        raise last_err

    ref = jax.block_until_ready(cmn_reference(x_feat, concept_v, params))
    np.testing.assert_allclose(np.asarray(out), np.asarray(ref), rtol=2e-2, atol=2e-2)
    assert out.shape == (B, E)
    print("KERNEL_OK")
</pallas_src>

<mosaic_0001>
module attributes {stable_mosaic.version = 11 : i64} {
  func.func @cmn_head_kernel(%arg0: i32, %arg1: memref<8x16x64xbf16, #tpu.memory_space<vmem>>, %arg2: memref<1x64xf32, #tpu.memory_space<vmem>>, %arg3: memref<1x64xf32, #tpu.memory_space<vmem>>, %arg4: memref<64x64xbf16, #tpu.memory_space<vmem>>, %arg5: memref<1x64xf32, #tpu.memory_space<vmem>>, %arg6: memref<64x8xbf16, #tpu.memory_space<vmem>>, %arg7: memref<8x64xbf16, #tpu.memory_space<vmem>>, %arg8: memref<8x64xbf16, #tpu.memory_space<vmem>>, %arg9: memref<8x8xf32, #tpu.memory_space<vmem>>) attributes {dimension_semantics = [#tpu.dimension_semantics<parallel>], iteration_bounds = array<i64: 2>, scalar_prefetch = 0 : i64, scratch_operands = 0 : i64, tpu.core_type = #tpu.core_type<tc>, window_params = [{transform_indices = @transform_0, window_bounds = array<i64: 8, 16, 64>}, {pipeline_mode = #tpu.pipeline_mode<synchronous>, transform_indices = @transform_1, window_bounds = array<i64: 1, 64>}, {pipeline_mode = #tpu.pipeline_mode<synchronous>, transform_indices = @transform_2, window_bounds = array<i64: 1, 64>}, {pipeline_mode = #tpu.pipeline_mode<synchronous>, transform_indices = @transform_3, window_bounds = array<i64: 64, 64>}, {pipeline_mode = #tpu.pipeline_mode<synchronous>, transform_indices = @transform_4, window_bounds = array<i64: 1, 64>}, {pipeline_mode = #tpu.pipeline_mode<synchronous>, transform_indices = @transform_5, window_bounds = array<i64: 64, 8>}, {pipeline_mode = #tpu.pipeline_mode<synchronous>, transform_indices = @transform_6, window_bounds = array<i64: 8, 64>}, {pipeline_mode = #tpu.pipeline_mode<synchronous>, transform_indices = @transform_7, window_bounds = array<i64: 8, 64>}, {transform_indices = @transform_8, window_bounds = array<i64: 8, 8>}]} {
    %c0 = arith.constant 0 : index
    %c0_0 = arith.constant 0 : index
    %c0_1 = arith.constant 0 : index
    %0 = vector.load %arg1[%c0, %c0_0, %c0_1] : memref<8x16x64xbf16, #tpu.memory_space<vmem>>, vector<8x16x64xbf16>
    %1 = arith.extf %0 : vector<8x16x64xbf16> to vector<8x16x64xf32>
    %cst = arith.constant dense<0.000000e+00> : vector<8x16xf32>
    %2 = vector.multi_reduction <add>, %1, %cst [2] : vector<8x16x64xf32> to vector<8x16xf32>
    %3 = vector.shape_cast %2 : vector<8x16xf32> to vector<8x16x1xf32>
    %cst_2 = arith.constant 6.400000e+01 : f32
    %4 = vector.broadcast %cst_2 : f32 to vector<8x16x1xf32>
    %5 = arith.divf %3, %4 : vector<8x16x1xf32>
    %6 = vector.broadcast %5 : vector<8x16x1xf32> to vector<8x16x64xf32>
    %7 = arith.subf %1, %6 : vector<8x16x64xf32>
    %8 = arith.mulf %7, %7 : vector<8x16x64xf32>
    %cst_3 = arith.constant dense<0.000000e+00> : vector<8x16xf32>
    %9 = vector.multi_reduction <add>, %8, %cst_3 [2] : vector<8x16x64xf32> to vector<8x16xf32>
    %10 = vector.shape_cast %9 : vector<8x16xf32> to vector<8x16x1xf32>
    %cst_4 = arith.constant 6.400000e+01 : f32
    %11 = vector.broadcast %cst_4 : f32 to vector<8x16x1xf32>
    %12 = arith.divf %10, %11 : vector<8x16x1xf32>
    %cst_5 = arith.constant 9.99999974E-6 : f32
    %13 = vector.broadcast %cst_5 : f32 to vector<8x16x1xf32>
    %14 = arith.addf %12, %13 : vector<8x16x1xf32>
    %15 = math.rsqrt %14 : vector<8x16x1xf32>
    %16 = vector.broadcast %15 : vector<8x16x1xf32> to vector<8x16x64xf32>
    %17 = arith.mulf %7, %16 : vector<8x16x64xf32>
    %c0_6 = arith.constant 0 : index
    %c0_7 = arith.constant 0 : index
    %18 = vector.load %arg2[%c0_6, %c0_7] : memref<1x64xf32, #tpu.memory_space<vmem>>, vector<1x64xf32>
    %19 = vector.shape_cast %18 : vector<1x64xf32> to vector<1x1x64xf32>
    %20 = vector.broadcast %19 : vector<1x1x64xf32> to vector<8x16x64xf32>
    %21 = arith.mulf %17, %20 : vector<8x16x64xf32>
    %c0_8 = arith.constant 0 : index
    %c0_9 = arith.constant 0 : index
    %22 = vector.load %arg3[%c0_8, %c0_9] : memref<1x64xf32, #tpu.memory_space<vmem>>, vector<1x64xf32>
    %23 = vector.shape_cast %22 : vector<1x64xf32> to vector<1x1x64xf32>
    %24 = vector.broadcast %23 : vector<1x1x64xf32> to vector<8x16x64xf32>
    %25 = arith.addf %21, %24 : vector<8x16x64xf32>
    %26 = vector.shape_cast %25 : vector<8x16x64xf32> to vector<128x64xf32>
    %27 = arith.truncf %26 : vector<128x64xf32> to vector<128x64xbf16>
    %c0_10 = arith.constant 0 : index
    %c0_11 = arith.constant 0 : index
    %28 = vector.load %arg4[%c0_10, %c0_11] : memref<64x64xbf16, #tpu.memory_space<vmem>>, vector<64x64xbf16>
    %cst_12 = arith.constant dense<0.000000e+00> : vector<128x64xf32>
    %29 = tpu.matmul %27, %28, %cst_12 {dimension_numbers = #tpu.dot_dimension_numbers<[1], [0], [0], [1], [0, 0, 1, 1], [], []>} : vector<128x64xbf16>, vector<64x64xbf16>, vector<128x64xf32> -> vector<128x64xf32>
    %c0_13 = arith.constant 0 : index
    %c0_14 = arith.constant 0 : index
    %30 = vector.load %arg5[%c0_13, %c0_14] : memref<1x64xf32, #tpu.memory_space<vmem>>, vector<1x64xf32>
    %31 = vector.broadcast %30 : vector<1x64xf32> to vector<128x64xf32>
    %32 = arith.addf %29, %31 : vector<128x64xf32>
    %33 = arith.truncf %32 : vector<128x64xf32> to vector<128x64xbf16>
    %34 = vector.shape_cast %33 : vector<128x64xbf16> to vector<8x16x64xbf16>
    %c0_15 = arith.constant 0 : index
    %c0_16 = arith.constant 0 : index
    %35 = vector.load %arg6[%c0_15, %c0_16] : memref<64x8xbf16, #tpu.memory_space<vmem>>, vector<64x8xbf16>
    %cst_17 = arith.constant dense<0.000000e+00> : vector<128x8xf32>
    %36 = tpu.matmul %33, %35, %cst_17 {dimension_numbers = #tpu.dot_dimension_numbers<[1], [0], [0], [1], [0, 0, 1, 1], [], []>} : vector<128x64xbf16>, vector<64x8xbf16>, vector<128x8xf32> -> vector<128x8xf32>
    %37 = vector.shape_cast %36 : vector<128x8xf32> to vector<8x16x8xf32>
    %38 = arith.mulf %37, %37 : vector<8x16x8xf32>
    %cst_18 = arith.constant dense<0.000000e+00> : vector<8x16xf32>
    %39 = vector.multi_reduction <add>, %38, %cst_18 [2] : vector<8x16x8xf32> to vector<8x16xf32>
    %40 = vector.shape_cast %39 : vector<8x16xf32> to vector<8x16x1xf32>
    %cst_19 = arith.constant 1.000000e-24 : f32
    %41 = vector.broadcast %cst_19 : f32 to vector<8x16x1xf32>
    %42 = arith.maximumf %40, %41 : vector<8x16x1xf32>
    %43 = math.rsqrt %42 : vector<8x16x1xf32>
    %44 = vector.broadcast %43 : vector<8x16x1xf32> to vector<8x16x8xf32>
    %45 = arith.mulf %37, %44 : vector<8x16x8xf32>
    %cst_20 = arith.constant 1.600000e+01 : f32
    %46 = vector.broadcast %cst_20 : f32 to vector<8x16x8xf32>
    %47 = arith.mulf %45, %46 : vector<8x16x8xf32>
    %cst_21 = arith.constant dense<0xFF800000> : vector<8x8xf32>
    %48 = vector.multi_reduction <maximumf>, %47, %cst_21 [1] : vector<8x16x8xf32> to vector<8x8xf32>
    %49 = vector.shape_cast %48 : vector<8x8xf32> to vector<8x1x8xf32>
    %50 = vector.broadcast %49 : vector<8x1x8xf32> to vector<8x16x8xf32>
    %51 = arith.subf %47, %50 : vector<8x16x8xf32>
    %52 = math.exp %51 : vector<8x16x8xf32>
    %cst_22 = arith.constant dense<0.000000e+00> : vector<8x8xf32>
    %53 = vector.multi_reduction <add>, %52, %cst_22 [1] : vector<8x16x8xf32> to vector<8x8xf32>
    %54 = vector.shape_cast %53 : vector<8x8xf32> to vector<8x1x8xf32>
    %55 = tpu.reciprocal %54 {approx = true} : vector<8x1x8xf32> -> vector<8x1x8xf32>
    %56 = vector.broadcast %55 : vector<8x1x8xf32> to vector<8x16x8xf32>
    %57 = arith.mulf %52, %56 : vector<8x16x8xf32>
    %58 = arith.truncf %57 : vector<8x16x8xf32> to vector<8x16x8xbf16>
    "tpu.trace_start"() <{level = 10 : i32, message = "bri,brf->bif"}> : () -> ()
    %cst_23 = arith.constant dense<0.000000e+00> : vector<8x8x64xf32>
    %59 = tpu.matmul %58, %34, %cst_23 {dimension_numbers = #tpu.dot_dimension_numbers<[1], [1], [2], [2], [0, 0, 0, 2, 1, 2], [0], [0]>} : vector<8x16x8xbf16>, vector<8x16x64xbf16>, vector<8x8x64xf32> -> vector<8x8x64xf32>
    "tpu.trace_stop"() : () -> ()
    %60 = arith.mulf %59, %59 : vector<8x8x64xf32>
    %cst_24 = arith.constant dense<0.000000e+00> : vector<8x64xf32>
    %61 = vector.multi_reduction <add>, %60, %cst_24 [1] : vector<8x8x64xf32> to vector<8x64xf32>
    %62 = vector.shape_cast %61 : vector<8x64xf32> to vector<8x1x64xf32>
    %cst_25 = arith.constant 1.000000e-24 : f32
    %63 = vector.broadcast %cst_25 : f32 to vector<8x1x64xf32>
    %64 = arith.maximumf %62, %63 : vector<8x1x64xf32>
    %65 = math.rsqrt %64 : vector<8x1x64xf32>
    %66 = vector.broadcast %65 : vector<8x1x64xf32> to vector<8x8x64xf32>
    %67 = arith.mulf %59, %66 : vector<8x8x64xf32>
    %c0_26 = arith.constant 0 : index
    %c0_27 = arith.constant 0 : index
    %68 = vector.load %arg8[%c0_26, %c0_27] : memref<8x64xbf16, #tpu.memory_space<vmem>>, vector<8x64xbf16>
    %69 = arith.extf %68 : vector<8x64xbf16> to vector<8x64xf32>
    %70 = vector.shape_cast %69 : vector<8x64xf32> to vector<1x8x64xf32>
    %71 = vector.broadcast %70 : vector<1x8x64xf32> to vector<8x8x64xf32>
    %72 = arith.mulf %71, %67 : vector<8x8x64xf32>
    %cst_28 = arith.constant dense<0.000000e+00> : vector<8x8xf32>
    %73 = vector.multi_reduction <add>, %72, %cst_28 [2] : vector<8x8x64xf32> to vector<8x8xf32>
    %74 = arith.mulf %73, %73 : vector<8x8xf32>
    %cst_29 = arith.constant dense<0.000000e+00> : vector<8xf32>
    %75 = vector.multi_reduction <add>, %74, %cst_29 [1] : vector<8x8xf32> to vector<8xf32>
    %76 = vector.shape_cast %75 : vector<8xf32> to vector<8x1xf32>
    %cst_30 = arith.constant 9.99999996E-13 : f32
    %77 = vector.broadcast %cst_30 : f32 to vector<8x1xf32>
    %78 = arith.addf %76, %77 : vector<8x1xf32>
    %79 = math.rsqrt %78 : vector<8x1xf32>
    %80 = vector.broadcast %79 : vector<8x1xf32> to vector<8x8xf32>
    %81 = arith.mulf %73, %80 : vector<8x8xf32>
    %c0_31 = arith.constant 0 : index
    %c0_32 = arith.constant 0 : index
    %82 = vector.load %arg9[%c0_31, %c0_32] : memref<8x8xf32, #tpu.memory_space<vmem>>, vector<8x8xf32>
    tpu.vector_store %arg9[%c0_31, %c0_32], %81 {strides = array<i32>} : memref<8x8xf32, #tpu.memory_space<vmem>>, vector<8x8xf32>,
    return
  }
  func.func @transform_0(%arg0: i32) -> (i32, i32, i32) {
    %c0_i32 = arith.constant 0 : i32
    %c0_i32_0 = arith.constant 0 : i32
    %c0_i32_1 = arith.constant 0 : i32
    return %arg0, %c0_i32, %c0_i32_0 : i32, i32, i32
  }
  func.func @transform_1(%arg0: i32) -> (i32, i32) {
    %c0_i32 = arith.constant 0 : i32
    %c0_i32_0 = arith.constant 0 : i32
    %c0_i32_1 = arith.constant 0 : i32
    return %c0_i32, %c0_i32_0 : i32, i32
  }
  func.func @transform_2(%arg0: i32) -> (i32, i32) {
    %c0_i32 = arith.constant 0 : i32
    %c0_i32_0 = arith.constant 0 : i32
    %c0_i32_1 = arith.constant 0 : i32
    return %c0_i32, %c0_i32_0 : i32, i32
  }
  func.func @transform_3(%arg0: i32) -> (i32, i32) {
    %c0_i32 = arith.constant 0 : i32
    %c0_i32_0 = arith.constant 0 : i32
    %c0_i32_1 = arith.constant 0 : i32
    return %c0_i32, %c0_i32_0 : i32, i32
  }
  func.func @transform_4(%arg0: i32) -> (i32, i32) {
    %c0_i32 = arith.constant 0 : i32
    %c0_i32_0 = arith.constant 0 : i32
    %c0_i32_1 = arith.constant 0 : i32
    return %c0_i32, %c0_i32_0 : i32, i32
  }
  func.func @transform_5(%arg0: i32) -> (i32, i32) {
    %c0_i32 = arith.constant 0 : i32
    %c0_i32_0 = arith.constant 0 : i32
    %c0_i32_1 = arith.constant 0 : i32
    return %c0_i32, %c0_i32_0 : i32, i32
  }
  func.func @transform_6(%arg0: i32) -> (i32, i32) {
    %c0_i32 = arith.constant 0 : i32
    %c0_i32_0 = arith.constant 0 : i32
    %c0_i32_1 = arith.constant 0 : i32
    return %c0_i32, %c0_i32_0 : i32, i32
  }
  func.func @transform_7(%arg0: i32) -> (i32, i32) {
    %c0_i32 = arith.constant 0 : i32
    %c0_i32_0 = arith.constant 0 : i32
    %c0_i32_1 = arith.constant 0 : i32
    return %c0_i32, %c0_i32_0 : i32, i32
  }
  func.func @transform_8(%arg0: i32) -> (i32, i32) {
    %c0_i32 = arith.constant 0 : i32
    %c0_i32_0 = arith.constant 0 : i32
    return %arg0, %c0_i32 : i32, i32
  }
}

module attributes {stable_mosaic.version = 11 : i64} {
  func.func @cmn_head_kernel(%arg0: i32, %arg1: memref<8x16x64xbf16, #tpu.memory_space<vmem>>, %arg2: memref<1x64xf32, #tpu.memory_space<vmem>>, %arg3: memref<1x64xf32, #tpu.memory_space<vmem>>, %arg4: memref<64x64xbf16, #tpu.memory_space<vmem>>, %arg5: memref<1x64xf32, #tpu.memory_space<vmem>>, %arg6: memref<64x8xbf16, #tpu.memory_space<vmem>>, %arg7: memref<8x64xbf16, #tpu.memory_space<vmem>>, %arg8: memref<8x64xbf16, #tpu.memory_space<vmem>>, %arg9: memref<8x8xf32, #tpu.memory_space<vmem>>) attributes {dimension_semantics = [#tpu.dimension_semantics<parallel>], iteration_bounds = array<i64: 2>, scalar_prefetch = 0 : i64, scratch_operands = 0 : i64, tpu.core_type = #tpu.core_type<tc>, window_params = [{transform_indices = @transform_0, window_bounds = array<i64: 8, 16, 64>}, {pipeline_mode = #tpu.pipeline_mode<synchronous>, transform_indices = @transform_1, window_bounds = array<i64: 1, 64>}, {pipeline_mode = #tpu.pipeline_mode<synchronous>, transform_indices = @transform_2, window_bounds = array<i64: 1, 64>}, {pipeline_mode = #tpu.pipeline_mode<synchronous>, transform_indices = @transform_3, window_bounds = array<i64: 64, 64>}, {pipeline_mode = #tpu.pipeline_mode<synchronous>, transform_indices = @transform_4, window_bounds = array<i64: 1, 64>}, {pipeline_mode = #tpu.pipeline_mode<synchronous>, transform_indices = @transform_5, window_bounds = array<i64: 64, 8>}, {pipeline_mode = #tpu.pipeline_mode<synchronous>, transform_indices = @transform_6, window_bounds = array<i64: 8, 64>}, {pipeline_mode = #tpu.pipeline_mode<synchronous>, transform_indices = @transform_7, window_bounds = array<i64: 8, 64>}, {transform_indices = @transform_8, window_bounds = array<i64: 8, 8>}]} {
    %c0 = arith.constant 0 : index
    %c0_0 = arith.constant 0 : index
    %c0_1 = arith.constant 0 : index
    %0 = vector.load %arg1[%c0, %c0_0, %c0_1] : memref<8x16x64xbf16, #tpu.memory_space<vmem>>, vector<8x16x64xbf16>
    %1 = arith.extf %0 : vector<8x16x64xbf16> to vector<8x16x64xf32>
    %cst = arith.constant dense<0.000000e+00> : vector<8x16xf32>
    %2 = vector.multi_reduction <add>, %1, %cst [2] : vector<8x16x64xf32> to vector<8x16xf32>
    %3 = vector.shape_cast %2 : vector<8x16xf32> to vector<8x16x1xf32>
    %cst_2 = arith.constant 6.400000e+01 : f32
    %4 = vector.broadcast %cst_2 : f32 to vector<8x16x1xf32>
    %5 = arith.divf %3, %4 : vector<8x16x1xf32>
    %6 = vector.broadcast %5 : vector<8x16x1xf32> to vector<8x16x64xf32>
    %7 = arith.subf %1, %6 : vector<8x16x64xf32>
    %8 = arith.mulf %7, %7 : vector<8x16x64xf32>
    %cst_3 = arith.constant dense<0.000000e+00> : vector<8x16xf32>
    %9 = vector.multi_reduction <add>, %8, %cst_3 [2] : vector<8x16x64xf32> to vector<8x16xf32>
    %10 = vector.shape_cast %9 : vector<8x16xf32> to vector<8x16x1xf32>
    %cst_4 = arith.constant 6.400000e+01 : f32
    %11 = vector.broadcast %cst_4 : f32 to vector<8x16x1xf32>
    %12 = arith.divf %10, %11 : vector<8x16x1xf32>
    %cst_5 = arith.constant 9.99999974E-6 : f32
    %13 = vector.broadcast %cst_5 : f32 to vector<8x16x1xf32>
    %14 = arith.addf %12, %13 : vector<8x16x1xf32>
    %15 = math.rsqrt %14 : vector<8x16x1xf32>
    %16 = vector.broadcast %15 : vector<8x16x1xf32> to vector<8x16x64xf32>
    %17 = arith.mulf %7, %16 : vector<8x16x64xf32>
    %c0_6 = arith.constant 0 : index
    %c0_7 = arith.constant 0 : index
    %18 = vector.load %arg2[%c0_6, %c0_7] : memref<1x64xf32, #tpu.memory_space<vmem>>, vector<1x64xf32>
    %19 = vector.shape_cast %18 : vector<1x64xf32> to vector<1x1x64xf32>
    %20 = vector.broadcast %19 : vector<1x1x64xf32> to vector<8x16x64xf32>
    %21 = arith.mulf %17, %20 : vector<8x16x64xf32>
    %c0_8 = arith.constant 0 : index
    %c0_9 = arith.constant 0 : index
    %22 = vector.load %arg3[%c0_8, %c0_9] : memref<1x64xf32, #tpu.memory_space<vmem>>, vector<1x64xf32>
    %23 = vector.shape_cast %22 : vector<1x64xf32> to vector<1x1x64xf32>
    %24 = vector.broadcast %23 : vector<1x1x64xf32> to vector<8x16x64xf32>
    %25 = arith.addf %21, %24 : vector<8x16x64xf32>
    %26 = vector.shape_cast %25 : vector<8x16x64xf32> to vector<128x64xf32>
    %27 = arith.truncf %26 : vector<128x64xf32> to vector<128x64xbf16>
    %c0_10 = arith.constant 0 : index
    %c0_11 = arith.constant 0 : index
    %28 = vector.load %arg4[%c0_10, %c0_11] : memref<64x64xbf16, #tpu.memory_space<vmem>>, vector<64x64xbf16>
    %cst_12 = arith.constant dense<0.000000e+00> : vector<128x64xf32>
    %29 = tpu.matmul %27, %28, %cst_12 {dimension_numbers = #tpu.dot_dimension_numbers<[1], [0], [0], [1], [0, 0, 1, 1], [], []>} : vector<128x64xbf16>, vector<64x64xbf16>, vector<128x64xf32> -> vector<128x64xf32>
    %c0_13 = arith.constant 0 : index
    %c0_14 = arith.constant 0 : index
    %30 = vector.load %arg5[%c0_13, %c0_14] : memref<1x64xf32, #tpu.memory_space<vmem>>, vector<1x64xf32>
    %31 = vector.broadcast %30 : vector<1x64xf32> to vector<128x64xf32>
    %32 = arith.addf %29, %31 : vector<128x64xf32>
    %33 = arith.truncf %32 : vector<128x64xf32> to vector<128x64xbf16>
    %34 = vector.shape_cast %33 : vector<128x64xbf16> to vector<8x16x64xbf16>
    %c0_15 = arith.constant 0 : index
    %c0_16 = arith.constant 0 : index
    %35 = vector.load %arg6[%c0_15, %c0_16] : memref<64x8xbf16, #tpu.memory_space<vmem>>, vector<64x8xbf16>
    %cst_17 = arith.constant dense<0.000000e+00> : vector<128x8xf32>
    %36 = tpu.matmul %33, %35, %cst_17 {dimension_numbers = #tpu.dot_dimension_numbers<[1], [0], [0], [1], [0, 0, 1, 1], [], []>} : vector<128x64xbf16>, vector<64x8xbf16>, vector<128x8xf32> -> vector<128x8xf32>
    %37 = vector.shape_cast %36 : vector<128x8xf32> to vector<8x16x8xf32>
    %38 = arith.mulf %37, %37 : vector<8x16x8xf32>
    %cst_18 = arith.constant dense<0.000000e+00> : vector<8x16xf32>
    %39 = vector.multi_reduction <add>, %38, %cst_18 [2] : vector<8x16x8xf32> to vector<8x16xf32>
    %40 = vector.shape_cast %39 : vector<8x16xf32> to vector<8x16x1xf32>
    %cst_19 = arith.constant 1.000000e-24 : f32
    %41 = vector.broadcast %cst_19 : f32 to vector<8x16x1xf32>
    %42 = arith.maximumf %40, %41 : vector<8x16x1xf32>
    %43 = math.rsqrt %42 : vector<8x16x1xf32>
    %44 = vector.broadcast %43 : vector<8x16x1xf32> to vector<8x16x8xf32>
    %45 = arith.mulf %37, %44 : vector<8x16x8xf32>
    %cst_20 = arith.constant 1.600000e+01 : f32
    %46 = vector.broadcast %cst_20 : f32 to vector<8x16x8xf32>
    %47 = arith.mulf %45, %46 : vector<8x16x8xf32>
    %cst_21 = arith.constant dense<0xFF800000> : vector<8x8xf32>
    %48 = vector.multi_reduction <maximumf>, %47, %cst_21 [1] : vector<8x16x8xf32> to vector<8x8xf32>
    %49 = vector.shape_cast %48 : vector<8x8xf32> to vector<8x1x8xf32>
    %50 = vector.broadcast %49 : vector<8x1x8xf32> to vector<8x16x8xf32>
    %51 = arith.subf %47, %50 : vector<8x16x8xf32>
    %52 = math.exp %51 : vector<8x16x8xf32>
    %cst_22 = arith.constant dense<0.000000e+00> : vector<8x8xf32>
    %53 = vector.multi_reduction <add>, %52, %cst_22 [1] : vector<8x16x8xf32> to vector<8x8xf32>
    %54 = vector.shape_cast %53 : vector<8x8xf32> to vector<8x1x8xf32>
    %55 = tpu.reciprocal %54 {approx = true} : vector<8x1x8xf32> -> vector<8x1x8xf32>
    %56 = vector.broadcast %55 : vector<8x1x8xf32> to vector<8x16x8xf32>
    %57 = arith.mulf %52, %56 : vector<8x16x8xf32>
    %58 = arith.truncf %57 : vector<8x16x8xf32> to vector<8x16x8xbf16>
    "tpu.trace_start"() <{level = 10 : i32, message = "bri,brf->bif"}> : () -> ()
    %cst_23 = arith.constant dense<0.000000e+00> : vector<8x8x64xf32>
    %59 = tpu.matmul %58, %34, %cst_23 {dimension_numbers = #tpu.dot_dimension_numbers<[1], [1], [2], [2], [0, 0, 0, 2, 1, 2], [0], [0]>} : vector<8x16x8xbf16>, vector<8x16x64xbf16>, vector<8x8x64xf32> -> vector<8x8x64xf32>
    "tpu.trace_stop"() : () -> ()
    %60 = arith.mulf %59, %59 : vector<8x8x64xf32>
    %cst_24 = arith.constant dense<0.000000e+00> : vector<8x64xf32>
    %61 = vector.multi_reduction <add>, %60, %cst_24 [1] : vector<8x8x64xf32> to vector<8x64xf32>
    %62 = vector.shape_cast %61 : vector<8x64xf32> to vector<8x1x64xf32>
    %cst_25 = arith.constant 1.000000e-24 : f32
    %63 = vector.broadcast %cst_25 : f32 to vector<8x1x64xf32>
    %64 = arith.maximumf %62, %63 : vector<8x1x64xf32>
    %65 = math.rsqrt %64 : vector<8x1x64xf32>
    %66 = vector.broadcast %65 : vector<8x1x64xf32> to vector<8x8x64xf32>
    %67 = arith.mulf %59, %66 : vector<8x8x64xf32>
    %c0_26 = arith.constant 0 : index
    %c0_27 = arith.constant 0 : index
    %68 = vector.load %arg8[%c0_26, %c0_27] : memref<8x64xbf16, #tpu.memory_space<vmem>>, vector<8x64xbf16>
    %69 = arith.extf %68 : vector<8x64xbf16> to vector<8x64xf32>
    %70 = vector.shape_cast %69 : vector<8x64xf32> to vector<1x8x64xf32>
    %71 = vector.broadcast %70 : vector<1x8x64xf32> to vector<8x8x64xf32>
    %72 = arith.mulf %71, %67 : vector<8x8x64xf32>
    %cst_28 = arith.constant dense<0.000000e+00> : vector<8x8xf32>
    %73 = vector.multi_reduction <add>, %72, %cst_28 [2] : vector<8x8x64xf32> to vector<8x8xf32>
    %74 = arith.mulf %73, %73 : vector<8x8xf32>
    %cst_29 = arith.constant dense<0.000000e+00> : vector<8xf32>
    %75 = vector.multi_reduction <add>, %74, %cst_29 [1] : vector<8x8xf32> to vector<8xf32>
    %76 = vector.shape_cast %75 : vector<8xf32> to vector<8x1xf32>
    %cst_30 = arith.constant 9.99999996E-13 : f32
    %77 = vector.broadcast %cst_30 : f32 to vector<8x1xf32>
    %78 = arith.addf %76, %77 : vector<8x1xf32>
    %79 = math.rsqrt %78 : vector<8x1xf32>
    %80 = vector.broadcast %79 : vector<8x1xf32> to vector<8x8xf32>
    %81 = arith.mulf %73, %80 : vector<8x8xf32>
    %c0_31 = arith.constant 0 : index
    %c0_32 = arith.constant 0 : index
    %82 = vector.load %arg9[%c0_31, %c0_32] : memref<8x8xf32, #tpu.memory_space<vmem>>, vector<8x8xf32>
    tpu.vector_store %arg9[%c0_31, %c0_32], %81 {strides = array<i32>} : memref<8x8xf32, #tpu.memory_space<vmem>>, vector<8x8xf32>,
    return
  }
  func.func @transform_0(%arg0: i32) -> (i32, i32, i32) {
    %c0_i32 = arith.constant 0 : i32
    %c0_i32_0 = arith.constant 0 : i32
    %c0_i32_1 = arith.constant 0 : i32
    return %arg0, %c0_i32, %c0_i32_0 : i32, i32, i32
  }
  func.func @transform_1(%arg0: i32) -> (i32, i32) {
    %c0_i32 = arith.constant 0 : i32
    %c0_i32_0 = arith.constant 0 : i32
    %c0_i32_1 = arith.constant 0 : i32
    return %c0_i32, %c0_i32_0 : i32, i32
  }
  func.func @transform_2(%arg0: i32) -> (i32, i32) {
    %c0_i32 = arith.constant 0 : i32
    %c0_i32_0 = arith.constant 0 : i32
    %c0_i32_1 = arith.constant 0 : i32
    return %c0_i32, %c0_i32_0 : i32, i32
  }
  func.func @transform_3(%arg0: i32) -> (i32, i32) {
    %c0_i32 = arith.constant 0 : i32
    %c0_i32_0 = arith.constant 0 : i32
    %c0_i32_1 = arith.constant 0 : i32
    return %c0_i32, %c0_i32_0 : i32, i32
  }
  func.func @transform_4(%arg0: i32) -> (i32, i32) {
    %c0_i32 = arith.constant 0 : i32
    %c0_i32_0 = arith.constant 0 : i32
    %c0_i32_1 = arith.constant 0 : i32
    return %c0_i32, %c0_i32_0 : i32, i32
  }
  func.func @transform_5(%arg0: i32) -> (i32, i32) {
    %c0_i32 = arith.constant 0 : i32
    %c0_i32_0 = arith.constant 0 : i32
    %c0_i32_1 = arith.constant 0 : i32
    return %c0_i32, %c0_i32_0 : i32, i32
  }
  func.func @transform_6(%arg0: i32) -> (i32, i32) {
    %c0_i32 = arith.constant 0 : i32
    %c0_i32_0 = arith.constant 0 : i32
    %c0_i32_1 = arith.constant 0 : i32
    return %c0_i32, %c0_i32_0 : i32, i32
  }
  func.func @transform_7(%arg0: i32) -> (i32, i32) {
    %c0_i32 = arith.constant 0 : i32
    %c0_i32_0 = arith.constant 0 : i32
    %c0_i32_1 = arith.constant 0 : i32
    return %c0_i32, %c0_i32_0 : i32, i32
  }
  func.func @transform_8(%arg0: i32) -> (i32, i32) {
    %c0_i32 = arith.constant 0 : i32
    %c0_i32_0 = arith.constant 0 : i32
    return %arg0, %c0_i32 : i32, i32
  }
}

module attributes {stable_mosaic.version = 11 : i64} {
  func.func @cmn_head_kernel(%arg0: i32, %arg1: memref<8x16x64xbf16, #tpu.memory_space<vmem>>, %arg2: memref<1x64xf32, #tpu.memory_space<vmem>>, %arg3: memref<1x64xf32, #tpu.memory_space<vmem>>, %arg4: memref<64x64xbf16, #tpu.memory_space<vmem>>, %arg5: memref<1x64xf32, #tpu.memory_space<vmem>>, %arg6: memref<64x8xbf16, #tpu.memory_space<vmem>>, %arg7: memref<8x64xbf16, #tpu.memory_space<vmem>>, %arg8: memref<8x64xbf16, #tpu.memory_space<vmem>>, %arg9: memref<8x8xf32, #tpu.memory_space<vmem>>) attributes {dimension_semantics = [#tpu.dimension_semantics<parallel>], iteration_bounds = array<i64: 2>, scalar_prefetch = 0 : i64, scratch_operands = 0 : i64, tpu.core_type = #tpu.core_type<tc>, window_params = [{transform_indices = @transform_0, window_bounds = array<i64: 8, 16, 64>}, {pipeline_mode = #tpu.pipeline_mode<synchronous>, transform_indices = @transform_1, window_bounds = array<i64: 1, 64>}, {pipeline_mode = #tpu.pipeline_mode<synchronous>, transform_indices = @transform_2, window_bounds = array<i64: 1, 64>}, {pipeline_mode = #tpu.pipeline_mode<synchronous>, transform_indices = @transform_3, window_bounds = array<i64: 64, 64>}, {pipeline_mode = #tpu.pipeline_mode<synchronous>, transform_indices = @transform_4, window_bounds = array<i64: 1, 64>}, {pipeline_mode = #tpu.pipeline_mode<synchronous>, transform_indices = @transform_5, window_bounds = array<i64: 64, 8>}, {pipeline_mode = #tpu.pipeline_mode<synchronous>, transform_indices = @transform_6, window_bounds = array<i64: 8, 64>}, {pipeline_mode = #tpu.pipeline_mode<synchronous>, transform_indices = @transform_7, window_bounds = array<i64: 8, 64>}, {transform_indices = @transform_8, window_bounds = array<i64: 8, 8>}]} {
    %c0 = arith.constant 0 : index
    %c0_0 = arith.constant 0 : index
    %c0_1 = arith.constant 0 : index
    %0 = vector.load %arg1[%c0, %c0_0, %c0_1] : memref<8x16x64xbf16, #tpu.memory_space<vmem>>, vector<8x16x64xbf16>
    %1 = arith.extf %0 : vector<8x16x64xbf16> to vector<8x16x64xf32>
    %cst = arith.constant dense<0.000000e+00> : vector<8x16xf32>
    %2 = vector.multi_reduction <add>, %1, %cst [2] : vector<8x16x64xf32> to vector<8x16xf32>
    %3 = vector.shape_cast %2 : vector<8x16xf32> to vector<8x16x1xf32>
    %cst_2 = arith.constant 6.400000e+01 : f32
    %4 = vector.broadcast %cst_2 : f32 to vector<8x16x1xf32>
    %5 = arith.divf %3, %4 : vector<8x16x1xf32>
    %6 = vector.broadcast %5 : vector<8x16x1xf32> to vector<8x16x64xf32>
    %7 = arith.subf %1, %6 : vector<8x16x64xf32>
    %8 = arith.mulf %7, %7 : vector<8x16x64xf32>
    %cst_3 = arith.constant dense<0.000000e+00> : vector<8x16xf32>
    %9 = vector.multi_reduction <add>, %8, %cst_3 [2] : vector<8x16x64xf32> to vector<8x16xf32>
    %10 = vector.shape_cast %9 : vector<8x16xf32> to vector<8x16x1xf32>
    %cst_4 = arith.constant 6.400000e+01 : f32
    %11 = vector.broadcast %cst_4 : f32 to vector<8x16x1xf32>
    %12 = arith.divf %10, %11 : vector<8x16x1xf32>
    %cst_5 = arith.constant 9.99999974E-6 : f32
    %13 = vector.broadcast %cst_5 : f32 to vector<8x16x1xf32>
    %14 = arith.addf %12, %13 : vector<8x16x1xf32>
    %15 = math.rsqrt %14 : vector<8x16x1xf32>
    %16 = vector.broadcast %15 : vector<8x16x1xf32> to vector<8x16x64xf32>
    %17 = arith.mulf %7, %16 : vector<8x16x64xf32>
    %c0_6 = arith.constant 0 : index
    %c0_7 = arith.constant 0 : index
    %18 = vector.load %arg2[%c0_6, %c0_7] : memref<1x64xf32, #tpu.memory_space<vmem>>, vector<1x64xf32>
    %19 = vector.shape_cast %18 : vector<1x64xf32> to vector<1x1x64xf32>
    %20 = vector.broadcast %19 : vector<1x1x64xf32> to vector<8x16x64xf32>
    %21 = arith.mulf %17, %20 : vector<8x16x64xf32>
    %c0_8 = arith.constant 0 : index
    %c0_9 = arith.constant 0 : index
    %22 = vector.load %arg3[%c0_8, %c0_9] : memref<1x64xf32, #tpu.memory_space<vmem>>, vector<1x64xf32>
    %23 = vector.shape_cast %22 : vector<1x64xf32> to vector<1x1x64xf32>
    %24 = vector.broadcast %23 : vector<1x1x64xf32> to vector<8x16x64xf32>
    %25 = arith.addf %21, %24 : vector<8x16x64xf32>
    %26 = vector.shape_cast %25 : vector<8x16x64xf32> to vector<128x64xf32>
    %27 = arith.truncf %26 : vector<128x64xf32> to vector<128x64xbf16>
    %c0_10 = arith.constant 0 : index
    %c0_11 = arith.constant 0 : index
    %28 = vector.load %arg4[%c0_10, %c0_11] : memref<64x64xbf16, #tpu.memory_space<vmem>>, vector<64x64xbf16>
    %cst_12 = arith.constant dense<0.000000e+00> : vector<128x64xf32>
    %29 = tpu.matmul %27, %28, %cst_12 {dimension_numbers = #tpu.dot_dimension_numbers<[1], [0], [0], [1], [0, 0, 1, 1], [], []>} : vector<128x64xbf16>, vector<64x64xbf16>, vector<128x64xf32> -> vector<128x64xf32>
    %c0_13 = arith.constant 0 : index
    %c0_14 = arith.constant 0 : index
    %30 = vector.load %arg5[%c0_13, %c0_14] : memref<1x64xf32, #tpu.memory_space<vmem>>, vector<1x64xf32>
    %31 = vector.broadcast %30 : vector<1x64xf32> to vector<128x64xf32>
    %32 = arith.addf %29, %31 : vector<128x64xf32>
    %33 = arith.truncf %32 : vector<128x64xf32> to vector<128x64xbf16>
    %34 = vector.shape_cast %33 : vector<128x64xbf16> to vector<8x16x64xbf16>
    %c0_15 = arith.constant 0 : index
    %c0_16 = arith.constant 0 : index
    %35 = vector.load %arg7[%c0_15, %c0_16] : memref<8x64xbf16, #tpu.memory_space<vmem>>, vector<8x64xbf16>
    %36 = vector.shape_cast %35 : vector<8x64xbf16> to vector<1x8x64xbf16>
    %37 = vector.broadcast %36 : vector<1x8x64xbf16> to vector<8x8x64xbf16>
    "tpu.trace_start"() <{level = 10 : i32, message = "bif,brf->bir"}> : () -> ()
    %cst_17 = arith.constant dense<0.000000e+00> : vector<8x8x16xf32>
    %38 = tpu.matmul %37, %34, %cst_17 {dimension_numbers = #tpu.dot_dimension_numbers<[2], [2], [1], [1], [0, 0, 0, 1, 1, 1], [0], [0]>} : vector<8x8x64xbf16>, vector<8x16x64xbf16>, vector<8x8x16xf32> -> vector<8x8x16xf32>
    "tpu.trace_stop"() : () -> ()
    %39 = arith.mulf %38, %38 : vector<8x8x16xf32>
    %cst_18 = arith.constant dense<0.000000e+00> : vector<8x16xf32>
    %40 = vector.multi_reduction <add>, %39, %cst_18 [1] : vector<8x8x16xf32> to vector<8x16xf32>
    %41 = vector.shape_cast %40 : vector<8x16xf32> to vector<8x1x16xf32>
    %cst_19 = arith.constant 1.000000e-24 : f32
    %42 = vector.broadcast %cst_19 : f32 to vector<8x1x16xf32>
    %43 = arith.maximumf %41, %42 : vector<8x1x16xf32>
    %44 = math.rsqrt %43 : vector<8x1x16xf32>
    %45 = vector.broadcast %44 : vector<8x1x16xf32> to vector<8x8x16xf32>
    %46 = arith.mulf %38, %45 : vector<8x8x16xf32>
    %cst_20 = arith.constant 1.600000e+01 : f32
    %47 = vector.broadcast %cst_20 : f32 to vector<8x8x16xf32>
    %48 = arith.mulf %46, %47 : vector<8x8x16xf32>
    %cst_21 = arith.constant dense<0xFF800000> : vector<8x8xf32>
    %49 = vector.multi_reduction <maximumf>, %48, %cst_21 [2] : vector<8x8x16xf32> to vector<8x8xf32>
    %50 = vector.shape_cast %49 : vector<8x8xf32> to vector<8x8x1xf32>
    %51 = vector.broadcast %50 : vector<8x8x1xf32> to vector<8x8x16xf32>
    %52 = arith.subf %48, %51 : vector<8x8x16xf32>
    %53 = math.exp %52 : vector<8x8x16xf32>
    %cst_22 = arith.constant dense<0.000000e+00> : vector<8x8xf32>
    %54 = vector.multi_reduction <add>, %53, %cst_22 [2] : vector<8x8x16xf32> to vector<8x8xf32>
    %55 = vector.shape_cast %54 : vector<8x8xf32> to vector<8x8x1xf32>
    %56 = tpu.reciprocal %55 {approx = true} : vector<8x8x1xf32> -> vector<8x8x1xf32>
    %57 = vector.broadcast %56 : vector<8x8x1xf32> to vector<8x8x16xf32>
    %58 = arith.mulf %53, %57 : vector<8x8x16xf32>
    %59 = arith.truncf %58 : vector<8x8x16xf32> to vector<8x8x16xbf16>
    "tpu.trace_start"() <{level = 10 : i32, message = "bir,brf->bif"}> : () -> ()
    %cst_23 = arith.constant dense<0.000000e+00> : vector<8x8x64xf32>
    %60 = tpu.matmul %59, %34, %cst_23 {dimension_numbers = #tpu.dot_dimension_numbers<[2], [1], [1], [2], [0, 0, 0, 1, 1, 2], [0], [0]>} : vector<8x8x16xbf16>, vector<8x16x64xbf16>, vector<8x8x64xf32> -> vector<8x8x64xf32>
    "tpu.trace_stop"() : () -> ()
    %61 = arith.mulf %60, %60 : vector<8x8x64xf32>
    %cst_24 = arith.constant dense<0.000000e+00> : vector<8x64xf32>
    %62 = vector.multi_reduction <add>, %61, %cst_24 [1] : vector<8x8x64xf32> to vector<8x64xf32>
    %63 = vector.shape_cast %62 : vector<8x64xf32> to vector<8x1x64xf32>
    %cst_25 = arith.constant 1.000000e-24 : f32
    %64 = vector.broadcast %cst_25 : f32 to vector<8x1x64xf32>
    %65 = arith.maximumf %63, %64 : vector<8x1x64xf32>
    %66 = math.rsqrt %65 : vector<8x1x64xf32>
    %67 = vector.broadcast %66 : vector<8x1x64xf32> to vector<8x8x64xf32>
    %68 = arith.mulf %60, %67 : vector<8x8x64xf32>
    %c0_26 = arith.constant 0 : index
    %c0_27 = arith.constant 0 : index
    %69 = vector.load %arg8[%c0_26, %c0_27] : memref<8x64xbf16, #tpu.memory_space<vmem>>, vector<8x64xbf16>
    %70 = arith.extf %69 : vector<8x64xbf16> to vector<8x64xf32>
    %71 = vector.shape_cast %70 : vector<8x64xf32> to vector<1x8x64xf32>
    %72 = vector.broadcast %71 : vector<1x8x64xf32> to vector<8x8x64xf32>
    %73 = arith.mulf %72, %68 : vector<8x8x64xf32>
    %cst_28 = arith.constant dense<0.000000e+00> : vector<8x8xf32>
    %74 = vector.multi_reduction <add>, %73, %cst_28 [2] : vector<8x8x64xf32> to vector<8x8xf32>
    %75 = arith.mulf %74, %74 : vector<8x8xf32>
    %cst_29 = arith.constant dense<0.000000e+00> : vector<8xf32>
    %76 = vector.multi_reduction <add>, %75, %cst_29 [1] : vector<8x8xf32> to vector<8xf32>
    %77 = vector.shape_cast %76 : vector<8xf32> to vector<8x1xf32>
    %cst_30 = arith.constant 9.99999996E-13 : f32
    %78 = vector.broadcast %cst_30 : f32 to vector<8x1xf32>
    %79 = arith.addf %77, %78 : vector<8x1xf32>
    %80 = math.rsqrt %79 : vector<8x1xf32>
    %81 = vector.broadcast %80 : vector<8x1xf32> to vector<8x8xf32>
    %82 = arith.mulf %74, %81 : vector<8x8xf32>
    %c0_31 = arith.constant 0 : index
    %c0_32 = arith.constant 0 : index
    %83 = vector.load %arg9[%c0_31, %c0_32] : memref<8x8xf32, #tpu.memory_space<vmem>>, vector<8x8xf32>
    tpu.vector_store %arg9[%c0_31, %c0_32], %82 {strides = array<i32>} : memref<8x8xf32, #tpu.memory_space<vmem>>, vector<8x8xf32>,
    return
  }
  func.func @transform_0(%arg0: i32) -> (i32, i32, i32) {
    %c0_i32 = arith.constant 0 : i32
    %c0_i32_0 = arith.constant 0 : i32
    %c0_i32_1 = arith.constant 0 : i32
    return %arg0, %c0_i32, %c0_i32_0 : i32, i32, i32
  }
  func.func @transform_1(%arg0: i32) -> (i32, i32) {
    %c0_i32 = arith.constant 0 : i32
    %c0_i32_0 = arith.constant 0 : i32
    %c0_i32_1 = arith.constant 0 : i32
    return %c0_i32, %c0_i32_0 : i32, i32
  }
  func.func @transform_2(%arg0: i32) -> (i32, i32) {
    %c0_i32 = arith.constant 0 : i32
    %c0_i32_0 = arith.constant 0 : i32
    %c0_i32_1 = arith.constant 0 : i32
    return %c0_i32, %c0_i32_0 : i32, i32
  }
  func.func @transform_3(%arg0: i32) -> (i32, i32) {
    %c0_i32 = arith.constant 0 : i32
    %c0_i32_0 = arith.constant 0 : i32
    %c0_i32_1 = arith.constant 0 : i32
    return %c0_i32, %c0_i32_0 : i32, i32
  }
  func.func @transform_4(%arg0: i32) -> (i32, i32) {
    %c0_i32 = arith.constant 0 : i32
    %c0_i32_0 = arith.constant 0 : i32
    %c0_i32_1 = arith.constant 0 : i32
    return %c0_i32, %c0_i32_0 : i32, i32
  }
  func.func @transform_5(%arg0: i32) -> (i32, i32) {
    %c0_i32 = arith.constant 0 : i32
    %c0_i32_0 = arith.constant 0 : i32
    %c0_i32_1 = arith.constant 0 : i32
    return %c0_i32, %c0_i32_0 : i32, i32
  }
  func.func @transform_6(%arg0: i32) -> (i32, i32) {
    %c0_i32 = arith.constant 0 : i32
    %c0_i32_0 = arith.constant 0 : i32
    %c0_i32_1 = arith.constant 0 : i32
    return %c0_i32, %c0_i32_0 : i32, i32
  }
  func.func @transform_7(%arg0: i32) -> (i32, i32) {
    %c0_i32 = arith.constant 0 : i32
    %c0_i32_0 = arith.constant 0 : i32
    %c0_i32_1 = arith.constant 0 : i32
    return %c0_i32, %c0_i32_0 : i32, i32
  }
  func.func @transform_8(%arg0: i32) -> (i32, i32) {
    %c0_i32 = arith.constant 0 : i32
    %c0_i32_0 = arith.constant 0 : i32
    return %arg0, %c0_i32 : i32, i32
  }
}

module attributes {stable_mosaic.version = 11 : i64} {
  func.func @cmn_head_kernel(%arg0: i32, %arg1: memref<8x16x64xbf16, #tpu.memory_space<vmem>>, %arg2: memref<1x64xf32, #tpu.memory_space<vmem>>, %arg3: memref<1x64xf32, #tpu.memory_space<vmem>>, %arg4: memref<64x64xbf16, #tpu.memory_space<vmem>>, %arg5: memref<1x64xf32, #tpu.memory_space<vmem>>, %arg6: memref<64x8xbf16, #tpu.memory_space<vmem>>, %arg7: memref<8x64xbf16, #tpu.memory_space<vmem>>, %arg8: memref<8x64xbf16, #tpu.memory_space<vmem>>, %arg9: memref<8x8xf32, #tpu.memory_space<vmem>>) attributes {dimension_semantics = [#tpu.dimension_semantics<parallel>], iteration_bounds = array<i64: 2>, scalar_prefetch = 0 : i64, scratch_operands = 0 : i64, tpu.core_type = #tpu.core_type<tc>, window_params = [{transform_indices = @transform_0, window_bounds = array<i64: 8, 16, 64>}, {pipeline_mode = #tpu.pipeline_mode<synchronous>, transform_indices = @transform_1, window_bounds = array<i64: 1, 64>}, {pipeline_mode = #tpu.pipeline_mode<synchronous>, transform_indices = @transform_2, window_bounds = array<i64: 1, 64>}, {pipeline_mode = #tpu.pipeline_mode<synchronous>, transform_indices = @transform_3, window_bounds = array<i64: 64, 64>}, {pipeline_mode = #tpu.pipeline_mode<synchronous>, transform_indices = @transform_4, window_bounds = array<i64: 1, 64>}, {pipeline_mode = #tpu.pipeline_mode<synchronous>, transform_indices = @transform_5, window_bounds = array<i64: 64, 8>}, {pipeline_mode = #tpu.pipeline_mode<synchronous>, transform_indices = @transform_6, window_bounds = array<i64: 8, 64>}, {pipeline_mode = #tpu.pipeline_mode<synchronous>, transform_indices = @transform_7, window_bounds = array<i64: 8, 64>}, {transform_indices = @transform_8, window_bounds = array<i64: 8, 8>}]} {
    %c0 = arith.constant 0 : index
    %c0_0 = arith.constant 0 : index
    %c0_1 = arith.constant 0 : index
    %0 = vector.load %arg1[%c0, %c0_0, %c0_1] : memref<8x16x64xbf16, #tpu.memory_space<vmem>>, vector<8x16x64xbf16>
    %1 = arith.extf %0 : vector<8x16x64xbf16> to vector<8x16x64xf32>
    %cst = arith.constant dense<0.000000e+00> : vector<8x16xf32>
    %2 = vector.multi_reduction <add>, %1, %cst [2] : vector<8x16x64xf32> to vector<8x16xf32>
    %3 = vector.shape_cast %2 : vector<8x16xf32> to vector<8x16x1xf32>
    %cst_2 = arith.constant 6.400000e+01 : f32
    %4 = vector.broadcast %cst_2 : f32 to vector<8x16x1xf32>
    %5 = arith.divf %3, %4 : vector<8x16x1xf32>
    %6 = vector.broadcast %5 : vector<8x16x1xf32> to vector<8x16x64xf32>
    %7 = arith.subf %1, %6 : vector<8x16x64xf32>
    %8 = arith.mulf %7, %7 : vector<8x16x64xf32>
    %cst_3 = arith.constant dense<0.000000e+00> : vector<8x16xf32>
    %9 = vector.multi_reduction <add>, %8, %cst_3 [2] : vector<8x16x64xf32> to vector<8x16xf32>
    %10 = vector.shape_cast %9 : vector<8x16xf32> to vector<8x16x1xf32>
    %cst_4 = arith.constant 6.400000e+01 : f32
    %11 = vector.broadcast %cst_4 : f32 to vector<8x16x1xf32>
    %12 = arith.divf %10, %11 : vector<8x16x1xf32>
    %cst_5 = arith.constant 9.99999974E-6 : f32
    %13 = vector.broadcast %cst_5 : f32 to vector<8x16x1xf32>
    %14 = arith.addf %12, %13 : vector<8x16x1xf32>
    %15 = math.rsqrt %14 : vector<8x16x1xf32>
    %16 = vector.broadcast %15 : vector<8x16x1xf32> to vector<8x16x64xf32>
    %17 = arith.mulf %7, %16 : vector<8x16x64xf32>
    %c0_6 = arith.constant 0 : index
    %c0_7 = arith.constant 0 : index
    %18 = vector.load %arg2[%c0_6, %c0_7] : memref<1x64xf32, #tpu.memory_space<vmem>>, vector<1x64xf32>
    %19 = vector.shape_cast %18 : vector<1x64xf32> to vector<1x1x64xf32>
    %20 = vector.broadcast %19 : vector<1x1x64xf32> to vector<8x16x64xf32>
    %21 = arith.mulf %17, %20 : vector<8x16x64xf32>
    %c0_8 = arith.constant 0 : index
    %c0_9 = arith.constant 0 : index
    %22 = vector.load %arg3[%c0_8, %c0_9] : memref<1x64xf32, #tpu.memory_space<vmem>>, vector<1x64xf32>
    %23 = vector.shape_cast %22 : vector<1x64xf32> to vector<1x1x64xf32>
    %24 = vector.broadcast %23 : vector<1x1x64xf32> to vector<8x16x64xf32>
    %25 = arith.addf %21, %24 : vector<8x16x64xf32>
    %26 = vector.shape_cast %25 : vector<8x16x64xf32> to vector<128x64xf32>
    %27 = arith.truncf %26 : vector<128x64xf32> to vector<128x64xbf16>
    %c0_10 = arith.constant 0 : index
    %c0_11 = arith.constant 0 : index
    %28 = vector.load %arg4[%c0_10, %c0_11] : memref<64x64xbf16, #tpu.memory_space<vmem>>, vector<64x64xbf16>
    %cst_12 = arith.constant dense<0.000000e+00> : vector<128x64xf32>
    %29 = tpu.matmul %27, %28, %cst_12 {dimension_numbers = #tpu.dot_dimension_numbers<[1], [0], [0], [1], [0, 0, 1, 1], [], []>} : vector<128x64xbf16>, vector<64x64xbf16>, vector<128x64xf32> -> vector<128x64xf32>
    %c0_13 = arith.constant 0 : index
    %c0_14 = arith.constant 0 : index
    %30 = vector.load %arg5[%c0_13, %c0_14] : memref<1x64xf32, #tpu.memory_space<vmem>>, vector<1x64xf32>
    %31 = vector.broadcast %30 : vector<1x64xf32> to vector<128x64xf32>
    %32 = arith.addf %29, %31 : vector<128x64xf32>
    %33 = arith.truncf %32 : vector<128x64xf32> to vector<128x64xbf16>
    %34 = vector.shape_cast %33 : vector<128x64xbf16> to vector<8x16x64xbf16>
    %c0_15 = arith.constant 0 : index
    %c0_16 = arith.constant 0 : index
    %35 = vector.load %arg7[%c0_15, %c0_16] : memref<8x64xbf16, #tpu.memory_space<vmem>>, vector<8x64xbf16>
    %36 = vector.shape_cast %35 : vector<8x64xbf16> to vector<1x8x64xbf16>
    %37 = vector.broadcast %36 : vector<1x8x64xbf16> to vector<8x8x64xbf16>
    "tpu.trace_start"() <{level = 10 : i32, message = "bif,brf->bir"}> : () -> ()
    %cst_17 = arith.constant dense<0.000000e+00> : vector<8x8x16xf32>
    %38 = tpu.matmul %37, %34, %cst_17 {dimension_numbers = #tpu.dot_dimension_numbers<[2], [2], [1], [1], [0, 0, 0, 1, 1, 1], [0], [0]>} : vector<8x8x64xbf16>, vector<8x16x64xbf16>, vector<8x8x16xf32> -> vector<8x8x16xf32>
    "tpu.trace_stop"() : () -> ()
    %39 = arith.mulf %38, %38 : vector<8x8x16xf32>
    %cst_18 = arith.constant dense<0.000000e+00> : vector<8x16xf32>
    %40 = vector.multi_reduction <add>, %39, %cst_18 [1] : vector<8x8x16xf32> to vector<8x16xf32>
    %41 = vector.shape_cast %40 : vector<8x16xf32> to vector<8x1x16xf32>
    %cst_19 = arith.constant 1.000000e-24 : f32
    %42 = vector.broadcast %cst_19 : f32 to vector<8x1x16xf32>
    %43 = arith.maximumf %41, %42 : vector<8x1x16xf32>
    %44 = math.rsqrt %43 : vector<8x1x16xf32>
    %45 = vector.broadcast %44 : vector<8x1x16xf32> to vector<8x8x16xf32>
    %46 = arith.mulf %38, %45 : vector<8x8x16xf32>
    %cst_20 = arith.constant 1.600000e+01 : f32
    %47 = vector.broadcast %cst_20 : f32 to vector<8x8x16xf32>
    %48 = arith.mulf %46, %47 : vector<8x8x16xf32>
    %cst_21 = arith.constant dense<0xFF800000> : vector<8x8xf32>
    %49 = vector.multi_reduction <maximumf>, %48, %cst_21 [2] : vector<8x8x16xf32> to vector<8x8xf32>
    %50 = vector.shape_cast %49 : vector<8x8xf32> to vector<8x8x1xf32>
    %51 = vector.broadcast %50 : vector<8x8x1xf32> to vector<8x8x16xf32>
    %52 = arith.subf %48, %51 : vector<8x8x16xf32>
    %53 = math.exp %52 : vector<8x8x16xf32>
    %cst_22 = arith.constant dense<0.000000e+00> : vector<8x8xf32>
    %54 = vector.multi_reduction <add>, %53, %cst_22 [2] : vector<8x8x16xf32> to vector<8x8xf32>
    %55 = vector.shape_cast %54 : vector<8x8xf32> to vector<8x8x1xf32>
    %56 = tpu.reciprocal %55 {approx = true} : vector<8x8x1xf32> -> vector<8x8x1xf32>
    %57 = vector.broadcast %56 : vector<8x8x1xf32> to vector<8x8x16xf32>
    %58 = arith.mulf %53, %57 : vector<8x8x16xf32>
    %59 = arith.truncf %58 : vector<8x8x16xf32> to vector<8x8x16xbf16>
    "tpu.trace_start"() <{level = 10 : i32, message = "bir,brf->bif"}> : () -> ()
    %cst_23 = arith.constant dense<0.000000e+00> : vector<8x8x64xf32>
    %60 = tpu.matmul %59, %34, %cst_23 {dimension_numbers = #tpu.dot_dimension_numbers<[2], [1], [1], [2], [0, 0, 0, 1, 1, 2], [0], [0]>} : vector<8x8x16xbf16>, vector<8x16x64xbf16>, vector<8x8x64xf32> -> vector<8x8x64xf32>
    "tpu.trace_stop"() : () -> ()
    %61 = arith.mulf %60, %60 : vector<8x8x64xf32>
    %cst_24 = arith.constant dense<0.000000e+00> : vector<8x64xf32>
    %62 = vector.multi_reduction <add>, %61, %cst_24 [1] : vector<8x8x64xf32> to vector<8x64xf32>
    %63 = vector.shape_cast %62 : vector<8x64xf32> to vector<8x1x64xf32>
    %cst_25 = arith.constant 1.000000e-24 : f32
    %64 = vector.broadcast %cst_25 : f32 to vector<8x1x64xf32>
    %65 = arith.maximumf %63, %64 : vector<8x1x64xf32>
    %66 = math.rsqrt %65 : vector<8x1x64xf32>
    %67 = vector.broadcast %66 : vector<8x1x64xf32> to vector<8x8x64xf32>
    %68 = arith.mulf %60, %67 : vector<8x8x64xf32>
    %c0_26 = arith.constant 0 : index
    %c0_27 = arith.constant 0 : index
    %69 = vector.load %arg8[%c0_26, %c0_27] : memref<8x64xbf16, #tpu.memory_space<vmem>>, vector<8x64xbf16>
    %70 = arith.extf %69 : vector<8x64xbf16> to vector<8x64xf32>
    %71 = vector.shape_cast %70 : vector<8x64xf32> to vector<1x8x64xf32>
    %72 = vector.broadcast %71 : vector<1x8x64xf32> to vector<8x8x64xf32>
    %73 = arith.mulf %72, %68 : vector<8x8x64xf32>
    %cst_28 = arith.constant dense<0.000000e+00> : vector<8x8xf32>
    %74 = vector.multi_reduction <add>, %73, %cst_28 [2] : vector<8x8x64xf32> to vector<8x8xf32>
    %75 = arith.mulf %74, %74 : vector<8x8xf32>
    %cst_29 = arith.constant dense<0.000000e+00> : vector<8xf32>
    %76 = vector.multi_reduction <add>, %75, %cst_29 [1] : vector<8x8xf32> to vector<8xf32>
    %77 = vector.shape_cast %76 : vector<8xf32> to vector<8x1xf32>
    %cst_30 = arith.constant 9.99999996E-13 : f32
    %78 = vector.broadcast %cst_30 : f32 to vector<8x1xf32>
    %79 = arith.addf %77, %78 : vector<8x1xf32>
    %80 = math.rsqrt %79 : vector<8x1xf32>
    %81 = vector.broadcast %80 : vector<8x1xf32> to vector<8x8xf32>
    %82 = arith.mulf %74, %81 : vector<8x8xf32>
    %c0_31 = arith.constant 0 : index
    %c0_32 = arith.constant 0 : index
    %83 = vector.load %arg9[%c0_31, %c0_32] : memref<8x8xf32, #tpu.memory_space<vmem>>, vector<8x8xf32>
    tpu.vector_store %arg9[%c0_31, %c0_32], %82 {strides = array<i32>} : memref<8x8xf32, #tpu.memory_space<vmem>>, vector<8x8xf32>,
    return
  }
  func.func @transform_0(%arg0: i32) -> (i32, i32, i32) {
    %c0_i32 = arith.constant 0 : i32
    %c0_i32_0 = arith.constant 0 : i32
    %c0_i32_1 = arith.constant 0 : i32
    return %arg0, %c0_i32, %c0_i32_0 : i32, i32, i32
  }
  func.func @transform_1(%arg0: i32) -> (i32, i32) {
    %c0_i32 = arith.constant 0 : i32
    %c0_i32_0 = arith.constant 0 : i32
    %c0_i32_1 = arith.constant 0 : i32
    return %c0_i32, %c0_i32_0 : i32, i32
  }
  func.func @transform_2(%arg0: i32) -> (i32, i32) {
    %c0_i32 = arith.constant 0 : i32
    %c0_i32_0 = arith.constant 0 : i32
    %c0_i32_1 = arith.constant 0 : i32
    return %c0_i32, %c0_i32_0 : i32, i32
  }
  func.func @transform_3(%arg0: i32) -> (i32, i32) {
    %c0_i32 = arith.constant 0 : i32
    %c0_i32_0 = arith.constant 0 : i32
    %c0_i32_1 = arith.constant 0 : i32
    return %c0_i32, %c0_i32_0 : i32, i32
  }
  func.func @transform_4(%arg0: i32) -> (i32, i32) {
    %c0_i32 = arith.constant 0 : i32
    %c0_i32_0 = arith.constant 0 : i32
    %c0_i32_1 = arith.constant 0 : i32
    return %c0_i32, %c0_i32_0 : i32, i32
  }
  func.func @transform_5(%arg0: i32) -> (i32, i32) {
    %c0_i32 = arith.constant 0 : i32
    %c0_i32_0 = arith.constant 0 : i32
    %c0_i32_1 = arith.constant 0 : i32
    return %c0_i32, %c0_i32_0 : i32, i32
  }
  func.func @transform_6(%arg0: i32) -> (i32, i32) {
    %c0_i32 = arith.constant 0 : i32
    %c0_i32_0 = arith.constant 0 : i32
    %c0_i32_1 = arith.constant 0 : i32
    return %c0_i32, %c0_i32_0 : i32, i32
  }
  func.func @transform_7(%arg0: i32) -> (i32, i32) {
    %c0_i32 = arith.constant 0 : i32
    %c0_i32_0 = arith.constant 0 : i32
    %c0_i32_1 = arith.constant 0 : i32
    return %c0_i32, %c0_i32_0 : i32, i32
  }
  func.func @transform_8(%arg0: i32) -> (i32, i32) {
    %c0_i32 = arith.constant 0 : i32
    %c0_i32_0 = arith.constant 0 : i32
    return %arg0, %c0_i32 : i32, i32
  }
}

</mosaic_0001>

<llo_original>
// kernel: cmn_forward.1
$region0: #{cmn_forward.1}
  #allocation0 [shape = 'u32[]', space=smem, size = 0x4, offset = 0x4, fixed_abs, tag = 'smem constant byte address 0x4 - core index']
  #allocation1 [shape = 'u32[144,128]{1,0:T(1,128)}', space=vmem, size = 0x12000, scoped, tag = 'internal scratch']
  %s0 = inlined_call_operand.vmem [shape: bf16[16,16,64], index: 0, kind: input, shape index: {}]
  %s1 = inlined_call_operand.vmem [shape: f32[1,64], index: 1, kind: input, shape index: {}]
  %s2 = inlined_call_operand.vmem [shape: f32[1,64], index: 2, kind: input, shape index: {}]
  %s3 = inlined_call_operand.vmem [shape: bf16[64,64], index: 3, kind: input, shape index: {}]
  %s4 = inlined_call_operand.vmem [shape: f32[1,64], index: 4, kind: input, shape index: {}]
  %s5 = inlined_call_operand.vmem [shape: bf16[64,8], index: 5, kind: input, shape index: {}]
  %s6 = inlined_call_operand.vmem [shape: bf16[8,64], index: 6, kind: input, shape index: {}]
  %s7 = inlined_call_operand.vmem [shape: bf16[8,64], index: 7, kind: input, shape index: {}]
  %s8 = inlined_call_operand.vmem [shape: f32[16,8], index: 8, kind: output, shape index: {}]
  %s9 = sld [smem:[#allocation0]]
  $region65: #{cmn_forward.1} parent=0
    _
  %s11 = ssub.s32 1, %s9
  %s12 = scalar_select 0, %s11, %s9
  loop: start=0, step=1, limit=4
  $region2: #{cmn_forward.1} parent=0 // loop_pre_header
    _
  $region3: #{cmn_forward.1} parent=0 // loop_header
    %s14 = sphi 0, %s18
    %p15 = scmp.ge.s32.totalorder %s14, 4
    %s24 = sphi 0, %s26
    %s27 = sphi 0, %s24
    %s28 = sphi 0, %s27
    %s44 = sphi 0, %s28
    %s48 = sphi 0, %s48
    %s50 = sphi 0, %s48
    %s51 = sphi 0, %s50
    %s65 = sphi 0, %s51
    %s69 = sphi 0, %s69
    %s71 = sphi 0, %s69
    %s72 = sphi 0, %s71
    %s86 = sphi 0, %s72
    %s90 = sphi 0, %s90
    %s92 = sphi 0, %s90
    %s93 = sphi 0, %s92
    %s107 = sphi 0, %s93
    %s111 = sphi 0, %s111
    %s113 = sphi 0, %s111
    %s114 = sphi 0, %s113
    %s128 = sphi 0, %s114
    %s132 = sphi 0, %s132
    %s134 = sphi 0, %s132
    %s135 = sphi 0, %s134
    %s149 = sphi 0, %s135
    %s153 = sphi 0, %s153
    %s155 = sphi 0, %s153
    %s156 = sphi 0, %s155
    %s170 = sphi 0, %s156
    %s174 = sphi 0, %s174
    %s176 = sphi 0, %s174
    %s177 = sphi 0, %s176
    %s191 = sphi 0, %s177
    %s197 = sphi 0, %s199
    %s200 = sphi 0, %s197
    %s201 = sphi 0, %s200
    %s217 = sphi 0, %s201
  $region4: #{cmn_forward.1} parent=0 // loop_header_branch
    %17 = sbr.rel (%p15) target = $region8
  $region5: #{cmn_forward.1} parent=0 // loop_body
    %s19 = ssub.s32 %s14, 1
    %s20 = ssub.s32 %s14, 2
    %s21 = sadd.s32 %s14, 1
    %s22 = ssub.s32 %s14, %s21
    %p23 = scmp.eq.s32.totalorder %s22, 0
    %s25 = sadd.s32 %s24, 1
    %s26 = scalar_select %p23, %s24, %s25
    %p29 = pneg %p23
    %p30 = scmp.eq.s32.totalorder %s14, 1
    %p31 = por %p29, %p30
    %p32 = scmp.ne.s32.totalorder %s24, %s27
    %p33 = scmp.eq.s32.totalorder %s14, 0
    %p34 = por %p32, %p33
    %p35 = scmp.ne.s32.totalorder %s24, %s27
    %p36 = scmp.eq.s32.totalorder %s19, 1
    %p37 = por %p35, %p36
    %p38 = scmp.ne.s32.totalorder %s27, %s28
    %p39 = scmp.eq.s32.totalorder %s19, 0
    %p40 = por %p38, %p39
    %p41 = scmp.ne.s32.totalorder %s27, %s28
    %p42 = scmp.eq.s32.totalorder %s20, 1
    %p43 = por %p41, %p42
    %p45 = scmp.ne.s32.totalorder %s28, %s44
    %p46 = scmp.eq.s32.totalorder %s20, 0
    %p47 = por %p45, %p46
    %s49 = sadd.s32 %s48, 1
    %p52 = scmp.eq.s32.totalorder %s14, 1
    %p53 = scmp.ne.s32.totalorder %s48, %s50
    %p54 = scmp.eq.s32.totalorder %s14, 0
    %p55 = por %p53, %p54
    %p56 = scmp.ne.s32.totalorder %s48, %s50
    %p57 = scmp.eq.s32.totalorder %s19, 1
    %p58 = por %p56, %p57
    %p59 = scmp.ne.s32.totalorder %s50, %s51
    %p60 = scmp.eq.s32.totalorder %s19, 0
    %p61 = por %p59, %p60
    %p62 = scmp.ne.s32.totalorder %s50, %s51
    %p63 = scmp.eq.s32.totalorder %s20, 1
    %p64 = por %p62, %p63
    %p66 = scmp.ne.s32.totalorder %s51, %s65
    %p67 = scmp.eq.s32.totalorder %s20, 0
    %p68 = por %p66, %p67
    %s70 = sadd.s32 %s69, 1
    %p73 = scmp.eq.s32.totalorder %s14, 1
    %p74 = scmp.ne.s32.totalorder %s69, %s71
    %p75 = scmp.eq.s32.totalorder %s14, 0
    %p76 = por %p74, %p75
    %p77 = scmp.ne.s32.totalorder %s69, %s71
    %p78 = scmp.eq.s32.totalorder %s19, 1
    %p79 = por %p77, %p78
    %p80 = scmp.ne.s32.totalorder %s71, %s72
    %p81 = scmp.eq.s32.totalorder %s19, 0
    %p82 = por %p80, %p81
    %p83 = scmp.ne.s32.totalorder %s71, %s72
    %p84 = scmp.eq.s32.totalorder %s20, 1
    %p85 = por %p83, %p84
    %p87 = scmp.ne.s32.totalorder %s72, %s86
    %p88 = scmp.eq.s32.totalorder %s20, 0
    %p89 = por %p87, %p88
    %s91 = sadd.s32 %s90, 1
    %p94 = scmp.eq.s32.totalorder %s14, 1
    %p95 = scmp.ne.s32.totalorder %s90, %s92
    %p96 = scmp.eq.s32.totalorder %s14, 0
    %p97 = por %p95, %p96
    %p98 = scmp.ne.s32.totalorder %s90, %s92
    %p99 = scmp.eq.s32.totalorder %s19, 1
    %p100 = por %p98, %p99
    %p101 = scmp.ne.s32.totalorder %s92, %s93
    %p102 = scmp.eq.s32.totalorder %s19, 0
    %p103 = por %p101, %p102
    %p104 = scmp.ne.s32.totalorder %s92, %s93
    %p105 = scmp.eq.s32.totalorder %s20, 1
    %p106 = por %p104, %p105
    %p108 = scmp.ne.s32.totalorder %s93, %s107
    %p109 = scmp.eq.s32.totalorder %s20, 0
    %p110 = por %p108, %p109
    %s112 = sadd.s32 %s111, 1
    %p115 = scmp.eq.s32.totalorder %s14, 1
    %p116 = scmp.ne.s32.totalorder %s111, %s113
    %p117 = scmp.eq.s32.totalorder %s14, 0
    %p118 = por %p116, %p117
    %p119 = scmp.ne.s32.totalorder %s111, %s113
    %p120 = scmp.eq.s32.totalorder %s19, 1
    %p121 = por %p119, %p120
    %p122 = scmp.ne.s32.totalorder %s113, %s114
    %p123 = scmp.eq.s32.totalorder %s19, 0
    %p124 = por %p122, %p123
    %p125 = scmp.ne.s32.totalorder %s113, %s114
    %p126 = scmp.eq.s32.totalorder %s20, 1
    %p127 = por %p125, %p126
    %p129 = scmp.ne.s32.totalorder %s114, %s128
    %p130 = scmp.eq.s32.totalorder %s20, 0
    %p131 = por %p129, %p130
    %s133 = sadd.s32 %s132, 1
    %p136 = scmp.eq.s32.totalorder %s14, 1
    %p137 = scmp.ne.s32.totalorder %s132, %s134
    %p138 = scmp.eq.s32.totalorder %s14, 0
    %p139 = por %p137, %p138
    %p140 = scmp.ne.s32.totalorder %s132, %s134
    %p141 = scmp.eq.s32.totalorder %s19, 1
    %p142 = por %p140, %p141
    %p143 = scmp.ne.s32.totalorder %s134, %s135
    %p144 = scmp.eq.s32.totalorder %s19, 0
    %p145 = por %p143, %p144
    %p146 = scmp.ne.s32.totalorder %s134, %s135
    %p147 = scmp.eq.s32.totalorder %s20, 1
    %p148 = por %p146, %p147
    %p150 = scmp.ne.s32.totalorder %s135, %s149
    %p151 = scmp.eq.s32.totalorder %s20, 0
    %p152 = por %p150, %p151
    %s154 = sadd.s32 %s153, 1
    %p157 = scmp.eq.s32.totalorder %s14, 1
    %p158 = scmp.ne.s32.totalorder %s153, %s155
    %p159 = scmp.eq.s32.totalorder %s14, 0
    %p160 = por %p158, %p159
    %p161 = scmp.ne.s32.totalorder %s153, %s155
    %p162 = scmp.eq.s32.totalorder %s19, 1
    %p163 = por %p161, %p162
    %p164 = scmp.ne.s32.totalorder %s155, %s156
    %p165 = scmp.eq.s32.totalorder %s19, 0
    %p166 = por %p164, %p165
    %p167 = scmp.ne.s32.totalorder %s155, %s156
    %p168 = scmp.eq.s32.totalorder %s20, 1
    %p169 = por %p167, %p168
    %p171 = scmp.ne.s32.totalorder %s156, %s170
    %p172 = scmp.eq.s32.totalorder %s20, 0
    %p173 = por %p171, %p172
    %s175 = sadd.s32 %s174, 1
    %p178 = scmp.eq.s32.totalorder %s14, 1
    %p179 = scmp.ne.s32.totalorder %s174, %s176
    %p180 = scmp.eq.s32.totalorder %s14, 0
    %p181 = por %p179, %p180
    %p182 = scmp.ne.s32.totalorder %s174, %s176
    %p183 = scmp.eq.s32.totalorder %s19, 1
    %p184 = por %p182, %p183
    %p185 = scmp.ne.s32.totalorder %s176, %s177
    %p186 = scmp.eq.s32.totalorder %s19, 0
    %p187 = por %p185, %p186
    %p188 = scmp.ne.s32.totalorder %s176, %s177
    %p189 = scmp.eq.s32.totalorder %s20, 1
    %p190 = por %p188, %p189
    %p192 = scmp.ne.s32.totalorder %s177, %s191
    %p193 = scmp.eq.s32.totalorder %s20, 0
    %p194 = por %p192, %p193
    %s195 = ssub.s32 %s14, %s21
    %p196 = scmp.eq.s32.totalorder %s195, 0
    %s198 = sadd.s32 %s197, 1
    %s199 = scalar_select %p196, %s197, %s198
    %p202 = pneg %p196
    %p203 = scmp.eq.s32.totalorder %s14, 1
    %p204 = por %p202, %p203
    %p205 = scmp.ne.s32.totalorder %s197, %s200
    %p206 = scmp.eq.s32.totalorder %s14, 0
    %p207 = por %p205, %p206
    %p208 = scmp.ne.s32.totalorder %s197, %s200
    %p209 = scmp.eq.s32.totalorder %s19, 1
    %p210 = por %p208, %p209
    %p211 = scmp.ne.s32.totalorder %s200, %s201
    %p212 = scmp.eq.s32.totalorder %s19, 0
    %p213 = por %p211, %p212
    %p214 = scmp.ne.s32.totalorder %s200, %s201
    %p215 = scmp.eq.s32.totalorder %s20, 1
    %p216 = por %p214, %p215
    %p218 = scmp.ne.s32.totalorder %s201, %s217
    %p219 = scmp.eq.s32.totalorder %s20, 0
    %p220 = por %p218, %p219
    %p221 = scmp.le.s32.totalorder 1, %s14
    %p222 = scmp.lt.s32.totalorder %s14, 3
    %p223 = pnand %p221, %p222
    %p224 = pneg %p223
    // Predicated region
    $region9: #{cmn_forward.1} parent=5 // pred_check
      _
    $region10: #{cmn_forward.1} parent=5 // pred_check_branch
      %226 = sbr.rel (%p223) target = $region12
    $region11: #{cmn_forward.1} parent=5 // pred_region
      %s227 = ssub.s32 %s14, 1
      // Predicated region
      $region13: #{cmn_forward.1} parent=11 // pred_check
        %p228 = pneg %p61
      $region14: #{cmn_forward.1} parent=11 // pred_check_branch
        %230 = sbr.rel (%p228) target = $region16
      $region15: #{cmn_forward.1} parent=11 // pred_region
        _
      $region16: #{cmn_forward.1} parent=11 // pred_fallthru
        _
      // Predicated region
      $region17: #{cmn_forward.1} parent=11 // pred_check
        %p231 = pneg %p82
      $region18: #{cmn_forward.1} parent=11 // pred_check_branch
        %233 = sbr.rel (%p231) target = $region20
      $region19: #{cmn_forward.1} parent=11 // pred_region
        _
      $region20: #{cmn_forward.1} parent=11 // pred_fallthru
        _
      // Predicated region
      $region21: #{cmn_forward.1} parent=11 // pred_check
        %p234 = pneg %p103
      $region22: #{cmn_forward.1} parent=11 // pred_check_branch
        %236 = sbr.rel (%p234) target = $region24
      $region23: #{cmn_forward.1} parent=11 // pred_region
        _
      $region24: #{cmn_forward.1} parent=11 // pred_fallthru
        _
      // Predicated region
      $region25: #{cmn_forward.1} parent=11 // pred_check
        %p237 = pneg %p124
      $region26: #{cmn_forward.1} parent=11 // pred_check_branch
        %239 = sbr.rel (%p237) target = $region28
      $region27: #{cmn_forward.1} parent=11 // pred_region
        _
      $region28: #{cmn_forward.1} parent=11 // pred_fallthru
        _
      // Predicated region
      $region29: #{cmn_forward.1} parent=11 // pred_check
        %p240 = pneg %p145
      $region30: #{cmn_forward.1} parent=11 // pred_check_branch
        %242 = sbr.rel (%p240) target = $region32
      $region31: #{cmn_forward.1} parent=11 // pred_region
        _
      $region32: #{cmn_forward.1} parent=11 // pred_fallthru
        _
      // Predicated region
      $region33: #{cmn_forward.1} parent=11 // pred_check
        %p243 = pneg %p166
      $region34: #{cmn_forward.1} parent=11 // pred_check_branch
        %245 = sbr.rel (%p243) target = $region36
      $region35: #{cmn_forward.1} parent=11 // pred_region
        _
      $region36: #{cmn_forward.1} parent=11 // pred_fallthru
        _
      // Predicated region
      $region37: #{cmn_forward.1} parent=11 // pred_check
        %p246 = pneg %p187
      $region38: #{cmn_forward.1} parent=11 // pred_check_branch
        %248 = sbr.rel (%p246) target = $region40
      $region39: #{cmn_forward.1} parent=11 // pred_region
        _
      $region40: #{cmn_forward.1} parent=11 // pred_fallthru
        _
    $region12: #{cmn_forward.1} parent=5 // pred_fallthru
      _
    %p249 = scmp.lt.s32.totalorder %s14, 2
    // Predicated region
    $region41: #{cmn_forward.1} parent=5 // pred_check
      %p250 = pneg %p249
    $region42: #{cmn_forward.1} parent=5 // pred_check_branch
      %252 = sbr.rel (%p250) target = $region44
    $region43: #{cmn_forward.1} parent=5 // pred_region
      // Predicated region
      $region45: #{cmn_forward.1} parent=43 // pred_check
        %p253 = pneg %p34
      $region46: #{cmn_forward.1} parent=43 // pred_check_branch
        %255 = sbr.rel (%p253) target = $region48
      $region47: #{cmn_forward.1} parent=43 // pred_region
        %s256 = smul.u32 8, %s14
        %p257 = scmp.lt.s32.totalorder %s256, 15
        %s258 = scalar_select %p257, %s256, 15
        %s259 = smul.addr %s258, 2
        %s260 = smul.addr %s259, 4
        %s261 = scalar_lea.vmem %s0, %s260
        %s262 = smul.u32 8, %s14
      $region48: #{cmn_forward.1} parent=43 // pred_fallthru
        _
    $region44: #{cmn_forward.1} parent=5 // pred_fallthru
      _
    %p263 = scmp.le.s32.totalorder 1, %s14
    %p264 = scmp.lt.s32.totalorder %s14, 3
    %p265 = pnand %p263, %p264
    %p266 = pneg %p265
    // Predicated region
    $region49: #{cmn_forward.1} parent=5 // pred_check
      _
    $region50: #{cmn_forward.1} parent=5 // pred_check_branch
      %268 = sbr.rel (%p265) target = $region52
    $region51: #{cmn_forward.1} parent=5 // pred_region
      %s269 = ssub.s32 %s14, 1
      %s270 = smul.u32 8, %s19
      %p271 = scmp.lt.s32.totalorder %s270, 15
      %s272 = scalar_select %p271, %s270, 15
      %s273 = smul.addr %s272, 2
      %s274 = smul.addr %s273, 4
      %s275 = scalar_lea.vmem %s0, %s274
      %p276 = pneg %p40
      %p277 = pneg %p37
      %p278 = pneg %p61
      %p279 = pneg %p58
      %p280 = pneg %p82
      %p281 = pneg %p79
      %p282 = pneg %p103
      %p283 = pneg %p100
      %p284 = pneg %p124
      %p285 = pneg %p121
      %p286 = pneg %p145
      %p287 = pneg %p142
      %p288 = pneg %p166
      %p289 = pneg %p163
      %p290 = pneg %p187
      %p291 = pneg %p184
      %p292 = pneg %p213
      %p293 = pneg %p210
      %p294 = scmp.lt.s32.totalorder %s19, 1
      %s295 = scalar_select %p294, %s19, 1
      %s296 = smul.addr %s295, 8
      %s297 = scalar_lea.vmem %s8, %s296
      %s298 = smul.u32 8, %s19
      %p299 = scmp.lt.s32.totalorder %s298, 15
      %s300 = scalar_select %p299, %s298, 15
      %s301 = smul.addr %s300, 2
      %s302 = smul.addr %s301, 4
      %s303 = scalar_lea.vmem %s0, %s302
      %s304 = smul.u32 8, %s19
      %p305 = scmp.lt.s32.totalorder %s19, 1
      %s306 = scalar_select %p305, %s19, 1
      %s307 = smul.addr %s306, 8
      %s308 = scalar_lea.vmem %s8, %s307
      %v310 = vld [vmem:[%s303] sm:$0xf]
      %v311 = vld [vmem:[%s303 + $0x4] sm:$0xf]
      %v312 = vld [vmem:[%s303 + $0x8] sm:$0xf]
      %v313 = vld [vmem:[%s303 + $0xc] sm:$0xf]
      %v314 = vld [vmem:[%s303 + $0x10] sm:$0xf]
      %v315 = vld [vmem:[%s303 + $0x14] sm:$0xf]
      %v316 = vld [vmem:[%s303 + $0x18] sm:$0xf]
      %v317 = vld [vmem:[%s303 + $0x1c] sm:$0xf]
      %v318 = vld [vmem:[%s303 + $0x20] sm:$0xf]
      %v319 = vld [vmem:[%s303 + $0x24] sm:$0xf]
      %v320 = vld [vmem:[%s303 + $0x28] sm:$0xf]
      %v321 = vld [vmem:[%s303 + $0x2c] sm:$0xf]
      %v322 = vld [vmem:[%s303 + $0x30] sm:$0xf]
      %v323 = vld [vmem:[%s303 + $0x34] sm:$0xf]
      %v324 = vld [vmem:[%s303 + $0x38] sm:$0xf]
      %v325 = vld [vmem:[%s303 + $0x3c] sm:$0xf]
      %v326 = vunpack.c.l.bf16 %v310
      %v327 = vunpack.c.l.bf16 %v311
      %v328 = vunpack.c.l.bf16 %v312
      %v329 = vunpack.c.l.bf16 %v313
      %v330 = vunpack.c.l.bf16 %v314
      %v331 = vunpack.c.l.bf16 %v315
      %v332 = vunpack.c.l.bf16 %v316
      %v333 = vunpack.c.l.bf16 %v317
      %v334 = vunpack.c.l.bf16 %v318
      %v335 = vunpack.c.l.bf16 %v319
      %v336 = vunpack.c.l.bf16 %v320
      %v337 = vunpack.c.l.bf16 %v321
      %v338 = vunpack.c.l.bf16 %v322
      %v339 = vunpack.c.l.bf16 %v323
      %v340 = vunpack.c.l.bf16 %v324
      %v341 = vunpack.c.l.bf16 %v325
      %vm342 = vcmask 523264
      %v343 = vsel %vm342, %v326, 0.0
      %344 = vadd.xlane.f32.xlu0 %v343
      %v345 = vpop.xlane.xlu0 %344
      %v346 = vsel %vm342, %v327, 0.0
      %347 = vadd.xlane.f32.xlu0 %v346
      %v348 = vpop.xlane.xlu0 %347
      %v349 = vsel %vm342, %v328, 0.0
      %350 = vadd.xlane.f32.xlu0 %v349
      %v351 = vpop.xlane.xlu0 %350
      %v352 = vsel %vm342, %v329, 0.0
      %353 = vadd.xlane.f32.xlu0 %v352
      %v354 = vpop.xlane.xlu0 %353
      %v355 = vsel %vm342, %v330, 0.0
      %356 = vadd.xlane.f32.xlu0 %v355
      %v357 = vpop.xlane.xlu0 %356
      %v358 = vsel %vm342, %v331, 0.0
      %359 = vadd.xlane.f32.xlu0 %v358
      %v360 = vpop.xlane.xlu0 %359
      %v361 = vsel %vm342, %v332, 0.0
      %362 = vadd.xlane.f32.xlu0 %v361
      %v363 = vpop.xlane.xlu0 %362
      %v364 = vsel %vm342, %v333, 0.0
      %365 = vadd.xlane.f32.xlu0 %v364
      %v366 = vpop.xlane.xlu0 %365
      %v367 = vsel %vm342, %v334, 0.0
      %368 = vadd.xlane.f32.xlu0 %v367
      %v369 = vpop.xlane.xlu0 %368
      %v370 = vsel %vm342, %v335, 0.0
      %371 = vadd.xlane.f32.xlu0 %v370
      %v372 = vpop.xlane.xlu0 %371
      %v373 = vsel %vm342, %v336, 0.0
      %374 = vadd.xlane.f32.xlu0 %v373
      %v375 = vpop.xlane.xlu0 %374
      %v376 = vsel %vm342, %v337, 0.0
      %377 = vadd.xlane.f32.xlu0 %v376
      %v378 = vpop.xlane.xlu0 %377
      %v379 = vsel %vm342, %v338, 0.0
      %380 = vadd.xlane.f32.xlu0 %v379
      %v381 = vpop.xlane.xlu0 %380
      %v382 = vsel %vm342, %v339, 0.0
      %383 = vadd.xlane.f32.xlu0 %v382
      %v384 = vpop.xlane.xlu0 %383
      %v385 = vsel %vm342, %v340, 0.0
      %386 = vadd.xlane.f32.xlu0 %v385
      %v387 = vpop.xlane.xlu0 %386
      %v388 = vsel %vm342, %v341, 0.0
      %389 = vadd.xlane.f32.xlu0 %v388
      %v390 = vpop.xlane.xlu0 %389
      %v391 = vrcp.pop 64.0
      %v392 = vmul.f32 %v345, %v391
      %v393 = vmul.f32 %v348, %v391
      %v394 = vmul.f32 %v351, %v391
      %v395 = vmul.f32 %v354, %v391
      %v396 = vmul.f32 %v357, %v391
      %v397 = vmul.f32 %v360, %v391
      %v398 = vmul.f32 %v363, %v391
      %v399 = vmul.f32 %v366, %v391
      %v400 = vmul.f32 %v369, %v391
      %v401 = vmul.f32 %v372, %v391
      %v402 = vmul.f32 %v375, %v391
      %v403 = vmul.f32 %v378, %v391
      %v404 = vmul.f32 %v381, %v391
      %v405 = vmul.f32 %v384, %v391
      %v406 = vmul.f32 %v387, %v391
      %v407 = vmul.f32 %v390, %v391
      %v408 = vsub.f32 %v326, %v392
      %v409 = vsub.f32 %v327, %v393
      %v410 = vsub.f32 %v328, %v394
      %v411 = vsub.f32 %v329, %v395
      %v412 = vsub.f32 %v330, %v396
      %v413 = vsub.f32 %v331, %v397
      %v414 = vsub.f32 %v332, %v398
      %v415 = vsub.f32 %v333, %v399
      %v416 = vsub.f32 %v334, %v400
      %v417 = vsub.f32 %v335, %v401
      %v418 = vsub.f32 %v336, %v402
      %v419 = vsub.f32 %v337, %v403
      %v420 = vsub.f32 %v338, %v404
      %v421 = vsub.f32 %v339, %v405
      %v422 = vsub.f32 %v340, %v406
      %v423 = vsub.f32 %v341, %v407
      %v424 = vmul.f32 %v408, %v408
      %v425 = vmul.f32 %v409, %v409
      %v426 = vmul.f32 %v410, %v410
      %v427 = vmul.f32 %v411, %v411
      %v428 = vmul.f32 %v412, %v412
      %v429 = vmul.f32 %v413, %v413
      %v430 = vmul.f32 %v414, %v414
      %v431 = vmul.f32 %v415, %v415
      %v432 = vmul.f32 %v416, %v416
      %v433 = vmul.f32 %v417, %v417
      %v434 = vmul.f32 %v418, %v418
      %v435 = vmul.f32 %v419, %v419
      %v436 = vmul.f32 %v420, %v420
      %v437 = vmul.f32 %v421, %v421
      %v438 = vmul.f32 %v422, %v422
      %v439 = vmul.f32 %v423, %v423
      %v440 = vsel %vm342, %v424, 0.0
      %441 = vadd.xlane.f32.xlu0 %v440
      %v442 = vpop.xlane.xlu0 %441
      %v443 = vsel %vm342, %v425, 0.0
      %444 = vadd.xlane.f32.xlu0 %v443
      %v445 = vpop.xlane.xlu0 %444
      %v446 = vsel %vm342, %v426, 0.0
      %447 = vadd.xlane.f32.xlu0 %v446
      %v448 = vpop.xlane.xlu0 %447
      %v449 = vsel %vm342, %v427, 0.0
      %450 = vadd.xlane.f32.xlu0 %v449
      %v451 = vpop.xlane.xlu0 %450
      %v452 = vsel %vm342, %v428, 0.0
      %453 = vadd.xlane.f32.xlu0 %v452
      %v454 = vpop.xlane.xlu0 %453
      %v455 = vsel %vm342, %v429, 0.0
      %456 = vadd.xlane.f32.xlu0 %v455
      %v457 = vpop.xlane.xlu0 %456
      %v458 = vsel %vm342, %v430, 0.0
      %459 = vadd.xlane.f32.xlu0 %v458
      %v460 = vpop.xlane.xlu0 %459
      %v461 = vsel %vm342, %v431, 0.0
      %462 = vadd.xlane.f32.xlu0 %v461
      %v463 = vpop.xlane.xlu0 %462
      %v464 = vsel %vm342, %v432, 0.0
      %465 = vadd.xlane.f32.xlu0 %v464
      %v466 = vpop.xlane.xlu0 %465
      %v467 = vsel %vm342, %v433, 0.0
      %468 = vadd.xlane.f32.xlu0 %v467
      %v469 = vpop.xlane.xlu0 %468
      %v470 = vsel %vm342, %v434, 0.0
      %471 = vadd.xlane.f32.xlu0 %v470
      %v472 = vpop.xlane.xlu0 %471
      %v473 = vsel %vm342, %v435, 0.0
      %474 = vadd.xlane.f32.xlu0 %v473
      %v475 = vpop.xlane.xlu0 %474
      %v476 = vsel %vm342, %v436, 0.0
      %477 = vadd.xlane.f32.xlu0 %v476
      %v478 = vpop.xlane.xlu0 %477
      %v479 = vsel %vm342, %v437, 0.0
      %480 = vadd.xlane.f32.xlu0 %v479
      %v481 = vpop.xlane.xlu0 %480
      %v482 = vsel %vm342, %v438, 0.0
      %483 = vadd.xlane.f32.xlu0 %v482
      %v484 = vpop.xlane.xlu0 %483
      %v485 = vsel %vm342, %v439, 0.0
      %486 = vadd.xlane.f32.xlu0 %v485
      %v487 = vpop.xlane.xlu0 %486
      %v488 = vmul.f32 %v442, %v391
      %v489 = vmul.f32 %v445, %v391
      %v490 = vmul.f32 %v448, %v391
      %v491 = vmul.f32 %v451, %v391
      %v492 = vmul.f32 %v454, %v391
      %v493 = vmul.f32 %v457, %v391
      %v494 = vmul.f32 %v460, %v391
      %v495 = vmul.f32 %v463, %v391
      %v496 = vmul.f32 %v466, %v391
      %v497 = vmul.f32 %v469, %v391
      %v498 = vmul.f32 %v472, %v391
      %v499 = vmul.f32 %v475, %v391
      %v500 = vmul.f32 %v478, %v391
      %v501 = vmul.f32 %v481, %v391
      %v502 = vmul.f32 %v484, %v391
      %v503 = vmul.f32 %v487, %v391
      %v504 = vadd.f32 %v488, 1e-05
      %v505 = vadd.f32 %v489, 1e-05
      %v506 = vadd.f32 %v490, 1e-05
      %v507 = vadd.f32 %v491, 1e-05
      %v508 = vadd.f32 %v492, 1e-05
      %v509 = vadd.f32 %v493, 1e-05
      %v510 = vadd.f32 %v494, 1e-05
      %v511 = vadd.f32 %v495, 1e-05
      %v512 = vadd.f32 %v496, 1e-05
      %v513 = vadd.f32 %v497, 1e-05
      %v514 = vadd.f32 %v498, 1e-05
      %v515 = vadd.f32 %v499, 1e-05
      %v516 = vadd.f32 %v500, 1e-05
      %v517 = vadd.f32 %v501, 1e-05
      %v518 = vadd.f32 %v502, 1e-05
      %v519 = vadd.f32 %v503, 1e-05
      %v520 = vrsqrt.pop %v504
      %v521 = vrsqrt.pop %v505
      %v522 = vrsqrt.pop %v506
      %v523 = vrsqrt.pop %v507
      %v524 = vrsqrt.pop %v508
      %v525 = vrsqrt.pop %v509
      %v526 = vrsqrt.pop %v510
      %v527 = vrsqrt.pop %v511
      %v528 = vrsqrt.pop %v512
      %v529 = vrsqrt.pop %v513
      %v530 = vrsqrt.pop %v514
      %v531 = vrsqrt.pop %v515
      %v532 = vrsqrt.pop %v516
      %v533 = vrsqrt.pop %v517
      %v534 = vrsqrt.pop %v518
      %v535 = vrsqrt.pop %v519
      %v536 = vmul.f32 %v408, %v520
      %v537 = vmul.f32 %v409, %v521
      %v538 = vmul.f32 %v410, %v522
      %v539 = vmul.f32 %v411, %v523
      %v540 = vmul.f32 %v412, %v524
      %v541 = vmul.f32 %v413, %v525
      %v542 = vmul.f32 %v414, %v526
      %v543 = vmul.f32 %v415, %v527
      %v544 = vmul.f32 %v416, %v528
      %v545 = vmul.f32 %v417, %v529
      %v546 = vmul.f32 %v418, %v530
      %v547 = vmul.f32 %v419, %v531
      %v548 = vmul.f32 %v420, %v532
      %v549 = vmul.f32 %v421, %v533
      %v550 = vmul.f32 %v422, %v534
      %v551 = vmul.f32 %v423, %v535
      %v552 = vld [vmem:[%s1] sm:$0x1]
      %v554 = vlaneseq
      %v555 = vshrl.u32 %v554, 7
      %v556 = vsub.s32 0, %v555
      %v557 = vrot.slane %v552, %v556
      %v559 = vmul.f32 %v536, %v557
      %v560 = vmul.f32 %v537, %v557
      %v561 = vmul.f32 %v538, %v557
      %v562 = vmul.f32 %v539, %v557
      %v563 = vmul.f32 %v540, %v557
      %v564 = vmul.f32 %v541, %v557
      %v565 = vmul.f32 %v542, %v557
      %v566 = vmul.f32 %v543, %v557
      %v567 = vmul.f32 %v544, %v557
      %v568 = vmul.f32 %v545, %v557
      %v569 = vmul.f32 %v546, %v557
      %v570 = vmul.f32 %v547, %v557
      %v571 = vmul.f32 %v548, %v557
      %v572 = vmul.f32 %v549, %v557
      %v573 = vmul.f32 %v550, %v557
      %v574 = vmul.f32 %v551, %v557
      %v575 = vld [vmem:[%s2] sm:$0x1]
      %v577 = vlaneseq
      %v578 = vshrl.u32 %v577, 7
      %v579 = vsub.s32 0, %v578
      %v580 = vrot.slane %v575, %v579
      %v582 = vadd.f32 %v559, %v580
      %v583 = vadd.f32 %v560, %v580
      %v584 = vadd.f32 %v561, %v580
      %v585 = vadd.f32 %v562, %v580
      %v586 = vadd.f32 %v563, %v580
      %v587 = vadd.f32 %v564, %v580
      %v588 = vadd.f32 %v565, %v580
      %v589 = vadd.f32 %v566, %v580
      %v590 = vadd.f32 %v567, %v580
      %v591 = vadd.f32 %v568, %v580
      %v592 = vadd.f32 %v569, %v580
      %v593 = vadd.f32 %v570, %v580
      %v594 = vadd.f32 %v571, %v580
      %v595 = vadd.f32 %v572, %v580
      %v596 = vadd.f32 %v573, %v580
      %v597 = vadd.f32 %v574, %v580
      %v598 = vpack.c.bf16 %v583, %v582
      %v599 = vpack.c.bf16 %v585, %v584
      %v600 = vpack.c.bf16 %v587, %v586
      %v601 = vpack.c.bf16 %v589, %v588
      %v602 = vpack.c.bf16 %v591, %v590
      %v603 = vpack.c.bf16 %v593, %v592
      %v604 = vpack.c.bf16 %v595, %v594
      %v605 = vpack.c.bf16 %v597, %v596
      %v606 = vld [vmem:[%s3] sm:$0xf]
      %v607 = vld [vmem:[%s3 + $0x4] sm:$0xf]
      %v608 = vld [vmem:[%s3 + $0x8] sm:$0xf]
      %v609 = vld [vmem:[%s3 + $0xc] sm:$0xf]
      %v610 = vld [vmem:[%s3 + $0x10] sm:$0xf]
      %v611 = vld [vmem:[%s3 + $0x14] sm:$0xf]
      %v612 = vld [vmem:[%s3 + $0x18] sm:$0xf]
      %v613 = vld [vmem:[%s3 + $0x1c] sm:$0xf]
      %v614 = vld [vmem:[%s4] sm:$0x1]
      %v616 = vlaneseq
      %v617 = vshrl.u32 %v616, 7
      %v618 = vsub.s32 0, %v617
      %v619 = vrot.slane %v614, %v618
      %v629 = vunpack.c.l.b16 %v606
      %v630 = vunpack.c.l.b16 %v607
      %v631 = vunpack.c.l.b16 %v608
      %v632 = vunpack.c.l.b16 %v609
      %v633 = vunpack.c.l.b16 %v610
      %v634 = vunpack.c.l.b16 %v611
      %v635 = vunpack.c.l.b16 %v612
      %v636 = vunpack.c.l.b16 %v613
      %v637 = vpack.c.b16 %v630, %v629
      %v638 = vpack.c.b16 %v632, %v631
      %v639 = vpack.c.b16 %v634, %v633
      %v640 = vpack.c.b16 %v636, %v635
      %v646 = vsel %vm342, %v598, 0
      %v649 = vsel %vm342, %v599, 0
      %v652 = vsel %vm342, %v600, 0
      %v655 = vsel %vm342, %v601, 0
      %v658 = vsel %vm342, %v602, 0
      %v661 = vsel %vm342, %v603, 0
      %v664 = vsel %vm342, %v604, 0
      %v667 = vsel %vm342, %v605, 0
      %669 = vmatprep.subr.bf16.mxu0 0
      %670 = vmatpush1.bf16.msra.mxu0 0
      %671 = vmatprep.subr.bf16.mxu0 0
      %672 = vmatpush1.bf16.msra.mxu0 0
      %673 = vmatprep.subr.bf16.mxu0 0
      %674 = vmatpush1.bf16.msra.mxu0 0
      %675 = vmatprep.subr.bf16.mxu0 0
      %676 = vmatpush1.bf16.msra.mxu0 0
      %677 = vmatprep.subr.bf16.mxu0 0
      %678 = vmatpush1.bf16.msra.mxu0 %v640
      %679 = vmatprep.subr.bf16.mxu0 0
      %680 = vmatpush1.bf16.msra.mxu0 %v639
      %681 = vmatprep.subr.bf16.mxu0 0
      %682 = vmatpush1.bf16.msra.mxu0 %v638
      %683 = vmatprep.subr.bf16.mxu0 0
      %684 = vmatpush1.bf16.msra.mxu0 %v637
      %685 = vmatprep.subr.bf16.mxu0 0
      %686 = vmatpush2.bf16.msra.mxu0 0
      %687 = vmatprep.subr.bf16.mxu0 0
      %688 = vmatpush2.bf16.msra.mxu0 0
      %689 = vmatprep.subr.bf16.mxu0 0
      %690 = vmatpush2.bf16.msra.mxu0 0
      %691 = vmatprep.subr.bf16.mxu0 0
      %692 = vmatpush2.bf16.msra.mxu0 0
      %693 = vmatprep.subr.bf16.mxu0 0
      %694 = vmatpush2.bf16.msra.mxu0 0
      %695 = vmatprep.subr.bf16.mxu0 0
      %696 = vmatpush2.bf16.msra.mxu0 0
      %697 = vmatprep.subr.bf16.mxu0 0
      %698 = vmatpush2.bf16.msra.mxu0 0
      %699 = vmatprep.subr.bf16.mxu0 0
      %700 = vmatpush2.bf16.msra.mxu0 0
      %701 = vmatprep.mubr.bf16.mxu0 0
      %702 = vmatmul.mubr.bf16.gmra.mxu0 %v646
      %v703 = vpop.f32.mrf.mxu0
      %v704 = vadd.f32 %v619, %v703
      %v705 = vpop.f32.mrf.mxu0
      %v706 = vpop.f32.mrf.mxu0
      %v707 = vadd.f32 %v619, %v706
      %v708 = vpop.f32.mrf.mxu0
      %709 = vmatprep.mubr.bf16.mxu0 0
      %710 = vmatmul.mubr.bf16.gmra.mxu0 %v649
      %v711 = vpop.f32.mrf.mxu0
      %v712 = vadd.f32 %v619, %v711
      %v713 = vpop.f32.mrf.mxu0
      %v714 = vpop.f32.mrf.mxu0
      %v715 = vadd.f32 %v619, %v714
      %v716 = vpop.f32.mrf.mxu0
      %717 = vmatprep.mubr.bf16.mxu0 0
      %718 = vmatmul.mubr.bf16.gmra.mxu0 %v652
      %v719 = vpop.f32.mrf.mxu0
      %v720 = vadd.f32 %v619, %v719
      %v721 = vpop.f32.mrf.mxu0
      %v722 = vpop.f32.mrf.mxu0
      %v723 = vadd.f32 %v619, %v722
      %v724 = vpop.f32.mrf.mxu0
      %725 = vmatprep.mubr.bf16.mxu0 0
      %726 = vmatmul.mubr.bf16.gmra.mxu0 %v655
      %v727 = vpop.f32.mrf.mxu0
      %v728 = vadd.f32 %v619, %v727
      %v729 = vpop.f32.mrf.mxu0
      %v730 = vpop.f32.mrf.mxu0
      %v731 = vadd.f32 %v619, %v730
      %v732 = vpop.f32.mrf.mxu0
      %733 = vmatprep.mubr.bf16.mxu0 0
      %734 = vmatmul.mubr.bf16.gmra.mxu0 %v658
      %v735 = vpop.f32.mrf.mxu0
      %v736 = vadd.f32 %v619, %v735
      %v737 = vpop.f32.mrf.mxu0
      %v738 = vpop.f32.mrf.mxu0
      %v739 = vadd.f32 %v619, %v738
      %v740 = vpop.f32.mrf.mxu0
      %741 = vmatprep.mubr.bf16.mxu0 0
      %742 = vmatmul.mubr.bf16.gmra.mxu0 %v661
      %v743 = vpop.f32.mrf.mxu0
      %v744 = vadd.f32 %v619, %v743
      %v745 = vpop.f32.mrf.mxu0
      %v746 = vpop.f32.mrf.mxu0
      %v747 = vadd.f32 %v619, %v746
      %v748 = vpop.f32.mrf.mxu0
      %749 = vmatprep.mubr.bf16.mxu0 0
      %750 = vmatmul.mubr.bf16.gmra.mxu0 %v664
      %v751 = vpop.f32.mrf.mxu0
      %v752 = vadd.f32 %v619, %v751
      %v753 = vpop.f32.mrf.mxu0
      %v754 = vpop.f32.mrf.mxu0
      %v755 = vadd.f32 %v619, %v754
      %v756 = vpop.f32.mrf.mxu0
      %757 = vmatprep.mubr.bf16.mxu0 0
      %758 = vmatmul.mubr.bf16.gmra.mxu0 %v667
      %v759 = vpop.f32.mrf.mxu0
      %v760 = vadd.f32 %v619, %v759
      %v761 = vpop.f32.mrf.mxu0
      %v762 = vpop.f32.mrf.mxu0
      %v763 = vadd.f32 %v619, %v762
      %v764 = vpop.f32.mrf.mxu0
      %765 = vdwg.mxu0
      %v766 = vpack.c.bf16 %v707, %v704
      %v767 = vpack.c.bf16 %v715, %v712
      %v768 = vpack.c.bf16 %v723, %v720
      %v769 = vpack.c.bf16 %v731, %v728
      %v770 = vpack.c.bf16 %v739, %v736
      %v771 = vpack.c.bf16 %v747, %v744
      %v772 = vpack.c.bf16 %v755, %v752
      %v773 = vpack.c.bf16 %v763, %v760
      %v774 = vld [vmem:[%s5] sm:$0xf]
      %v775 = vld [vmem:[%s5 + $0x4] sm:$0xf]
      %v776 = vld [vmem:[%s5 + $0x8] sm:$0xf]
      %v777 = vld [vmem:[%s5 + $0xc] sm:$0xf]
      %v778 = vld [vmem:[%s5 + $0x10] sm:$0xf]
      %v779 = vld [vmem:[%s5 + $0x14] sm:$0xf]
      %v780 = vld [vmem:[%s5 + $0x18] sm:$0xf]
      %v781 = vld [vmem:[%s5 + $0x1c] sm:$0xf]
      %v790 = vunpack.c.l.b16 %v774
      %v791 = vunpack.c.l.b16 %v775
      %v792 = vunpack.c.l.b16 %v776
      %v793 = vunpack.c.l.b16 %v777
      %v794 = vunpack.c.l.b16 %v778
      %v795 = vunpack.c.l.b16 %v779
      %v796 = vunpack.c.l.b16 %v780
      %v797 = vunpack.c.l.b16 %v781
      %v798 = vpack.c.b16 %v791, %v790
      %v799 = vpack.c.b16 %v793, %v792
      %v800 = vpack.c.b16 %v795, %v794
      %v801 = vpack.c.b16 %v797, %v796
      %v807 = vsel %vm342, %v766, 0
      %v810 = vsel %vm342, %v767, 0
      %v813 = vsel %vm342, %v768, 0
      %v816 = vsel %vm342, %v769, 0
      %v819 = vsel %vm342, %v770, 0
      %v822 = vsel %vm342, %v771, 0
      %v825 = vsel %vm342, %v772, 0
      %v828 = vsel %vm342, %v773, 0
      %830 = vmatprep.subr.bf16.mxu0 0
      %831 = vmatpush1.bf16.msra.mxu0 0
      %832 = vmatprep.subr.bf16.mxu0 0
      %833 = vmatpush1.bf16.msra.mxu0 0
      %834 = vmatprep.subr.bf16.mxu0 0
      %835 = vmatpush1.bf16.msra.mxu0 0
      %836 = vmatprep.subr.bf16.mxu0 0
      %837 = vmatpush1.bf16.msra.mxu0 0
      %838 = vmatprep.subr.bf16.mxu0 0
      %839 = vmatpush1.bf16.msra.mxu0 %v801
      %840 = vmatprep.subr.bf16.mxu0 0
      %841 = vmatpush1.bf16.msra.mxu0 %v800
      %842 = vmatprep.subr.bf16.mxu0 0
      %843 = vmatpush1.bf16.msra.mxu0 %v799
      %844 = vmatprep.subr.bf16.mxu0 0
      %845 = vmatpush1.bf16.msra.mxu0 %v798
      %846 = vmatprep.subr.bf16.mxu0 0
      %847 = vmatpush2.bf16.msra.mxu0 0
      %848 = vmatprep.subr.bf16.mxu0 0
      %849 = vmatpush2.bf16.msra.mxu0 0
      %850 = vmatprep.subr.bf16.mxu0 0
      %851 = vmatpush2.bf16.msra.mxu0 0
      %852 = vmatprep.subr.bf16.mxu0 0
      %853 = vmatpush2.bf16.msra.mxu0 0
      %854 = vmatprep.subr.bf16.mxu0 0
      %855 = vmatpush2.bf16.msra.mxu0 0
      %856 = vmatprep.subr.bf16.mxu0 0
      %857 = vmatpush2.bf16.msra.mxu0 0
      %858 = vmatprep.subr.bf16.mxu0 0
      %859 = vmatpush2.bf16.msra.mxu0 0
      %860 = vmatprep.subr.bf16.mxu0 0
      %861 = vmatpush2.bf16.msra.mxu0 0
      %862 = vmatprep.mubr.bf16.mxu0 0
      %863 = vmatmul.mubr.bf16.gmra.mxu0 %v807
      %v864 = vpop.f32.mrf.mxu0
      %v865 = vadd.f32 0.0, %v864
      %v866 = vpop.f32.mrf.mxu0
      %v867 = vpop.f32.mrf.mxu0
      %v868 = vadd.f32 0.0, %v867
      %v869 = vpop.f32.mrf.mxu0
      %870 = vmatprep.mubr.bf16.mxu0 0
      %871 = vmatmul.mubr.bf16.gmra.mxu0 %v810
      %v872 = vpop.f32.mrf.mxu0
      %v873 = vadd.f32 0.0, %v872
      %v874 = vpop.f32.mrf.mxu0
      %v875 = vpop.f32.mrf.mxu0
      %v876 = vadd.f32 0.0, %v875
      %v877 = vpop.f32.mrf.mxu0
      %878 = vmatprep.mubr.bf16.mxu0 0
      %879 = vmatmul.mubr.bf16.gmra.mxu0 %v813
      %v880 = vpop.f32.mrf.mxu0
      %v881 = vadd.f32 0.0, %v880
      %v882 = vpop.f32.mrf.mxu0
      %v883 = vpop.f32.mrf.mxu0
      %v884 = vadd.f32 0.0, %v883
      %v885 = vpop.f32.mrf.mxu0
      %886 = vmatprep.mubr.bf16.mxu0 0
      %887 = vmatmul.mubr.bf16.gmra.mxu0 %v816
      %v888 = vpop.f32.mrf.mxu0
      %v889 = vadd.f32 0.0, %v888
      %v890 = vpop.f32.mrf.mxu0
      %v891 = vpop.f32.mrf.mxu0
      %v892 = vadd.f32 0.0, %v891
      %v893 = vpop.f32.mrf.mxu0
      %894 = vmatprep.mubr.bf16.mxu0 0
      %895 = vmatmul.mubr.bf16.gmra.mxu0 %v819
      %v896 = vpop.f32.mrf.mxu0
      %v897 = vadd.f32 0.0, %v896
      %v898 = vpop.f32.mrf.mxu0
      %v899 = vpop.f32.mrf.mxu0
      %v900 = vadd.f32 0.0, %v899
      %v901 = vpop.f32.mrf.mxu0
      %902 = vmatprep.mubr.bf16.mxu0 0
      %903 = vmatmul.mubr.bf16.gmra.mxu0 %v822
      %v904 = vpop.f32.mrf.mxu0
      %v905 = vadd.f32 0.0, %v904
      %v906 = vpop.f32.mrf.mxu0
      %v907 = vpop.f32.mrf.mxu0
      %v908 = vadd.f32 0.0, %v907
      %v909 = vpop.f32.mrf.mxu0
      %910 = vmatprep.mubr.bf16.mxu0 0
      %911 = vmatmul.mubr.bf16.gmra.mxu0 %v825
      %v912 = vpop.f32.mrf.mxu0
      %v913 = vadd.f32 0.0, %v912
      %v914 = vpop.f32.mrf.mxu0
      %v915 = vpop.f32.mrf.mxu0
      %v916 = vadd.f32 0.0, %v915
      %v917 = vpop.f32.mrf.mxu0
      %918 = vmatprep.mubr.bf16.mxu0 0
      %919 = vmatmul.mubr.bf16.gmra.mxu0 %v828
      %v920 = vpop.f32.mrf.mxu0
      %v921 = vadd.f32 0.0, %v920
      %v922 = vpop.f32.mrf.mxu0
      %v923 = vpop.f32.mrf.mxu0
      %v924 = vadd.f32 0.0, %v923
      %v925 = vpop.f32.mrf.mxu0
      %926 = vdwg.mxu0
      %v927 = vmul.f32 %v865, %v865
      %v928 = vmul.f32 %v868, %v868
      %v929 = vmul.f32 %v873, %v873
      %v930 = vmul.f32 %v876, %v876
      %v931 = vmul.f32 %v881, %v881
      %v932 = vmul.f32 %v884, %v884
      %v933 = vmul.f32 %v889, %v889
      %v934 = vmul.f32 %v892, %v892
      %v935 = vmul.f32 %v897, %v897
      %v936 = vmul.f32 %v900, %v900
      %v937 = vmul.f32 %v905, %v905
      %v938 = vmul.f32 %v908, %v908
      %v939 = vmul.f32 %v913, %v913
      %v940 = vmul.f32 %v916, %v916
      %v941 = vmul.f32 %v921, %v921
      %v942 = vmul.f32 %v924, %v924
      %vm943 = vcmask 64512
      %v944 = vsel %vm943, %v927, 0.0
      %945 = vadd.xlane.f32.xlu0 %v944
      %v946 = vpop.xlane.xlu0 %945
      %v947 = vsel %vm943, %v928, 0.0
      %948 = vadd.xlane.f32.xlu0 %v947
      %v949 = vpop.xlane.xlu0 %948
      %v950 = vsel %vm943, %v929, 0.0
      %951 = vadd.xlane.f32.xlu0 %v950
      %v952 = vpop.xlane.xlu0 %951
      %v953 = vsel %vm943, %v930, 0.0
      %954 = vadd.xlane.f32.xlu0 %v953
      %v955 = vpop.xlane.xlu0 %954
      %v956 = vsel %vm943, %v931, 0.0
      %957 = vadd.xlane.f32.xlu0 %v956
      %v958 = vpop.xlane.xlu0 %957
      %v959 = vsel %vm943, %v932, 0.0
      %960 = vadd.xlane.f32.xlu0 %v959
      %v961 = vpop.xlane.xlu0 %960
      %v962 = vsel %vm943, %v933, 0.0
      %963 = vadd.xlane.f32.xlu0 %v962
      %v964 = vpop.xlane.xlu0 %963
      %v965 = vsel %vm943, %v934, 0.0
      %966 = vadd.xlane.f32.xlu0 %v965
      %v967 = vpop.xlane.xlu0 %966
      %v968 = vsel %vm943, %v935, 0.0
      %969 = vadd.xlane.f32.xlu0 %v968
      %v970 = vpop.xlane.xlu0 %969
      %v971 = vsel %vm943, %v936, 0.0
      %972 = vadd.xlane.f32.xlu0 %v971
      %v973 = vpop.xlane.xlu0 %972
      %v974 = vsel %vm943, %v937, 0.0
      %975 = vadd.xlane.f32.xlu0 %v974
      %v976 = vpop.xlane.xlu0 %975
      %v977 = vsel %vm943, %v938, 0.0
      %978 = vadd.xlane.f32.xlu0 %v977
      %v979 = vpop.xlane.xlu0 %978
      %v980 = vsel %vm943, %v939, 0.0
      %981 = vadd.xlane.f32.xlu0 %v980
      %v982 = vpop.xlane.xlu0 %981
      %v983 = vsel %vm943, %v940, 0.0
      %984 = vadd.xlane.f32.xlu0 %v983
      %v985 = vpop.xlane.xlu0 %984
      %v986 = vsel %vm943, %v941, 0.0
      %987 = vadd.xlane.f32.xlu0 %v986
      %v988 = vpop.xlane.xlu0 %987
      %v989 = vsel %vm943, %v942, 0.0
      %990 = vadd.xlane.f32.xlu0 %v989
      %v991 = vpop.xlane.xlu0 %990
      %v992 = vmax.f32 %v946, 1e-24
      %v993 = vmax.f32 %v949, 1e-24
      %v994 = vmax.f32 %v952, 1e-24
      %v995 = vmax.f32 %v955, 1e-24
      %v996 = vmax.f32 %v958, 1e-24
      %v997 = vmax.f32 %v961, 1e-24
      %v998 = vmax.f32 %v964, 1e-24
      %v999 = vmax.f32 %v967, 1e-24
      %v1000 = vmax.f32 %v970, 1e-24
      %v1001 = vmax.f32 %v973, 1e-24
      %v1002 = vmax.f32 %v976, 1e-24
      %v1003 = vmax.f32 %v979, 1e-24
      %v1004 = vmax.f32 %v982, 1e-24
      %v1005 = vmax.f32 %v985, 1e-24
      %v1006 = vmax.f32 %v988, 1e-24
      %v1007 = vmax.f32 %v991, 1e-24
      %v1008 = vrsqrt.pop %v992
      %v1009 = vrsqrt.pop %v993
      %v1010 = vrsqrt.pop %v994
      %v1011 = vrsqrt.pop %v995
      %v1012 = vrsqrt.pop %v996
      %v1013 = vrsqrt.pop %v997
      %v1014 = vrsqrt.pop %v998
      %v1015 = vrsqrt.pop %v999
      %v1016 = vrsqrt.pop %v1000
      %v1017 = vrsqrt.pop %v1001
      %v1018 = vrsqrt.pop %v1002
      %v1019 = vrsqrt.pop %v1003
      %v1020 = vrsqrt.pop %v1004
      %v1021 = vrsqrt.pop %v1005
      %v1022 = vrsqrt.pop %v1006
      %v1023 = vrsqrt.pop %v1007
      %v1024 = vmul.f32 %v865, %v1008
      %v1025 = vmul.f32 %v868, %v1009
      %v1026 = vmul.f32 %v873, %v1010
      %v1027 = vmul.f32 %v876, %v1011
      %v1028 = vmul.f32 %v881, %v1012
      %v1029 = vmul.f32 %v884, %v1013
      %v1030 = vmul.f32 %v889, %v1014
      %v1031 = vmul.f32 %v892, %v1015
      %v1032 = vmul.f32 %v897, %v1016
      %v1033 = vmul.f32 %v900, %v1017
      %v1034 = vmul.f32 %v905, %v1018
      %v1035 = vmul.f32 %v908, %v1019
      %v1036 = vmul.f32 %v913, %v1020
      %v1037 = vmul.f32 %v916, %v1021
      %v1038 = vmul.f32 %v921, %v1022
      %v1039 = vmul.f32 %v924, %v1023
      %v1040 = vmul.f32 %v1024, 16.0
      %v1041 = vmul.f32 %v1025, 16.0
      %v1042 = vmul.f32 %v1026, 16.0
      %v1043 = vmul.f32 %v1027, 16.0
      %v1044 = vmul.f32 %v1028, 16.0
      %v1045 = vmul.f32 %v1029, 16.0
      %v1046 = vmul.f32 %v1030, 16.0
      %v1047 = vmul.f32 %v1031, 16.0
      %v1048 = vmul.f32 %v1032, 16.0
      %v1049 = vmul.f32 %v1033, 16.0
      %v1050 = vmul.f32 %v1034, 16.0
      %v1051 = vmul.f32 %v1035, 16.0
      %v1052 = vmul.f32 %v1036, 16.0
      %v1053 = vmul.f32 %v1037, 16.0
      %v1054 = vmul.f32 %v1038, 16.0
      %v1055 = vmul.f32 %v1039, 16.0
      %v1056 = vsel %vm943, %v1040, -inf
      %v1057 = vsel %vm943, %v1041, -inf
      %v1058 = vmax.f32 %v1056, %v1057
      %v1059 = vrot.slane %v1058, 4
      %v1060 = vmax.f32 %v1058, %v1059
      %v1061 = vrot.slane %v1060, 2
      %v1062 = vmax.f32 %v1060, %v1061
      %v1063 = vrot.slane %v1062, 1
      %v1064 = vmax.f32 %v1062, %v1063
      %v1065 = vsel %vm943, %v1042, -inf
      %v1066 = vsel %vm943, %v1043, -inf
      %v1067 = vmax.f32 %v1065, %v1066
      %v1068 = vrot.slane %v1067, 4
      %v1069 = vmax.f32 %v1067, %v1068
      %v1070 = vrot.slane %v1069, 2
      %v1071 = vmax.f32 %v1069, %v1070
      %v1072 = vrot.slane %v1071, 1
      %v1073 = vmax.f32 %v1071, %v1072
      %v1074 = vsel %vm943, %v1044, -inf
      %v1075 = vsel %vm943, %v1045, -inf
      %v1076 = vmax.f32 %v1074, %v1075
      %v1077 = vrot.slane %v1076, 4
      %v1078 = vmax.f32 %v1076, %v1077
      %v1079 = vrot.slane %v1078, 2
      %v1080 = vmax.f32 %v1078, %v1079
      %v1081 = vrot.slane %v1080, 1
      %v1082 = vmax.f32 %v1080, %v1081
      %v1083 = vsel %vm943, %v1046, -inf
      %v1084 = vsel %vm943, %v1047, -inf
      %v1085 = vmax.f32 %v1083, %v1084
      %v1086 = vrot.slane %v1085, 4
      %v1087 = vmax.f32 %v1085, %v1086
      %v1088 = vrot.slane %v1087, 2
      %v1089 = vmax.f32 %v1087, %v1088
      %v1090 = vrot.slane %v1089, 1
      %v1091 = vmax.f32 %v1089, %v1090
      %v1092 = vsel %vm943, %v1048, -inf
      %v1093 = vsel %vm943, %v1049, -inf
      %v1094 = vmax.f32 %v1092, %v1093
      %v1095 = vrot.slane %v1094, 4
      %v1096 = vmax.f32 %v1094, %v1095
      %v1097 = vrot.slane %v1096, 2
      %v1098 = vmax.f32 %v1096, %v1097
      %v1099 = vrot.slane %v1098, 1
      %v1100 = vmax.f32 %v1098, %v1099
      %v1101 = vsel %vm943, %v1050, -inf
      %v1102 = vsel %vm943, %v1051, -inf
      %v1103 = vmax.f32 %v1101, %v1102
      %v1104 = vrot.slane %v1103, 4
      %v1105 = vmax.f32 %v1103, %v1104
      %v1106 = vrot.slane %v1105, 2
      %v1107 = vmax.f32 %v1105, %v1106
      %v1108 = vrot.slane %v1107, 1
      %v1109 = vmax.f32 %v1107, %v1108
      %v1110 = vsel %vm943, %v1052, -inf
      %v1111 = vsel %vm943, %v1053, -inf
      %v1112 = vmax.f32 %v1110, %v1111
      %v1113 = vrot.slane %v1112, 4
      %v1114 = vmax.f32 %v1112, %v1113
      %v1115 = vrot.slane %v1114, 2
      %v1116 = vmax.f32 %v1114, %v1115
      %v1117 = vrot.slane %v1116, 1
      %v1118 = vmax.f32 %v1116, %v1117
      %v1119 = vsel %vm943, %v1054, -inf
      %v1120 = vsel %vm943, %v1055, -inf
      %v1121 = vmax.f32 %v1119, %v1120
      %v1122 = vrot.slane %v1121, 4
      %v1123 = vmax.f32 %v1121, %v1122
      %v1124 = vrot.slane %v1123, 2
      %v1125 = vmax.f32 %v1123, %v1124
      %v1126 = vrot.slane %v1125, 1
      %v1127 = vmax.f32 %v1125, %v1126
      %v1128 = vsub.f32 %v1040, %v1064
      %v1129 = vsub.f32 %v1041, %v1064
      %v1130 = vsub.f32 %v1042, %v1073
      %v1131 = vsub.f32 %v1043, %v1073
      %v1132 = vsub.f32 %v1044, %v1082
      %v1133 = vsub.f32 %v1045, %v1082
      %v1134 = vsub.f32 %v1046, %v1091
      %v1135 = vsub.f32 %v1047, %v1091
      %v1136 = vsub.f32 %v1048, %v1100
      %v1137 = vsub.f32 %v1049, %v1100
      %v1138 = vsub.f32 %v1050, %v1109
      %v1139 = vsub.f32 %v1051, %v1109
      %v1140 = vsub.f32 %v1052, %v1118
      %v1141 = vsub.f32 %v1053, %v1118
      %v1142 = vsub.f32 %v1054, %v1127
      %v1143 = vsub.f32 %v1055, %v1127
      %v1144 = vmul.f32 %v1128, 1.442695
      %v1145 = vpow.pop %v1144
      %v1146 = vmul.f32 %v1129, 1.442695
      %v1147 = vpow.pop %v1146
      %v1148 = vmul.f32 %v1130, 1.442695
      %v1149 = vpow.pop %v1148
      %v1150 = vmul.f32 %v1131, 1.442695
      %v1151 = vpow.pop %v1150
      %v1152 = vmul.f32 %v1132, 1.442695
      %v1153 = vpow.pop %v1152
      %v1154 = vmul.f32 %v1133, 1.442695
      %v1155 = vpow.pop %v1154
      %v1156 = vmul.f32 %v1134, 1.442695
      %v1157 = vpow.pop %v1156
      %v1158 = vmul.f32 %v1135, 1.442695
      %v1159 = vpow.pop %v1158
      %v1160 = vmul.f32 %v1136, 1.442695
      %v1161 = vpow.pop %v1160
      %v1162 = vmul.f32 %v1137, 1.442695
      %v1163 = vpow.pop %v1162
      %v1164 = vmul.f32 %v1138, 1.442695
      %v1165 = vpow.pop %v1164
      %v1166 = vmul.f32 %v1139, 1.442695
      %v1167 = vpow.pop %v1166
      %v1168 = vmul.f32 %v1140, 1.442695
      %v1169 = vpow.pop %v1168
      %v1170 = vmul.f32 %v1141, 1.442695
      %v1171 = vpow.pop %v1170
      %v1172 = vmul.f32 %v1142, 1.442695
      %v1173 = vpow.pop %v1172
      %v1174 = vmul.f32 %v1143, 1.442695
      %v1175 = vpow.pop %v1174
      %v1176 = vsel %vm943, %v1145, 0.0
      %v1177 = vsel %vm943, %v1147, 0.0
      %v1178 = vadd.f32 %v1176, %v1177
      %v1179 = vrot.slane %v1178, 4
      %v1180 = vadd.f32 %v1178, %v1179
      %v1181 = vrot.slane %v1180, 2
      %v1182 = vadd.f32 %v1180, %v1181
      %v1183 = vrot.slane %v1182, 1
      %v1184 = vadd.f32 %v1182, %v1183
      %v1185 = vsel %vm943, %v1149, 0.0
      %v1186 = vsel %vm943, %v1151, 0.0
      %v1187 = vadd.f32 %v1185, %v1186
      %v1188 = vrot.slane %v1187, 4
      %v1189 = vadd.f32 %v1187, %v1188
      %v1190 = vrot.slane %v1189, 2
      %v1191 = vadd.f32 %v1189, %v1190
      %v1192 = vrot.slane %v1191, 1
      %v1193 = vadd.f32 %v1191, %v1192
      %v1194 = vsel %vm943, %v1153, 0.0
      %v1195 = vsel %vm943, %v1155, 0.0
      %v1196 = vadd.f32 %v1194, %v1195
      %v1197 = vrot.slane %v1196, 4
      %v1198 = vadd.f32 %v1196, %v1197
      %v1199 = vrot.slane %v1198, 2
      %v1200 = vadd.f32 %v1198, %v1199
      %v1201 = vrot.slane %v1200, 1
      %v1202 = vadd.f32 %v1200, %v1201
      %v1203 = vsel %vm943, %v1157, 0.0
      %v1204 = vsel %vm943, %v1159, 0.0
      %v1205 = vadd.f32 %v1203, %v1204
      %v1206 = vrot.slane %v1205, 4
      %v1207 = vadd.f32 %v1205, %v1206
      %v1208 = vrot.slane %v1207, 2
      %v1209 = vadd.f32 %v1207, %v1208
      %v1210 = vrot.slane %v1209, 1
      %v1211 = vadd.f32 %v1209, %v1210
      %v1212 = vsel %vm943, %v1161, 0.0
      %v1213 = vsel %vm943, %v1163, 0.0
      %v1214 = vadd.f32 %v1212, %v1213
      %v1215 = vrot.slane %v1214, 4
      %v1216 = vadd.f32 %v1214, %v1215
      %v1217 = vrot.slane %v1216, 2
      %v1218 = vadd.f32 %v1216, %v1217
      %v1219 = vrot.slane %v1218, 1
      %v1220 = vadd.f32 %v1218, %v1219
      %v1221 = vsel %vm943, %v1165, 0.0
      %v1222 = vsel %vm943, %v1167, 0.0
      %v1223 = vadd.f32 %v1221, %v1222
      %v1224 = vrot.slane %v1223, 4
      %v1225 = vadd.f32 %v1223, %v1224
      %v1226 = vrot.slane %v1225, 2
      %v1227 = vadd.f32 %v1225, %v1226
      %v1228 = vrot.slane %v1227, 1
      %v1229 = vadd.f32 %v1227, %v1228
      %v1230 = vsel %vm943, %v1169, 0.0
      %v1231 = vsel %vm943, %v1171, 0.0
      %v1232 = vadd.f32 %v1230, %v1231
      %v1233 = vrot.slane %v1232, 4
      %v1234 = vadd.f32 %v1232, %v1233
      %v1235 = vrot.slane %v1234, 2
      %v1236 = vadd.f32 %v1234, %v1235
      %v1237 = vrot.slane %v1236, 1
      %v1238 = vadd.f32 %v1236, %v1237
      %v1239 = vsel %vm943, %v1173, 0.0
      %v1240 = vsel %vm943, %v1175, 0.0
      %v1241 = vadd.f32 %v1239, %v1240
      %v1242 = vrot.slane %v1241, 4
      %v1243 = vadd.f32 %v1241, %v1242
      %v1244 = vrot.slane %v1243, 2
      %v1245 = vadd.f32 %v1243, %v1244
      %v1246 = vrot.slane %v1245, 1
      %v1247 = vadd.f32 %v1245, %v1246
      %v1248 = vrcp.pop %v1184
      %v1249 = vrcp.pop %v1193
      %v1250 = vrcp.pop %v1202
      %v1251 = vrcp.pop %v1211
      %v1252 = vrcp.pop %v1220
      %v1253 = vrcp.pop %v1229
      %v1254 = vrcp.pop %v1238
      %v1255 = vrcp.pop %v1247
      %v1256 = vmul.f32 %v1145, %v1248
      %v1257 = vmul.f32 %v1147, %v1248
      %v1258 = vmul.f32 %v1149, %v1249
      %v1259 = vmul.f32 %v1151, %v1249
      %v1260 = vmul.f32 %v1153, %v1250
      %v1261 = vmul.f32 %v1155, %v1250
      %v1262 = vmul.f32 %v1157, %v1251
      %v1263 = vmul.f32 %v1159, %v1251
      %v1264 = vmul.f32 %v1161, %v1252
      %v1265 = vmul.f32 %v1163, %v1252
      %v1266 = vmul.f32 %v1165, %v1253
      %v1267 = vmul.f32 %v1167, %v1253
      %v1268 = vmul.f32 %v1169, %v1254
      %v1269 = vmul.f32 %v1171, %v1254
      %v1270 = vmul.f32 %v1173, %v1255
      %v1271 = vmul.f32 %v1175, %v1255
      %v1272 = vpack.c.bf16 %v1257, %v1256
      %v1273 = vpack.c.bf16 %v1259, %v1258
      %v1274 = vpack.c.bf16 %v1261, %v1260
      %v1275 = vpack.c.bf16 %v1263, %v1262
      %v1276 = vpack.c.bf16 %v1265, %v1264
      %v1277 = vpack.c.bf16 %v1267, %v1266
      %v1278 = vpack.c.bf16 %v1269, %v1268
      %v1279 = vpack.c.bf16 %v1271, %v1270
      %1280 = vxpose.xlu0.c.b16.start [1/8] %v1272, 128
      %1281 = vxpose.xlu0.c.b16.cont [2/8] 0, 128
      %1282 = vxpose.xlu0.c.b16.cont [3/8] 0, 128
      %1283 = vxpose.xlu0.c.b16.cont [4/8] 0, 128
      %1284 = vxpose.xlu0.c.b16.cont [5/8] 0, 128
      %1285 = vxpose.xlu0.c.b16.cont [6/8] 0, 128
      %1286 = vxpose.xlu0.c.b16.cont [7/8] 0, 128
      %1287 = vxpose.xlu0.c.b16.end [8/8] 0, 128
      %v1288 = vpop.trf.xlu0
      %v1289 = vpop.trf.xlu0
      %v1290 = vpop.trf.xlu0
      %v1291 = vpop.trf.xlu0
      %v1292 = vpop.trf.xlu0
      %v1293 = vpop.trf.xlu0
      %v1294 = vpop.trf.xlu0
      %v1295 = vpop.trf.xlu0
      %vm1296 = vcmask 130048
      %v1298 = vsel %vm1296, %v1288, 0
      %1300 = vmatprep.subr.bf16.mxu0 0
      %1301 = vmatpush1.bf16.msra.mxu0 0
      %1302 = vmatprep.subr.bf16.mxu0 0
      %1303 = vmatpush1.bf16.msra.mxu0 0
      %1304 = vmatprep.subr.bf16.mxu0 0
      %1305 = vmatpush1.bf16.msra.mxu0 0
      %1306 = vmatprep.subr.bf16.mxu0 0
      %1307 = vmatpush1.bf16.msra.mxu0 0
      %1308 = vmatprep.subr.bf16.mxu0 0
      %1309 = vmatpush1.bf16.msra.mxu0 0
      %1310 = vmatprep.subr.bf16.mxu0 0
      %1311 = vmatpush1.bf16.msra.mxu0 0
      %1312 = vmatprep.subr.bf16.mxu0 0
      %1313 = vmatpush1.bf16.msra.mxu0 0
      %1314 = vmatprep.subr.bf16.mxu0 0
      %1315 = vmatpush1.bf16.msra.mxu0 %v766
      %1316 = vmatprep.subr.bf16.mxu0 0
      %1317 = vmatpush2.bf16.msra.mxu0 0
      %1318 = vmatprep.subr.bf16.mxu0 0
      %1319 = vmatpush2.bf16.msra.mxu0 0
      %1320 = vmatprep.subr.bf16.mxu0 0
      %1321 = vmatpush2.bf16.msra.mxu0 0
      %1322 = vmatprep.subr.bf16.mxu0 0
      %1323 = vmatpush2.bf16.msra.mxu0 0
      %1324 = vmatprep.subr.bf16.mxu0 0
      %1325 = vmatpush2.bf16.msra.mxu0 0
      %1326 = vmatprep.subr.bf16.mxu0 0
      %1327 = vmatpush2.bf16.msra.mxu0 0
      %1328 = vmatprep.subr.bf16.mxu0 0
      %1329 = vmatpush2.bf16.msra.mxu0 0
      %1330 = vmatprep.subr.bf16.mxu0 0
      %1331 = vmatpush2.bf16.msra.mxu0 0
      %1332 = vmatprep.mubr.bf16.mxu0 0
      %1333 = vmatmul.mubr.bf16.gmra.mxu0 %v1298
      %v1334 = vpop.f32.mrf.mxu0
      %v1335 = vadd.f32 0.0, %v1334
      %v1336 = vpop.f32.mrf.mxu0
      %v1337 = vpop.f32.mrf.mxu0
      %v1338 = vpop.f32.mrf.mxu0
      %1339 = vdwg.mxu0
      %1340 = vxpose.xlu0.c.b16.start [1/8] %v1273, 128
      %1341 = vxpose.xlu0.c.b16.cont [2/8] 0, 128
      %1342 = vxpose.xlu0.c.b16.cont [3/8] 0, 128
      %1343 = vxpose.xlu0.c.b16.cont [4/8] 0, 128
      %1344 = vxpose.xlu0.c.b16.cont [5/8] 0, 128
      %1345 = vxpose.xlu0.c.b16.cont [6/8] 0, 128
      %1346 = vxpose.xlu0.c.b16.cont [7/8] 0, 128
      %1347 = vxpose.xlu0.c.b16.end [8/8] 0, 128
      %v1348 = vpop.trf.xlu0
      %v1349 = vpop.trf.xlu0
      %v1350 = vpop.trf.xlu0
      %v1351 = vpop.trf.xlu0
      %v1352 = vpop.trf.xlu0
      %v1353 = vpop.trf.xlu0
      %v1354 = vpop.trf.xlu0
      %v1355 = vpop.trf.xlu0
      %v1357 = vsel %vm1296, %v1348, 0
      %1359 = vmatprep.subr.bf16.mxu0 0
      %1360 = vmatpush1.bf16.msra.mxu0 0
      %1361 = vmatprep.subr.bf16.mxu0 0
      %1362 = vmatpush1.bf16.msra.mxu0 0
      %1363 = vmatprep.subr.bf16.mxu0 0
      %1364 = vmatpush1.bf16.msra.mxu0 0
      %1365 = vmatprep.subr.bf16.mxu0 0
      %1366 = vmatpush1.bf16.msra.mxu0 0
      %1367 = vmatprep.subr.bf16.mxu0 0
      %1368 = vmatpush1.bf16.msra.mxu0 0
      %1369 = vmatprep.subr.bf16.mxu0 0
      %1370 = vmatpush1.bf16.msra.mxu0 0
      %1371 = vmatprep.subr.bf16.mxu0 0
      %1372 = vmatpush1.bf16.msra.mxu0 0
      %1373 = vmatprep.subr.bf16.mxu0 0
      %1374 = vmatpush1.bf16.msra.mxu0 %v767
      %1375 = vmatprep.subr.bf16.mxu0 0
      %1376 = vmatpush2.bf16.msra.mxu0 0
      %1377 = vmatprep.subr.bf16.mxu0 0
      %1378 = vmatpush2.bf16.msra.mxu0 0
      %1379 = vmatprep.subr.bf16.mxu0 0
      %1380 = vmatpush2.bf16.msra.mxu0 0
      %1381 = vmatprep.subr.bf16.mxu0 0
      %1382 = vmatpush2.bf16.msra.mxu0 0
      %1383 = vmatprep.subr.bf16.mxu0 0
      %1384 = vmatpush2.bf16.msra.mxu0 0
      %1385 = vmatprep.subr.bf16.mxu0 0
      %1386 = vmatpush2.bf16.msra.mxu0 0
      %1387 = vmatprep.subr.bf16.mxu0 0
      %1388 = vmatpush2.bf16.msra.mxu0 0
      %1389 = vmatprep.subr.bf16.mxu0 0
      %1390 = vmatpush2.bf16.msra.mxu0 0
      %1391 = vmatprep.mubr.bf16.mxu0 0
      %1392 = vmatmul.mubr.bf16.gmra.mxu0 %v1357
      %v1393 = vpop.f32.mrf.mxu0
      %v1394 = vadd.f32 0.0, %v1393
      %v1395 = vpop.f32.mrf.mxu0
      %v1396 = vpop.f32.mrf.mxu0
      %v1397 = vpop.f32.mrf.mxu0
      %1398 = vdwg.mxu0
      %1399 = vxpose.xlu0.c.b16.start [1/8] %v1274, 128
      %1400 = vxpose.xlu0.c.b16.cont [2/8] 0, 128
      %1401 = vxpose.xlu0.c.b16.cont [3/8] 0, 128
      %1402 = vxpose.xlu0.c.b16.cont [4/8] 0, 128
      %1403 = vxpose.xlu0.c.b16.cont [5/8] 0, 128
      %1404 = vxpose.xlu0.c.b16.cont [6/8] 0, 128
      %1405 = vxpose.xlu0.c.b16.cont [7/8] 0, 128
      %1406 = vxpose.xlu0.c.b16.end [8/8] 0, 128
      %v1407 = vpop.trf.xlu0
      %v1408 = vpop.trf.xlu0
      %v1409 = vpop.trf.xlu0
      %v1410 = vpop.trf.xlu0
      %v1411 = vpop.trf.xlu0
      %v1412 = vpop.trf.xlu0
      %v1413 = vpop.trf.xlu0
      %v1414 = vpop.trf.xlu0
      %v1416 = vsel %vm1296, %v1407, 0
      %1418 = vmatprep.subr.bf16.mxu0 0
      %1419 = vmatpush1.bf16.msra.mxu0 0
      %1420 = vmatprep.subr.bf16.mxu0 0
      %1421 = vmatpush1.bf16.msra.mxu0 0
      %1422 = vmatprep.subr.bf16.mxu0 0
      %1423 = vmatpush1.bf16.msra.mxu0 0
      %1424 = vmatprep.subr.bf16.mxu0 0
      %1425 = vmatpush1.bf16.msra.mxu0 0
      %1426 = vmatprep.subr.bf16.mxu0 0
      %1427 = vmatpush1.bf16.msra.mxu0 0
      %1428 = vmatprep.subr.bf16.mxu0 0
      %1429 = vmatpush1.bf16.msra.mxu0 0
      %1430 = vmatprep.subr.bf16.mxu0 0
      %1431 = vmatpush1.bf16.msra.mxu0 0
      %1432 = vmatprep.subr.bf16.mxu0 0
      %1433 = vmatpush1.bf16.msra.mxu0 %v768
      %1434 = vmatprep.subr.bf16.mxu0 0
      %1435 = vmatpush2.bf16.msra.mxu0 0
      %1436 = vmatprep.subr.bf16.mxu0 0
      %1437 = vmatpush2.bf16.msra.mxu0 0
      %1438 = vmatprep.subr.bf16.mxu0 0
      %1439 = vmatpush2.bf16.msra.mxu0 0
      %1440 = vmatprep.subr.bf16.mxu0 0
      %1441 = vmatpush2.bf16.msra.mxu0 0
      %1442 = vmatprep.subr.bf16.mxu0 0
      %1443 = vmatpush2.bf16.msra.mxu0 0
      %1444 = vmatprep.subr.bf16.mxu0 0
      %1445 = vmatpush2.bf16.msra.mxu0 0
      %1446 = vmatprep.subr.bf16.mxu0 0
      %1447 = vmatpush2.bf16.msra.mxu0 0
      %1448 = vmatprep.subr.bf16.mxu0 0
      %1449 = vmatpush2.bf16.msra.mxu0 0
      %1450 = vmatprep.mubr.bf16.mxu0 0
      %1451 = vmatmul.mubr.bf16.gmra.mxu0 %v1416
      %v1452 = vpop.f32.mrf.mxu0
      %v1453 = vadd.f32 0.0, %v1452
      %v1454 = vpop.f32.mrf.mxu0
      %v1455 = vpop.f32.mrf.mxu0
      %v1456 = vpop.f32.mrf.mxu0
      %1457 = vdwg.mxu0
      %1458 = vxpose.xlu0.c.b16.start [1/8] %v1275, 128
      %1459 = vxpose.xlu0.c.b16.cont [2/8] 0, 128
      %1460 = vxpose.xlu0.c.b16.cont [3/8] 0, 128
      %1461 = vxpose.xlu0.c.b16.cont [4/8] 0, 128
      %1462 = vxpose.xlu0.c.b16.cont [5/8] 0, 128
      %1463 = vxpose.xlu0.c.b16.cont [6/8] 0, 128
      %1464 = vxpose.xlu0.c.b16.cont [7/8] 0, 128
      %1465 = vxpose.xlu0.c.b16.end [8/8] 0, 128
      %v1466 = vpop.trf.xlu0
      %v1467 = vpop.trf.xlu0
      %v1468 = vpop.trf.xlu0
      %v1469 = vpop.trf.xlu0
      %v1470 = vpop.trf.xlu0
      %v1471 = vpop.trf.xlu0
      %v1472 = vpop.trf.xlu0
      %v1473 = vpop.trf.xlu0
      %v1475 = vsel %vm1296, %v1466, 0
      %1477 = vmatprep.subr.bf16.mxu0 0
      %1478 = vmatpush1.bf16.msra.mxu0 0
      %1479 = vmatprep.subr.bf16.mxu0 0
      %1480 = vmatpush1.bf16.msra.mxu0 0
      %1481 = vmatprep.subr.bf16.mxu0 0
      %1482 = vmatpush1.bf16.msra.mxu0 0
      %1483 = vmatprep.subr.bf16.mxu0 0
      %1484 = vmatpush1.bf16.msra.mxu0 0
      %1485 = vmatprep.subr.bf16.mxu0 0
      %1486 = vmatpush1.bf16.msra.mxu0 0
      %1487 = vmatprep.subr.bf16.mxu0 0
      %1488 = vmatpush1.bf16.msra.mxu0 0
      %1489 = vmatprep.subr.bf16.mxu0 0
      %1490 = vmatpush1.bf16.msra.mxu0 0
      %1491 = vmatprep.subr.bf16.mxu0 0
      %1492 = vmatpush1.bf16.msra.mxu0 %v769
      %1493 = vmatprep.subr.bf16.mxu0 0
      %1494 = vmatpush2.bf16.msra.mxu0 0
      %1495 = vmatprep.subr.bf16.mxu0 0
      %1496 = vmatpush2.bf16.msra.mxu0 0
      %1497 = vmatprep.subr.bf16.mxu0 0
      %1498 = vmatpush2.bf16.msra.mxu0 0
      %1499 = vmatprep.subr.bf16.mxu0 0
      %1500 = vmatpush2.bf16.msra.mxu0 0
      %1501 = vmatprep.subr.bf16.mxu0 0
      %1502 = vmatpush2.bf16.msra.mxu0 0
      %1503 = vmatprep.subr.bf16.mxu0 0
      %1504 = vmatpush2.bf16.msra.mxu0 0
      %1505 = vmatprep.subr.bf16.mxu0 0
      %1506 = vmatpush2.bf16.msra.mxu0 0
      %1507 = vmatprep.subr.bf16.mxu0 0
      %1508 = vmatpush2.bf16.msra.mxu0 0
      %1509 = vmatprep.mubr.bf16.mxu0 0
      %1510 = vmatmul.mubr.bf16.gmra.mxu0 %v1475
      %v1511 = vpop.f32.mrf.mxu0
      %v1512 = vadd.f32 0.0, %v1511
      %v1513 = vpop.f32.mrf.mxu0
      %v1514 = vpop.f32.mrf.mxu0
      %v1515 = vpop.f32.mrf.mxu0
      %1516 = vdwg.mxu0
      %1517 = vxpose.xlu0.c.b16.start [1/8] %v1276, 128
      %1518 = vxpose.xlu0.c.b16.cont [2/8] 0, 128
      %1519 = vxpose.xlu0.c.b16.cont [3/8] 0, 128
      %1520 = vxpose.xlu0.c.b16.cont [4/8] 0, 128
      %1521 = vxpose.xlu0.c.b16.cont [5/8] 0, 128
      %1522 = vxpose.xlu0.c.b16.cont [6/8] 0, 128
      %1523 = vxpose.xlu0.c.b16.cont [7/8] 0, 128
      %1524 = vxpose.xlu0.c.b16.end [8/8] 0, 128
      %v1525 = vpop.trf.xlu0
      %v1526 = vpop.trf.xlu0
      %v1527 = vpop.trf.xlu0
      %v1528 = vpop.trf.xlu0
      %v1529 = vpop.trf.xlu0
      %v1530 = vpop.trf.xlu0
      %v1531 = vpop.trf.xlu0
      %v1532 = vpop.trf.xlu0
      %v1534 = vsel %vm1296, %v1525, 0
      %1536 = vmatprep.subr.bf16.mxu0 0
      %1537 = vmatpush1.bf16.msra.mxu0 0
      %1538 = vmatprep.subr.bf16.mxu0 0
      %1539 = vmatpush1.bf16.msra.mxu0 0
      %1540 = vmatprep.subr.bf16.mxu0 0
      %1541 = vmatpush1.bf16.msra.mxu0 0
      %1542 = vmatprep.subr.bf16.mxu0 0
      %1543 = vmatpush1.bf16.msra.mxu0 0
      %1544 = vmatprep.subr.bf16.mxu0 0
      %1545 = vmatpush1.bf16.msra.mxu0 0
      %1546 = vmatprep.subr.bf16.mxu0 0
      %1547 = vmatpush1.bf16.msra.mxu0 0
      %1548 = vmatprep.subr.bf16.mxu0 0
      %1549 = vmatpush1.bf16.msra.mxu0 0
      %1550 = vmatprep.subr.bf16.mxu0 0
      %1551 = vmatpush1.bf16.msra.mxu0 %v770
      %1552 = vmatprep.subr.bf16.mxu0 0
      %1553 = vmatpush2.bf16.msra.mxu0 0
      %1554 = vmatprep.subr.bf16.mxu0 0
      %1555 = vmatpush2.bf16.msra.mxu0 0
      %1556 = vmatprep.subr.bf16.mxu0 0
      %1557 = vmatpush2.bf16.msra.mxu0 0
      %1558 = vmatprep.subr.bf16.mxu0 0
      %1559 = vmatpush2.bf16.msra.mxu0 0
      %1560 = vmatprep.subr.bf16.mxu0 0
      %1561 = vmatpush2.bf16.msra.mxu0 0
      %1562 = vmatprep.subr.bf16.mxu0 0
      %1563 = vmatpush2.bf16.msra.mxu0 0
      %1564 = vmatprep.subr.bf16.mxu0 0
      %1565 = vmatpush2.bf16.msra.mxu0 0
      %1566 = vmatprep.subr.bf16.mxu0 0
      %1567 = vmatpush2.bf16.msra.mxu0 0
      %1568 = vmatprep.mubr.bf16.mxu0 0
      %1569 = vmatmul.mubr.bf16.gmra.mxu0 %v1534
      %v1570 = vpop.f32.mrf.mxu0
      %v1571 = vadd.f32 0.0, %v1570
      %v1572 = vpop.f32.mrf.mxu0
      %v1573 = vpop.f32.mrf.mxu0
      %v1574 = vpop.f32.mrf.mxu0
      %1575 = vdwg.mxu0
      %1576 = vxpose.xlu0.c.b16.start [1/8] %v1277, 128
      %1577 = vxpose.xlu0.c.b16.cont [2/8] 0, 128
      %1578 = vxpose.xlu0.c.b16.cont [3/8] 0, 128
      %1579 = vxpose.xlu0.c.b16.cont [4/8] 0, 128
      %1580 = vxpose.xlu0.c.b16.cont [5/8] 0, 128
      %1581 = vxpose.xlu0.c.b16.cont [6/8] 0, 128
      %1582 = vxpose.xlu0.c.b16.cont [7/8] 0, 128
      %1583 = vxpose.xlu0.c.b16.end [8/8] 0, 128
      %v1584 = vpop.trf.xlu0
      %v1585 = vpop.trf.xlu0
      %v1586 = vpop.trf.xlu0
      %v1587 = vpop.trf.xlu0
      %v1588 = vpop.trf.xlu0
      %v1589 = vpop.trf.xlu0
      %v1590 = vpop.trf.xlu0
      %v1591 = vpop.trf.xlu0
      %v1593 = vsel %vm1296, %v1584, 0
      %1595 = vmatprep.subr.bf16.mxu0 0
      %1596 = vmatpush1.bf16.msra.mxu0 0
      %1597 = vmatprep.subr.bf16.mxu0 0
      %1598 = vmatpush1.bf16.msra.mxu0 0
      %1599 = vmatprep.subr.bf16.mxu0 0
      %1600 = vmatpush1.bf16.msra.mxu0 0
      %1601 = vmatprep.subr.bf16.mxu0 0
      %1602 = vmatpush1.bf16.msra.mxu0 0
      %1603 = vmatprep.subr.bf16.mxu0 0
      %1604 = vmatpush1.bf16.msra.mxu0 0
      %1605 = vmatprep.subr.bf16.mxu0 0
      %1606 = vmatpush1.bf16.msra.mxu0 0
      %1607 = vmatprep.subr.bf16.mxu0 0
      %1608 = vmatpush1.bf16.msra.mxu0 0
      %1609 = vmatprep.subr.bf16.mxu0 0
      %1610 = vmatpush1.bf16.msra.mxu0 %v771
      %1611 = vmatprep.subr.bf16.mxu0 0
      %1612 = vmatpush2.bf16.msra.mxu0 0
      %1613 = vmatprep.subr.bf16.mxu0 0
      %1614 = vmatpush2.bf16.msra.mxu0 0
      %1615 = vmatprep.subr.bf16.mxu0 0
      %1616 = vmatpush2.bf16.msra.mxu0 0
      %1617 = vmatprep.subr.bf16.mxu0 0
      %1618 = vmatpush2.bf16.msra.mxu0 0
      %1619 = vmatprep.subr.bf16.mxu0 0
      %1620 = vmatpush2.bf16.msra.mxu0 0
      %1621 = vmatprep.subr.bf16.mxu0 0
      %1622 = vmatpush2.bf16.msra.mxu0 0
      %1623 = vmatprep.subr.bf16.mxu0 0
      %1624 = vmatpush2.bf16.msra.mxu0 0
      %1625 = vmatprep.subr.bf16.mxu0 0
      %1626 = vmatpush2.bf16.msra.mxu0 0
      %1627 = vmatprep.mubr.bf16.mxu0 0
      %1628 = vmatmul.mubr.bf16.gmra.mxu0 %v1593
      %v1629 = vpop.f32.mrf.mxu0
      %v1630 = vadd.f32 0.0, %v1629
      %v1631 = vpop.f32.mrf.mxu0
      %v1632 = vpop.f32.mrf.mxu0
      %v1633 = vpop.f32.mrf.mxu0
      %1634 = vdwg.mxu0
      %1635 = vxpose.xlu0.c.b16.start [1/8] %v1278, 128
      %1636 = vxpose.xlu0.c.b16.cont [2/8] 0, 128
      %1637 = vxpose.xlu0.c.b16.cont [3/8] 0, 128
      %1638 = vxpose.xlu0.c.b16.cont [4/8] 0, 128
      %1639 = vxpose.xlu0.c.b16.cont [5/8] 0, 128
      %1640 = vxpose.xlu0.c.b16.cont [6/8] 0, 128
      %1641 = vxpose.xlu0.c.b16.cont [7/8] 0, 128
      %1642 = vxpose.xlu0.c.b16.end [8/8] 0, 128
      %v1643 = vpop.trf.xlu0
      %v1644 = vpop.trf.xlu0
      %v1645 = vpop.trf.xlu0
      %v1646 = vpop.trf.xlu0
      %v1647 = vpop.trf.xlu0
      %v1648 = vpop.trf.xlu0
      %v1649 = vpop.trf.xlu0
      %v1650 = vpop.trf.xlu0
      %v1652 = vsel %vm1296, %v1643, 0
      %1654 = vmatprep.subr.bf16.mxu0 0
      %1655 = vmatpush1.bf16.msra.mxu0 0
      %1656 = vmatprep.subr.bf16.mxu0 0
      %1657 = vmatpush1.bf16.msra.mxu0 0
      %1658 = vmatprep.subr.bf16.mxu0 0
      %1659 = vmatpush1.bf16.msra.mxu0 0
      %1660 = vmatprep.subr.bf16.mxu0 0
      %1661 = vmatpush1.bf16.msra.mxu0 0
      %1662 = vmatprep.subr.bf16.mxu0 0
      %1663 = vmatpush1.bf16.msra.mxu0 0
      %1664 = vmatprep.subr.bf16.mxu0 0
      %1665 = vmatpush1.bf16.msra.mxu0 0
      %1666 = vmatprep.subr.bf16.mxu0 0
      %1667 = vmatpush1.bf16.msra.mxu0 0
      %1668 = vmatprep.subr.bf16.mxu0 0
      %1669 = vmatpush1.bf16.msra.mxu0 %v772
      %1670 = vmatprep.subr.bf16.mxu0 0
      %1671 = vmatpush2.bf16.msra.mxu0 0
      %1672 = vmatprep.subr.bf16.mxu0 0
      %1673 = vmatpush2.bf16.msra.mxu0 0
      %1674 = vmatprep.subr.bf16.mxu0 0
      %1675 = vmatpush2.bf16.msra.mxu0 0
      %1676 = vmatprep.subr.bf16.mxu0 0
      %1677 = vmatpush2.bf16.msra.mxu0 0
      %1678 = vmatprep.subr.bf16.mxu0 0
      %1679 = vmatpush2.bf16.msra.mxu0 0
      %1680 = vmatprep.subr.bf16.mxu0 0
      %1681 = vmatpush2.bf16.msra.mxu0 0
      %1682 = vmatprep.subr.bf16.mxu0 0
      %1683 = vmatpush2.bf16.msra.mxu0 0
      %1684 = vmatprep.subr.bf16.mxu0 0
      %1685 = vmatpush2.bf16.msra.mxu0 0
      %1686 = vmatprep.mubr.bf16.mxu0 0
      %1687 = vmatmul.mubr.bf16.gmra.mxu0 %v1652
      %v1688 = vpop.f32.mrf.mxu0
      %v1689 = vadd.f32 0.0, %v1688
      %v1690 = vpop.f32.mrf.mxu0
      %v1691 = vpop.f32.mrf.mxu0
      %v1692 = vpop.f32.mrf.mxu0
      %1693 = vdwg.mxu0
      %1694 = vxpose.xlu0.c.b16.start [1/8] %v1279, 128
      %1695 = vxpose.xlu0.c.b16.cont [2/8] 0, 128
      %1696 = vxpose.xlu0.c.b16.cont [3/8] 0, 128
      %1697 = vxpose.xlu0.c.b16.cont [4/8] 0, 128
      %1698 = vxpose.xlu0.c.b16.cont [5/8] 0, 128
      %1699 = vxpose.xlu0.c.b16.cont [6/8] 0, 128
      %1700 = vxpose.xlu0.c.b16.cont [7/8] 0, 128
      %1701 = vxpose.xlu0.c.b16.end [8/8] 0, 128
      %v1702 = vpop.trf.xlu0
      %v1703 = vpop.trf.xlu0
      %v1704 = vpop.trf.xlu0
      %v1705 = vpop.trf.xlu0
      %v1706 = vpop.trf.xlu0
      %v1707 = vpop.trf.xlu0
      %v1708 = vpop.trf.xlu0
      %v1709 = vpop.trf.xlu0
      %v1711 = vsel %vm1296, %v1702, 0
      %1713 = vmatprep.subr.bf16.mxu0 0
      %1714 = vmatpush1.bf16.msra.mxu0 0
      %1715 = vmatprep.subr.bf16.mxu0 0
      %1716 = vmatpush1.bf16.msra.mxu0 0
      %1717 = vmatprep.subr.bf16.mxu0 0
      %1718 = vmatpush1.bf16.msra.mxu0 0
      %1719 = vmatprep.subr.bf16.mxu0 0
      %1720 = vmatpush1.bf16.msra.mxu0 0
      %1721 = vmatprep.subr.bf16.mxu0 0
      %1722 = vmatpush1.bf16.msra.mxu0 0
      %1723 = vmatprep.subr.bf16.mxu0 0
      %1724 = vmatpush1.bf16.msra.mxu0 0
      %1725 = vmatprep.subr.bf16.mxu0 0
      %1726 = vmatpush1.bf16.msra.mxu0 0
      %1727 = vmatprep.subr.bf16.mxu0 0
      %1728 = vmatpush1.bf16.msra.mxu0 %v773
      %1729 = vmatprep.subr.bf16.mxu0 0
      %1730 = vmatpush2.bf16.msra.mxu0 0
      %1731 = vmatprep.subr.bf16.mxu0 0
      %1732 = vmatpush2.bf16.msra.mxu0 0
      %1733 = vmatprep.subr.bf16.mxu0 0
      %1734 = vmatpush2.bf16.msra.mxu0 0
      %1735 = vmatprep.subr.bf16.mxu0 0
      %1736 = vmatpush2.bf16.msra.mxu0 0
      %1737 = vmatprep.subr.bf16.mxu0 0
      %1738 = vmatpush2.bf16.msra.mxu0 0
      %1739 = vmatprep.subr.bf16.mxu0 0
      %1740 = vmatpush2.bf16.msra.mxu0 0
      %1741 = vmatprep.subr.bf16.mxu0 0
      %1742 = vmatpush2.bf16.msra.mxu0 0
      %1743 = vmatprep.subr.bf16.mxu0 0
      %1744 = vmatpush2.bf16.msra.mxu0 0
      %1745 = vmatprep.mubr.bf16.mxu0 0
      %1746 = vmatmul.mubr.bf16.gmra.mxu0 %v1711
      %v1747 = vpop.f32.mrf.mxu0
      %v1748 = vadd.f32 0.0, %v1747
      %v1749 = vpop.f32.mrf.mxu0
      %v1750 = vpop.f32.mrf.mxu0
      %v1751 = vpop.f32.mrf.mxu0
      %1752 = vdwg.mxu0
      %v1753 = vmul.f32 %v1335, %v1335
      %v1754 = vmul.f32 %v1394, %v1394
      %v1755 = vmul.f32 %v1453, %v1453
      %v1756 = vmul.f32 %v1512, %v1512
      %v1757 = vmul.f32 %v1571, %v1571
      %v1758 = vmul.f32 %v1630, %v1630
      %v1759 = vmul.f32 %v1689, %v1689
      %v1760 = vmul.f32 %v1748, %v1748
      %v1761 = vsel %vm342, %v1753, 0.0
      %v1762 = vrot.slane %v1761, 4
      %v1763 = vadd.f32 %v1761, %v1762
      %v1764 = vrot.slane %v1763, 2
      %v1765 = vadd.f32 %v1763, %v1764
      %v1766 = vrot.slane %v1765, 1
      %v1767 = vadd.f32 %v1765, %v1766
      %v1768 = vsel %vm342, %v1754, 0.0
      %v1769 = vrot.slane %v1768, 4
      %v1770 = vadd.f32 %v1768, %v1769
      %v1771 = vrot.slane %v1770, 2
      %v1772 = vadd.f32 %v1770, %v1771
      %v1773 = vrot.slane %v1772, 1
      %v1774 = vadd.f32 %v1772, %v1773
      %v1775 = vsel %vm342, %v1755, 0.0
      %v1776 = vrot.slane %v1775, 4
      %v1777 = vadd.f32 %v1775, %v1776
      %v1778 = vrot.slane %v1777, 2
      %v1779 = vadd.f32 %v1777, %v1778
      %v1780 = vrot.slane %v1779, 1
      %v1781 = vadd.f32 %v1779, %v1780
      %v1782 = vsel %vm342, %v1756, 0.0
      %v1783 = vrot.slane %v1782, 4
      %v1784 = vadd.f32 %v1782, %v1783
      %v1785 = vrot.slane %v1784, 2
      %v1786 = vadd.f32 %v1784, %v1785
      %v1787 = vrot.slane %v1786, 1
      %v1788 = vadd.f32 %v1786, %v1787
      %v1789 = vsel %vm342, %v1757, 0.0
      %v1790 = vrot.slane %v1789, 4
      %v1791 = vadd.f32 %v1789, %v1790
      %v1792 = vrot.slane %v1791, 2
      %v1793 = vadd.f32 %v1791, %v1792
      %v1794 = vrot.slane %v1793, 1
      %v1795 = vadd.f32 %v1793, %v1794
      %v1796 = vsel %vm342, %v1758, 0.0
      %v1797 = vrot.slane %v1796, 4
      %v1798 = vadd.f32 %v1796, %v1797
      %v1799 = vrot.slane %v1798, 2
      %v1800 = vadd.f32 %v1798, %v1799
      %v1801 = vrot.slane %v1800, 1
      %v1802 = vadd.f32 %v1800, %v1801
      %v1803 = vsel %vm342, %v1759, 0.0
      %v1804 = vrot.slane %v1803, 4
      %v1805 = vadd.f32 %v1803, %v1804
      %v1806 = vrot.slane %v1805, 2
      %v1807 = vadd.f32 %v1805, %v1806
      %v1808 = vrot.slane %v1807, 1
      %v1809 = vadd.f32 %v1807, %v1808
      %v1810 = vsel %vm342, %v1760, 0.0
      %v1811 = vrot.slane %v1810, 4
      %v1812 = vadd.f32 %v1810, %v1811
      %v1813 = vrot.slane %v1812, 2
      %v1814 = vadd.f32 %v1812, %v1813
      %v1815 = vrot.slane %v1814, 1
      %v1816 = vadd.f32 %v1814, %v1815
      %v1817 = vmax.f32 %v1767, 1e-24
      %v1818 = vmax.f32 %v1774, 1e-24
      %v1819 = vmax.f32 %v1781, 1e-24
      %v1820 = vmax.f32 %v1788, 1e-24
      %v1821 = vmax.f32 %v1795, 1e-24
      %v1822 = vmax.f32 %v1802, 1e-24
      %v1823 = vmax.f32 %v1809, 1e-24
      %v1824 = vmax.f32 %v1816, 1e-24
      %v1825 = vrsqrt.pop %v1817
      %v1826 = vrsqrt.pop %v1818
      %v1827 = vrsqrt.pop %v1819
      %v1828 = vrsqrt.pop %v1820
      %v1829 = vrsqrt.pop %v1821
      %v1830 = vrsqrt.pop %v1822
      %v1831 = vrsqrt.pop %v1823
      %v1832 = vrsqrt.pop %v1824
      %v1833 = vmul.f32 %v1335, %v1825
      %v1834 = vmul.f32 %v1394, %v1826
      %v1835 = vmul.f32 %v1453, %v1827
      %v1836 = vmul.f32 %v1512, %v1828
      %v1837 = vmul.f32 %v1571, %v1829
      %v1838 = vmul.f32 %v1630, %v1830
      %v1839 = vmul.f32 %v1689, %v1831
      %v1840 = vmul.f32 %v1748, %v1832
      %v1841 = vld [vmem:[%s7] sm:$0xf]
      %v1842 = vunpack.c.l.bf16 %v1841
      %v1843 = vmul.f32 %v1842, %v1833
      %v1844 = vmul.f32 %v1842, %v1834
      %v1845 = vmul.f32 %v1842, %v1835
      %v1846 = vmul.f32 %v1842, %v1836
      %v1847 = vmul.f32 %v1842, %v1837
      %v1848 = vmul.f32 %v1842, %v1838
      %v1849 = vmul.f32 %v1842, %v1839
      %v1850 = vmul.f32 %v1842, %v1840
      %v1851 = vsel %vm342, %v1843, 0.0
      %1852 = vadd.xlane.f32.xlu0 %v1851
      %v1853 = vpop.xlane.xlu0 %1852
      %v1854 = vsel %vm342, %v1844, 0.0
      %1855 = vadd.xlane.f32.xlu0 %v1854
      %v1856 = vpop.xlane.xlu0 %1855
      %v1857 = vsel %vm342, %v1845, 0.0
      %1858 = vadd.xlane.f32.xlu0 %v1857
      %v1859 = vpop.xlane.xlu0 %1858
      %v1860 = vsel %vm342, %v1846, 0.0
      %1861 = vadd.xlane.f32.xlu0 %v1860
      %v1862 = vpop.xlane.xlu0 %1861
      %v1863 = vsel %vm342, %v1847, 0.0
      %1864 = vadd.xlane.f32.xlu0 %v1863
      %v1865 = vpop.xlane.xlu0 %1864
      %v1866 = vsel %vm342, %v1848, 0.0
      %1867 = vadd.xlane.f32.xlu0 %v1866
      %v1868 = vpop.xlane.xlu0 %1867
      %v1869 = vsel %vm342, %v1849, 0.0
      %1870 = vadd.xlane.f32.xlu0 %v1869
      %v1871 = vpop.xlane.xlu0 %1870
      %v1872 = vsel %vm342, %v1850, 0.0
      %1873 = vadd.xlane.f32.xlu0 %v1872
      %v1874 = vpop.xlane.xlu0 %1873
      %v1875 = vmul.f32 %v1853, %v1853
      %v1876 = vmul.f32 %v1856, %v1856
      %v1877 = vmul.f32 %v1859, %v1859
      %v1878 = vmul.f32 %v1862, %v1862
      %v1879 = vmul.f32 %v1865, %v1865
      %v1880 = vmul.f32 %v1868, %v1868
      %v1881 = vmul.f32 %v1871, %v1871
      %v1882 = vmul.f32 %v1874, %v1874
      %v1891 = vlaneseq
      %v1892 = vand.u32 %v1891, 127
      %v1893 = vlaneseq
      %v1894 = vshrl.u32 %v1893, 7
      %v1895 = vsub.s32 %v1892, %v1894
      %v1896 = vrot.slane %v1875, %v1895
      %v1897 = vlaneseq
      %v1898 = vshrl.u32 %v1897, 7
      %v1899 = vsub.s32 %v1892, %v1898
      %v1900 = vrot.slane %v1876, %v1899
      %v1901 = vlaneseq
      %v1902 = vshrl.u32 %v1901, 7
      %v1903 = vsub.s32 %v1892, %v1902
      %v1904 = vrot.slane %v1877, %v1903
      %v1905 = vlaneseq
      %v1906 = vshrl.u32 %v1905, 7
      %v1907 = vsub.s32 %v1892, %v1906
      %v1908 = vrot.slane %v1878, %v1907
      %v1909 = vlaneseq
      %v1910 = vshrl.u32 %v1909, 7
      %v1911 = vsub.s32 %v1892, %v1910
      %v1912 = vrot.slane %v1879, %v1911
      %v1913 = vlaneseq
      %v1914 = vshrl.u32 %v1913, 7
      %v1915 = vsub.s32 %v1892, %v1914
      %v1916 = vrot.slane %v1880, %v1915
      %v1917 = vlaneseq
      %v1918 = vshrl.u32 %v1917, 7
      %v1919 = vsub.s32 %v1892, %v1918
      %v1920 = vrot.slane %v1881, %v1919
      %v1921 = vlaneseq
      %v1922 = vshrl.u32 %v1921, 7
      %v1923 = vsub.s32 %v1892, %v1922
      %v1924 = vrot.slane %v1882, %v1923
      %vm1925 = vcmask 1041409
      %v1926 = vsel %vm1925, %v1900, %v1896
      %vm1927 = vcmask 1042434
      %v1928 = vsel %vm1927, %v1904, %v1926
      %vm1929 = vcmask 1043459
      %v1930 = vsel %vm1929, %v1908, %v1928
      %vm1931 = vcmask 1044484
      %v1932 = vsel %vm1931, %v1912, %v1930
      %vm1933 = vcmask 1045509
      %v1934 = vsel %vm1933, %v1916, %v1932
      %vm1935 = vcmask 1046534
      %v1936 = vsel %vm1935, %v1920, %v1934
      %vm1937 = vcmask 1047559
      %v1938 = vsel %vm1937, %v1924, %v1936
      %v1940 = vsel %vm943, %v1938, 0.0
      %1941 = vadd.xlane.f32.xlu0 %v1940
      %v1942 = vpop.xlane.xlu0 %1941
      %v1943 = vadd.f32 %v1942, 1e-12
      %v1944 = vrsqrt.pop %v1943
      %v1946 = vlaneseq
      %v1947 = vshrl.u32 %v1946, 7
      %v1948 = vsub.s32 0, %v1947
      %v1949 = vrot.slane %v1944, %v1948
      %v1950 = vlaneseq
      %v1951 = vshrl.u32 %v1950, 7
      %v1952 = vsub.s32 1, %v1951
      %v1953 = vrot.slane %v1944, %v1952
      %v1954 = vlaneseq
      %v1955 = vshrl.u32 %v1954, 7
      %v1956 = vsub.s32 2, %v1955
      %v1957 = vrot.slane %v1944, %v1956
      %v1958 = vlaneseq
      %v1959 = vshrl.u32 %v1958, 7
      %v1960 = vsub.s32 3, %v1959
      %v1961 = vrot.slane %v1944, %v1960
      %v1962 = vlaneseq
      %v1963 = vshrl.u32 %v1962, 7
      %v1964 = vsub.s32 4, %v1963
      %v1965 = vrot.slane %v1944, %v1964
      %v1966 = vlaneseq
      %v1967 = vshrl.u32 %v1966, 7
      %v1968 = vsub.s32 5, %v1967
      %v1969 = vrot.slane %v1944, %v1968
      %v1970 = vlaneseq
      %v1971 = vshrl.u32 %v1970, 7
      %v1972 = vsub.s32 6, %v1971
      %v1973 = vrot.slane %v1944, %v1972
      %v1974 = vlaneseq
      %v1975 = vshrl.u32 %v1974, 7
      %v1976 = vsub.s32 7, %v1975
      %v1977 = vrot.slane %v1944, %v1976
      %v1986 = vmul.f32 %v1853, %v1949
      %v1987 = vmul.f32 %v1856, %v1953
      %v1988 = vmul.f32 %v1859, %v1957
      %v1989 = vmul.f32 %v1862, %v1961
      %v1990 = vmul.f32 %v1865, %v1965
      %v1991 = vmul.f32 %v1868, %v1969
      %v1992 = vmul.f32 %v1871, %v1973
      %v1993 = vmul.f32 %v1874, %v1977
      %2002 = vset.pattern.permute.xlu0 0
      %2003 = vperm.xlu0 %2002, %v1986
      %v2004 = vpop.permute.xlu0 %2003
      %2005 = vset.pattern.permute.xlu0 0
      %2006 = vperm.xlu0 %2005, %v1987
      %v2007 = vpop.permute.xlu0 %2006
      %2008 = vset.pattern.permute.xlu0 0
      %2009 = vperm.xlu0 %2008, %v1988
      %v2010 = vpop.permute.xlu0 %2009
      %2011 = vset.pattern.permute.xlu0 0
      %2012 = vperm.xlu0 %2011, %v1989
      %v2013 = vpop.permute.xlu0 %2012
      %2014 = vset.pattern.permute.xlu0 0
      %2015 = vperm.xlu0 %2014, %v1990
      %v2016 = vpop.permute.xlu0 %2015
      %2017 = vset.pattern.permute.xlu0 0
      %2018 = vperm.xlu0 %2017, %v1991
      %v2019 = vpop.permute.xlu0 %2018
      %2020 = vset.pattern.permute.xlu0 0
      %2021 = vperm.xlu0 %2020, %v1992
      %v2022 = vpop.permute.xlu0 %2021
      %2023 = vset.pattern.permute.xlu0 0
      %2024 = vperm.xlu0 %2023, %v1993
      %v2025 = vpop.permute.xlu0 %2024
      %v2026 = vlaneseq
      %v2027 = vshrl.u32 %v2026, 7
      %v2028 = vsub.s32 %v1892, %v2027
      %v2029 = vrot.slane %v2004, %v2028
      %v2030 = vlaneseq
      %v2031 = vshrl.u32 %v2030, 7
      %v2032 = vsub.s32 %v1892, %v2031
      %v2033 = vrot.slane %v2007, %v2032
      %v2034 = vlaneseq
      %v2035 = vshrl.u32 %v2034, 7
      %v2036 = vsub.s32 %v1892, %v2035
      %v2037 = vrot.slane %v2010, %v2036
      %v2038 = vlaneseq
      %v2039 = vshrl.u32 %v2038, 7
      %v2040 = vsub.s32 %v1892, %v2039
      %v2041 = vrot.slane %v2013, %v2040
      %v2042 = vlaneseq
      %v2043 = vshrl.u32 %v2042, 7
      %v2044 = vsub.s32 %v1892, %v2043
      %v2045 = vrot.slane %v2016, %v2044
      %v2046 = vlaneseq
      %v2047 = vshrl.u32 %v2046, 7
      %v2048 = vsub.s32 %v1892, %v2047
      %v2049 = vrot.slane %v2019, %v2048
      %v2050 = vlaneseq
      %v2051 = vshrl.u32 %v2050, 7
      %v2052 = vsub.s32 %v1892, %v2051
      %v2053 = vrot.slane %v2022, %v2052
      %v2054 = vlaneseq
      %v2055 = vshrl.u32 %v2054, 7
      %v2056 = vsub.s32 %v1892, %v2055
      %v2057 = vrot.slane %v2025, %v2056
      %v2058 = vsel %vm1925, %v2033, %v2029
      %v2059 = vsel %vm1927, %v2037, %v2058
      %v2060 = vsel %vm1929, %v2041, %v2059
      %v2061 = vsel %vm1931, %v2045, %v2060
      %v2062 = vsel %vm1933, %v2049, %v2061
      %v2063 = vsel %vm1935, %v2053, %v2062
      %v2064 = vsel %vm1937, %v2057, %v2063
      %2066 = vst.msk [vmem:[%s308] sm:$0xff] %vm943, %v2064
      %p2067 = scmp.lt.s32.totalorder %s19, 1
      %s2068 = scalar_select %p2067, %s19, 1
      %s2069 = smul.addr %s2068, 8
      %s2070 = scalar_lea.vmem %s8, %s2069
      // Predicated region
      $region53: #{cmn_forward.1} parent=51 // pred_check
        %p2071 = pneg %p210
      $region54: #{cmn_forward.1} parent=51 // pred_check_branch
        %2073 = sbr.rel (%p2071) target = $region56
      $region55: #{cmn_forward.1} parent=51 // pred_region
        _
      $region56: #{cmn_forward.1} parent=51 // pred_fallthru
        _
    $region52: #{cmn_forward.1} parent=5 // pred_fallthru
      _
    %p2074 = scmp.le.s32.totalorder 2, %s14
    // Predicated region
    $region57: #{cmn_forward.1} parent=5 // pred_check
      %p2075 = pneg %p2074
    $region58: #{cmn_forward.1} parent=5 // pred_check_branch
      %2077 = sbr.rel (%p2075) target = $region60
    $region59: #{cmn_forward.1} parent=5 // pred_region
      %s2078 = ssub.s32 %s14, 2
      // Predicated region
      $region61: #{cmn_forward.1} parent=59 // pred_check
        %p2079 = pneg %p216
      $region62: #{cmn_forward.1} parent=59 // pred_check_branch
        %2081 = sbr.rel (%p2079) target = $region64
      $region63: #{cmn_forward.1} parent=59 // pred_region
        %p2082 = scmp.lt.s32.totalorder %s20, 1
        %s2083 = scalar_select %p2082, %s20, 1
        %s2084 = smul.addr %s2083, 8
        %s2085 = scalar_lea.vmem %s8, %s2084
      $region64: #{cmn_forward.1} parent=59 // pred_fallthru
        _
    $region60: #{cmn_forward.1} parent=5 // pred_fallthru
      _
  $region6: #{cmn_forward.1} parent=0 // loop_footer
    %s18 = sadd.s32 1, %s14
  $region7: #{cmn_forward.1} parent=0 // loop_footer_branch
    %13 = sbr.rel target = $region3
  $region8: #{cmn_forward.1} parent=0 // loop_exit
    _

// kernel: cmn_forward.1
$region0: #{cmn_forward.1}
  #allocation0 [shape = 'u32[]', space=smem, size = 0x4, offset = 0x4, fixed_abs, tag = 'smem constant byte address 0x4 - core index']
  #allocation1 [shape = 'u32[144,128]{1,0:T(1,128)}', space=vmem, size = 0x12000, scoped, tag = 'internal scratch']
  %s0 = inlined_call_operand.vmem [shape: bf16[16,16,64], index: 0, kind: input, shape index: {}]
  %s1 = inlined_call_operand.vmem [shape: f32[1,64], index: 1, kind: input, shape index: {}]
  %s2 = inlined_call_operand.vmem [shape: f32[1,64], index: 2, kind: input, shape index: {}]
  %s3 = inlined_call_operand.vmem [shape: bf16[64,64], index: 3, kind: input, shape index: {}]
  %s4 = inlined_call_operand.vmem [shape: f32[1,64], index: 4, kind: input, shape index: {}]
  %s5 = inlined_call_operand.vmem [shape: bf16[64,8], index: 5, kind: input, shape index: {}]
  %s6 = inlined_call_operand.vmem [shape: bf16[8,64], index: 6, kind: input, shape index: {}]
  %s7 = inlined_call_operand.vmem [shape: bf16[8,64], index: 7, kind: input, shape index: {}]
  %s8 = inlined_call_operand.vmem [shape: f32[16,8], index: 8, kind: output, shape index: {}]
  %s9 = sld [smem:[#allocation0]]
  $region65: #{cmn_forward.1} parent=0
    _
  %s11 = ssub.s32 1, %s9
  %s12 = scalar_select 0, %s11, %s9
  loop: start=0, step=1, limit=4
  $region2: #{cmn_forward.1} parent=0 // loop_pre_header
    _
  $region3: #{cmn_forward.1} parent=0 // loop_header
    %s14 = sphi 0, %s18
    %p15 = scmp.ge.s32.totalorder %s14, 4
    %s24 = sphi 0, %s26
    %s27 = sphi 0, %s24
    %s28 = sphi 0, %s27
    %s44 = sphi 0, %s28
    %s48 = sphi 0, %s48
    %s50 = sphi 0, %s48
    %s51 = sphi 0, %s50
    %s65 = sphi 0, %s51
    %s69 = sphi 0, %s69
    %s71 = sphi 0, %s69
    %s72 = sphi 0, %s71
    %s86 = sphi 0, %s72
    %s90 = sphi 0, %s90
    %s92 = sphi 0, %s90
    %s93 = sphi 0, %s92
    %s107 = sphi 0, %s93
    %s111 = sphi 0, %s111
    %s113 = sphi 0, %s111
    %s114 = sphi 0, %s113
    %s128 = sphi 0, %s114
    %s132 = sphi 0, %s132
    %s134 = sphi 0, %s132
    %s135 = sphi 0, %s134
    %s149 = sphi 0, %s135
    %s153 = sphi 0, %s153
    %s155 = sphi 0, %s153
    %s156 = sphi 0, %s155
    %s170 = sphi 0, %s156
    %s174 = sphi 0, %s174
    %s176 = sphi 0, %s174
    %s177 = sphi 0, %s176
    %s191 = sphi 0, %s177
    %s197 = sphi 0, %s199
    %s200 = sphi 0, %s197
    %s201 = sphi 0, %s200
    %s217 = sphi 0, %s201
  $region4: #{cmn_forward.1} parent=0 // loop_header_branch
    %17 = sbr.rel (%p15) target = $region8
  $region5: #{cmn_forward.1} parent=0 // loop_body
    %s19 = ssub.s32 %s14, 1
    %s20 = ssub.s32 %s14, 2
    %s21 = sadd.s32 %s14, 1
    %s22 = ssub.s32 %s14, %s21
    %p23 = scmp.eq.s32.totalorder %s22, 0
    %s25 = sadd.s32 %s24, 1
    %s26 = scalar_select %p23, %s24, %s25
    %p29 = pneg %p23
    %p30 = scmp.eq.s32.totalorder %s14, 1
    %p31 = por %p29, %p30
    %p32 = scmp.ne.s32.totalorder %s24, %s27
    %p33 = scmp.eq.s32.totalorder %s14, 0
    %p34 = por %p32, %p33
    %p35 = scmp.ne.s32.totalorder %s24, %s27
    %p36 = scmp.eq.s32.totalorder %s19, 1
    %p37 = por %p35, %p36
    %p38 = scmp.ne.s32.totalorder %s27, %s28
    %p39 = scmp.eq.s32.totalorder %s19, 0
    %p40 = por %p38, %p39
    %p41 = scmp.ne.s32.totalorder %s27, %s28
    %p42 = scmp.eq.s32.totalorder %s20, 1
    %p43 = por %p41, %p42
    %p45 = scmp.ne.s32.totalorder %s28, %s44
    %p46 = scmp.eq.s32.totalorder %s20, 0
    %p47 = por %p45, %p46
    %s49 = sadd.s32 %s48, 1
    %p52 = scmp.eq.s32.totalorder %s14, 1
    %p53 = scmp.ne.s32.totalorder %s48, %s50
    %p54 = scmp.eq.s32.totalorder %s14, 0
    %p55 = por %p53, %p54
    %p56 = scmp.ne.s32.totalorder %s48, %s50
    %p57 = scmp.eq.s32.totalorder %s19, 1
    %p58 = por %p56, %p57
    %p59 = scmp.ne.s32.totalorder %s50, %s51
    %p60 = scmp.eq.s32.totalorder %s19, 0
    %p61 = por %p59, %p60
    %p62 = scmp.ne.s32.totalorder %s50, %s51
    %p63 = scmp.eq.s32.totalorder %s20, 1
    %p64 = por %p62, %p63
    %p66 = scmp.ne.s32.totalorder %s51, %s65
    %p67 = scmp.eq.s32.totalorder %s20, 0
    %p68 = por %p66, %p67
    %s70 = sadd.s32 %s69, 1
    %p73 = scmp.eq.s32.totalorder %s14, 1
    %p74 = scmp.ne.s32.totalorder %s69, %s71
    %p75 = scmp.eq.s32.totalorder %s14, 0
    %p76 = por %p74, %p75
    %p77 = scmp.ne.s32.totalorder %s69, %s71
    %p78 = scmp.eq.s32.totalorder %s19, 1
    %p79 = por %p77, %p78
    %p80 = scmp.ne.s32.totalorder %s71, %s72
    %p81 = scmp.eq.s32.totalorder %s19, 0
    %p82 = por %p80, %p81
    %p83 = scmp.ne.s32.totalorder %s71, %s72
    %p84 = scmp.eq.s32.totalorder %s20, 1
    %p85 = por %p83, %p84
    %p87 = scmp.ne.s32.totalorder %s72, %s86
    %p88 = scmp.eq.s32.totalorder %s20, 0
    %p89 = por %p87, %p88
    %s91 = sadd.s32 %s90, 1
    %p94 = scmp.eq.s32.totalorder %s14, 1
    %p95 = scmp.ne.s32.totalorder %s90, %s92
    %p96 = scmp.eq.s32.totalorder %s14, 0
    %p97 = por %p95, %p96
    %p98 = scmp.ne.s32.totalorder %s90, %s92
    %p99 = scmp.eq.s32.totalorder %s19, 1
    %p100 = por %p98, %p99
    %p101 = scmp.ne.s32.totalorder %s92, %s93
    %p102 = scmp.eq.s32.totalorder %s19, 0
    %p103 = por %p101, %p102
    %p104 = scmp.ne.s32.totalorder %s92, %s93
    %p105 = scmp.eq.s32.totalorder %s20, 1
    %p106 = por %p104, %p105
    %p108 = scmp.ne.s32.totalorder %s93, %s107
    %p109 = scmp.eq.s32.totalorder %s20, 0
    %p110 = por %p108, %p109
    %s112 = sadd.s32 %s111, 1
    %p115 = scmp.eq.s32.totalorder %s14, 1
    %p116 = scmp.ne.s32.totalorder %s111, %s113
    %p117 = scmp.eq.s32.totalorder %s14, 0
    %p118 = por %p116, %p117
    %p119 = scmp.ne.s32.totalorder %s111, %s113
    %p120 = scmp.eq.s32.totalorder %s19, 1
    %p121 = por %p119, %p120
    %p122 = scmp.ne.s32.totalorder %s113, %s114
    %p123 = scmp.eq.s32.totalorder %s19, 0
    %p124 = por %p122, %p123
    %p125 = scmp.ne.s32.totalorder %s113, %s114
    %p126 = scmp.eq.s32.totalorder %s20, 1
    %p127 = por %p125, %p126
    %p129 = scmp.ne.s32.totalorder %s114, %s128
    %p130 = scmp.eq.s32.totalorder %s20, 0
    %p131 = por %p129, %p130
    %s133 = sadd.s32 %s132, 1
    %p136 = scmp.eq.s32.totalorder %s14, 1
    %p137 = scmp.ne.s32.totalorder %s132, %s134
    %p138 = scmp.eq.s32.totalorder %s14, 0
    %p139 = por %p137, %p138
    %p140 = scmp.ne.s32.totalorder %s132, %s134
    %p141 = scmp.eq.s32.totalorder %s19, 1
    %p142 = por %p140, %p141
    %p143 = scmp.ne.s32.totalorder %s134, %s135
    %p144 = scmp.eq.s32.totalorder %s19, 0
    %p145 = por %p143, %p144
    %p146 = scmp.ne.s32.totalorder %s134, %s135
    %p147 = scmp.eq.s32.totalorder %s20, 1
    %p148 = por %p146, %p147
    %p150 = scmp.ne.s32.totalorder %s135, %s149
    %p151 = scmp.eq.s32.totalorder %s20, 0
    %p152 = por %p150, %p151
    %s154 = sadd.s32 %s153, 1
    %p157 = scmp.eq.s32.totalorder %s14, 1
    %p158 = scmp.ne.s32.totalorder %s153, %s155
    %p159 = scmp.eq.s32.totalorder %s14, 0
    %p160 = por %p158, %p159
    %p161 = scmp.ne.s32.totalorder %s153, %s155
    %p162 = scmp.eq.s32.totalorder %s19, 1
    %p163 = por %p161, %p162
    %p164 = scmp.ne.s32.totalorder %s155, %s156
    %p165 = scmp.eq.s32.totalorder %s19, 0
    %p166 = por %p164, %p165
    %p167 = scmp.ne.s32.totalorder %s155, %s156
    %p168 = scmp.eq.s32.totalorder %s20, 1
    %p169 = por %p167, %p168
    %p171 = scmp.ne.s32.totalorder %s156, %s170
    %p172 = scmp.eq.s32.totalorder %s20, 0
    %p173 = por %p171, %p172
    %s175 = sadd.s32 %s174, 1
    %p178 = scmp.eq.s32.totalorder %s14, 1
    %p179 = scmp.ne.s32.totalorder %s174, %s176
    %p180 = scmp.eq.s32.totalorder %s14, 0
    %p181 = por %p179, %p180
    %p182 = scmp.ne.s32.totalorder %s174, %s176
    %p183 = scmp.eq.s32.totalorder %s19, 1
    %p184 = por %p182, %p183
    %p185 = scmp.ne.s32.totalorder %s176, %s177
    %p186 = scmp.eq.s32.totalorder %s19, 0
    %p187 = por %p185, %p186
    %p188 = scmp.ne.s32.totalorder %s176, %s177
    %p189 = scmp.eq.s32.totalorder %s20, 1
    %p190 = por %p188, %p189
    %p192 = scmp.ne.s32.totalorder %s177, %s191
    %p193 = scmp.eq.s32.totalorder %s20, 0
    %p194 = por %p192, %p193
    %s195 = ssub.s32 %s14, %s21
    %p196 = scmp.eq.s32.totalorder %s195, 0
    %s198 = sadd.s32 %s197, 1
    %s199 = scalar_select %p196, %s197, %s198
    %p202 = pneg %p196
    %p203 = scmp.eq.s32.totalorder %s14, 1
    %p204 = por %p202, %p203
    %p205 = scmp.ne.s32.totalorder %s197, %s200
    %p206 = scmp.eq.s32.totalorder %s14, 0
    %p207 = por %p205, %p206
    %p208 = scmp.ne.s32.totalorder %s197, %s200
    %p209 = scmp.eq.s32.totalorder %s19, 1
    %p210 = por %p208, %p209
    %p211 = scmp.ne.s32.totalorder %s200, %s201
    %p212 = scmp.eq.s32.totalorder %s19, 0
    %p213 = por %p211, %p212
    %p214 = scmp.ne.s32.totalorder %s200, %s201
    %p215 = scmp.eq.s32.totalorder %s20, 1
    %p216 = por %p214, %p215
    %p218 = scmp.ne.s32.totalorder %s201, %s217
    %p219 = scmp.eq.s32.totalorder %s20, 0
    %p220 = por %p218, %p219
    %p221 = scmp.le.s32.totalorder 1, %s14
    %p222 = scmp.lt.s32.totalorder %s14, 3
    %p223 = pnand %p221, %p222
    %p224 = pneg %p223
    // Predicated region
    $region9: #{cmn_forward.1} parent=5 // pred_check
      _
    $region10: #{cmn_forward.1} parent=5 // pred_check_branch
      %226 = sbr.rel (%p223) target = $region12
    $region11: #{cmn_forward.1} parent=5 // pred_region
      %s227 = ssub.s32 %s14, 1
      // Predicated region
      $region13: #{cmn_forward.1} parent=11 // pred_check
        %p228 = pneg %p61
      $region14: #{cmn_forward.1} parent=11 // pred_check_branch
        %230 = sbr.rel (%p228) target = $region16
      $region15: #{cmn_forward.1} parent=11 // pred_region
        _
      $region16: #{cmn_forward.1} parent=11 // pred_fallthru
        _
      // Predicated region
      $region17: #{cmn_forward.1} parent=11 // pred_check
        %p231 = pneg %p82
      $region18: #{cmn_forward.1} parent=11 // pred_check_branch
        %233 = sbr.rel (%p231) target = $region20
      $region19: #{cmn_forward.1} parent=11 // pred_region
        _
      $region20: #{cmn_forward.1} parent=11 // pred_fallthru
        _
      // Predicated region
      $region21: #{cmn_forward.1} parent=11 // pred_check
        %p234 = pneg %p103
      $region22: #{cmn_forward.1} parent=11 // pred_check_branch
        %236 = sbr.rel (%p234) target = $region24
      $region23: #{cmn_forward.1} parent=11 // pred_region
        _
      $region24: #{cmn_forward.1} parent=11 // pred_fallthru
        _
      // Predicated region
      $region25: #{cmn_forward.1} parent=11 // pred_check
        %p237 = pneg %p124
      $region26: #{cmn_forward.1} parent=11 // pred_check_branch
        %239 = sbr.rel (%p237) target = $region28
      $region27: #{cmn_forward.1} parent=11 // pred_region
        _
      $region28: #{cmn_forward.1} parent=11 // pred_fallthru
        _
      // Predicated region
      $region29: #{cmn_forward.1} parent=11 // pred_check
        %p240 = pneg %p145
      $region30: #{cmn_forward.1} parent=11 // pred_check_branch
        %242 = sbr.rel (%p240) target = $region32
      $region31: #{cmn_forward.1} parent=11 // pred_region
        _
      $region32: #{cmn_forward.1} parent=11 // pred_fallthru
        _
      // Predicated region
      $region33: #{cmn_forward.1} parent=11 // pred_check
        %p243 = pneg %p166
      $region34: #{cmn_forward.1} parent=11 // pred_check_branch
        %245 = sbr.rel (%p243) target = $region36
      $region35: #{cmn_forward.1} parent=11 // pred_region
        _
      $region36: #{cmn_forward.1} parent=11 // pred_fallthru
        _
      // Predicated region
      $region37: #{cmn_forward.1} parent=11 // pred_check
        %p246 = pneg %p187
      $region38: #{cmn_forward.1} parent=11 // pred_check_branch
        %248 = sbr.rel (%p246) target = $region40
      $region39: #{cmn_forward.1} parent=11 // pred_region
        _
      $region40: #{cmn_forward.1} parent=11 // pred_fallthru
        _
    $region12: #{cmn_forward.1} parent=5 // pred_fallthru
      _
    %p249 = scmp.lt.s32.totalorder %s14, 2
    // Predicated region
    $region41: #{cmn_forward.1} parent=5 // pred_check
      %p250 = pneg %p249
    $region42: #{cmn_forward.1} parent=5 // pred_check_branch
      %252 = sbr.rel (%p250) target = $region44
    $region43: #{cmn_forward.1} parent=5 // pred_region
      // Predicated region
      $region45: #{cmn_forward.1} parent=43 // pred_check
        %p253 = pneg %p34
      $region46: #{cmn_forward.1} parent=43 // pred_check_branch
        %255 = sbr.rel (%p253) target = $region48
      $region47: #{cmn_forward.1} parent=43 // pred_region
        %s256 = smul.u32 8, %s14
        %p257 = scmp.lt.s32.totalorder %s256, 15
        %s258 = scalar_select %p257, %s256, 15
        %s259 = smul.addr %s258, 2
        %s260 = smul.addr %s259, 4
        %s261 = scalar_lea.vmem %s0, %s260
        %s262 = smul.u32 8, %s14
      $region48: #{cmn_forward.1} parent=43 // pred_fallthru
        _
    $region44: #{cmn_forward.1} parent=5 // pred_fallthru
      _
    %p263 = scmp.le.s32.totalorder 1, %s14
    %p264 = scmp.lt.s32.totalorder %s14, 3
    %p265 = pnand %p263, %p264
    %p266 = pneg %p265
    // Predicated region
    $region49: #{cmn_forward.1} parent=5 // pred_check
      _
    $region50: #{cmn_forward.1} parent=5 // pred_check_branch
      %268 = sbr.rel (%p265) target = $region52
    $region51: #{cmn_forward.1} parent=5 // pred_region
      %s269 = ssub.s32 %s14, 1
      %s270 = smul.u32 8, %s19
      %p271 = scmp.lt.s32.totalorder %s270, 15
      %s272 = scalar_select %p271, %s270, 15
      %s273 = smul.addr %s272, 2
      %s274 = smul.addr %s273, 4
      %s275 = scalar_lea.vmem %s0, %s274
      %p276 = pneg %p40
      %p277 = pneg %p37
      %p278 = pneg %p61
      %p279 = pneg %p58
      %p280 = pneg %p82
      %p281 = pneg %p79
      %p282 = pneg %p103
      %p283 = pneg %p100
      %p284 = pneg %p124
      %p285 = pneg %p121
      %p286 = pneg %p145
      %p287 = pneg %p142
      %p288 = pneg %p166
      %p289 = pneg %p163
      %p290 = pneg %p187
      %p291 = pneg %p184
      %p292 = pneg %p213
      %p293 = pneg %p210
      %p294 = scmp.lt.s32.totalorder %s19, 1
      %s295 = scalar_select %p294, %s19, 1
      %s296 = smul.addr %s295, 8
      %s297 = scalar_lea.vmem %s8, %s296
      %s298 = smul.u32 8, %s19
      %p299 = scmp.lt.s32.totalorder %s298, 15
      %s300 = scalar_select %p299, %s298, 15
      %s301 = smul.addr %s300, 2
      %s302 = smul.addr %s301, 4
      %s303 = scalar_lea.vmem %s0, %s302
      %s304 = smul.u32 8, %s19
      %p305 = scmp.lt.s32.totalorder %s19, 1
      %s306 = scalar_select %p305, %s19, 1
      %s307 = smul.addr %s306, 8
      %s308 = scalar_lea.vmem %s8, %s307
      %v310 = vld [vmem:[%s303] sm:$0xf]
      %v311 = vld [vmem:[%s303 + $0x4] sm:$0xf]
      %v312 = vld [vmem:[%s303 + $0x8] sm:$0xf]
      %v313 = vld [vmem:[%s303 + $0xc] sm:$0xf]
      %v314 = vld [vmem:[%s303 + $0x10] sm:$0xf]
      %v315 = vld [vmem:[%s303 + $0x14] sm:$0xf]
      %v316 = vld [vmem:[%s303 + $0x18] sm:$0xf]
      %v317 = vld [vmem:[%s303 + $0x1c] sm:$0xf]
      %v318 = vld [vmem:[%s303 + $0x20] sm:$0xf]
      %v319 = vld [vmem:[%s303 + $0x24] sm:$0xf]
      %v320 = vld [vmem:[%s303 + $0x28] sm:$0xf]
      %v321 = vld [vmem:[%s303 + $0x2c] sm:$0xf]
      %v322 = vld [vmem:[%s303 + $0x30] sm:$0xf]
      %v323 = vld [vmem:[%s303 + $0x34] sm:$0xf]
      %v324 = vld [vmem:[%s303 + $0x38] sm:$0xf]
      %v325 = vld [vmem:[%s303 + $0x3c] sm:$0xf]
      %v326 = vunpack.c.l.bf16 %v310
      %v327 = vunpack.c.l.bf16 %v311
      %v328 = vunpack.c.l.bf16 %v312
      %v329 = vunpack.c.l.bf16 %v313
      %v330 = vunpack.c.l.bf16 %v314
      %v331 = vunpack.c.l.bf16 %v315
      %v332 = vunpack.c.l.bf16 %v316
      %v333 = vunpack.c.l.bf16 %v317
      %v334 = vunpack.c.l.bf16 %v318
      %v335 = vunpack.c.l.bf16 %v319
      %v336 = vunpack.c.l.bf16 %v320
      %v337 = vunpack.c.l.bf16 %v321
      %v338 = vunpack.c.l.bf16 %v322
      %v339 = vunpack.c.l.bf16 %v323
      %v340 = vunpack.c.l.bf16 %v324
      %v341 = vunpack.c.l.bf16 %v325
      %vm342 = vcmask 523264
      %v343 = vsel %vm342, %v326, 0.0
      %344 = vadd.xlane.f32.xlu0 %v343
      %v345 = vpop.xlane.xlu0 %344
      %v346 = vsel %vm342, %v327, 0.0
      %347 = vadd.xlane.f32.xlu0 %v346
      %v348 = vpop.xlane.xlu0 %347
      %v349 = vsel %vm342, %v328, 0.0
      %350 = vadd.xlane.f32.xlu0 %v349
      %v351 = vpop.xlane.xlu0 %350
      %v352 = vsel %vm342, %v329, 0.0
      %353 = vadd.xlane.f32.xlu0 %v352
      %v354 = vpop.xlane.xlu0 %353
      %v355 = vsel %vm342, %v330, 0.0
      %356 = vadd.xlane.f32.xlu0 %v355
      %v357 = vpop.xlane.xlu0 %356
      %v358 = vsel %vm342, %v331, 0.0
      %359 = vadd.xlane.f32.xlu0 %v358
      %v360 = vpop.xlane.xlu0 %359
      %v361 = vsel %vm342, %v332, 0.0
      %362 = vadd.xlane.f32.xlu0 %v361
      %v363 = vpop.xlane.xlu0 %362
      %v364 = vsel %vm342, %v333, 0.0
      %365 = vadd.xlane.f32.xlu0 %v364
      %v366 = vpop.xlane.xlu0 %365
      %v367 = vsel %vm342, %v334, 0.0
      %368 = vadd.xlane.f32.xlu0 %v367
      %v369 = vpop.xlane.xlu0 %368
      %v370 = vsel %vm342, %v335, 0.0
      %371 = vadd.xlane.f32.xlu0 %v370
      %v372 = vpop.xlane.xlu0 %371
      %v373 = vsel %vm342, %v336, 0.0
      %374 = vadd.xlane.f32.xlu0 %v373
      %v375 = vpop.xlane.xlu0 %374
      %v376 = vsel %vm342, %v337, 0.0
      %377 = vadd.xlane.f32.xlu0 %v376
      %v378 = vpop.xlane.xlu0 %377
      %v379 = vsel %vm342, %v338, 0.0
      %380 = vadd.xlane.f32.xlu0 %v379
      %v381 = vpop.xlane.xlu0 %380
      %v382 = vsel %vm342, %v339, 0.0
      %383 = vadd.xlane.f32.xlu0 %v382
      %v384 = vpop.xlane.xlu0 %383
      %v385 = vsel %vm342, %v340, 0.0
      %386 = vadd.xlane.f32.xlu0 %v385
      %v387 = vpop.xlane.xlu0 %386
      %v388 = vsel %vm342, %v341, 0.0
      %389 = vadd.xlane.f32.xlu0 %v388
      %v390 = vpop.xlane.xlu0 %389
      %v391 = vrcp.pop 64.0
      %v392 = vmul.f32 %v345, %v391
      %v393 = vmul.f32 %v348, %v391
      %v394 = vmul.f32 %v351, %v391
      %v395 = vmul.f32 %v354, %v391
      %v396 = vmul.f32 %v357, %v391
      %v397 = vmul.f32 %v360, %v391
      %v398 = vmul.f32 %v363, %v391
      %v399 = vmul.f32 %v366, %v391
      %v400 = vmul.f32 %v369, %v391
      %v401 = vmul.f32 %v372, %v391
      %v402 = vmul.f32 %v375, %v391
      %v403 = vmul.f32 %v378, %v391
      %v404 = vmul.f32 %v381, %v391
      %v405 = vmul.f32 %v384, %v391
      %v406 = vmul.f32 %v387, %v391
      %v407 = vmul.f32 %v390, %v391
      %v408 = vsub.f32 %v326, %v392
      %v409 = vsub.f32 %v327, %v393
      %v410 = vsub.f32 %v328, %v394
      %v411 = vsub.f32 %v329, %v395
      %v412 = vsub.f32 %v330, %v396
      %v413 = vsub.f32 %v331, %v397
      %v414 = vsub.f32 %v332, %v398
      %v415 = vsub.f32 %v333, %v399
      %v416 = vsub.f32 %v334, %v400
      %v417 = vsub.f32 %v335, %v401
      %v418 = vsub.f32 %v336, %v402
      %v419 = vsub.f32 %v337, %v403
      %v420 = vsub.f32 %v338, %v404
      %v421 = vsub.f32 %v339, %v405
      %v422 = vsub.f32 %v340, %v406
      %v423 = vsub.f32 %v341, %v407
      %v424 = vmul.f32 %v408, %v408
      %v425 = vmul.f32 %v409, %v409
      %v426 = vmul.f32 %v410, %v410
      %v427 = vmul.f32 %v411, %v411
      %v428 = vmul.f32 %v412, %v412
      %v429 = vmul.f32 %v413, %v413
      %v430 = vmul.f32 %v414, %v414
      %v431 = vmul.f32 %v415, %v415
      %v432 = vmul.f32 %v416, %v416
      %v433 = vmul.f32 %v417, %v417
      %v434 = vmul.f32 %v418, %v418
      %v435 = vmul.f32 %v419, %v419
      %v436 = vmul.f32 %v420, %v420
      %v437 = vmul.f32 %v421, %v421
      %v438 = vmul.f32 %v422, %v422
      %v439 = vmul.f32 %v423, %v423
      %v440 = vsel %vm342, %v424, 0.0
      %441 = vadd.xlane.f32.xlu0 %v440
      %v442 = vpop.xlane.xlu0 %441
      %v443 = vsel %vm342, %v425, 0.0
      %444 = vadd.xlane.f32.xlu0 %v443
      %v445 = vpop.xlane.xlu0 %444
      %v446 = vsel %vm342, %v426, 0.0
      %447 = vadd.xlane.f32.xlu0 %v446
      %v448 = vpop.xlane.xlu0 %447
      %v449 = vsel %vm342, %v427, 0.0
      %450 = vadd.xlane.f32.xlu0 %v449
      %v451 = vpop.xlane.xlu0 %450
      %v452 = vsel %vm342, %v428, 0.0
      %453 = vadd.xlane.f32.xlu0 %v452
      %v454 = vpop.xlane.xlu0 %453
      %v455 = vsel %vm342, %v429, 0.0
      %456 = vadd.xlane.f32.xlu0 %v455
      %v457 = vpop.xlane.xlu0 %456
      %v458 = vsel %vm342, %v430, 0.0
      %459 = vadd.xlane.f32.xlu0 %v458
      %v460 = vpop.xlane.xlu0 %459
      %v461 = vsel %vm342, %v431, 0.0
      %462 = vadd.xlane.f32.xlu0 %v461
      %v463 = vpop.xlane.xlu0 %462
      %v464 = vsel %vm342, %v432, 0.0
      %465 = vadd.xlane.f32.xlu0 %v464
      %v466 = vpop.xlane.xlu0 %465
      %v467 = vsel %vm342, %v433, 0.0
      %468 = vadd.xlane.f32.xlu0 %v467
      %v469 = vpop.xlane.xlu0 %468
      %v470 = vsel %vm342, %v434, 0.0
      %471 = vadd.xlane.f32.xlu0 %v470
      %v472 = vpop.xlane.xlu0 %471
      %v473 = vsel %vm342, %v435, 0.0
      %474 = vadd.xlane.f32.xlu0 %v473
      %v475 = vpop.xlane.xlu0 %474
      %v476 = vsel %vm342, %v436, 0.0
      %477 = vadd.xlane.f32.xlu0 %v476
      %v478 = vpop.xlane.xlu0 %477
      %v479 = vsel %vm342, %v437, 0.0
      %480 = vadd.xlane.f32.xlu0 %v479
      %v481 = vpop.xlane.xlu0 %480
      %v482 = vsel %vm342, %v438, 0.0
      %483 = vadd.xlane.f32.xlu0 %v482
      %v484 = vpop.xlane.xlu0 %483
      %v485 = vsel %vm342, %v439, 0.0
      %486 = vadd.xlane.f32.xlu0 %v485
      %v487 = vpop.xlane.xlu0 %486
      %v488 = vmul.f32 %v442, %v391
      %v489 = vmul.f32 %v445, %v391
      %v490 = vmul.f32 %v448, %v391
      %v491 = vmul.f32 %v451, %v391
      %v492 = vmul.f32 %v454, %v391
      %v493 = vmul.f32 %v457, %v391
      %v494 = vmul.f32 %v460, %v391
      %v495 = vmul.f32 %v463, %v391
      %v496 = vmul.f32 %v466, %v391
      %v497 = vmul.f32 %v469, %v391
      %v498 = vmul.f32 %v472, %v391
      %v499 = vmul.f32 %v475, %v391
      %v500 = vmul.f32 %v478, %v391
      %v501 = vmul.f32 %v481, %v391
      %v502 = vmul.f32 %v484, %v391
      %v503 = vmul.f32 %v487, %v391
      %v504 = vadd.f32 %v488, 1e-05
      %v505 = vadd.f32 %v489, 1e-05
      %v506 = vadd.f32 %v490, 1e-05
      %v507 = vadd.f32 %v491, 1e-05
      %v508 = vadd.f32 %v492, 1e-05
      %v509 = vadd.f32 %v493, 1e-05
      %v510 = vadd.f32 %v494, 1e-05
      %v511 = vadd.f32 %v495, 1e-05
      %v512 = vadd.f32 %v496, 1e-05
      %v513 = vadd.f32 %v497, 1e-05
      %v514 = vadd.f32 %v498, 1e-05
      %v515 = vadd.f32 %v499, 1e-05
      %v516 = vadd.f32 %v500, 1e-05
      %v517 = vadd.f32 %v501, 1e-05
      %v518 = vadd.f32 %v502, 1e-05
      %v519 = vadd.f32 %v503, 1e-05
      %v520 = vrsqrt.pop %v504
      %v521 = vrsqrt.pop %v505
      %v522 = vrsqrt.pop %v506
      %v523 = vrsqrt.pop %v507
      %v524 = vrsqrt.pop %v508
      %v525 = vrsqrt.pop %v509
      %v526 = vrsqrt.pop %v510
      %v527 = vrsqrt.pop %v511
      %v528 = vrsqrt.pop %v512
      %v529 = vrsqrt.pop %v513
      %v530 = vrsqrt.pop %v514
      %v531 = vrsqrt.pop %v515
      %v532 = vrsqrt.pop %v516
      %v533 = vrsqrt.pop %v517
      %v534 = vrsqrt.pop %v518
      %v535 = vrsqrt.pop %v519
      %v536 = vmul.f32 %v408, %v520
      %v537 = vmul.f32 %v409, %v521
      %v538 = vmul.f32 %v410, %v522
      %v539 = vmul.f32 %v411, %v523
      %v540 = vmul.f32 %v412, %v524
      %v541 = vmul.f32 %v413, %v525
      %v542 = vmul.f32 %v414, %v526
      %v543 = vmul.f32 %v415, %v527
      %v544 = vmul.f32 %v416, %v528
      %v545 = vmul.f32 %v417, %v529
      %v546 = vmul.f32 %v418, %v530
      %v547 = vmul.f32 %v419, %v531
      %v548 = vmul.f32 %v420, %v532
      %v549 = vmul.f32 %v421, %v533
      %v550 = vmul.f32 %v422, %v534
      %v551 = vmul.f32 %v423, %v535
      %v552 = vld [vmem:[%s1] sm:$0x1]
      %v554 = vlaneseq
      %v555 = vshrl.u32 %v554, 7
      %v556 = vsub.s32 0, %v555
      %v557 = vrot.slane %v552, %v556
      %v559 = vmul.f32 %v536, %v557
      %v560 = vmul.f32 %v537, %v557
      %v561 = vmul.f32 %v538, %v557
      %v562 = vmul.f32 %v539, %v557
      %v563 = vmul.f32 %v540, %v557
      %v564 = vmul.f32 %v541, %v557
      %v565 = vmul.f32 %v542, %v557
      %v566 = vmul.f32 %v543, %v557
      %v567 = vmul.f32 %v544, %v557
      %v568 = vmul.f32 %v545, %v557
      %v569 = vmul.f32 %v546, %v557
      %v570 = vmul.f32 %v547, %v557
      %v571 = vmul.f32 %v548, %v557
      %v572 = vmul.f32 %v549, %v557
      %v573 = vmul.f32 %v550, %v557
      %v574 = vmul.f32 %v551, %v557
      %v575 = vld [vmem:[%s2] sm:$0x1]
      %v577 = vlaneseq
      %v578 = vshrl.u32 %v577, 7
      %v579 = vsub.s32 0, %v578
      %v580 = vrot.slane %v575, %v579
      %v582 = vadd.f32 %v559, %v580
      %v583 = vadd.f32 %v560, %v580
      %v584 = vadd.f32 %v561, %v580
      %v585 = vadd.f32 %v562, %v580
      %v586 = vadd.f32 %v563, %v580
      %v587 = vadd.f32 %v564, %v580
      %v588 = vadd.f32 %v565, %v580
      %v589 = vadd.f32 %v566, %v580
      %v590 = vadd.f32 %v567, %v580
      %v591 = vadd.f32 %v568, %v580
      %v592 = vadd.f32 %v569, %v580
      %v593 = vadd.f32 %v570, %v580
      %v594 = vadd.f32 %v571, %v580
      %v595 = vadd.f32 %v572, %v580
      %v596 = vadd.f32 %v573, %v580
      %v597 = vadd.f32 %v574, %v580
      %v598 = vpack.c.bf16 %v583, %v582
      %v599 = vpack.c.bf16 %v585, %v584
      %v600 = vpack.c.bf16 %v587, %v586
      %v601 = vpack.c.bf16 %v589, %v588
      %v602 = vpack.c.bf16 %v591, %v590
      %v603 = vpack.c.bf16 %v593, %v592
      %v604 = vpack.c.bf16 %v595, %v594
      %v605 = vpack.c.bf16 %v597, %v596
      %v606 = vld [vmem:[%s3] sm:$0xf]
      %v607 = vld [vmem:[%s3 + $0x4] sm:$0xf]
      %v608 = vld [vmem:[%s3 + $0x8] sm:$0xf]
      %v609 = vld [vmem:[%s3 + $0xc] sm:$0xf]
      %v610 = vld [vmem:[%s3 + $0x10] sm:$0xf]
      %v611 = vld [vmem:[%s3 + $0x14] sm:$0xf]
      %v612 = vld [vmem:[%s3 + $0x18] sm:$0xf]
      %v613 = vld [vmem:[%s3 + $0x1c] sm:$0xf]
      %v614 = vld [vmem:[%s4] sm:$0x1]
      %v616 = vlaneseq
      %v617 = vshrl.u32 %v616, 7
      %v618 = vsub.s32 0, %v617
      %v619 = vrot.slane %v614, %v618
      %v629 = vunpack.c.l.b16 %v606
      %v630 = vunpack.c.l.b16 %v607
      %v631 = vunpack.c.l.b16 %v608
      %v632 = vunpack.c.l.b16 %v609
      %v633 = vunpack.c.l.b16 %v610
      %v634 = vunpack.c.l.b16 %v611
      %v635 = vunpack.c.l.b16 %v612
      %v636 = vunpack.c.l.b16 %v613
      %v637 = vpack.c.b16 %v630, %v629
      %v638 = vpack.c.b16 %v632, %v631
      %v639 = vpack.c.b16 %v634, %v633
      %v640 = vpack.c.b16 %v636, %v635
      %v646 = vsel %vm342, %v598, 0
      %v649 = vsel %vm342, %v599, 0
      %v652 = vsel %vm342, %v600, 0
      %v655 = vsel %vm342, %v601, 0
      %v658 = vsel %vm342, %v602, 0
      %v661 = vsel %vm342, %v603, 0
      %v664 = vsel %vm342, %v604, 0
      %v667 = vsel %vm342, %v605, 0
      %669 = vmatprep.subr.bf16.mxu0 0
      %670 = vmatpush1.bf16.msra.mxu0 0
      %671 = vmatprep.subr.bf16.mxu0 0
      %672 = vmatpush1.bf16.msra.mxu0 0
      %673 = vmatprep.subr.bf16.mxu0 0
      %674 = vmatpush1.bf16.msra.mxu0 0
      %675 = vmatprep.subr.bf16.mxu0 0
      %676 = vmatpush1.bf16.msra.mxu0 0
      %677 = vmatprep.subr.bf16.mxu0 0
      %678 = vmatpush1.bf16.msra.mxu0 %v640
      %679 = vmatprep.subr.bf16.mxu0 0
      %680 = vmatpush1.bf16.msra.mxu0 %v639
      %681 = vmatprep.subr.bf16.mxu0 0
      %682 = vmatpush1.bf16.msra.mxu0 %v638
      %683 = vmatprep.subr.bf16.mxu0 0
      %684 = vmatpush1.bf16.msra.mxu0 %v637
      %685 = vmatprep.subr.bf16.mxu0 0
      %686 = vmatpush2.bf16.msra.mxu0 0
      %687 = vmatprep.subr.bf16.mxu0 0
      %688 = vmatpush2.bf16.msra.mxu0 0
      %689 = vmatprep.subr.bf16.mxu0 0
      %690 = vmatpush2.bf16.msra.mxu0 0
      %691 = vmatprep.subr.bf16.mxu0 0
      %692 = vmatpush2.bf16.msra.mxu0 0
      %693 = vmatprep.subr.bf16.mxu0 0
      %694 = vmatpush2.bf16.msra.mxu0 0
      %695 = vmatprep.subr.bf16.mxu0 0
      %696 = vmatpush2.bf16.msra.mxu0 0
      %697 = vmatprep.subr.bf16.mxu0 0
      %698 = vmatpush2.bf16.msra.mxu0 0
      %699 = vmatprep.subr.bf16.mxu0 0
      %700 = vmatpush2.bf16.msra.mxu0 0
      %701 = vmatprep.mubr.bf16.mxu0 0
      %702 = vmatmul.mubr.bf16.gmra.mxu0 %v646
      %v703 = vpop.f32.mrf.mxu0
      %v704 = vadd.f32 %v619, %v703
      %v705 = vpop.f32.mrf.mxu0
      %v706 = vpop.f32.mrf.mxu0
      %v707 = vadd.f32 %v619, %v706
      %v708 = vpop.f32.mrf.mxu0
      %709 = vmatprep.mubr.bf16.mxu0 0
      %710 = vmatmul.mubr.bf16.gmra.mxu0 %v649
      %v711 = vpop.f32.mrf.mxu0
      %v712 = vadd.f32 %v619, %v711
      %v713 = vpop.f32.mrf.mxu0
      %v714 = vpop.f32.mrf.mxu0
      %v715 = vadd.f32 %v619, %v714
      %v716 = vpop.f32.mrf.mxu0
      %717 = vmatprep.mubr.bf16.mxu0 0
      %718 = vmatmul.mubr.bf16.gmra.mxu0 %v652
      %v719 = vpop.f32.mrf.mxu0
      %v720 = vadd.f32 %v619, %v719
      %v721 = vpop.f32.mrf.mxu0
      %v722 = vpop.f32.mrf.mxu0
      %v723 = vadd.f32 %v619, %v722
      %v724 = vpop.f32.mrf.mxu0
      %725 = vmatprep.mubr.bf16.mxu0 0
      %726 = vmatmul.mubr.bf16.gmra.mxu0 %v655
      %v727 = vpop.f32.mrf.mxu0
      %v728 = vadd.f32 %v619, %v727
      %v729 = vpop.f32.mrf.mxu0
      %v730 = vpop.f32.mrf.mxu0
      %v731 = vadd.f32 %v619, %v730
      %v732 = vpop.f32.mrf.mxu0
      %733 = vmatprep.mubr.bf16.mxu0 0
      %734 = vmatmul.mubr.bf16.gmra.mxu0 %v658
      %v735 = vpop.f32.mrf.mxu0
      %v736 = vadd.f32 %v619, %v735
      %v737 = vpop.f32.mrf.mxu0
      %v738 = vpop.f32.mrf.mxu0
      %v739 = vadd.f32 %v619, %v738
      %v740 = vpop.f32.mrf.mxu0
      %741 = vmatprep.mubr.bf16.mxu0 0
      %742 = vmatmul.mubr.bf16.gmra.mxu0 %v661
      %v743 = vpop.f32.mrf.mxu0
      %v744 = vadd.f32 %v619, %v743
      %v745 = vpop.f32.mrf.mxu0
      %v746 = vpop.f32.mrf.mxu0
      %v747 = vadd.f32 %v619, %v746
      %v748 = vpop.f32.mrf.mxu0
      %749 = vmatprep.mubr.bf16.mxu0 0
      %750 = vmatmul.mubr.bf16.gmra.mxu0 %v664
      %v751 = vpop.f32.mrf.mxu0
      %v752 = vadd.f32 %v619, %v751
      %v753 = vpop.f32.mrf.mxu0
      %v754 = vpop.f32.mrf.mxu0
      %v755 = vadd.f32 %v619, %v754
      %v756 = vpop.f32.mrf.mxu0
      %757 = vmatprep.mubr.bf16.mxu0 0
      %758 = vmatmul.mubr.bf16.gmra.mxu0 %v667
      %v759 = vpop.f32.mrf.mxu0
      %v760 = vadd.f32 %v619, %v759
      %v761 = vpop.f32.mrf.mxu0
      %v762 = vpop.f32.mrf.mxu0
      %v763 = vadd.f32 %v619, %v762
      %v764 = vpop.f32.mrf.mxu0
      %765 = vdwg.mxu0
      %v766 = vpack.c.bf16 %v707, %v704
      %v767 = vpack.c.bf16 %v715, %v712
      %v768 = vpack.c.bf16 %v723, %v720
      %v769 = vpack.c.bf16 %v731, %v728
      %v770 = vpack.c.bf16 %v739, %v736
      %v771 = vpack.c.bf16 %v747, %v744
      %v772 = vpack.c.bf16 %v755, %v752
      %v773 = vpack.c.bf16 %v763, %v760
      %v774 = vld [vmem:[%s5] sm:$0xf]
      %v775 = vld [vmem:[%s5 + $0x4] sm:$0xf]
      %v776 = vld [vmem:[%s5 + $0x8] sm:$0xf]
      %v777 = vld [vmem:[%s5 + $0xc] sm:$0xf]
      %v778 = vld [vmem:[%s5 + $0x10] sm:$0xf]
      %v779 = vld [vmem:[%s5 + $0x14] sm:$0xf]
      %v780 = vld [vmem:[%s5 + $0x18] sm:$0xf]
      %v781 = vld [vmem:[%s5 + $0x1c] sm:$0xf]
      %v790 = vunpack.c.l.b16 %v774
      %v791 = vunpack.c.l.b16 %v775
      %v792 = vunpack.c.l.b16 %v776
      %v793 = vunpack.c.l.b16 %v777
      %v794 = vunpack.c.l.b16 %v778
      %v795 = vunpack.c.l.b16 %v779
      %v796 = vunpack.c.l.b16 %v780
      %v797 = vunpack.c.l.b16 %v781
      %v798 = vpack.c.b16 %v791, %v790
      %v799 = vpack.c.b16 %v793, %v792
      %v800 = vpack.c.b16 %v795, %v794
      %v801 = vpack.c.b16 %v797, %v796
      %v807 = vsel %vm342, %v766, 0
      %v810 = vsel %vm342, %v767, 0
      %v813 = vsel %vm342, %v768, 0
      %v816 = vsel %vm342, %v769, 0
      %v819 = vsel %vm342, %v770, 0
      %v822 = vsel %vm342, %v771, 0
      %v825 = vsel %vm342, %v772, 0
      %v828 = vsel %vm342, %v773, 0
      %830 = vmatprep.subr.bf16.mxu0 0
      %831 = vmatpush1.bf16.msra.mxu0 0
      %832 = vmatprep.subr.bf16.mxu0 0
      %833 = vmatpush1.bf16.msra.mxu0 0
      %834 = vmatprep.subr.bf16.mxu0 0
      %835 = vmatpush1.bf16.msra.mxu0 0
      %836 = vmatprep.subr.bf16.mxu0 0
      %837 = vmatpush1.bf16.msra.mxu0 0
      %838 = vmatprep.subr.bf16.mxu0 0
      %839 = vmatpush1.bf16.msra.mxu0 %v801
      %840 = vmatprep.subr.bf16.mxu0 0
      %841 = vmatpush1.bf16.msra.mxu0 %v800
      %842 = vmatprep.subr.bf16.mxu0 0
      %843 = vmatpush1.bf16.msra.mxu0 %v799
      %844 = vmatprep.subr.bf16.mxu0 0
      %845 = vmatpush1.bf16.msra.mxu0 %v798
      %846 = vmatprep.subr.bf16.mxu0 0
      %847 = vmatpush2.bf16.msra.mxu0 0
      %848 = vmatprep.subr.bf16.mxu0 0
      %849 = vmatpush2.bf16.msra.mxu0 0
      %850 = vmatprep.subr.bf16.mxu0 0
      %851 = vmatpush2.bf16.msra.mxu0 0
      %852 = vmatprep.subr.bf16.mxu0 0
      %853 = vmatpush2.bf16.msra.mxu0 0
      %854 = vmatprep.subr.bf16.mxu0 0
      %855 = vmatpush2.bf16.msra.mxu0 0
      %856 = vmatprep.subr.bf16.mxu0 0
      %857 = vmatpush2.bf16.msra.mxu0 0
      %858 = vmatprep.subr.bf16.mxu0 0
      %859 = vmatpush2.bf16.msra.mxu0 0
      %860 = vmatprep.subr.bf16.mxu0 0
      %861 = vmatpush2.bf16.msra.mxu0 0
      %862 = vmatprep.mubr.bf16.mxu0 0
      %863 = vmatmul.mubr.bf16.gmra.mxu0 %v807
      %v864 = vpop.f32.mrf.mxu0
      %v865 = vadd.f32 0.0, %v864
      %v866 = vpop.f32.mrf.mxu0
      %v867 = vpop.f32.mrf.mxu0
      %v868 = vadd.f32 0.0, %v867
      %v869 = vpop.f32.mrf.mxu0
      %870 = vmatprep.mubr.bf16.mxu0 0
      %871 = vmatmul.mubr.bf16.gmra.mxu0 %v810
      %v872 = vpop.f32.mrf.mxu0
      %v873 = vadd.f32 0.0, %v872
      %v874 = vpop.f32.mrf.mxu0
      %v875 = vpop.f32.mrf.mxu0
      %v876 = vadd.f32 0.0, %v875
      %v877 = vpop.f32.mrf.mxu0
      %878 = vmatprep.mubr.bf16.mxu0 0
      %879 = vmatmul.mubr.bf16.gmra.mxu0 %v813
      %v880 = vpop.f32.mrf.mxu0
      %v881 = vadd.f32 0.0, %v880
      %v882 = vpop.f32.mrf.mxu0
      %v883 = vpop.f32.mrf.mxu0
      %v884 = vadd.f32 0.0, %v883
      %v885 = vpop.f32.mrf.mxu0
      %886 = vmatprep.mubr.bf16.mxu0 0
      %887 = vmatmul.mubr.bf16.gmra.mxu0 %v816
      %v888 = vpop.f32.mrf.mxu0
      %v889 = vadd.f32 0.0, %v888
      %v890 = vpop.f32.mrf.mxu0
      %v891 = vpop.f32.mrf.mxu0
      %v892 = vadd.f32 0.0, %v891
      %v893 = vpop.f32.mrf.mxu0
      %894 = vmatprep.mubr.bf16.mxu0 0
      %895 = vmatmul.mubr.bf16.gmra.mxu0 %v819
      %v896 = vpop.f32.mrf.mxu0
      %v897 = vadd.f32 0.0, %v896
      %v898 = vpop.f32.mrf.mxu0
      %v899 = vpop.f32.mrf.mxu0
      %v900 = vadd.f32 0.0, %v899
      %v901 = vpop.f32.mrf.mxu0
      %902 = vmatprep.mubr.bf16.mxu0 0
      %903 = vmatmul.mubr.bf16.gmra.mxu0 %v822
      %v904 = vpop.f32.mrf.mxu0
      %v905 = vadd.f32 0.0, %v904
      %v906 = vpop.f32.mrf.mxu0
      %v907 = vpop.f32.mrf.mxu0
      %v908 = vadd.f32 0.0, %v907
      %v909 = vpop.f32.mrf.mxu0
      %910 = vmatprep.mubr.bf16.mxu0 0
      %911 = vmatmul.mubr.bf16.gmra.mxu0 %v825
      %v912 = vpop.f32.mrf.mxu0
      %v913 = vadd.f32 0.0, %v912
      %v914 = vpop.f32.mrf.mxu0
      %v915 = vpop.f32.mrf.mxu0
      %v916 = vadd.f32 0.0, %v915
      %v917 = vpop.f32.mrf.mxu0
      %918 = vmatprep.mubr.bf16.mxu0 0
      %919 = vmatmul.mubr.bf16.gmra.mxu0 %v828
      %v920 = vpop.f32.mrf.mxu0
      %v921 = vadd.f32 0.0, %v920
      %v922 = vpop.f32.mrf.mxu0
      %v923 = vpop.f32.mrf.mxu0
      %v924 = vadd.f32 0.0, %v923
      %v925 = vpop.f32.mrf.mxu0
      %926 = vdwg.mxu0
      %v927 = vmul.f32 %v865, %v865
      %v928 = vmul.f32 %v868, %v868
      %v929 = vmul.f32 %v873, %v873
      %v930 = vmul.f32 %v876, %v876
      %v931 = vmul.f32 %v881, %v881
      %v932 = vmul.f32 %v884, %v884
      %v933 = vmul.f32 %v889, %v889
      %v934 = vmul.f32 %v892, %v892
      %v935 = vmul.f32 %v897, %v897
      %v936 = vmul.f32 %v900, %v900
      %v937 = vmul.f32 %v905, %v905
      %v938 = vmul.f32 %v908, %v908
      %v939 = vmul.f32 %v913, %v913
      %v940 = vmul.f32 %v916, %v916
      %v941 = vmul.f32 %v921, %v921
      %v942 = vmul.f32 %v924, %v924
      %vm943 = vcmask 64512
      %v944 = vsel %vm943, %v927, 0.0
      %945 = vadd.xlane.f32.xlu0 %v944
      %v946 = vpop.xlane.xlu0 %945
      %v947 = vsel %vm943, %v928, 0.0
      %948 = vadd.xlane.f32.xlu0 %v947
      %v949 = vpop.xlane.xlu0 %948
      %v950 = vsel %vm943, %v929, 0.0
      %951 = vadd.xlane.f32.xlu0 %v950
      %v952 = vpop.xlane.xlu0 %951
      %v953 = vsel %vm943, %v930, 0.0
      %954 = vadd.xlane.f32.xlu0 %v953
      %v955 = vpop.xlane.xlu0 %954
      %v956 = vsel %vm943, %v931, 0.0
      %957 = vadd.xlane.f32.xlu0 %v956
      %v958 = vpop.xlane.xlu0 %957
      %v959 = vsel %vm943, %v932, 0.0
      %960 = vadd.xlane.f32.xlu0 %v959
      %v961 = vpop.xlane.xlu0 %960
      %v962 = vsel %vm943, %v933, 0.0
      %963 = vadd.xlane.f32.xlu0 %v962
      %v964 = vpop.xlane.xlu0 %963
      %v965 = vsel %vm943, %v934, 0.0
      %966 = vadd.xlane.f32.xlu0 %v965
      %v967 = vpop.xlane.xlu0 %966
      %v968 = vsel %vm943, %v935, 0.0
      %969 = vadd.xlane.f32.xlu0 %v968
      %v970 = vpop.xlane.xlu0 %969
      %v971 = vsel %vm943, %v936, 0.0
      %972 = vadd.xlane.f32.xlu0 %v971
      %v973 = vpop.xlane.xlu0 %972
      %v974 = vsel %vm943, %v937, 0.0
      %975 = vadd.xlane.f32.xlu0 %v974
      %v976 = vpop.xlane.xlu0 %975
      %v977 = vsel %vm943, %v938, 0.0
      %978 = vadd.xlane.f32.xlu0 %v977
      %v979 = vpop.xlane.xlu0 %978
      %v980 = vsel %vm943, %v939, 0.0
      %981 = vadd.xlane.f32.xlu0 %v980
      %v982 = vpop.xlane.xlu0 %981
      %v983 = vsel %vm943, %v940, 0.0
      %984 = vadd.xlane.f32.xlu0 %v983
      %v985 = vpop.xlane.xlu0 %984
      %v986 = vsel %vm943, %v941, 0.0
      %987 = vadd.xlane.f32.xlu0 %v986
      %v988 = vpop.xlane.xlu0 %987
      %v989 = vsel %vm943, %v942, 0.0
      %990 = vadd.xlane.f32.xlu0 %v989
      %v991 = vpop.xlane.xlu0 %990
      %v992 = vmax.f32 %v946, 1e-24
      %v993 = vmax.f32 %v949, 1e-24
      %v994 = vmax.f32 %v952, 1e-24
      %v995 = vmax.f32 %v955, 1e-24
      %v996 = vmax.f32 %v958, 1e-24
      %v997 = vmax.f32 %v961, 1e-24
      %v998 = vmax.f32 %v964, 1e-24
      %v999 = vmax.f32 %v967, 1e-24
      %v1000 = vmax.f32 %v970, 1e-24
      %v1001 = vmax.f32 %v973, 1e-24
      %v1002 = vmax.f32 %v976, 1e-24
      %v1003 = vmax.f32 %v979, 1e-24
      %v1004 = vmax.f32 %v982, 1e-24
      %v1005 = vmax.f32 %v985, 1e-24
      %v1006 = vmax.f32 %v988, 1e-24
      %v1007 = vmax.f32 %v991, 1e-24
      %v1008 = vrsqrt.pop %v992
      %v1009 = vrsqrt.pop %v993
      %v1010 = vrsqrt.pop %v994
      %v1011 = vrsqrt.pop %v995
      %v1012 = vrsqrt.pop %v996
      %v1013 = vrsqrt.pop %v997
      %v1014 = vrsqrt.pop %v998
      %v1015 = vrsqrt.pop %v999
      %v1016 = vrsqrt.pop %v1000
      %v1017 = vrsqrt.pop %v1001
      %v1018 = vrsqrt.pop %v1002
      %v1019 = vrsqrt.pop %v1003
      %v1020 = vrsqrt.pop %v1004
      %v1021 = vrsqrt.pop %v1005
      %v1022 = vrsqrt.pop %v1006
      %v1023 = vrsqrt.pop %v1007
      %v1024 = vmul.f32 %v865, %v1008
      %v1025 = vmul.f32 %v868, %v1009
      %v1026 = vmul.f32 %v873, %v1010
      %v1027 = vmul.f32 %v876, %v1011
      %v1028 = vmul.f32 %v881, %v1012
      %v1029 = vmul.f32 %v884, %v1013
      %v1030 = vmul.f32 %v889, %v1014
      %v1031 = vmul.f32 %v892, %v1015
      %v1032 = vmul.f32 %v897, %v1016
      %v1033 = vmul.f32 %v900, %v1017
      %v1034 = vmul.f32 %v905, %v1018
      %v1035 = vmul.f32 %v908, %v1019
      %v1036 = vmul.f32 %v913, %v1020
      %v1037 = vmul.f32 %v916, %v1021
      %v1038 = vmul.f32 %v921, %v1022
      %v1039 = vmul.f32 %v924, %v1023
      %v1040 = vmul.f32 %v1024, 16.0
      %v1041 = vmul.f32 %v1025, 16.0
      %v1042 = vmul.f32 %v1026, 16.0
      %v1043 = vmul.f32 %v1027, 16.0
      %v1044 = vmul.f32 %v1028, 16.0
      %v1045 = vmul.f32 %v1029, 16.0
      %v1046 = vmul.f32 %v1030, 16.0
      %v1047 = vmul.f32 %v1031, 16.0
      %v1048 = vmul.f32 %v1032, 16.0
      %v1049 = vmul.f32 %v1033, 16.0
      %v1050 = vmul.f32 %v1034, 16.0
      %v1051 = vmul.f32 %v1035, 16.0
      %v1052 = vmul.f32 %v1036, 16.0
      %v1053 = vmul.f32 %v1037, 16.0
      %v1054 = vmul.f32 %v1038, 16.0
      %v1055 = vmul.f32 %v1039, 16.0
      %v1056 = vsel %vm943, %v1040, -inf
      %v1057 = vsel %vm943, %v1041, -inf
      %v1058 = vmax.f32 %v1056, %v1057
      %v1059 = vrot.slane %v1058, 4
      %v1060 = vmax.f32 %v1058, %v1059
      %v1061 = vrot.slane %v1060, 2
      %v1062 = vmax.f32 %v1060, %v1061
      %v1063 = vrot.slane %v1062, 1
      %v1064 = vmax.f32 %v1062, %v1063
      %v1065 = vsel %vm943, %v1042, -inf
      %v1066 = vsel %vm943, %v1043, -inf
      %v1067 = vmax.f32 %v1065, %v1066
      %v1068 = vrot.slane %v1067, 4
      %v1069 = vmax.f32 %v1067, %v1068
      %v1070 = vrot.slane %v1069, 2
      %v1071 = vmax.f32 %v1069, %v1070
      %v1072 = vrot.slane %v1071, 1
      %v1073 = vmax.f32 %v1071, %v1072
      %v1074 = vsel %vm943, %v1044, -inf
      %v1075 = vsel %vm943, %v1045, -inf
      %v1076 = vmax.f32 %v1074, %v1075
      %v1077 = vrot.slane %v1076, 4
      %v1078 = vmax.f32 %v1076, %v1077
      %v1079 = vrot.slane %v1078, 2
      %v1080 = vmax.f32 %v1078, %v1079
      %v1081 = vrot.slane %v1080, 1
      %v1082 = vmax.f32 %v1080, %v1081
      %v1083 = vsel %vm943, %v1046, -inf
      %v1084 = vsel %vm943, %v1047, -inf
      %v1085 = vmax.f32 %v1083, %v1084
      %v1086 = vrot.slane %v1085, 4
      %v1087 = vmax.f32 %v1085, %v1086
      %v1088 = vrot.slane %v1087, 2
      %v1089 = vmax.f32 %v1087, %v1088
      %v1090 = vrot.slane %v1089, 1
      %v1091 = vmax.f32 %v1089, %v1090
      %v1092 = vsel %vm943, %v1048, -inf
      %v1093 = vsel %vm943, %v1049, -inf
      %v1094 = vmax.f32 %v1092, %v1093
      %v1095 = vrot.slane %v1094, 4
      %v1096 = vmax.f32 %v1094, %v1095
      %v1097 = vrot.slane %v1096, 2
      %v1098 = vmax.f32 %v1096, %v1097
      %v1099 = vrot.slane %v1098, 1
      %v1100 = vmax.f32 %v1098, %v1099
      %v1101 = vsel %vm943, %v1050, -inf
      %v1102 = vsel %vm943, %v1051, -inf
      %v1103 = vmax.f32 %v1101, %v1102
      %v1104 = vrot.slane %v1103, 4
      %v1105 = vmax.f32 %v1103, %v1104
      %v1106 = vrot.slane %v1105, 2
      %v1107 = vmax.f32 %v1105, %v1106
      %v1108 = vrot.slane %v1107, 1
      %v1109 = vmax.f32 %v1107, %v1108
      %v1110 = vsel %vm943, %v1052, -inf
      %v1111 = vsel %vm943, %v1053, -inf
      %v1112 = vmax.f32 %v1110, %v1111
      %v1113 = vrot.slane %v1112, 4
      %v1114 = vmax.f32 %v1112, %v1113
      %v1115 = vrot.slane %v1114, 2
      %v1116 = vmax.f32 %v1114, %v1115
      %v1117 = vrot.slane %v1116, 1
      %v1118 = vmax.f32 %v1116, %v1117
      %v1119 = vsel %vm943, %v1054, -inf
      %v1120 = vsel %vm943, %v1055, -inf
      %v1121 = vmax.f32 %v1119, %v1120
      %v1122 = vrot.slane %v1121, 4
      %v1123 = vmax.f32 %v1121, %v1122
      %v1124 = vrot.slane %v1123, 2
      %v1125 = vmax.f32 %v1123, %v1124
      %v1126 = vrot.slane %v1125, 1
      %v1127 = vmax.f32 %v1125, %v1126
      %v1128 = vsub.f32 %v1040, %v1064
      %v1129 = vsub.f32 %v1041, %v1064
      %v1130 = vsub.f32 %v1042, %v1073
      %v1131 = vsub.f32 %v1043, %v1073
      %v1132 = vsub.f32 %v1044, %v1082
      %v1133 = vsub.f32 %v1045, %v1082
      %v1134 = vsub.f32 %v1046, %v1091
      %v1135 = vsub.f32 %v1047, %v1091
      %v1136 = vsub.f32 %v1048, %v1100
      %v1137 = vsub.f32 %v1049, %v1100
      %v1138 = vsub.f32 %v1050, %v1109
      %v1139 = vsub.f32 %v1051, %v1109
      %v1140 = vsub.f32 %v1052, %v1118
      %v1141 = vsub.f32 %v1053, %v1118
      %v1142 = vsub.f32 %v1054, %v1127
      %v1143 = vsub.f32 %v1055, %v1127
      %v1144 = vmul.f32 %v1128, 1.442695
      %v1145 = vpow.pop %v1144
      %v1146 = vmul.f32 %v1129, 1.442695
      %v1147 = vpow.pop %v1146
      %v1148 = vmul.f32 %v1130, 1.442695
      %v1149 = vpow.pop %v1148
      %v1150 = vmul.f32 %v1131, 1.442695
      %v1151 = vpow.pop %v1150
      %v1152 = vmul.f32 %v1132, 1.442695
      %v1153 = vpow.pop %v1152
      %v1154 = vmul.f32 %v1133, 1.442695
      %v1155 = vpow.pop %v1154
      %v1156 = vmul.f32 %v1134, 1.442695
      %v1157 = vpow.pop %v1156
      %v1158 = vmul.f32 %v1135, 1.442695
      %v1159 = vpow.pop %v1158
      %v1160 = vmul.f32 %v1136, 1.442695
      %v1161 = vpow.pop %v1160
      %v1162 = vmul.f32 %v1137, 1.442695
      %v1163 = vpow.pop %v1162
      %v1164 = vmul.f32 %v1138, 1.442695
      %v1165 = vpow.pop %v1164
      %v1166 = vmul.f32 %v1139, 1.442695
      %v1167 = vpow.pop %v1166
      %v1168 = vmul.f32 %v1140, 1.442695
      %v1169 = vpow.pop %v1168
      %v1170 = vmul.f32 %v1141, 1.442695
      %v1171 = vpow.pop %v1170
      %v1172 = vmul.f32 %v1142, 1.442695
      %v1173 = vpow.pop %v1172
      %v1174 = vmul.f32 %v1143, 1.442695
      %v1175 = vpow.pop %v1174
      %v1176 = vsel %vm943, %v1145, 0.0
      %v1177 = vsel %vm943, %v1147, 0.0
      %v1178 = vadd.f32 %v1176, %v1177
      %v1179 = vrot.slane %v1178, 4
      %v1180 = vadd.f32 %v1178, %v1179
      %v1181 = vrot.slane %v1180, 2
      %v1182 = vadd.f32 %v1180, %v1181
      %v1183 = vrot.slane %v1182, 1
      %v1184 = vadd.f32 %v1182, %v1183
      %v1185 = vsel %vm943, %v1149, 0.0
      %v1186 = vsel %vm943, %v1151, 0.0
      %v1187 = vadd.f32 %v1185, %v1186
      %v1188 = vrot.slane %v1187, 4
      %v1189 = vadd.f32 %v1187, %v1188
      %v1190 = vrot.slane %v1189, 2
      %v1191 = vadd.f32 %v1189, %v1190
      %v1192 = vrot.slane %v1191, 1
      %v1193 = vadd.f32 %v1191, %v1192
      %v1194 = vsel %vm943, %v1153, 0.0
      %v1195 = vsel %vm943, %v1155, 0.0
      %v1196 = vadd.f32 %v1194, %v1195
      %v1197 = vrot.slane %v1196, 4
      %v1198 = vadd.f32 %v1196, %v1197
      %v1199 = vrot.slane %v1198, 2
      %v1200 = vadd.f32 %v1198, %v1199
      %v1201 = vrot.slane %v1200, 1
      %v1202 = vadd.f32 %v1200, %v1201
      %v1203 = vsel %vm943, %v1157, 0.0
      %v1204 = vsel %vm943, %v1159, 0.0
      %v1205 = vadd.f32 %v1203, %v1204
      %v1206 = vrot.slane %v1205, 4
      %v1207 = vadd.f32 %v1205, %v1206
      %v1208 = vrot.slane %v1207, 2
      %v1209 = vadd.f32 %v1207, %v1208
      %v1210 = vrot.slane %v1209, 1
      %v1211 = vadd.f32 %v1209, %v1210
      %v1212 = vsel %vm943, %v1161, 0.0
      %v1213 = vsel %vm943, %v1163, 0.0
      %v1214 = vadd.f32 %v1212, %v1213
      %v1215 = vrot.slane %v1214, 4
      %v1216 = vadd.f32 %v1214, %v1215
      %v1217 = vrot.slane %v1216, 2
      %v1218 = vadd.f32 %v1216, %v1217
      %v1219 = vrot.slane %v1218, 1
      %v1220 = vadd.f32 %v1218, %v1219
      %v1221 = vsel %vm943, %v1165, 0.0
      %v1222 = vsel %vm943, %v1167, 0.0
      %v1223 = vadd.f32 %v1221, %v1222
      %v1224 = vrot.slane %v1223, 4
      %v1225 = vadd.f32 %v1223, %v1224
      %v1226 = vrot.slane %v1225, 2
      %v1227 = vadd.f32 %v1225, %v1226
      %v1228 = vrot.slane %v1227, 1
      %v1229 = vadd.f32 %v1227, %v1228
      %v1230 = vsel %vm943, %v1169, 0.0
      %v1231 = vsel %vm943, %v1171, 0.0
      %v1232 = vadd.f32 %v1230, %v1231
      %v1233 = vrot.slane %v1232, 4
      %v1234 = vadd.f32 %v1232, %v1233
      %v1235 = vrot.slane %v1234, 2
      %v1236 = vadd.f32 %v1234, %v1235
      %v1237 = vrot.slane %v1236, 1
      %v1238 = vadd.f32 %v1236, %v1237
      %v1239 = vsel %vm943, %v1173, 0.0
      %v1240 = vsel %vm943, %v1175, 0.0
      %v1241 = vadd.f32 %v1239, %v1240
      %v1242 = vrot.slane %v1241, 4
      %v1243 = vadd.f32 %v1241, %v1242
      %v1244 = vrot.slane %v1243, 2
      %v1245 = vadd.f32 %v1243, %v1244
      %v1246 = vrot.slane %v1245, 1
      %v1247 = vadd.f32 %v1245, %v1246
      %v1248 = vrcp.pop %v1184
      %v1249 = vrcp.pop %v1193
      %v1250 = vrcp.pop %v1202
      %v1251 = vrcp.pop %v1211
      %v1252 = vrcp.pop %v1220
      %v1253 = vrcp.pop %v1229
      %v1254 = vrcp.pop %v1238
      %v1255 = vrcp.pop %v1247
      %v1256 = vmul.f32 %v1145, %v1248
      %v1257 = vmul.f32 %v1147, %v1248
      %v1258 = vmul.f32 %v1149, %v1249
      %v1259 = vmul.f32 %v1151, %v1249
      %v1260 = vmul.f32 %v1153, %v1250
      %v1261 = vmul.f32 %v1155, %v1250
      %v1262 = vmul.f32 %v1157, %v1251
      %v1263 = vmul.f32 %v1159, %v1251
      %v1264 = vmul.f32 %v1161, %v1252
      %v1265 = vmul.f32 %v1163, %v1252
      %v1266 = vmul.f32 %v1165, %v1253
      %v1267 = vmul.f32 %v1167, %v1253
      %v1268 = vmul.f32 %v1169, %v1254
      %v1269 = vmul.f32 %v1171, %v1254
      %v1270 = vmul.f32 %v1173, %v1255
      %v1271 = vmul.f32 %v1175, %v1255
      %v1272 = vpack.c.bf16 %v1257, %v1256
      %v1273 = vpack.c.bf16 %v1259, %v1258
      %v1274 = vpack.c.bf16 %v1261, %v1260
      %v1275 = vpack.c.bf16 %v1263, %v1262
      %v1276 = vpack.c.bf16 %v1265, %v1264
      %v1277 = vpack.c.bf16 %v1267, %v1266
      %v1278 = vpack.c.bf16 %v1269, %v1268
      %v1279 = vpack.c.bf16 %v1271, %v1270
      %1280 = vxpose.xlu0.c.b16.start [1/8] %v1272, 128
      %1281 = vxpose.xlu0.c.b16.cont [2/8] 0, 128
      %1282 = vxpose.xlu0.c.b16.cont [3/8] 0, 128
      %1283 = vxpose.xlu0.c.b16.cont [4/8] 0, 128
      %1284 = vxpose.xlu0.c.b16.cont [5/8] 0, 128
      %1285 = vxpose.xlu0.c.b16.cont [6/8] 0, 128
      %1286 = vxpose.xlu0.c.b16.cont [7/8] 0, 128
      %1287 = vxpose.xlu0.c.b16.end [8/8] 0, 128
      %v1288 = vpop.trf.xlu0
      %v1289 = vpop.trf.xlu0
      %v1290 = vpop.trf.xlu0
      %v1291 = vpop.trf.xlu0
      %v1292 = vpop.trf.xlu0
      %v1293 = vpop.trf.xlu0
      %v1294 = vpop.trf.xlu0
      %v1295 = vpop.trf.xlu0
      %vm1296 = vcmask 130048
      %v1298 = vsel %vm1296, %v1288, 0
      %1300 = vmatprep.subr.bf16.mxu0 0
      %1301 = vmatpush1.bf16.msra.mxu0 0
      %1302 = vmatprep.subr.bf16.mxu0 0
      %1303 = vmatpush1.bf16.msra.mxu0 0
      %1304 = vmatprep.subr.bf16.mxu0 0
      %1305 = vmatpush1.bf16.msra.mxu0 0
      %1306 = vmatprep.subr.bf16.mxu0 0
      %1307 = vmatpush1.bf16.msra.mxu0 0
      %1308 = vmatprep.subr.bf16.mxu0 0
      %1309 = vmatpush1.bf16.msra.mxu0 0
      %1310 = vmatprep.subr.bf16.mxu0 0
      %1311 = vmatpush1.bf16.msra.mxu0 0
      %1312 = vmatprep.subr.bf16.mxu0 0
      %1313 = vmatpush1.bf16.msra.mxu0 0
      %1314 = vmatprep.subr.bf16.mxu0 0
      %1315 = vmatpush1.bf16.msra.mxu0 %v766
      %1316 = vmatprep.subr.bf16.mxu0 0
      %1317 = vmatpush2.bf16.msra.mxu0 0
      %1318 = vmatprep.subr.bf16.mxu0 0
      %1319 = vmatpush2.bf16.msra.mxu0 0
      %1320 = vmatprep.subr.bf16.mxu0 0
      %1321 = vmatpush2.bf16.msra.mxu0 0
      %1322 = vmatprep.subr.bf16.mxu0 0
      %1323 = vmatpush2.bf16.msra.mxu0 0
      %1324 = vmatprep.subr.bf16.mxu0 0
      %1325 = vmatpush2.bf16.msra.mxu0 0
      %1326 = vmatprep.subr.bf16.mxu0 0
      %1327 = vmatpush2.bf16.msra.mxu0 0
      %1328 = vmatprep.subr.bf16.mxu0 0
      %1329 = vmatpush2.bf16.msra.mxu0 0
      %1330 = vmatprep.subr.bf16.mxu0 0
      %1331 = vmatpush2.bf16.msra.mxu0 0
      %1332 = vmatprep.mubr.bf16.mxu0 0
      %1333 = vmatmul.mubr.bf16.gmra.mxu0 %v1298
      %v1334 = vpop.f32.mrf.mxu0
      %v1335 = vadd.f32 0.0, %v1334
      %v1336 = vpop.f32.mrf.mxu0
      %v1337 = vpop.f32.mrf.mxu0
      %v1338 = vpop.f32.mrf.mxu0
      %1339 = vdwg.mxu0
      %1340 = vxpose.xlu0.c.b16.start [1/8] %v1273, 128
      %1341 = vxpose.xlu0.c.b16.cont [2/8] 0, 128
      %1342 = vxpose.xlu0.c.b16.cont [3/8] 0, 128
      %1343 = vxpose.xlu0.c.b16.cont [4/8] 0, 128
      %1344 = vxpose.xlu0.c.b16.cont [5/8] 0, 128
      %1345 = vxpose.xlu0.c.b16.cont [6/8] 0, 128
      %1346 = vxpose.xlu0.c.b16.cont [7/8] 0, 128
      %1347 = vxpose.xlu0.c.b16.end [8/8] 0, 128
      %v1348 = vpop.trf.xlu0
      %v1349 = vpop.trf.xlu0
      %v1350 = vpop.trf.xlu0
      %v1351 = vpop.trf.xlu0
      %v1352 = vpop.trf.xlu0
      %v1353 = vpop.trf.xlu0
      %v1354 = vpop.trf.xlu0
      %v1355 = vpop.trf.xlu0
      %v1357 = vsel %vm1296, %v1348, 0
      %1359 = vmatprep.subr.bf16.mxu0 0
      %1360 = vmatpush1.bf16.msra.mxu0 0
      %1361 = vmatprep.subr.bf16.mxu0 0
      %1362 = vmatpush1.bf16.msra.mxu0 0
      %1363 = vmatprep.subr.bf16.mxu0 0
      %1364 = vmatpush1.bf16.msra.mxu0 0
      %1365 = vmatprep.subr.bf16.mxu0 0
      %1366 = vmatpush1.bf16.msra.mxu0 0
      %1367 = vmatprep.subr.bf16.mxu0 0
      %1368 = vmatpush1.bf16.msra.mxu0 0
      %1369 = vmatprep.subr.bf16.mxu0 0
      %1370 = vmatpush1.bf16.msra.mxu0 0
      %1371 = vmatprep.subr.bf16.mxu0 0
      %1372 = vmatpush1.bf16.msra.mxu0 0
      %1373 = vmatprep.subr.bf16.mxu0 0
      %1374 = vmatpush1.bf16.msra.mxu0 %v767
      %1375 = vmatprep.subr.bf16.mxu0 0
      %1376 = vmatpush2.bf16.msra.mxu0 0
      %1377 = vmatprep.subr.bf16.mxu0 0
      %1378 = vmatpush2.bf16.msra.mxu0 0
      %1379 = vmatprep.subr.bf16.mxu0 0
      %1380 = vmatpush2.bf16.msra.mxu0 0
      %1381 = vmatprep.subr.bf16.mxu0 0
      %1382 = vmatpush2.bf16.msra.mxu0 0
      %1383 = vmatprep.subr.bf16.mxu0 0
      %1384 = vmatpush2.bf16.msra.mxu0 0
      %1385 = vmatprep.subr.bf16.mxu0 0
      %1386 = vmatpush2.bf16.msra.mxu0 0
      %1387 = vmatprep.subr.bf16.mxu0 0
      %1388 = vmatpush2.bf16.msra.mxu0 0
      %1389 = vmatprep.subr.bf16.mxu0 0
      %1390 = vmatpush2.bf16.msra.mxu0 0
      %1391 = vmatprep.mubr.bf16.mxu0 0
      %1392 = vmatmul.mubr.bf16.gmra.mxu0 %v1357
      %v1393 = vpop.f32.mrf.mxu0
      %v1394 = vadd.f32 0.0, %v1393
      %v1395 = vpop.f32.mrf.mxu0
      %v1396 = vpop.f32.mrf.mxu0
      %v1397 = vpop.f32.mrf.mxu0
      %1398 = vdwg.mxu0
      %1399 = vxpose.xlu0.c.b16.start [1/8] %v1274, 128
      %1400 = vxpose.xlu0.c.b16.cont [2/8] 0, 128
      %1401 = vxpose.xlu0.c.b16.cont [3/8] 0, 128
      %1402 = vxpose.xlu0.c.b16.cont [4/8] 0, 128
      %1403 = vxpose.xlu0.c.b16.cont [5/8] 0, 128
      %1404 = vxpose.xlu0.c.b16.cont [6/8] 0, 128
      %1405 = vxpose.xlu0.c.b16.cont [7/8] 0, 128
      %1406 = vxpose.xlu0.c.b16.end [8/8] 0, 128
      %v1407 = vpop.trf.xlu0
      %v1408 = vpop.trf.xlu0
      %v1409 = vpop.trf.xlu0
      %v1410 = vpop.trf.xlu0
      %v1411 = vpop.trf.xlu0
      %v1412 = vpop.trf.xlu0
      %v1413 = vpop.trf.xlu0
      %v1414 = vpop.trf.xlu0
      %v1416 = vsel %vm1296, %v1407, 0
      %1418 = vmatprep.subr.bf16.mxu0 0
      %1419 = vmatpush1.bf16.msra.mxu0 0
      %1420 = vmatprep.subr.bf16.mxu0 0
      %1421 = vmatpush1.bf16.msra.mxu0 0
      %1422 = vmatprep.subr.bf16.mxu0 0
      %1423 = vmatpush1.bf16.msra.mxu0 0
      %1424 = vmatprep.subr.bf16.mxu0 0
      %1425 = vmatpush1.bf16.msra.mxu0 0
      %1426 = vmatprep.subr.bf16.mxu0 0
      %1427 = vmatpush1.bf16.msra.mxu0 0
      %1428 = vmatprep.subr.bf16.mxu0 0
      %1429 = vmatpush1.bf16.msra.mxu0 0
      %1430 = vmatprep.subr.bf16.mxu0 0
      %1431 = vmatpush1.bf16.msra.mxu0 0
      %1432 = vmatprep.subr.bf16.mxu0 0
      %1433 = vmatpush1.bf16.msra.mxu0 %v768
      %1434 = vmatprep.subr.bf16.mxu0 0
      %1435 = vmatpush2.bf16.msra.mxu0 0
      %1436 = vmatprep.subr.bf16.mxu0 0
      %1437 = vmatpush2.bf16.msra.mxu0 0
      %1438 = vmatprep.subr.bf16.mxu0 0
      %1439 = vmatpush2.bf16.msra.mxu0 0
      %1440 = vmatprep.subr.bf16.mxu0 0
      %1441 = vmatpush2.bf16.msra.mxu0 0
      %1442 = vmatprep.subr.bf16.mxu0 0
      %1443 = vmatpush2.bf16.msra.mxu0 0
      %1444 = vmatprep.subr.bf16.mxu0 0
      %1445 = vmatpush2.bf16.msra.mxu0 0
      %1446 = vmatprep.subr.bf16.mxu0 0
      %1447 = vmatpush2.bf16.msra.mxu0 0
      %1448 = vmatprep.subr.bf16.mxu0 0
      %1449 = vmatpush2.bf16.msra.mxu0 0
      %1450 = vmatprep.mubr.bf16.mxu0 0
      %1451 = vmatmul.mubr.bf16.gmra.mxu0 %v1416
      %v1452 = vpop.f32.mrf.mxu0
      %v1453 = vadd.f32 0.0, %v1452
      %v1454 = vpop.f32.mrf.mxu0
      %v1455 = vpop.f32.mrf.mxu0
      %v1456 = vpop.f32.mrf.mxu0
      %1457 = vdwg.mxu0
      %1458 = vxpose.xlu0.c.b16.start [1/8] %v1275, 128
      %1459 = vxpose.xlu0.c.b16.cont [2/8] 0, 128
      %1460 = vxpose.xlu0.c.b16.cont [3/8] 0, 128
      %1461 = vxpose.xlu0.c.b16.cont [4/8] 0, 128
      %1462 = vxpose.xlu0.c.b16.cont [5/8] 0, 128
      %1463 = vxpose.xlu0.c.b16.cont [6/8] 0, 128
      %1464 = vxpose.xlu0.c.b16.cont [7/8] 0, 128
      %1465 = vxpose.xlu0.c.b16.end [8/8] 0, 128
      %v1466 = vpop.trf.xlu0
      %v1467 = vpop.trf.xlu0
      %v1468 = vpop.trf.xlu0
      %v1469 = vpop.trf.xlu0
      %v1470 = vpop.trf.xlu0
      %v1471 = vpop.trf.xlu0
      %v1472 = vpop.trf.xlu0
      %v1473 = vpop.trf.xlu0
      %v1475 = vsel %vm1296, %v1466, 0
      %1477 = vmatprep.subr.bf16.mxu0 0
      %1478 = vmatpush1.bf16.msra.mxu0 0
      %1479 = vmatprep.subr.bf16.mxu0 0
      %1480 = vmatpush1.bf16.msra.mxu0 0
      %1481 = vmatprep.subr.bf16.mxu0 0
      %1482 = vmatpush1.bf16.msra.mxu0 0
      %1483 = vmatprep.subr.bf16.mxu0 0
      %1484 = vmatpush1.bf16.msra.mxu0 0
      %1485 = vmatprep.subr.bf16.mxu0 0
      %1486 = vmatpush1.bf16.msra.mxu0 0
      %1487 = vmatprep.subr.bf16.mxu0 0
      %1488 = vmatpush1.bf16.msra.mxu0 0
      %1489 = vmatprep.subr.bf16.mxu0 0
      %1490 = vmatpush1.bf16.msra.mxu0 0
      %1491 = vmatprep.subr.bf16.mxu0 0
      %1492 = vmatpush1.bf16.msra.mxu0 %v769
      %1493 = vmatprep.subr.bf16.mxu0 0
      %1494 = vmatpush2.bf16.msra.mxu0 0
      %1495 = vmatprep.subr.bf16.mxu0 0
      %1496 = vmatpush2.bf16.msra.mxu0 0
      %1497 = vmatprep.subr.bf16.mxu0 0
      %1498 = vmatpush2.bf16.msra.mxu0 0
      %1499 = vmatprep.subr.bf16.mxu0 0
      %1500 = vmatpush2.bf16.msra.mxu0 0
      %1501 = vmatprep.subr.bf16.mxu0 0
      %1502 = vmatpush2.bf16.msra.mxu0 0
      %1503 = vmatprep.subr.bf16.mxu0 0
      %1504 = vmatpush2.bf16.msra.mxu0 0
      %1505 = vmatprep.subr.bf16.mxu0 0
      %1506 = vmatpush2.bf16.msra.mxu0 0
      %1507 = vmatprep.subr.bf16.mxu0 0
      %1508 = vmatpush2.bf16.msra.mxu0 0
      %1509 = vmatprep.mubr.bf16.mxu0 0
      %1510 = vmatmul.mubr.bf16.gmra.mxu0 %v1475
      %v1511 = vpop.f32.mrf.mxu0
      %v1512 = vadd.f32 0.0, %v1511
      %v1513 = vpop.f32.mrf.mxu0
      %v1514 = vpop.f32.mrf.mxu0
      %v1515 = vpop.f32.mrf.mxu0
      %1516 = vdwg.mxu0
      %1517 = vxpose.xlu0.c.b16.start [1/8] %v1276, 128
      %1518 = vxpose.xlu0.c.b16.cont [2/8] 0, 128
      %1519 = vxpose.xlu0.c.b16.cont [3/8] 0, 128
      %1520 = vxpose.xlu0.c.b16.cont [4/8] 0, 128
      %1521 = vxpose.xlu0.c.b16.cont [5/8] 0, 128
      %1522 = vxpose.xlu0.c.b16.cont [6/8] 0, 128
      %1523 = vxpose.xlu0.c.b16.cont [7/8] 0, 128
      %1524 = vxpose.xlu0.c.b16.end [8/8] 0, 128
      %v1525 = vpop.trf.xlu0
      %v1526 = vpop.trf.xlu0
      %v1527 = vpop.trf.xlu0
      %v1528 = vpop.trf.xlu0
      %v1529 = vpop.trf.xlu0
      %v1530 = vpop.trf.xlu0
      %v1531 = vpop.trf.xlu0
      %v1532 = vpop.trf.xlu0
      %v1534 = vsel %vm1296, %v1525, 0
      %1536 = vmatprep.subr.bf16.mxu0 0
      %1537 = vmatpush1.bf16.msra.mxu0 0
      %1538 = vmatprep.subr.bf16.mxu0 0
      %1539 = vmatpush1.bf16.msra.mxu0 0
      %1540 = vmatprep.subr.bf16.mxu0 0
      %1541 = vmatpush1.bf16.msra.mxu0 0
      %1542 = vmatprep.subr.bf16.mxu0 0
      %1543 = vmatpush1.bf16.msra.mxu0 0
      %1544 = vmatprep.subr.bf16.mxu0 0
      %1545 = vmatpush1.bf16.msra.mxu0 0
      %1546 = vmatprep.subr.bf16.mxu0 0
      %1547 = vmatpush1.bf16.msra.mxu0 0
      %1548 = vmatprep.subr.bf16.mxu0 0
      %1549 = vmatpush1.bf16.msra.mxu0 0
      %1550 = vmatprep.subr.bf16.mxu0 0
      %1551 = vmatpush1.bf16.msra.mxu0 %v770
      %1552 = vmatprep.subr.bf16.mxu0 0
      %1553 = vmatpush2.bf16.msra.mxu0 0
      %1554 = vmatprep.subr.bf16.mxu0 0
      %1555 = vmatpush2.bf16.msra.mxu0 0
      %1556 = vmatprep.subr.bf16.mxu0 0
      %1557 = vmatpush2.bf16.msra.mxu0 0
      %1558 = vmatprep.subr.bf16.mxu0 0
      %1559 = vmatpush2.bf16.msra.mxu0 0
      %1560 = vmatprep.subr.bf16.mxu0 0
      %1561 = vmatpush2.bf16.msra.mxu0 0
      %1562 = vmatprep.subr.bf16.mxu0 0
      %1563 = vmatpush2.bf16.msra.mxu0 0
      %1564 = vmatprep.subr.bf16.mxu0 0
      %1565 = vmatpush2.bf16.msra.mxu0 0
      %1566 = vmatprep.subr.bf16.mxu0 0
      %1567 = vmatpush2.bf16.msra.mxu0 0
      %1568 = vmatprep.mubr.bf16.mxu0 0
      %1569 = vmatmul.mubr.bf16.gmra.mxu0 %v1534
      %v1570 = vpop.f32.mrf.mxu0
      %v1571 = vadd.f32 0.0, %v1570
      %v1572 = vpop.f32.mrf.mxu0
      %v1573 = vpop.f32.mrf.mxu0
      %v1574 = vpop.f32.mrf.mxu0
      %1575 = vdwg.mxu0
      %1576 = vxpose.xlu0.c.b16.start [1/8] %v1277, 128
      %1577 = vxpose.xlu0.c.b16.cont [2/8] 0, 128
      %1578 = vxpose.xlu0.c.b16.cont [3/8] 0, 128
      %1579 = vxpose.xlu0.c.b16.cont [4/8] 0, 128
      %1580 = vxpose.xlu0.c.b16.cont [5/8] 0, 128
      %1581 = vxpose.xlu0.c.b16.cont [6/8] 0, 128
      %1582 = vxpose.xlu0.c.b16.cont [7/8] 0, 128
      %1583 = vxpose.xlu0.c.b16.end [8/8] 0, 128
      %v1584 = vpop.trf.xlu0
      %v1585 = vpop.trf.xlu0
      %v1586 = vpop.trf.xlu0
      %v1587 = vpop.trf.xlu0
      %v1588 = vpop.trf.xlu0
      %v1589 = vpop.trf.xlu0
      %v1590 = vpop.trf.xlu0
      %v1591 = vpop.trf.xlu0
      %v1593 = vsel %vm1296, %v1584, 0
      %1595 = vmatprep.subr.bf16.mxu0 0
      %1596 = vmatpush1.bf16.msra.mxu0 0
      %1597 = vmatprep.subr.bf16.mxu0 0
      %1598 = vmatpush1.bf16.msra.mxu0 0
      %1599 = vmatprep.subr.bf16.mxu0 0
      %1600 = vmatpush1.bf16.msra.mxu0 0
      %1601 = vmatprep.subr.bf16.mxu0 0
      %1602 = vmatpush1.bf16.msra.mxu0 0
      %1603 = vmatprep.subr.bf16.mxu0 0
      %1604 = vmatpush1.bf16.msra.mxu0 0
      %1605 = vmatprep.subr.bf16.mxu0 0
      %1606 = vmatpush1.bf16.msra.mxu0 0
      %1607 = vmatprep.subr.bf16.mxu0 0
      %1608 = vmatpush1.bf16.msra.mxu0 0
      %1609 = vmatprep.subr.bf16.mxu0 0
      %1610 = vmatpush1.bf16.msra.mxu0 %v771
      %1611 = vmatprep.subr.bf16.mxu0 0
      %1612 = vmatpush2.bf16.msra.mxu0 0
      %1613 = vmatprep.subr.bf16.mxu0 0
      %1614 = vmatpush2.bf16.msra.mxu0 0
      %1615 = vmatprep.subr.bf16.mxu0 0
      %1616 = vmatpush2.bf16.msra.mxu0 0
      %1617 = vmatprep.subr.bf16.mxu0 0
      %1618 = vmatpush2.bf16.msra.mxu0 0
      %1619 = vmatprep.subr.bf16.mxu0 0
      %1620 = vmatpush2.bf16.msra.mxu0 0
      %1621 = vmatprep.subr.bf16.mxu0 0
      %1622 = vmatpush2.bf16.msra.mxu0 0
      %1623 = vmatprep.subr.bf16.mxu0 0
      %1624 = vmatpush2.bf16.msra.mxu0 0
      %1625 = vmatprep.subr.bf16.mxu0 0
      %1626 = vmatpush2.bf16.msra.mxu0 0
      %1627 = vmatprep.mubr.bf16.mxu0 0
      %1628 = vmatmul.mubr.bf16.gmra.mxu0 %v1593
      %v1629 = vpop.f32.mrf.mxu0
      %v1630 = vadd.f32 0.0, %v1629
      %v1631 = vpop.f32.mrf.mxu0
      %v1632 = vpop.f32.mrf.mxu0
      %v1633 = vpop.f32.mrf.mxu0
      %1634 = vdwg.mxu0
      %1635 = vxpose.xlu0.c.b16.start [1/8] %v1278, 128
      %1636 = vxpose.xlu0.c.b16.cont [2/8] 0, 128
      %1637 = vxpose.xlu0.c.b16.cont [3/8] 0, 128
      %1638 = vxpose.xlu0.c.b16.cont [4/8] 0, 128
      %1639 = vxpose.xlu0.c.b16.cont [5/8] 0, 128
      %1640 = vxpose.xlu0.c.b16.cont [6/8] 0, 128
      %1641 = vxpose.xlu0.c.b16.cont [7/8] 0, 128
      %1642 = vxpose.xlu0.c.b16.end [8/8] 0, 128
      %v1643 = vpop.trf.xlu0
      %v1644 = vpop.trf.xlu0
      %v1645 = vpop.trf.xlu0
      %v1646 = vpop.trf.xlu0
      %v1647 = vpop.trf.xlu0
      %v1648 = vpop.trf.xlu0
      %v1649 = vpop.trf.xlu0
      %v1650 = vpop.trf.xlu0
      %v1652 = vsel %vm1296, %v1643, 0
      %1654 = vmatprep.subr.bf16.mxu0 0
      %1655 = vmatpush1.bf16.msra.mxu0 0
      %1656 = vmatprep.subr.bf16.mxu0 0
      %1657 = vmatpush1.bf16.msra.mxu0 0
      %1658 = vmatprep.subr.bf16.mxu0 0
      %1659 = vmatpush1.bf16.msra.mxu0 0
      %1660 = vmatprep.subr.bf16.mxu0 0
      %1661 = vmatpush1.bf16.msra.mxu0 0
      %1662 = vmatprep.subr.bf16.mxu0 0
      %1663 = vmatpush1.bf16.msra.mxu0 0
      %1664 = vmatprep.subr.bf16.mxu0 0
      %1665 = vmatpush1.bf16.msra.mxu0 0
      %1666 = vmatprep.subr.bf16.mxu0 0
      %1667 = vmatpush1.bf16.msra.mxu0 0
      %1668 = vmatprep.subr.bf16.mxu0 0
      %1669 = vmatpush1.bf16.msra.mxu0 %v772
      %1670 = vmatprep.subr.bf16.mxu0 0
      %1671 = vmatpush2.bf16.msra.mxu0 0
      %1672 = vmatprep.subr.bf16.mxu0 0
      %1673 = vmatpush2.bf16.msra.mxu0 0
      %1674 = vmatprep.subr.bf16.mxu0 0
      %1675 = vmatpush2.bf16.msra.mxu0 0
      %1676 = vmatprep.subr.bf16.mxu0 0
      %1677 = vmatpush2.bf16.msra.mxu0 0
      %1678 = vmatprep.subr.bf16.mxu0 0
      %1679 = vmatpush2.bf16.msra.mxu0 0
      %1680 = vmatprep.subr.bf16.mxu0 0
      %1681 = vmatpush2.bf16.msra.mxu0 0
      %1682 = vmatprep.subr.bf16.mxu0 0
      %1683 = vmatpush2.bf16.msra.mxu0 0
      %1684 = vmatprep.subr.bf16.mxu0 0
      %1685 = vmatpush2.bf16.msra.mxu0 0
      %1686 = vmatprep.mubr.bf16.mxu0 0
      %1687 = vmatmul.mubr.bf16.gmra.mxu0 %v1652
      %v1688 = vpop.f32.mrf.mxu0
      %v1689 = vadd.f32 0.0, %v1688
      %v1690 = vpop.f32.mrf.mxu0
      %v1691 = vpop.f32.mrf.mxu0
      %v1692 = vpop.f32.mrf.mxu0
      %1693 = vdwg.mxu0
      %1694 = vxpose.xlu0.c.b16.start [1/8] %v1279, 128
      %1695 = vxpose.xlu0.c.b16.cont [2/8] 0, 128
      %1696 = vxpose.xlu0.c.b16.cont [3/8] 0, 128
      %1697 = vxpose.xlu0.c.b16.cont [4/8] 0, 128
      %1698 = vxpose.xlu0.c.b16.cont [5/8] 0, 128
      %1699 = vxpose.xlu0.c.b16.cont [6/8] 0, 128
      %1700 = vxpose.xlu0.c.b16.cont [7/8] 0, 128
      %1701 = vxpose.xlu0.c.b16.end [8/8] 0, 128
      %v1702 = vpop.trf.xlu0
      %v1703 = vpop.trf.xlu0
      %v1704 = vpop.trf.xlu0
      %v1705 = vpop.trf.xlu0
      %v1706 = vpop.trf.xlu0
      %v1707 = vpop.trf.xlu0
      %v1708 = vpop.trf.xlu0
      %v1709 = vpop.trf.xlu0
      %v1711 = vsel %vm1296, %v1702, 0
      %1713 = vmatprep.subr.bf16.mxu0 0
      %1714 = vmatpush1.bf16.msra.mxu0 0
      %1715 = vmatprep.subr.bf16.mxu0 0
      %1716 = vmatpush1.bf16.msra.mxu0 0
      %1717 = vmatprep.subr.bf16.mxu0 0
      %1718 = vmatpush1.bf16.msra.mxu0 0
      %1719 = vmatprep.subr.bf16.mxu0 0
      %1720 = vmatpush1.bf16.msra.mxu0 0
      %1721 = vmatprep.subr.bf16.mxu0 0
      %1722 = vmatpush1.bf16.msra.mxu0 0
      %1723 = vmatprep.subr.bf16.mxu0 0
      %1724 = vmatpush1.bf16.msra.mxu0 0
      %1725 = vmatprep.subr.bf16.mxu0 0
      %1726 = vmatpush1.bf16.msra.mxu0 0
      %1727 = vmatprep.subr.bf16.mxu0 0
      %1728 = vmatpush1.bf16.msra.mxu0 %v773
      %1729 = vmatprep.subr.bf16.mxu0 0
      %1730 = vmatpush2.bf16.msra.mxu0 0
      %1731 = vmatprep.subr.bf16.mxu0 0
      %1732 = vmatpush2.bf16.msra.mxu0 0
      %1733 = vmatprep.subr.bf16.mxu0 0
      %1734 = vmatpush2.bf16.msra.mxu0 0
      %1735 = vmatprep.subr.bf16.mxu0 0
      %1736 = vmatpush2.bf16.msra.mxu0 0
      %1737 = vmatprep.subr.bf16.mxu0 0
      %1738 = vmatpush2.bf16.msra.mxu0 0
      %1739 = vmatprep.subr.bf16.mxu0 0
      %1740 = vmatpush2.bf16.msra.mxu0 0
      %1741 = vmatprep.subr.bf16.mxu0 0
      %1742 = vmatpush2.bf16.msra.mxu0 0
      %1743 = vmatprep.subr.bf16.mxu0 0
      %1744 = vmatpush2.bf16.msra.mxu0 0
      %1745 = vmatprep.mubr.bf16.mxu0 0
      %1746 = vmatmul.mubr.bf16.gmra.mxu0 %v1711
      %v1747 = vpop.f32.mrf.mxu0
      %v1748 = vadd.f32 0.0, %v1747
      %v1749 = vpop.f32.mrf.mxu0
      %v1750 = vpop.f32.mrf.mxu0
      %v1751 = vpop.f32.mrf.mxu0
      %1752 = vdwg.mxu0
      %v1753 = vmul.f32 %v1335, %v1335
      %v1754 = vmul.f32 %v1394, %v1394
      %v1755 = vmul.f32 %v1453, %v1453
      %v1756 = vmul.f32 %v1512, %v1512
      %v1757 = vmul.f32 %v1571, %v1571
      %v1758 = vmul.f32 %v1630, %v1630
      %v1759 = vmul.f32 %v1689, %v1689
      %v1760 = vmul.f32 %v1748, %v1748
      %v1761 = vsel %vm342, %v1753, 0.0
      %v1762 = vrot.slane %v1761, 4
      %v1763 = vadd.f32 %v1761, %v1762
      %v1764 = vrot.slane %v1763, 2
      %v1765 = vadd.f32 %v1763, %v1764
      %v1766 = vrot.slane %v1765, 1
      %v1767 = vadd.f32 %v1765, %v1766
      %v1768 = vsel %vm342, %v1754, 0.0
      %v1769 = vrot.slane %v1768, 4
      %v1770 = vadd.f32 %v1768, %v1769
      %v1771 = vrot.slane %v1770, 2
      %v1772 = vadd.f32 %v1770, %v1771
      %v1773 = vrot.slane %v1772, 1
      %v1774 = vadd.f32 %v1772, %v1773
      %v1775 = vsel %vm342, %v1755, 0.0
      %v1776 = vrot.slane %v1775, 4
      %v1777 = vadd.f32 %v1775, %v1776
      %v1778 = vrot.slane %v1777, 2
      %v1779 = vadd.f32 %v1777, %v1778
      %v1780 = vrot.slane %v1779, 1
      %v1781 = vadd.f32 %v1779, %v1780
      %v1782 = vsel %vm342, %v1756, 0.0
      %v1783 = vrot.slane %v1782, 4
      %v1784 = vadd.f32 %v1782, %v1783
      %v1785 = vrot.slane %v1784, 2
      %v1786 = vadd.f32 %v1784, %v1785
      %v1787 = vrot.slane %v1786, 1
      %v1788 = vadd.f32 %v1786, %v1787
      %v1789 = vsel %vm342, %v1757, 0.0
      %v1790 = vrot.slane %v1789, 4
      %v1791 = vadd.f32 %v1789, %v1790
      %v1792 = vrot.slane %v1791, 2
      %v1793 = vadd.f32 %v1791, %v1792
      %v1794 = vrot.slane %v1793, 1
      %v1795 = vadd.f32 %v1793, %v1794
      %v1796 = vsel %vm342, %v1758, 0.0
      %v1797 = vrot.slane %v1796, 4
      %v1798 = vadd.f32 %v1796, %v1797
      %v1799 = vrot.slane %v1798, 2
      %v1800 = vadd.f32 %v1798, %v1799
      %v1801 = vrot.slane %v1800, 1
      %v1802 = vadd.f32 %v1800, %v1801
      %v1803 = vsel %vm342, %v1759, 0.0
      %v1804 = vrot.slane %v1803, 4
      %v1805 = vadd.f32 %v1803, %v1804
      %v1806 = vrot.slane %v1805, 2
      %v1807 = vadd.f32 %v1805, %v1806
      %v1808 = vrot.slane %v1807, 1
      %v1809 = vadd.f32 %v1807, %v1808
      %v1810 = vsel %vm342, %v1760, 0.0
      %v1811 = vrot.slane %v1810, 4
      %v1812 = vadd.f32 %v1810, %v1811
      %v1813 = vrot.slane %v1812, 2
      %v1814 = vadd.f32 %v1812, %v1813
      %v1815 = vrot.slane %v1814, 1
      %v1816 = vadd.f32 %v1814, %v1815
      %v1817 = vmax.f32 %v1767, 1e-24
      %v1818 = vmax.f32 %v1774, 1e-24
      %v1819 = vmax.f32 %v1781, 1e-24
      %v1820 = vmax.f32 %v1788, 1e-24
      %v1821 = vmax.f32 %v1795, 1e-24
      %v1822 = vmax.f32 %v1802, 1e-24
      %v1823 = vmax.f32 %v1809, 1e-24
      %v1824 = vmax.f32 %v1816, 1e-24
      %v1825 = vrsqrt.pop %v1817
      %v1826 = vrsqrt.pop %v1818
      %v1827 = vrsqrt.pop %v1819
      %v1828 = vrsqrt.pop %v1820
      %v1829 = vrsqrt.pop %v1821
      %v1830 = vrsqrt.pop %v1822
      %v1831 = vrsqrt.pop %v1823
      %v1832 = vrsqrt.pop %v1824
      %v1833 = vmul.f32 %v1335, %v1825
      %v1834 = vmul.f32 %v1394, %v1826
      %v1835 = vmul.f32 %v1453, %v1827
      %v1836 = vmul.f32 %v1512, %v1828
      %v1837 = vmul.f32 %v1571, %v1829
      %v1838 = vmul.f32 %v1630, %v1830
      %v1839 = vmul.f32 %v1689, %v1831
      %v1840 = vmul.f32 %v1748, %v1832
      %v1841 = vld [vmem:[%s7] sm:$0xf]
      %v1842 = vunpack.c.l.bf16 %v1841
      %v1843 = vmul.f32 %v1842, %v1833
      %v1844 = vmul.f32 %v1842, %v1834
      %v1845 = vmul.f32 %v1842, %v1835
      %v1846 = vmul.f32 %v1842, %v1836
      %v1847 = vmul.f32 %v1842, %v1837
      %v1848 = vmul.f32 %v1842, %v1838
      %v1849 = vmul.f32 %v1842, %v1839
      %v1850 = vmul.f32 %v1842, %v1840
      %v1851 = vsel %vm342, %v1843, 0.0
      %1852 = vadd.xlane.f32.xlu0 %v1851
      %v1853 = vpop.xlane.xlu0 %1852
      %v1854 = vsel %vm342, %v1844, 0.0
      %1855 = vadd.xlane.f32.xlu0 %v1854
      %v1856 = vpop.xlane.xlu0 %1855
      %v1857 = vsel %vm342, %v1845, 0.0
      %1858 = vadd.xlane.f32.xlu0 %v1857
      %v1859 = vpop.xlane.xlu0 %1858
      %v1860 = vsel %vm342, %v1846, 0.0
      %1861 = vadd.xlane.f32.xlu0 %v1860
      %v1862 = vpop.xlane.xlu0 %1861
      %v1863 = vsel %vm342, %v1847, 0.0
      %1864 = vadd.xlane.f32.xlu0 %v1863
      %v1865 = vpop.xlane.xlu0 %1864
      %v1866 = vsel %vm342, %v1848, 0.0
      %1867 = vadd.xlane.f32.xlu0 %v1866
      %v1868 = vpop.xlane.xlu0 %1867
      %v1869 = vsel %vm342, %v1849, 0.0
      %1870 = vadd.xlane.f32.xlu0 %v1869
      %v1871 = vpop.xlane.xlu0 %1870
      %v1872 = vsel %vm342, %v1850, 0.0
      %1873 = vadd.xlane.f32.xlu0 %v1872
      %v1874 = vpop.xlane.xlu0 %1873
      %v1875 = vmul.f32 %v1853, %v1853
      %v1876 = vmul.f32 %v1856, %v1856
      %v1877 = vmul.f32 %v1859, %v1859
      %v1878 = vmul.f32 %v1862, %v1862
      %v1879 = vmul.f32 %v1865, %v1865
      %v1880 = vmul.f32 %v1868, %v1868
      %v1881 = vmul.f32 %v1871, %v1871
      %v1882 = vmul.f32 %v1874, %v1874
      %v1891 = vlaneseq
      %v1892 = vand.u32 %v1891, 127
      %v1893 = vlaneseq
      %v1894 = vshrl.u32 %v1893, 7
      %v1895 = vsub.s32 %v1892, %v1894
      %v1896 = vrot.slane %v1875, %v1895
      %v1897 = vlaneseq
      %v1898 = vshrl.u32 %v1897, 7
      %v1899 = vsub.s32 %v1892, %v1898
      %v1900 = vrot.slane %v1876, %v1899
      %v1901 = vlaneseq
      %v1902 = vshrl.u32 %v1901, 7
      %v1903 = vsub.s32 %v1892, %v1902
      %v1904 = vrot.slane %v1877, %v1903
      %v1905 = vlaneseq
      %v1906 = vshrl.u32 %v1905, 7
      %v1907 = vsub.s32 %v1892, %v1906
      %v1908 = vrot.slane %v1878, %v1907
      %v1909 = vlaneseq
      %v1910 = vshrl.u32 %v1909, 7
      %v1911 = vsub.s32 %v1892, %v1910
      %v1912 = vrot.slane %v1879, %v1911
      %v1913 = vlaneseq
      %v1914 = vshrl.u32 %v1913, 7
      %v1915 = vsub.s32 %v1892, %v1914
      %v1916 = vrot.slane %v1880, %v1915
      %v1917 = vlaneseq
      %v1918 = vshrl.u32 %v1917, 7
      %v1919 = vsub.s32 %v1892, %v1918
      %v1920 = vrot.slane %v1881, %v1919
      %v1921 = vlaneseq
      %v1922 = vshrl.u32 %v1921, 7
      %v1923 = vsub.s32 %v1892, %v1922
      %v1924 = vrot.slane %v1882, %v1923
      %vm1925 = vcmask 1041409
      %v1926 = vsel %vm1925, %v1900, %v1896
      %vm1927 = vcmask 1042434
      %v1928 = vsel %vm1927, %v1904, %v1926
      %vm1929 = vcmask 1043459
      %v1930 = vsel %vm1929, %v1908, %v1928
      %vm1931 = vcmask 1044484
      %v1932 = vsel %vm1931, %v1912, %v1930
      %vm1933 = vcmask 1045509
      %v1934 = vsel %vm1933, %v1916, %v1932
      %vm1935 = vcmask 1046534
      %v1936 = vsel %vm1935, %v1920, %v1934
      %vm1937 = vcmask 1047559
      %v1938 = vsel %vm1937, %v1924, %v1936
      %v1940 = vsel %vm943, %v1938, 0.0
      %1941 = vadd.xlane.f32.xlu0 %v1940
      %v1942 = vpop.xlane.xlu0 %1941
      %v1943 = vadd.f32 %v1942, 1e-12
      %v1944 = vrsqrt.pop %v1943
      %v1946 = vlaneseq
      %v1947 = vshrl.u32 %v1946, 7
      %v1948 = vsub.s32 0, %v1947
      %v1949 = vrot.slane %v1944, %v1948
      %v1950 = vlaneseq
      %v1951 = vshrl.u32 %v1950, 7
      %v1952 = vsub.s32 1, %v1951
      %v1953 = vrot.slane %v1944, %v1952
      %v1954 = vlaneseq
      %v1955 = vshrl.u32 %v1954, 7
      %v1956 = vsub.s32 2, %v1955
      %v1957 = vrot.slane %v1944, %v1956
      %v1958 = vlaneseq
      %v1959 = vshrl.u32 %v1958, 7
      %v1960 = vsub.s32 3, %v1959
      %v1961 = vrot.slane %v1944, %v1960
      %v1962 = vlaneseq
      %v1963 = vshrl.u32 %v1962, 7
      %v1964 = vsub.s32 4, %v1963
      %v1965 = vrot.slane %v1944, %v1964
      %v1966 = vlaneseq
      %v1967 = vshrl.u32 %v1966, 7
      %v1968 = vsub.s32 5, %v1967
      %v1969 = vrot.slane %v1944, %v1968
      %v1970 = vlaneseq
      %v1971 = vshrl.u32 %v1970, 7
      %v1972 = vsub.s32 6, %v1971
      %v1973 = vrot.slane %v1944, %v1972
      %v1974 = vlaneseq
      %v1975 = vshrl.u32 %v1974, 7
      %v1976 = vsub.s32 7, %v1975
      %v1977 = vrot.slane %v1944, %v1976
      %v1986 = vmul.f32 %v1853, %v1949
      %v1987 = vmul.f32 %v1856, %v1953
      %v1988 = vmul.f32 %v1859, %v1957
      %v1989 = vmul.f32 %v1862, %v1961
      %v1990 = vmul.f32 %v1865, %v1965
      %v1991 = vmul.f32 %v1868, %v1969
      %v1992 = vmul.f32 %v1871, %v1973
      %v1993 = vmul.f32 %v1874, %v1977
      %2002 = vset.pattern.permute.xlu0 0
      %2003 = vperm.xlu0 %2002, %v1986
      %v2004 = vpop.permute.xlu0 %2003
      %2005 = vset.pattern.permute.xlu0 0
      %2006 = vperm.xlu0 %2005, %v1987
      %v2007 = vpop.permute.xlu0 %2006
      %2008 = vset.pattern.permute.xlu0 0
      %2009 = vperm.xlu0 %2008, %v1988
      %v2010 = vpop.permute.xlu0 %2009
      %2011 = vset.pattern.permute.xlu0 0
      %2012 = vperm.xlu0 %2011, %v1989
      %v2013 = vpop.permute.xlu0 %2012
      %2014 = vset.pattern.permute.xlu0 0
      %2015 = vperm.xlu0 %2014, %v1990
      %v2016 = vpop.permute.xlu0 %2015
      %2017 = vset.pattern.permute.xlu0 0
      %2018 = vperm.xlu0 %2017, %v1991
      %v2019 = vpop.permute.xlu0 %2018
      %2020 = vset.pattern.permute.xlu0 0
      %2021 = vperm.xlu0 %2020, %v1992
      %v2022 = vpop.permute.xlu0 %2021
      %2023 = vset.pattern.permute.xlu0 0
      %2024 = vperm.xlu0 %2023, %v1993
      %v2025 = vpop.permute.xlu0 %2024
      %v2026 = vlaneseq
      %v2027 = vshrl.u32 %v2026, 7
      %v2028 = vsub.s32 %v1892, %v2027
      %v2029 = vrot.slane %v2004, %v2028
      %v2030 = vlaneseq
      %v2031 = vshrl.u32 %v2030, 7
      %v2032 = vsub.s32 %v1892, %v2031
      %v2033 = vrot.slane %v2007, %v2032
      %v2034 = vlaneseq
      %v2035 = vshrl.u32 %v2034, 7
      %v2036 = vsub.s32 %v1892, %v2035
      %v2037 = vrot.slane %v2010, %v2036
      %v2038 = vlaneseq
      %v2039 = vshrl.u32 %v2038, 7
      %v2040 = vsub.s32 %v1892, %v2039
      %v2041 = vrot.slane %v2013, %v2040
      %v2042 = vlaneseq
      %v2043 = vshrl.u32 %v2042, 7
      %v2044 = vsub.s32 %v1892, %v2043
      %v2045 = vrot.slane %v2016, %v2044
      %v2046 = vlaneseq
      %v2047 = vshrl.u32 %v2046, 7
      %v2048 = vsub.s32 %v1892, %v2047
      %v2049 = vrot.slane %v2019, %v2048
      %v2050 = vlaneseq
      %v2051 = vshrl.u32 %v2050, 7
      %v2052 = vsub.s32 %v1892, %v2051
      %v2053 = vrot.slane %v2022, %v2052
      %v2054 = vlaneseq
      %v2055 = vshrl.u32 %v2054, 7
      %v2056 = vsub.s32 %v1892, %v2055
      %v2057 = vrot.slane %v2025, %v2056
      %v2058 = vsel %vm1925, %v2033, %v2029
      %v2059 = vsel %vm1927, %v2037, %v2058
      %v2060 = vsel %vm1929, %v2041, %v2059
      %v2061 = vsel %vm1931, %v2045, %v2060
      %v2062 = vsel %vm1933, %v2049, %v2061
      %v2063 = vsel %vm1935, %v2053, %v2062
      %v2064 = vsel %vm1937, %v2057, %v2063
      %2066 = vst.msk [vmem:[%s308] sm:$0xff] %vm943, %v2064
      %p2067 = scmp.lt.s32.totalorder %s19, 1
      %s2068 = scalar_select %p2067, %s19, 1
      %s2069 = smul.addr %s2068, 8
      %s2070 = scalar_lea.vmem %s8, %s2069
      // Predicated region
      $region53: #{cmn_forward.1} parent=51 // pred_check
        %p2071 = pneg %p210
      $region54: #{cmn_forward.1} parent=51 // pred_check_branch
        %2073 = sbr.rel (%p2071) target = $region56
      $region55: #{cmn_forward.1} parent=51 // pred_region
        _
      $region56: #{cmn_forward.1} parent=51 // pred_fallthru
        _
    $region52: #{cmn_forward.1} parent=5 // pred_fallthru
      _
    %p2074 = scmp.le.s32.totalorder 2, %s14
    // Predicated region
    $region57: #{cmn_forward.1} parent=5 // pred_check
      %p2075 = pneg %p2074
    $region58: #{cmn_forward.1} parent=5 // pred_check_branch
      %2077 = sbr.rel (%p2075) target = $region60
    $region59: #{cmn_forward.1} parent=5 // pred_region
      %s2078 = ssub.s32 %s14, 2
      // Predicated region
      $region61: #{cmn_forward.1} parent=59 // pred_check
        %p2079 = pneg %p216
      $region62: #{cmn_forward.1} parent=59 // pred_check_branch
        %2081 = sbr.rel (%p2079) target = $region64
      $region63: #{cmn_forward.1} parent=59 // pred_region
        %p2082 = scmp.lt.s32.totalorder %s20, 1
        %s2083 = scalar_select %p2082, %s20, 1
        %s2084 = smul.addr %s2083, 8
        %s2085 = scalar_lea.vmem %s8, %s2084
      $region64: #{cmn_forward.1} parent=59 // pred_fallthru
        _
    $region60: #{cmn_forward.1} parent=5 // pred_fallthru
      _
  $region6: #{cmn_forward.1} parent=0 // loop_footer
    %s18 = sadd.s32 1, %s14
  $region7: #{cmn_forward.1} parent=0 // loop_footer_branch
    %13 = sbr.rel target = $region3
  $region8: #{cmn_forward.1} parent=0 // loop_exit
    _

// kernel: cmn_forward.1
$region0: #{cmn_forward.1}
  #allocation0 [shape = 'u32[]', space=smem, size = 0x4, offset = 0x4, fixed_abs, tag = 'smem constant byte address 0x4 - core index']
  #allocation1 [shape = 'u32[144,128]{1,0:T(1,128)}', space=vmem, size = 0x12000, scoped, tag = 'internal scratch']
  %s0 = inlined_call_operand.vmem [shape: bf16[16,16,64], index: 0, kind: input, shape index: {}]
  %s1 = inlined_call_operand.vmem [shape: f32[1,64], index: 1, kind: input, shape index: {}]
  %s2 = inlined_call_operand.vmem [shape: f32[1,64], index: 2, kind: input, shape index: {}]
  %s3 = inlined_call_operand.vmem [shape: bf16[64,64], index: 3, kind: input, shape index: {}]
  %s4 = inlined_call_operand.vmem [shape: f32[1,64], index: 4, kind: input, shape index: {}]
  %s5 = inlined_call_operand.vmem [shape: bf16[64,8], index: 5, kind: input, shape index: {}]
  %s6 = inlined_call_operand.vmem [shape: bf16[8,64], index: 6, kind: input, shape index: {}]
  %s7 = inlined_call_operand.vmem [shape: bf16[8,64], index: 7, kind: input, shape index: {}]
  %s8 = inlined_call_operand.vmem [shape: f32[16,8], index: 8, kind: output, shape index: {}]
  %s9 = sld [smem:[#allocation0]]
  $region65: #{cmn_forward.1} parent=0
    _
  %s11 = ssub.s32 1, %s9
  %s12 = scalar_select 0, %s11, %s9
  loop: start=0, step=1, limit=4
  $region2: #{cmn_forward.1} parent=0 // loop_pre_header
    _
  $region3: #{cmn_forward.1} parent=0 // loop_header
    %s14 = sphi 0, %s18
    %p15 = scmp.ge.s32.totalorder %s14, 4
    %s24 = sphi 0, %s26
    %s27 = sphi 0, %s24
    %s28 = sphi 0, %s27
    %s44 = sphi 0, %s28
    %s48 = sphi 0, %s48
    %s50 = sphi 0, %s48
    %s51 = sphi 0, %s50
    %s65 = sphi 0, %s51
    %s69 = sphi 0, %s69
    %s71 = sphi 0, %s69
    %s72 = sphi 0, %s71
    %s86 = sphi 0, %s72
    %s90 = sphi 0, %s90
    %s92 = sphi 0, %s90
    %s93 = sphi 0, %s92
    %s107 = sphi 0, %s93
    %s111 = sphi 0, %s111
    %s113 = sphi 0, %s111
    %s114 = sphi 0, %s113
    %s128 = sphi 0, %s114
    %s132 = sphi 0, %s132
    %s134 = sphi 0, %s132
    %s135 = sphi 0, %s134
    %s149 = sphi 0, %s135
    %s153 = sphi 0, %s153
    %s155 = sphi 0, %s153
    %s156 = sphi 0, %s155
    %s170 = sphi 0, %s156
    %s174 = sphi 0, %s174
    %s176 = sphi 0, %s174
    %s177 = sphi 0, %s176
    %s191 = sphi 0, %s177
    %s197 = sphi 0, %s199
    %s200 = sphi 0, %s197
    %s201 = sphi 0, %s200
    %s217 = sphi 0, %s201
  $region4: #{cmn_forward.1} parent=0 // loop_header_branch
    %17 = sbr.rel (%p15) target = $region8
  $region5: #{cmn_forward.1} parent=0 // loop_body
    %s19 = ssub.s32 %s14, 1
    %s20 = ssub.s32 %s14, 2
    %s21 = sadd.s32 %s14, 1
    %s22 = ssub.s32 %s14, %s21
    %p23 = scmp.eq.s32.totalorder %s22, 0
    %s25 = sadd.s32 %s24, 1
    %s26 = scalar_select %p23, %s24, %s25
    %p29 = pneg %p23
    %p30 = scmp.eq.s32.totalorder %s14, 1
    %p31 = por %p29, %p30
    %p32 = scmp.ne.s32.totalorder %s24, %s27
    %p33 = scmp.eq.s32.totalorder %s14, 0
    %p34 = por %p32, %p33
    %p35 = scmp.ne.s32.totalorder %s24, %s27
    %p36 = scmp.eq.s32.totalorder %s19, 1
    %p37 = por %p35, %p36
    %p38 = scmp.ne.s32.totalorder %s27, %s28
    %p39 = scmp.eq.s32.totalorder %s19, 0
    %p40 = por %p38, %p39
    %p41 = scmp.ne.s32.totalorder %s27, %s28
    %p42 = scmp.eq.s32.totalorder %s20, 1
    %p43 = por %p41, %p42
    %p45 = scmp.ne.s32.totalorder %s28, %s44
    %p46 = scmp.eq.s32.totalorder %s20, 0
    %p47 = por %p45, %p46
    %s49 = sadd.s32 %s48, 1
    %p52 = scmp.eq.s32.totalorder %s14, 1
    %p53 = scmp.ne.s32.totalorder %s48, %s50
    %p54 = scmp.eq.s32.totalorder %s14, 0
    %p55 = por %p53, %p54
    %p56 = scmp.ne.s32.totalorder %s48, %s50
    %p57 = scmp.eq.s32.totalorder %s19, 1
    %p58 = por %p56, %p57
    %p59 = scmp.ne.s32.totalorder %s50, %s51
    %p60 = scmp.eq.s32.totalorder %s19, 0
    %p61 = por %p59, %p60
    %p62 = scmp.ne.s32.totalorder %s50, %s51
    %p63 = scmp.eq.s32.totalorder %s20, 1
    %p64 = por %p62, %p63
    %p66 = scmp.ne.s32.totalorder %s51, %s65
    %p67 = scmp.eq.s32.totalorder %s20, 0
    %p68 = por %p66, %p67
    %s70 = sadd.s32 %s69, 1
    %p73 = scmp.eq.s32.totalorder %s14, 1
    %p74 = scmp.ne.s32.totalorder %s69, %s71
    %p75 = scmp.eq.s32.totalorder %s14, 0
    %p76 = por %p74, %p75
    %p77 = scmp.ne.s32.totalorder %s69, %s71
    %p78 = scmp.eq.s32.totalorder %s19, 1
    %p79 = por %p77, %p78
    %p80 = scmp.ne.s32.totalorder %s71, %s72
    %p81 = scmp.eq.s32.totalorder %s19, 0
    %p82 = por %p80, %p81
    %p83 = scmp.ne.s32.totalorder %s71, %s72
    %p84 = scmp.eq.s32.totalorder %s20, 1
    %p85 = por %p83, %p84
    %p87 = scmp.ne.s32.totalorder %s72, %s86
    %p88 = scmp.eq.s32.totalorder %s20, 0
    %p89 = por %p87, %p88
    %s91 = sadd.s32 %s90, 1
    %p94 = scmp.eq.s32.totalorder %s14, 1
    %p95 = scmp.ne.s32.totalorder %s90, %s92
    %p96 = scmp.eq.s32.totalorder %s14, 0
    %p97 = por %p95, %p96
    %p98 = scmp.ne.s32.totalorder %s90, %s92
    %p99 = scmp.eq.s32.totalorder %s19, 1
    %p100 = por %p98, %p99
    %p101 = scmp.ne.s32.totalorder %s92, %s93
    %p102 = scmp.eq.s32.totalorder %s19, 0
    %p103 = por %p101, %p102
    %p104 = scmp.ne.s32.totalorder %s92, %s93
    %p105 = scmp.eq.s32.totalorder %s20, 1
    %p106 = por %p104, %p105
    %p108 = scmp.ne.s32.totalorder %s93, %s107
    %p109 = scmp.eq.s32.totalorder %s20, 0
    %p110 = por %p108, %p109
    %s112 = sadd.s32 %s111, 1
    %p115 = scmp.eq.s32.totalorder %s14, 1
    %p116 = scmp.ne.s32.totalorder %s111, %s113
    %p117 = scmp.eq.s32.totalorder %s14, 0
    %p118 = por %p116, %p117
    %p119 = scmp.ne.s32.totalorder %s111, %s113
    %p120 = scmp.eq.s32.totalorder %s19, 1
    %p121 = por %p119, %p120
    %p122 = scmp.ne.s32.totalorder %s113, %s114
    %p123 = scmp.eq.s32.totalorder %s19, 0
    %p124 = por %p122, %p123
    %p125 = scmp.ne.s32.totalorder %s113, %s114
    %p126 = scmp.eq.s32.totalorder %s20, 1
    %p127 = por %p125, %p126
    %p129 = scmp.ne.s32.totalorder %s114, %s128
    %p130 = scmp.eq.s32.totalorder %s20, 0
    %p131 = por %p129, %p130
    %s133 = sadd.s32 %s132, 1
    %p136 = scmp.eq.s32.totalorder %s14, 1
    %p137 = scmp.ne.s32.totalorder %s132, %s134
    %p138 = scmp.eq.s32.totalorder %s14, 0
    %p139 = por %p137, %p138
    %p140 = scmp.ne.s32.totalorder %s132, %s134
    %p141 = scmp.eq.s32.totalorder %s19, 1
    %p142 = por %p140, %p141
    %p143 = scmp.ne.s32.totalorder %s134, %s135
    %p144 = scmp.eq.s32.totalorder %s19, 0
    %p145 = por %p143, %p144
    %p146 = scmp.ne.s32.totalorder %s134, %s135
    %p147 = scmp.eq.s32.totalorder %s20, 1
    %p148 = por %p146, %p147
    %p150 = scmp.ne.s32.totalorder %s135, %s149
    %p151 = scmp.eq.s32.totalorder %s20, 0
    %p152 = por %p150, %p151
    %s154 = sadd.s32 %s153, 1
    %p157 = scmp.eq.s32.totalorder %s14, 1
    %p158 = scmp.ne.s32.totalorder %s153, %s155
    %p159 = scmp.eq.s32.totalorder %s14, 0
    %p160 = por %p158, %p159
    %p161 = scmp.ne.s32.totalorder %s153, %s155
    %p162 = scmp.eq.s32.totalorder %s19, 1
    %p163 = por %p161, %p162
    %p164 = scmp.ne.s32.totalorder %s155, %s156
    %p165 = scmp.eq.s32.totalorder %s19, 0
    %p166 = por %p164, %p165
    %p167 = scmp.ne.s32.totalorder %s155, %s156
    %p168 = scmp.eq.s32.totalorder %s20, 1
    %p169 = por %p167, %p168
    %p171 = scmp.ne.s32.totalorder %s156, %s170
    %p172 = scmp.eq.s32.totalorder %s20, 0
    %p173 = por %p171, %p172
    %s175 = sadd.s32 %s174, 1
    %p178 = scmp.eq.s32.totalorder %s14, 1
    %p179 = scmp.ne.s32.totalorder %s174, %s176
    %p180 = scmp.eq.s32.totalorder %s14, 0
    %p181 = por %p179, %p180
    %p182 = scmp.ne.s32.totalorder %s174, %s176
    %p183 = scmp.eq.s32.totalorder %s19, 1
    %p184 = por %p182, %p183
    %p185 = scmp.ne.s32.totalorder %s176, %s177
    %p186 = scmp.eq.s32.totalorder %s19, 0
    %p187 = por %p185, %p186
    %p188 = scmp.ne.s32.totalorder %s176, %s177
    %p189 = scmp.eq.s32.totalorder %s20, 1
    %p190 = por %p188, %p189
    %p192 = scmp.ne.s32.totalorder %s177, %s191
    %p193 = scmp.eq.s32.totalorder %s20, 0
    %p194 = por %p192, %p193
    %s195 = ssub.s32 %s14, %s21
    %p196 = scmp.eq.s32.totalorder %s195, 0
    %s198 = sadd.s32 %s197, 1
    %s199 = scalar_select %p196, %s197, %s198
    %p202 = pneg %p196
    %p203 = scmp.eq.s32.totalorder %s14, 1
    %p204 = por %p202, %p203
    %p205 = scmp.ne.s32.totalorder %s197, %s200
    %p206 = scmp.eq.s32.totalorder %s14, 0
    %p207 = por %p205, %p206
    %p208 = scmp.ne.s32.totalorder %s197, %s200
    %p209 = scmp.eq.s32.totalorder %s19, 1
    %p210 = por %p208, %p209
    %p211 = scmp.ne.s32.totalorder %s200, %s201
    %p212 = scmp.eq.s32.totalorder %s19, 0
    %p213 = por %p211, %p212
    %p214 = scmp.ne.s32.totalorder %s200, %s201
    %p215 = scmp.eq.s32.totalorder %s20, 1
    %p216 = por %p214, %p215
    %p218 = scmp.ne.s32.totalorder %s201, %s217
    %p219 = scmp.eq.s32.totalorder %s20, 0
    %p220 = por %p218, %p219
    %p221 = scmp.le.s32.totalorder 1, %s14
    %p222 = scmp.lt.s32.totalorder %s14, 3
    %p223 = pnand %p221, %p222
    %p224 = pneg %p223
    // Predicated region
    $region9: #{cmn_forward.1} parent=5 // pred_check
      _
    $region10: #{cmn_forward.1} parent=5 // pred_check_branch
      %226 = sbr.rel (%p223) target = $region12
    $region11: #{cmn_forward.1} parent=5 // pred_region
      %s227 = ssub.s32 %s14, 1
      // Predicated region
      $region13: #{cmn_forward.1} parent=11 // pred_check
        %p228 = pneg %p61
      $region14: #{cmn_forward.1} parent=11 // pred_check_branch
        %230 = sbr.rel (%p228) target = $region16
      $region15: #{cmn_forward.1} parent=11 // pred_region
        _
      $region16: #{cmn_forward.1} parent=11 // pred_fallthru
        _
      // Predicated region
      $region17: #{cmn_forward.1} parent=11 // pred_check
        %p231 = pneg %p82
      $region18: #{cmn_forward.1} parent=11 // pred_check_branch
        %233 = sbr.rel (%p231) target = $region20
      $region19: #{cmn_forward.1} parent=11 // pred_region
        _
      $region20: #{cmn_forward.1} parent=11 // pred_fallthru
        _
      // Predicated region
      $region21: #{cmn_forward.1} parent=11 // pred_check
        %p234 = pneg %p103
      $region22: #{cmn_forward.1} parent=11 // pred_check_branch
        %236 = sbr.rel (%p234) target = $region24
      $region23: #{cmn_forward.1} parent=11 // pred_region
        _
      $region24: #{cmn_forward.1} parent=11 // pred_fallthru
        _
      // Predicated region
      $region25: #{cmn_forward.1} parent=11 // pred_check
        %p237 = pneg %p124
      $region26: #{cmn_forward.1} parent=11 // pred_check_branch
        %239 = sbr.rel (%p237) target = $region28
      $region27: #{cmn_forward.1} parent=11 // pred_region
        _
      $region28: #{cmn_forward.1} parent=11 // pred_fallthru
        _
      // Predicated region
      $region29: #{cmn_forward.1} parent=11 // pred_check
        %p240 = pneg %p145
      $region30: #{cmn_forward.1} parent=11 // pred_check_branch
        %242 = sbr.rel (%p240) target = $region32
      $region31: #{cmn_forward.1} parent=11 // pred_region
        _
      $region32: #{cmn_forward.1} parent=11 // pred_fallthru
        _
      // Predicated region
      $region33: #{cmn_forward.1} parent=11 // pred_check
        %p243 = pneg %p166
      $region34: #{cmn_forward.1} parent=11 // pred_check_branch
        %245 = sbr.rel (%p243) target = $region36
      $region35: #{cmn_forward.1} parent=11 // pred_region
        _
      $region36: #{cmn_forward.1} parent=11 // pred_fallthru
        _
      // Predicated region
      $region37: #{cmn_forward.1} parent=11 // pred_check
        %p246 = pneg %p187
      $region38: #{cmn_forward.1} parent=11 // pred_check_branch
        %248 = sbr.rel (%p246) target = $region40
      $region39: #{cmn_forward.1} parent=11 // pred_region
        _
      $region40: #{cmn_forward.1} parent=11 // pred_fallthru
        _
    $region12: #{cmn_forward.1} parent=5 // pred_fallthru
      _
    %p249 = scmp.lt.s32.totalorder %s14, 2
    // Predicated region
    $region41: #{cmn_forward.1} parent=5 // pred_check
      %p250 = pneg %p249
    $region42: #{cmn_forward.1} parent=5 // pred_check_branch
      %252 = sbr.rel (%p250) target = $region44
    $region43: #{cmn_forward.1} parent=5 // pred_region
      // Predicated region
      $region45: #{cmn_forward.1} parent=43 // pred_check
        %p253 = pneg %p34
      $region46: #{cmn_forward.1} parent=43 // pred_check_branch
        %255 = sbr.rel (%p253) target = $region48
      $region47: #{cmn_forward.1} parent=43 // pred_region
        %s256 = smul.u32 8, %s14
        %p257 = scmp.lt.s32.totalorder %s256, 15
        %s258 = scalar_select %p257, %s256, 15
        %s259 = smul.addr %s258, 2
        %s260 = smul.addr %s259, 4
        %s261 = scalar_lea.vmem %s0, %s260
        %s262 = smul.u32 8, %s14
      $region48: #{cmn_forward.1} parent=43 // pred_fallthru
        _
    $region44: #{cmn_forward.1} parent=5 // pred_fallthru
      _
    %p263 = scmp.le.s32.totalorder 1, %s14
    %p264 = scmp.lt.s32.totalorder %s14, 3
    %p265 = pnand %p263, %p264
    %p266 = pneg %p265
    // Predicated region
    $region49: #{cmn_forward.1} parent=5 // pred_check
      _
    $region50: #{cmn_forward.1} parent=5 // pred_check_branch
      %268 = sbr.rel (%p265) target = $region52
    $region51: #{cmn_forward.1} parent=5 // pred_region
      %s269 = ssub.s32 %s14, 1
      %s270 = smul.u32 8, %s19
      %p271 = scmp.lt.s32.totalorder %s270, 15
      %s272 = scalar_select %p271, %s270, 15
      %s273 = smul.addr %s272, 2
      %s274 = smul.addr %s273, 4
      %s275 = scalar_lea.vmem %s0, %s274
      %p276 = pneg %p40
      %p277 = pneg %p37
      %p278 = pneg %p61
      %p279 = pneg %p58
      %p280 = pneg %p82
      %p281 = pneg %p79
      %p282 = pneg %p103
      %p283 = pneg %p100
      %p284 = pneg %p124
      %p285 = pneg %p121
      %p286 = pneg %p145
      %p287 = pneg %p142
      %p288 = pneg %p166
      %p289 = pneg %p163
      %p290 = pneg %p187
      %p291 = pneg %p184
      %p292 = pneg %p213
      %p293 = pneg %p210
      %p294 = scmp.lt.s32.totalorder %s19, 1
      %s295 = scalar_select %p294, %s19, 1
      %s296 = smul.addr %s295, 8
      %s297 = scalar_lea.vmem %s8, %s296
      %s298 = smul.u32 8, %s19
      %p299 = scmp.lt.s32.totalorder %s298, 15
      %s300 = scalar_select %p299, %s298, 15
      %s301 = smul.addr %s300, 2
      %s302 = smul.addr %s301, 4
      %s303 = scalar_lea.vmem %s0, %s302
      %s304 = smul.u32 8, %s19
      %p305 = scmp.lt.s32.totalorder %s19, 1
      %s306 = scalar_select %p305, %s19, 1
      %s307 = smul.addr %s306, 8
      %s308 = scalar_lea.vmem %s8, %s307
      %v310 = vld [vmem:[%s303] sm:$0xf]
      %v311 = vld [vmem:[%s303 + $0x4] sm:$0xf]
      %v312 = vld [vmem:[%s303 + $0x8] sm:$0xf]
      %v313 = vld [vmem:[%s303 + $0xc] sm:$0xf]
      %v314 = vld [vmem:[%s303 + $0x10] sm:$0xf]
      %v315 = vld [vmem:[%s303 + $0x14] sm:$0xf]
      %v316 = vld [vmem:[%s303 + $0x18] sm:$0xf]
      %v317 = vld [vmem:[%s303 + $0x1c] sm:$0xf]
      %v318 = vld [vmem:[%s303 + $0x20] sm:$0xf]
      %v319 = vld [vmem:[%s303 + $0x24] sm:$0xf]
      %v320 = vld [vmem:[%s303 + $0x28] sm:$0xf]
      %v321 = vld [vmem:[%s303 + $0x2c] sm:$0xf]
      %v322 = vld [vmem:[%s303 + $0x30] sm:$0xf]
      %v323 = vld [vmem:[%s303 + $0x34] sm:$0xf]
      %v324 = vld [vmem:[%s303 + $0x38] sm:$0xf]
      %v325 = vld [vmem:[%s303 + $0x3c] sm:$0xf]
      %v326 = vunpack.c.l.bf16 %v310
      %v327 = vunpack.c.l.bf16 %v311
      %v328 = vunpack.c.l.bf16 %v312
      %v329 = vunpack.c.l.bf16 %v313
      %v330 = vunpack.c.l.bf16 %v314
      %v331 = vunpack.c.l.bf16 %v315
      %v332 = vunpack.c.l.bf16 %v316
      %v333 = vunpack.c.l.bf16 %v317
      %v334 = vunpack.c.l.bf16 %v318
      %v335 = vunpack.c.l.bf16 %v319
      %v336 = vunpack.c.l.bf16 %v320
      %v337 = vunpack.c.l.bf16 %v321
      %v338 = vunpack.c.l.bf16 %v322
      %v339 = vunpack.c.l.bf16 %v323
      %v340 = vunpack.c.l.bf16 %v324
      %v341 = vunpack.c.l.bf16 %v325
      %vm342 = vcmask 523264
      %v343 = vsel %vm342, %v326, 0.0
      %344 = vadd.xlane.f32.xlu0 %v343
      %v345 = vpop.xlane.xlu0 %344
      %v346 = vsel %vm342, %v327, 0.0
      %347 = vadd.xlane.f32.xlu0 %v346
      %v348 = vpop.xlane.xlu0 %347
      %v349 = vsel %vm342, %v328, 0.0
      %350 = vadd.xlane.f32.xlu0 %v349
      %v351 = vpop.xlane.xlu0 %350
      %v352 = vsel %vm342, %v329, 0.0
      %353 = vadd.xlane.f32.xlu0 %v352
      %v354 = vpop.xlane.xlu0 %353
      %v355 = vsel %vm342, %v330, 0.0
      %356 = vadd.xlane.f32.xlu0 %v355
      %v357 = vpop.xlane.xlu0 %356
      %v358 = vsel %vm342, %v331, 0.0
      %359 = vadd.xlane.f32.xlu0 %v358
      %v360 = vpop.xlane.xlu0 %359
      %v361 = vsel %vm342, %v332, 0.0
      %362 = vadd.xlane.f32.xlu0 %v361
      %v363 = vpop.xlane.xlu0 %362
      %v364 = vsel %vm342, %v333, 0.0
      %365 = vadd.xlane.f32.xlu0 %v364
      %v366 = vpop.xlane.xlu0 %365
      %v367 = vsel %vm342, %v334, 0.0
      %368 = vadd.xlane.f32.xlu0 %v367
      %v369 = vpop.xlane.xlu0 %368
      %v370 = vsel %vm342, %v335, 0.0
      %371 = vadd.xlane.f32.xlu0 %v370
      %v372 = vpop.xlane.xlu0 %371
      %v373 = vsel %vm342, %v336, 0.0
      %374 = vadd.xlane.f32.xlu0 %v373
      %v375 = vpop.xlane.xlu0 %374
      %v376 = vsel %vm342, %v337, 0.0
      %377 = vadd.xlane.f32.xlu0 %v376
      %v378 = vpop.xlane.xlu0 %377
      %v379 = vsel %vm342, %v338, 0.0
      %380 = vadd.xlane.f32.xlu0 %v379
      %v381 = vpop.xlane.xlu0 %380
      %v382 = vsel %vm342, %v339, 0.0
      %383 = vadd.xlane.f32.xlu0 %v382
      %v384 = vpop.xlane.xlu0 %383
      %v385 = vsel %vm342, %v340, 0.0
      %386 = vadd.xlane.f32.xlu0 %v385
      %v387 = vpop.xlane.xlu0 %386
      %v388 = vsel %vm342, %v341, 0.0
      %389 = vadd.xlane.f32.xlu0 %v388
      %v390 = vpop.xlane.xlu0 %389
      %v391 = vrcp.pop 64.0
      %v392 = vmul.f32 %v345, %v391
      %v393 = vmul.f32 %v348, %v391
      %v394 = vmul.f32 %v351, %v391
      %v395 = vmul.f32 %v354, %v391
      %v396 = vmul.f32 %v357, %v391
      %v397 = vmul.f32 %v360, %v391
      %v398 = vmul.f32 %v363, %v391
      %v399 = vmul.f32 %v366, %v391
      %v400 = vmul.f32 %v369, %v391
      %v401 = vmul.f32 %v372, %v391
      %v402 = vmul.f32 %v375, %v391
      %v403 = vmul.f32 %v378, %v391
      %v404 = vmul.f32 %v381, %v391
      %v405 = vmul.f32 %v384, %v391
      %v406 = vmul.f32 %v387, %v391
      %v407 = vmul.f32 %v390, %v391
      %v408 = vsub.f32 %v326, %v392
      %v409 = vsub.f32 %v327, %v393
      %v410 = vsub.f32 %v328, %v394
      %v411 = vsub.f32 %v329, %v395
      %v412 = vsub.f32 %v330, %v396
      %v413 = vsub.f32 %v331, %v397
      %v414 = vsub.f32 %v332, %v398
      %v415 = vsub.f32 %v333, %v399
      %v416 = vsub.f32 %v334, %v400
      %v417 = vsub.f32 %v335, %v401
      %v418 = vsub.f32 %v336, %v402
      %v419 = vsub.f32 %v337, %v403
      %v420 = vsub.f32 %v338, %v404
      %v421 = vsub.f32 %v339, %v405
      %v422 = vsub.f32 %v340, %v406
      %v423 = vsub.f32 %v341, %v407
      %v424 = vmul.f32 %v408, %v408
      %v425 = vmul.f32 %v409, %v409
      %v426 = vmul.f32 %v410, %v410
      %v427 = vmul.f32 %v411, %v411
      %v428 = vmul.f32 %v412, %v412
      %v429 = vmul.f32 %v413, %v413
      %v430 = vmul.f32 %v414, %v414
      %v431 = vmul.f32 %v415, %v415
      %v432 = vmul.f32 %v416, %v416
      %v433 = vmul.f32 %v417, %v417
      %v434 = vmul.f32 %v418, %v418
      %v435 = vmul.f32 %v419, %v419
      %v436 = vmul.f32 %v420, %v420
      %v437 = vmul.f32 %v421, %v421
      %v438 = vmul.f32 %v422, %v422
      %v439 = vmul.f32 %v423, %v423
      %v440 = vsel %vm342, %v424, 0.0
      %441 = vadd.xlane.f32.xlu0 %v440
      %v442 = vpop.xlane.xlu0 %441
      %v443 = vsel %vm342, %v425, 0.0
      %444 = vadd.xlane.f32.xlu0 %v443
      %v445 = vpop.xlane.xlu0 %444
      %v446 = vsel %vm342, %v426, 0.0
      %447 = vadd.xlane.f32.xlu0 %v446
      %v448 = vpop.xlane.xlu0 %447
      %v449 = vsel %vm342, %v427, 0.0
      %450 = vadd.xlane.f32.xlu0 %v449
      %v451 = vpop.xlane.xlu0 %450
      %v452 = vsel %vm342, %v428, 0.0
      %453 = vadd.xlane.f32.xlu0 %v452
      %v454 = vpop.xlane.xlu0 %453
      %v455 = vsel %vm342, %v429, 0.0
      %456 = vadd.xlane.f32.xlu0 %v455
      %v457 = vpop.xlane.xlu0 %456
      %v458 = vsel %vm342, %v430, 0.0
      %459 = vadd.xlane.f32.xlu0 %v458
      %v460 = vpop.xlane.xlu0 %459
      %v461 = vsel %vm342, %v431, 0.0
      %462 = vadd.xlane.f32.xlu0 %v461
      %v463 = vpop.xlane.xlu0 %462
      %v464 = vsel %vm342, %v432, 0.0
      %465 = vadd.xlane.f32.xlu0 %v464
      %v466 = vpop.xlane.xlu0 %465
      %v467 = vsel %vm342, %v433, 0.0
      %468 = vadd.xlane.f32.xlu0 %v467
      %v469 = vpop.xlane.xlu0 %468
      %v470 = vsel %vm342, %v434, 0.0
      %471 = vadd.xlane.f32.xlu0 %v470
      %v472 = vpop.xlane.xlu0 %471
      %v473 = vsel %vm342, %v435, 0.0
      %474 = vadd.xlane.f32.xlu0 %v473
      %v475 = vpop.xlane.xlu0 %474
      %v476 = vsel %vm342, %v436, 0.0
      %477 = vadd.xlane.f32.xlu0 %v476
      %v478 = vpop.xlane.xlu0 %477
      %v479 = vsel %vm342, %v437, 0.0
      %480 = vadd.xlane.f32.xlu0 %v479
      %v481 = vpop.xlane.xlu0 %480
      %v482 = vsel %vm342, %v438, 0.0
      %483 = vadd.xlane.f32.xlu0 %v482
      %v484 = vpop.xlane.xlu0 %483
      %v485 = vsel %vm342, %v439, 0.0
      %486 = vadd.xlane.f32.xlu0 %v485
      %v487 = vpop.xlane.xlu0 %486
      %v488 = vmul.f32 %v442, %v391
      %v489 = vmul.f32 %v445, %v391
      %v490 = vmul.f32 %v448, %v391
      %v491 = vmul.f32 %v451, %v391
      %v492 = vmul.f32 %v454, %v391
      %v493 = vmul.f32 %v457, %v391
      %v494 = vmul.f32 %v460, %v391
      %v495 = vmul.f32 %v463, %v391
      %v496 = vmul.f32 %v466, %v391
      %v497 = vmul.f32 %v469, %v391
      %v498 = vmul.f32 %v472, %v391
      %v499 = vmul.f32 %v475, %v391
      %v500 = vmul.f32 %v478, %v391
      %v501 = vmul.f32 %v481, %v391
      %v502 = vmul.f32 %v484, %v391
      %v503 = vmul.f32 %v487, %v391
      %v504 = vadd.f32 %v488, 1e-05
      %v505 = vadd.f32 %v489, 1e-05
      %v506 = vadd.f32 %v490, 1e-05
      %v507 = vadd.f32 %v491, 1e-05
      %v508 = vadd.f32 %v492, 1e-05
      %v509 = vadd.f32 %v493, 1e-05
      %v510 = vadd.f32 %v494, 1e-05
      %v511 = vadd.f32 %v495, 1e-05
      %v512 = vadd.f32 %v496, 1e-05
      %v513 = vadd.f32 %v497, 1e-05
      %v514 = vadd.f32 %v498, 1e-05
      %v515 = vadd.f32 %v499, 1e-05
      %v516 = vadd.f32 %v500, 1e-05
      %v517 = vadd.f32 %v501, 1e-05
      %v518 = vadd.f32 %v502, 1e-05
      %v519 = vadd.f32 %v503, 1e-05
      %v520 = vrsqrt.pop %v504
      %v521 = vrsqrt.pop %v505
      %v522 = vrsqrt.pop %v506
      %v523 = vrsqrt.pop %v507
      %v524 = vrsqrt.pop %v508
      %v525 = vrsqrt.pop %v509
      %v526 = vrsqrt.pop %v510
      %v527 = vrsqrt.pop %v511
      %v528 = vrsqrt.pop %v512
      %v529 = vrsqrt.pop %v513
      %v530 = vrsqrt.pop %v514
      %v531 = vrsqrt.pop %v515
      %v532 = vrsqrt.pop %v516
      %v533 = vrsqrt.pop %v517
      %v534 = vrsqrt.pop %v518
      %v535 = vrsqrt.pop %v519
      %v536 = vmul.f32 %v408, %v520
      %v537 = vmul.f32 %v409, %v521
      %v538 = vmul.f32 %v410, %v522
      %v539 = vmul.f32 %v411, %v523
      %v540 = vmul.f32 %v412, %v524
      %v541 = vmul.f32 %v413, %v525
      %v542 = vmul.f32 %v414, %v526
      %v543 = vmul.f32 %v415, %v527
      %v544 = vmul.f32 %v416, %v528
      %v545 = vmul.f32 %v417, %v529
      %v546 = vmul.f32 %v418, %v530
      %v547 = vmul.f32 %v419, %v531
      %v548 = vmul.f32 %v420, %v532
      %v549 = vmul.f32 %v421, %v533
      %v550 = vmul.f32 %v422, %v534
      %v551 = vmul.f32 %v423, %v535
      %v552 = vld [vmem:[%s1] sm:$0x1]
      %v554 = vlaneseq
      %v555 = vshrl.u32 %v554, 7
      %v556 = vsub.s32 0, %v555
      %v557 = vrot.slane %v552, %v556
      %v559 = vmul.f32 %v536, %v557
      %v560 = vmul.f32 %v537, %v557
      %v561 = vmul.f32 %v538, %v557
      %v562 = vmul.f32 %v539, %v557
      %v563 = vmul.f32 %v540, %v557
      %v564 = vmul.f32 %v541, %v557
      %v565 = vmul.f32 %v542, %v557
      %v566 = vmul.f32 %v543, %v557
      %v567 = vmul.f32 %v544, %v557
      %v568 = vmul.f32 %v545, %v557
      %v569 = vmul.f32 %v546, %v557
      %v570 = vmul.f32 %v547, %v557
      %v571 = vmul.f32 %v548, %v557
      %v572 = vmul.f32 %v549, %v557
      %v573 = vmul.f32 %v550, %v557
      %v574 = vmul.f32 %v551, %v557
      %v575 = vld [vmem:[%s2] sm:$0x1]
      %v577 = vlaneseq
      %v578 = vshrl.u32 %v577, 7
      %v579 = vsub.s32 0, %v578
      %v580 = vrot.slane %v575, %v579
      %v582 = vadd.f32 %v559, %v580
      %v583 = vadd.f32 %v560, %v580
      %v584 = vadd.f32 %v561, %v580
      %v585 = vadd.f32 %v562, %v580
      %v586 = vadd.f32 %v563, %v580
      %v587 = vadd.f32 %v564, %v580
      %v588 = vadd.f32 %v565, %v580
      %v589 = vadd.f32 %v566, %v580
      %v590 = vadd.f32 %v567, %v580
      %v591 = vadd.f32 %v568, %v580
      %v592 = vadd.f32 %v569, %v580
      %v593 = vadd.f32 %v570, %v580
      %v594 = vadd.f32 %v571, %v580
      %v595 = vadd.f32 %v572, %v580
      %v596 = vadd.f32 %v573, %v580
      %v597 = vadd.f32 %v574, %v580
      %v598 = vpack.c.bf16 %v583, %v582
      %v599 = vpack.c.bf16 %v585, %v584
      %v600 = vpack.c.bf16 %v587, %v586
      %v601 = vpack.c.bf16 %v589, %v588
      %v602 = vpack.c.bf16 %v591, %v590
      %v603 = vpack.c.bf16 %v593, %v592
      %v604 = vpack.c.bf16 %v595, %v594
      %v605 = vpack.c.bf16 %v597, %v596
      %v606 = vld [vmem:[%s3] sm:$0xf]
      %v607 = vld [vmem:[%s3 + $0x4] sm:$0xf]
      %v608 = vld [vmem:[%s3 + $0x8] sm:$0xf]
      %v609 = vld [vmem:[%s3 + $0xc] sm:$0xf]
      %v610 = vld [vmem:[%s3 + $0x10] sm:$0xf]
      %v611 = vld [vmem:[%s3 + $0x14] sm:$0xf]
      %v612 = vld [vmem:[%s3 + $0x18] sm:$0xf]
      %v613 = vld [vmem:[%s3 + $0x1c] sm:$0xf]
      %v614 = vld [vmem:[%s4] sm:$0x1]
      %v616 = vlaneseq
      %v617 = vshrl.u32 %v616, 7
      %v618 = vsub.s32 0, %v617
      %v619 = vrot.slane %v614, %v618
      %v629 = vunpack.c.l.b16 %v606
      %v630 = vunpack.c.l.b16 %v607
      %v631 = vunpack.c.l.b16 %v608
      %v632 = vunpack.c.l.b16 %v609
      %v633 = vunpack.c.l.b16 %v610
      %v634 = vunpack.c.l.b16 %v611
      %v635 = vunpack.c.l.b16 %v612
      %v636 = vunpack.c.l.b16 %v613
      %v637 = vpack.c.b16 %v630, %v629
      %v638 = vpack.c.b16 %v632, %v631
      %v639 = vpack.c.b16 %v634, %v633
      %v640 = vpack.c.b16 %v636, %v635
      %v646 = vsel %vm342, %v598, 0
      %v649 = vsel %vm342, %v599, 0
      %v652 = vsel %vm342, %v600, 0
      %v655 = vsel %vm342, %v601, 0
      %v658 = vsel %vm342, %v602, 0
      %v661 = vsel %vm342, %v603, 0
      %v664 = vsel %vm342, %v604, 0
      %v667 = vsel %vm342, %v605, 0
      %669 = vmatprep.subr.bf16.mxu0 0
      %670 = vmatpush1.bf16.msra.mxu0 0
      %671 = vmatprep.subr.bf16.mxu0 0
      %672 = vmatpush1.bf16.msra.mxu0 0
      %673 = vmatprep.subr.bf16.mxu0 0
      %674 = vmatpush1.bf16.msra.mxu0 0
      %675 = vmatprep.subr.bf16.mxu0 0
      %676 = vmatpush1.bf16.msra.mxu0 0
      %677 = vmatprep.subr.bf16.mxu0 0
      %678 = vmatpush1.bf16.msra.mxu0 %v640
      %679 = vmatprep.subr.bf16.mxu0 0
      %680 = vmatpush1.bf16.msra.mxu0 %v639
      %681 = vmatprep.subr.bf16.mxu0 0
      %682 = vmatpush1.bf16.msra.mxu0 %v638
      %683 = vmatprep.subr.bf16.mxu0 0
      %684 = vmatpush1.bf16.msra.mxu0 %v637
      %685 = vmatprep.subr.bf16.mxu0 0
      %686 = vmatpush2.bf16.msra.mxu0 0
      %687 = vmatprep.subr.bf16.mxu0 0
      %688 = vmatpush2.bf16.msra.mxu0 0
      %689 = vmatprep.subr.bf16.mxu0 0
      %690 = vmatpush2.bf16.msra.mxu0 0
      %691 = vmatprep.subr.bf16.mxu0 0
      %692 = vmatpush2.bf16.msra.mxu0 0
      %693 = vmatprep.subr.bf16.mxu0 0
      %694 = vmatpush2.bf16.msra.mxu0 0
      %695 = vmatprep.subr.bf16.mxu0 0
      %696 = vmatpush2.bf16.msra.mxu0 0
      %697 = vmatprep.subr.bf16.mxu0 0
      %698 = vmatpush2.bf16.msra.mxu0 0
      %699 = vmatprep.subr.bf16.mxu0 0
      %700 = vmatpush2.bf16.msra.mxu0 0
      %701 = vmatprep.mubr.bf16.mxu0 0
      %702 = vmatmul.mubr.bf16.gmra.mxu0 %v646
      %v703 = vpop.f32.mrf.mxu0
      %v704 = vadd.f32 %v619, %v703
      %v705 = vpop.f32.mrf.mxu0
      %v706 = vpop.f32.mrf.mxu0
      %v707 = vadd.f32 %v619, %v706
      %v708 = vpop.f32.mrf.mxu0
      %709 = vmatprep.mubr.bf16.mxu0 0
      %710 = vmatmul.mubr.bf16.gmra.mxu0 %v649
      %v711 = vpop.f32.mrf.mxu0
      %v712 = vadd.f32 %v619, %v711
      %v713 = vpop.f32.mrf.mxu0
      %v714 = vpop.f32.mrf.mxu0
      %v715 = vadd.f32 %v619, %v714
      %v716 = vpop.f32.mrf.mxu0
      %717 = vmatprep.mubr.bf16.mxu0 0
      %718 = vmatmul.mubr.bf16.gmra.mxu0 %v652
      %v719 = vpop.f32.mrf.mxu0
      %v720 = vadd.f32 %v619, %v719
      %v721 = vpop.f32.mrf.mxu0
      %v722 = vpop.f32.mrf.mxu0
      %v723 = vadd.f32 %v619, %v722
      %v724 = vpop.f32.mrf.mxu0
      %725 = vmatprep.mubr.bf16.mxu0 0
      %726 = vmatmul.mubr.bf16.gmra.mxu0 %v655
      %v727 = vpop.f32.mrf.mxu0
      %v728 = vadd.f32 %v619, %v727
      %v729 = vpop.f32.mrf.mxu0
      %v730 = vpop.f32.mrf.mxu0
      %v731 = vadd.f32 %v619, %v730
      %v732 = vpop.f32.mrf.mxu0
      %733 = vmatprep.mubr.bf16.mxu0 0
      %734 = vmatmul.mubr.bf16.gmra.mxu0 %v658
      %v735 = vpop.f32.mrf.mxu0
      %v736 = vadd.f32 %v619, %v735
      %v737 = vpop.f32.mrf.mxu0
      %v738 = vpop.f32.mrf.mxu0
      %v739 = vadd.f32 %v619, %v738
      %v740 = vpop.f32.mrf.mxu0
      %741 = vmatprep.mubr.bf16.mxu0 0
      %742 = vmatmul.mubr.bf16.gmra.mxu0 %v661
      %v743 = vpop.f32.mrf.mxu0
      %v744 = vadd.f32 %v619, %v743
      %v745 = vpop.f32.mrf.mxu0
      %v746 = vpop.f32.mrf.mxu0
      %v747 = vadd.f32 %v619, %v746
      %v748 = vpop.f32.mrf.mxu0
      %749 = vmatprep.mubr.bf16.mxu0 0
      %750 = vmatmul.mubr.bf16.gmra.mxu0 %v664
      %v751 = vpop.f32.mrf.mxu0
      %v752 = vadd.f32 %v619, %v751
      %v753 = vpop.f32.mrf.mxu0
      %v754 = vpop.f32.mrf.mxu0
      %v755 = vadd.f32 %v619, %v754
      %v756 = vpop.f32.mrf.mxu0
      %757 = vmatprep.mubr.bf16.mxu0 0
      %758 = vmatmul.mubr.bf16.gmra.mxu0 %v667
      %v759 = vpop.f32.mrf.mxu0
      %v760 = vadd.f32 %v619, %v759
      %v761 = vpop.f32.mrf.mxu0
      %v762 = vpop.f32.mrf.mxu0
      %v763 = vadd.f32 %v619, %v762
      %v764 = vpop.f32.mrf.mxu0
      %765 = vdwg.mxu0
      %v766 = vpack.c.bf16 %v707, %v704
      %v767 = vpack.c.bf16 %v715, %v712
      %v768 = vpack.c.bf16 %v723, %v720
      %v769 = vpack.c.bf16 %v731, %v728
      %v770 = vpack.c.bf16 %v739, %v736
      %v771 = vpack.c.bf16 %v747, %v744
      %v772 = vpack.c.bf16 %v755, %v752
      %v773 = vpack.c.bf16 %v763, %v760
      %v774 = vld [vmem:[%s6] sm:$0xf]
      %v776 = vsel %vm342, %v774, 0
      %v779 = vsel %vm342, %v766, 0
      %781 = vmatprep.subr.bf16.mxu0 0
      %782 = vmatpush1.bf16.xpose.msra.mxu0 0
      %783 = vmatprep.subr.bf16.mxu0 0
      %784 = vmatpush1.bf16.xpose.msra.mxu0 0
      %785 = vmatprep.subr.bf16.mxu0 0
      %786 = vmatpush1.bf16.xpose.msra.mxu0 0
      %787 = vmatprep.subr.bf16.mxu0 0
      %788 = vmatpush1.bf16.xpose.msra.mxu0 0
      %789 = vmatprep.subr.bf16.mxu0 0
      %790 = vmatpush1.bf16.xpose.msra.mxu0 0
      %791 = vmatprep.subr.bf16.mxu0 0
      %792 = vmatpush1.bf16.xpose.msra.mxu0 0
      %793 = vmatprep.subr.bf16.mxu0 0
      %794 = vmatpush1.bf16.xpose.msra.mxu0 0
      %795 = vmatprep.subr.bf16.mxu0 0
      %796 = vmatpush1.bf16.xpose.msra.mxu0 %v779
      %797 = vmatprep.subr.bf16.mxu0 0
      %798 = vmatpush2.bf16.xpose.msra.mxu0 0
      %799 = vmatprep.subr.bf16.mxu0 0
      %800 = vmatpush2.bf16.xpose.msra.mxu0 0
      %801 = vmatprep.subr.bf16.mxu0 0
      %802 = vmatpush2.bf16.xpose.msra.mxu0 0
      %803 = vmatprep.subr.bf16.mxu0 0
      %804 = vmatpush2.bf16.xpose.msra.mxu0 0
      %805 = vmatprep.subr.bf16.mxu0 0
      %806 = vmatpush2.bf16.xpose.msra.mxu0 0
      %807 = vmatprep.subr.bf16.mxu0 0
      %808 = vmatpush2.bf16.xpose.msra.mxu0 0
      %809 = vmatprep.subr.bf16.mxu0 0
      %810 = vmatpush2.bf16.xpose.msra.mxu0 0
      %811 = vmatprep.subr.bf16.mxu0 0
      %812 = vmatpush2.bf16.xpose.msra.mxu0 0
      %813 = vmatprep.mubr.bf16.mxu0 0
      %814 = vmatmul.mubr.bf16.gmra.mxu0 %v776
      %v815 = vpop.f32.mrf.mxu0
      %v816 = vadd.f32 0.0, %v815
      %v817 = vpop.f32.mrf.mxu0
      %v818 = vpop.f32.mrf.mxu0
      %v819 = vpop.f32.mrf.mxu0
      %820 = vdwg.mxu0
      %v822 = vsel %vm342, %v767, 0
      %824 = vmatprep.subr.bf16.mxu0 0
      %825 = vmatpush1.bf16.xpose.msra.mxu0 0
      %826 = vmatprep.subr.bf16.mxu0 0
      %827 = vmatpush1.bf16.xpose.msra.mxu0 0
      %828 = vmatprep.subr.bf16.mxu0 0
      %829 = vmatpush1.bf16.xpose.msra.mxu0 0
      %830 = vmatprep.subr.bf16.mxu0 0
      %831 = vmatpush1.bf16.xpose.msra.mxu0 0
      %832 = vmatprep.subr.bf16.mxu0 0
      %833 = vmatpush1.bf16.xpose.msra.mxu0 0
      %834 = vmatprep.subr.bf16.mxu0 0
      %835 = vmatpush1.bf16.xpose.msra.mxu0 0
      %836 = vmatprep.subr.bf16.mxu0 0
      %837 = vmatpush1.bf16.xpose.msra.mxu0 0
      %838 = vmatprep.subr.bf16.mxu0 0
      %839 = vmatpush1.bf16.xpose.msra.mxu0 %v822
      %840 = vmatprep.subr.bf16.mxu0 0
      %841 = vmatpush2.bf16.xpose.msra.mxu0 0
      %842 = vmatprep.subr.bf16.mxu0 0
      %843 = vmatpush2.bf16.xpose.msra.mxu0 0
      %844 = vmatprep.subr.bf16.mxu0 0
      %845 = vmatpush2.bf16.xpose.msra.mxu0 0
      %846 = vmatprep.subr.bf16.mxu0 0
      %847 = vmatpush2.bf16.xpose.msra.mxu0 0
      %848 = vmatprep.subr.bf16.mxu0 0
      %849 = vmatpush2.bf16.xpose.msra.mxu0 0
      %850 = vmatprep.subr.bf16.mxu0 0
      %851 = vmatpush2.bf16.xpose.msra.mxu0 0
      %852 = vmatprep.subr.bf16.mxu0 0
      %853 = vmatpush2.bf16.xpose.msra.mxu0 0
      %854 = vmatprep.subr.bf16.mxu0 0
      %855 = vmatpush2.bf16.xpose.msra.mxu0 0
      %856 = vmatprep.mubr.bf16.mxu0 0
      %857 = vmatmul.mubr.bf16.gmra.mxu0 %v776
      %v858 = vpop.f32.mrf.mxu0
      %v859 = vadd.f32 0.0, %v858
      %v860 = vpop.f32.mrf.mxu0
      %v861 = vpop.f32.mrf.mxu0
      %v862 = vpop.f32.mrf.mxu0
      %863 = vdwg.mxu0
      %v865 = vsel %vm342, %v768, 0
      %867 = vmatprep.subr.bf16.mxu0 0
      %868 = vmatpush1.bf16.xpose.msra.mxu0 0
      %869 = vmatprep.subr.bf16.mxu0 0
      %870 = vmatpush1.bf16.xpose.msra.mxu0 0
      %871 = vmatprep.subr.bf16.mxu0 0
      %872 = vmatpush1.bf16.xpose.msra.mxu0 0
      %873 = vmatprep.subr.bf16.mxu0 0
      %874 = vmatpush1.bf16.xpose.msra.mxu0 0
      %875 = vmatprep.subr.bf16.mxu0 0
      %876 = vmatpush1.bf16.xpose.msra.mxu0 0
      %877 = vmatprep.subr.bf16.mxu0 0
      %878 = vmatpush1.bf16.xpose.msra.mxu0 0
      %879 = vmatprep.subr.bf16.mxu0 0
      %880 = vmatpush1.bf16.xpose.msra.mxu0 0
      %881 = vmatprep.subr.bf16.mxu0 0
      %882 = vmatpush1.bf16.xpose.msra.mxu0 %v865
      %883 = vmatprep.subr.bf16.mxu0 0
      %884 = vmatpush2.bf16.xpose.msra.mxu0 0
      %885 = vmatprep.subr.bf16.mxu0 0
      %886 = vmatpush2.bf16.xpose.msra.mxu0 0
      %887 = vmatprep.subr.bf16.mxu0 0
      %888 = vmatpush2.bf16.xpose.msra.mxu0 0
      %889 = vmatprep.subr.bf16.mxu0 0
      %890 = vmatpush2.bf16.xpose.msra.mxu0 0
      %891 = vmatprep.subr.bf16.mxu0 0
      %892 = vmatpush2.bf16.xpose.msra.mxu0 0
      %893 = vmatprep.subr.bf16.mxu0 0
      %894 = vmatpush2.bf16.xpose.msra.mxu0 0
      %895 = vmatprep.subr.bf16.mxu0 0
      %896 = vmatpush2.bf16.xpose.msra.mxu0 0
      %897 = vmatprep.subr.bf16.mxu0 0
      %898 = vmatpush2.bf16.xpose.msra.mxu0 0
      %899 = vmatprep.mubr.bf16.mxu0 0
      %900 = vmatmul.mubr.bf16.gmra.mxu0 %v776
      %v901 = vpop.f32.mrf.mxu0
      %v902 = vadd.f32 0.0, %v901
      %v903 = vpop.f32.mrf.mxu0
      %v904 = vpop.f32.mrf.mxu0
      %v905 = vpop.f32.mrf.mxu0
      %906 = vdwg.mxu0
      %v908 = vsel %vm342, %v769, 0
      %910 = vmatprep.subr.bf16.mxu0 0
      %911 = vmatpush1.bf16.xpose.msra.mxu0 0
      %912 = vmatprep.subr.bf16.mxu0 0
      %913 = vmatpush1.bf16.xpose.msra.mxu0 0
      %914 = vmatprep.subr.bf16.mxu0 0
      %915 = vmatpush1.bf16.xpose.msra.mxu0 0
      %916 = vmatprep.subr.bf16.mxu0 0
      %917 = vmatpush1.bf16.xpose.msra.mxu0 0
      %918 = vmatprep.subr.bf16.mxu0 0
      %919 = vmatpush1.bf16.xpose.msra.mxu0 0
      %920 = vmatprep.subr.bf16.mxu0 0
      %921 = vmatpush1.bf16.xpose.msra.mxu0 0
      %922 = vmatprep.subr.bf16.mxu0 0
      %923 = vmatpush1.bf16.xpose.msra.mxu0 0
      %924 = vmatprep.subr.bf16.mxu0 0
      %925 = vmatpush1.bf16.xpose.msra.mxu0 %v908
      %926 = vmatprep.subr.bf16.mxu0 0
      %927 = vmatpush2.bf16.xpose.msra.mxu0 0
      %928 = vmatprep.subr.bf16.mxu0 0
      %929 = vmatpush2.bf16.xpose.msra.mxu0 0
      %930 = vmatprep.subr.bf16.mxu0 0
      %931 = vmatpush2.bf16.xpose.msra.mxu0 0
      %932 = vmatprep.subr.bf16.mxu0 0
      %933 = vmatpush2.bf16.xpose.msra.mxu0 0
      %934 = vmatprep.subr.bf16.mxu0 0
      %935 = vmatpush2.bf16.xpose.msra.mxu0 0
      %936 = vmatprep.subr.bf16.mxu0 0
      %937 = vmatpush2.bf16.xpose.msra.mxu0 0
      %938 = vmatprep.subr.bf16.mxu0 0
      %939 = vmatpush2.bf16.xpose.msra.mxu0 0
      %940 = vmatprep.subr.bf16.mxu0 0
      %941 = vmatpush2.bf16.xpose.msra.mxu0 0
      %942 = vmatprep.mubr.bf16.mxu0 0
      %943 = vmatmul.mubr.bf16.gmra.mxu0 %v776
      %v944 = vpop.f32.mrf.mxu0
      %v945 = vadd.f32 0.0, %v944
      %v946 = vpop.f32.mrf.mxu0
      %v947 = vpop.f32.mrf.mxu0
      %v948 = vpop.f32.mrf.mxu0
      %949 = vdwg.mxu0
      %v951 = vsel %vm342, %v770, 0
      %953 = vmatprep.subr.bf16.mxu0 0
      %954 = vmatpush1.bf16.xpose.msra.mxu0 0
      %955 = vmatprep.subr.bf16.mxu0 0
      %956 = vmatpush1.bf16.xpose.msra.mxu0 0
      %957 = vmatprep.subr.bf16.mxu0 0
      %958 = vmatpush1.bf16.xpose.msra.mxu0 0
      %959 = vmatprep.subr.bf16.mxu0 0
      %960 = vmatpush1.bf16.xpose.msra.mxu0 0
      %961 = vmatprep.subr.bf16.mxu0 0
      %962 = vmatpush1.bf16.xpose.msra.mxu0 0
      %963 = vmatprep.subr.bf16.mxu0 0
      %964 = vmatpush1.bf16.xpose.msra.mxu0 0
      %965 = vmatprep.subr.bf16.mxu0 0
      %966 = vmatpush1.bf16.xpose.msra.mxu0 0
      %967 = vmatprep.subr.bf16.mxu0 0
      %968 = vmatpush1.bf16.xpose.msra.mxu0 %v951
      %969 = vmatprep.subr.bf16.mxu0 0
      %970 = vmatpush2.bf16.xpose.msra.mxu0 0
      %971 = vmatprep.subr.bf16.mxu0 0
      %972 = vmatpush2.bf16.xpose.msra.mxu0 0
      %973 = vmatprep.subr.bf16.mxu0 0
      %974 = vmatpush2.bf16.xpose.msra.mxu0 0
      %975 = vmatprep.subr.bf16.mxu0 0
      %976 = vmatpush2.bf16.xpose.msra.mxu0 0
      %977 = vmatprep.subr.bf16.mxu0 0
      %978 = vmatpush2.bf16.xpose.msra.mxu0 0
      %979 = vmatprep.subr.bf16.mxu0 0
      %980 = vmatpush2.bf16.xpose.msra.mxu0 0
      %981 = vmatprep.subr.bf16.mxu0 0
      %982 = vmatpush2.bf16.xpose.msra.mxu0 0
      %983 = vmatprep.subr.bf16.mxu0 0
      %984 = vmatpush2.bf16.xpose.msra.mxu0 0
      %985 = vmatprep.mubr.bf16.mxu0 0
      %986 = vmatmul.mubr.bf16.gmra.mxu0 %v776
      %v987 = vpop.f32.mrf.mxu0
      %v988 = vadd.f32 0.0, %v987
      %v989 = vpop.f32.mrf.mxu0
      %v990 = vpop.f32.mrf.mxu0
      %v991 = vpop.f32.mrf.mxu0
      %992 = vdwg.mxu0
      %v994 = vsel %vm342, %v771, 0
      %996 = vmatprep.subr.bf16.mxu0 0
      %997 = vmatpush1.bf16.xpose.msra.mxu0 0
      %998 = vmatprep.subr.bf16.mxu0 0
      %999 = vmatpush1.bf16.xpose.msra.mxu0 0
      %1000 = vmatprep.subr.bf16.mxu0 0
      %1001 = vmatpush1.bf16.xpose.msra.mxu0 0
      %1002 = vmatprep.subr.bf16.mxu0 0
      %1003 = vmatpush1.bf16.xpose.msra.mxu0 0
      %1004 = vmatprep.subr.bf16.mxu0 0
      %1005 = vmatpush1.bf16.xpose.msra.mxu0 0
      %1006 = vmatprep.subr.bf16.mxu0 0
      %1007 = vmatpush1.bf16.xpose.msra.mxu0 0
      %1008 = vmatprep.subr.bf16.mxu0 0
      %1009 = vmatpush1.bf16.xpose.msra.mxu0 0
      %1010 = vmatprep.subr.bf16.mxu0 0
      %1011 = vmatpush1.bf16.xpose.msra.mxu0 %v994
      %1012 = vmatprep.subr.bf16.mxu0 0
      %1013 = vmatpush2.bf16.xpose.msra.mxu0 0
      %1014 = vmatprep.subr.bf16.mxu0 0
      %1015 = vmatpush2.bf16.xpose.msra.mxu0 0
      %1016 = vmatprep.subr.bf16.mxu0 0
      %1017 = vmatpush2.bf16.xpose.msra.mxu0 0
      %1018 = vmatprep.subr.bf16.mxu0 0
      %1019 = vmatpush2.bf16.xpose.msra.mxu0 0
      %1020 = vmatprep.subr.bf16.mxu0 0
      %1021 = vmatpush2.bf16.xpose.msra.mxu0 0
      %1022 = vmatprep.subr.bf16.mxu0 0
      %1023 = vmatpush2.bf16.xpose.msra.mxu0 0
      %1024 = vmatprep.subr.bf16.mxu0 0
      %1025 = vmatpush2.bf16.xpose.msra.mxu0 0
      %1026 = vmatprep.subr.bf16.mxu0 0
      %1027 = vmatpush2.bf16.xpose.msra.mxu0 0
      %1028 = vmatprep.mubr.bf16.mxu0 0
      %1029 = vmatmul.mubr.bf16.gmra.mxu0 %v776
      %v1030 = vpop.f32.mrf.mxu0
      %v1031 = vadd.f32 0.0, %v1030
      %v1032 = vpop.f32.mrf.mxu0
      %v1033 = vpop.f32.mrf.mxu0
      %v1034 = vpop.f32.mrf.mxu0
      %1035 = vdwg.mxu0
      %v1037 = vsel %vm342, %v772, 0
      %1039 = vmatprep.subr.bf16.mxu0 0
      %1040 = vmatpush1.bf16.xpose.msra.mxu0 0
      %1041 = vmatprep.subr.bf16.mxu0 0
      %1042 = vmatpush1.bf16.xpose.msra.mxu0 0
      %1043 = vmatprep.subr.bf16.mxu0 0
      %1044 = vmatpush1.bf16.xpose.msra.mxu0 0
      %1045 = vmatprep.subr.bf16.mxu0 0
      %1046 = vmatpush1.bf16.xpose.msra.mxu0 0
      %1047 = vmatprep.subr.bf16.mxu0 0
      %1048 = vmatpush1.bf16.xpose.msra.mxu0 0
      %1049 = vmatprep.subr.bf16.mxu0 0
      %1050 = vmatpush1.bf16.xpose.msra.mxu0 0
      %1051 = vmatprep.subr.bf16.mxu0 0
      %1052 = vmatpush1.bf16.xpose.msra.mxu0 0
      %1053 = vmatprep.subr.bf16.mxu0 0
      %1054 = vmatpush1.bf16.xpose.msra.mxu0 %v1037
      %1055 = vmatprep.subr.bf16.mxu0 0
      %1056 = vmatpush2.bf16.xpose.msra.mxu0 0
      %1057 = vmatprep.subr.bf16.mxu0 0
      %1058 = vmatpush2.bf16.xpose.msra.mxu0 0
      %1059 = vmatprep.subr.bf16.mxu0 0
      %1060 = vmatpush2.bf16.xpose.msra.mxu0 0
      %1061 = vmatprep.subr.bf16.mxu0 0
      %1062 = vmatpush2.bf16.xpose.msra.mxu0 0
      %1063 = vmatprep.subr.bf16.mxu0 0
      %1064 = vmatpush2.bf16.xpose.msra.mxu0 0
      %1065 = vmatprep.subr.bf16.mxu0 0
      %1066 = vmatpush2.bf16.xpose.msra.mxu0 0
      %1067 = vmatprep.subr.bf16.mxu0 0
      %1068 = vmatpush2.bf16.xpose.msra.mxu0 0
      %1069 = vmatprep.subr.bf16.mxu0 0
      %1070 = vmatpush2.bf16.xpose.msra.mxu0 0
      %1071 = vmatprep.mubr.bf16.mxu0 0
      %1072 = vmatmul.mubr.bf16.gmra.mxu0 %v776
      %v1073 = vpop.f32.mrf.mxu0
      %v1074 = vadd.f32 0.0, %v1073
      %v1075 = vpop.f32.mrf.mxu0
      %v1076 = vpop.f32.mrf.mxu0
      %v1077 = vpop.f32.mrf.mxu0
      %1078 = vdwg.mxu0
      %v1080 = vsel %vm342, %v773, 0
      %1082 = vmatprep.subr.bf16.mxu0 0
      %1083 = vmatpush1.bf16.xpose.msra.mxu0 0
      %1084 = vmatprep.subr.bf16.mxu0 0
      %1085 = vmatpush1.bf16.xpose.msra.mxu0 0
      %1086 = vmatprep.subr.bf16.mxu0 0
      %1087 = vmatpush1.bf16.xpose.msra.mxu0 0
      %1088 = vmatprep.subr.bf16.mxu0 0
      %1089 = vmatpush1.bf16.xpose.msra.mxu0 0
      %1090 = vmatprep.subr.bf16.mxu0 0
      %1091 = vmatpush1.bf16.xpose.msra.mxu0 0
      %1092 = vmatprep.subr.bf16.mxu0 0
      %1093 = vmatpush1.bf16.xpose.msra.mxu0 0
      %1094 = vmatprep.subr.bf16.mxu0 0
      %1095 = vmatpush1.bf16.xpose.msra.mxu0 0
      %1096 = vmatprep.subr.bf16.mxu0 0
      %1097 = vmatpush1.bf16.xpose.msra.mxu0 %v1080
      %1098 = vmatprep.subr.bf16.mxu0 0
      %1099 = vmatpush2.bf16.xpose.msra.mxu0 0
      %1100 = vmatprep.subr.bf16.mxu0 0
      %1101 = vmatpush2.bf16.xpose.msra.mxu0 0
      %1102 = vmatprep.subr.bf16.mxu0 0
      %1103 = vmatpush2.bf16.xpose.msra.mxu0 0
      %1104 = vmatprep.subr.bf16.mxu0 0
      %1105 = vmatpush2.bf16.xpose.msra.mxu0 0
      %1106 = vmatprep.subr.bf16.mxu0 0
      %1107 = vmatpush2.bf16.xpose.msra.mxu0 0
      %1108 = vmatprep.subr.bf16.mxu0 0
      %1109 = vmatpush2.bf16.xpose.msra.mxu0 0
      %1110 = vmatprep.subr.bf16.mxu0 0
      %1111 = vmatpush2.bf16.xpose.msra.mxu0 0
      %1112 = vmatprep.subr.bf16.mxu0 0
      %1113 = vmatpush2.bf16.xpose.msra.mxu0 0
      %1114 = vmatprep.mubr.bf16.mxu0 0
      %1115 = vmatmul.mubr.bf16.gmra.mxu0 %v776
      %v1116 = vpop.f32.mrf.mxu0
      %v1117 = vadd.f32 0.0, %v1116
      %v1118 = vpop.f32.mrf.mxu0
      %v1119 = vpop.f32.mrf.mxu0
      %v1120 = vpop.f32.mrf.mxu0
      %1121 = vdwg.mxu0
      %v1122 = vmul.f32 %v816, %v816
      %v1123 = vmul.f32 %v859, %v859
      %v1124 = vmul.f32 %v902, %v902
      %v1125 = vmul.f32 %v945, %v945
      %v1126 = vmul.f32 %v988, %v988
      %v1127 = vmul.f32 %v1031, %v1031
      %v1128 = vmul.f32 %v1074, %v1074
      %v1129 = vmul.f32 %v1117, %v1117
      %vm1130 = vcmask 130048
      %v1131 = vsel %vm1130, %v1122, 0.0
      %v1132 = vrot.slane %v1131, 4
      %v1133 = vadd.f32 %v1131, %v1132
      %v1134 = vrot.slane %v1133, 2
      %v1135 = vadd.f32 %v1133, %v1134
      %v1136 = vrot.slane %v1135, 1
      %v1137 = vadd.f32 %v1135, %v1136
      %v1138 = vsel %vm1130, %v1123, 0.0
      %v1139 = vrot.slane %v1138, 4
      %v1140 = vadd.f32 %v1138, %v1139
      %v1141 = vrot.slane %v1140, 2
      %v1142 = vadd.f32 %v1140, %v1141
      %v1143 = vrot.slane %v1142, 1
      %v1144 = vadd.f32 %v1142, %v1143
      %v1145 = vsel %vm1130, %v1124, 0.0
      %v1146 = vrot.slane %v1145, 4
      %v1147 = vadd.f32 %v1145, %v1146
      %v1148 = vrot.slane %v1147, 2
      %v1149 = vadd.f32 %v1147, %v1148
      %v1150 = vrot.slane %v1149, 1
      %v1151 = vadd.f32 %v1149, %v1150
      %v1152 = vsel %vm1130, %v1125, 0.0
      %v1153 = vrot.slane %v1152, 4
      %v1154 = vadd.f32 %v1152, %v1153
      %v1155 = vrot.slane %v1154, 2
      %v1156 = vadd.f32 %v1154, %v1155
      %v1157 = vrot.slane %v1156, 1
      %v1158 = vadd.f32 %v1156, %v1157
      %v1159 = vsel %vm1130, %v1126, 0.0
      %v1160 = vrot.slane %v1159, 4
      %v1161 = vadd.f32 %v1159, %v1160
      %v1162 = vrot.slane %v1161, 2
      %v1163 = vadd.f32 %v1161, %v1162
      %v1164 = vrot.slane %v1163, 1
      %v1165 = vadd.f32 %v1163, %v1164
      %v1166 = vsel %vm1130, %v1127, 0.0
      %v1167 = vrot.slane %v1166, 4
      %v1168 = vadd.f32 %v1166, %v1167
      %v1169 = vrot.slane %v1168, 2
      %v1170 = vadd.f32 %v1168, %v1169
      %v1171 = vrot.slane %v1170, 1
      %v1172 = vadd.f32 %v1170, %v1171
      %v1173 = vsel %vm1130, %v1128, 0.0
      %v1174 = vrot.slane %v1173, 4
      %v1175 = vadd.f32 %v1173, %v1174
      %v1176 = vrot.slane %v1175, 2
      %v1177 = vadd.f32 %v1175, %v1176
      %v1178 = vrot.slane %v1177, 1
      %v1179 = vadd.f32 %v1177, %v1178
      %v1180 = vsel %vm1130, %v1129, 0.0
      %v1181 = vrot.slane %v1180, 4
      %v1182 = vadd.f32 %v1180, %v1181
      %v1183 = vrot.slane %v1182, 2
      %v1184 = vadd.f32 %v1182, %v1183
      %v1185 = vrot.slane %v1184, 1
      %v1186 = vadd.f32 %v1184, %v1185
      %v1187 = vmax.f32 %v1137, 1e-24
      %v1188 = vmax.f32 %v1144, 1e-24
      %v1189 = vmax.f32 %v1151, 1e-24
      %v1190 = vmax.f32 %v1158, 1e-24
      %v1191 = vmax.f32 %v1165, 1e-24
      %v1192 = vmax.f32 %v1172, 1e-24
      %v1193 = vmax.f32 %v1179, 1e-24
      %v1194 = vmax.f32 %v1186, 1e-24
      %v1195 = vrsqrt.pop %v1187
      %v1196 = vrsqrt.pop %v1188
      %v1197 = vrsqrt.pop %v1189
      %v1198 = vrsqrt.pop %v1190
      %v1199 = vrsqrt.pop %v1191
      %v1200 = vrsqrt.pop %v1192
      %v1201 = vrsqrt.pop %v1193
      %v1202 = vrsqrt.pop %v1194
      %v1203 = vmul.f32 %v816, %v1195
      %v1204 = vmul.f32 %v859, %v1196
      %v1205 = vmul.f32 %v902, %v1197
      %v1206 = vmul.f32 %v945, %v1198
      %v1207 = vmul.f32 %v988, %v1199
      %v1208 = vmul.f32 %v1031, %v1200
      %v1209 = vmul.f32 %v1074, %v1201
      %v1210 = vmul.f32 %v1117, %v1202
      %v1211 = vmul.f32 %v1203, 16.0
      %v1212 = vmul.f32 %v1204, 16.0
      %v1213 = vmul.f32 %v1205, 16.0
      %v1214 = vmul.f32 %v1206, 16.0
      %v1215 = vmul.f32 %v1207, 16.0
      %v1216 = vmul.f32 %v1208, 16.0
      %v1217 = vmul.f32 %v1209, 16.0
      %v1218 = vmul.f32 %v1210, 16.0
      %v1219 = vsel %vm1130, %v1211, -inf
      %1220 = vmax.xlane.f32.xlu0 %v1219
      %v1221 = vpop.xlane.xlu0 %1220
      %v1222 = vsel %vm1130, %v1212, -inf
      %1223 = vmax.xlane.f32.xlu0 %v1222
      %v1224 = vpop.xlane.xlu0 %1223
      %v1225 = vsel %vm1130, %v1213, -inf
      %1226 = vmax.xlane.f32.xlu0 %v1225
      %v1227 = vpop.xlane.xlu0 %1226
      %v1228 = vsel %vm1130, %v1214, -inf
      %1229 = vmax.xlane.f32.xlu0 %v1228
      %v1230 = vpop.xlane.xlu0 %1229
      %v1231 = vsel %vm1130, %v1215, -inf
      %1232 = vmax.xlane.f32.xlu0 %v1231
      %v1233 = vpop.xlane.xlu0 %1232
      %v1234 = vsel %vm1130, %v1216, -inf
      %1235 = vmax.xlane.f32.xlu0 %v1234
      %v1236 = vpop.xlane.xlu0 %1235
      %v1237 = vsel %vm1130, %v1217, -inf
      %1238 = vmax.xlane.f32.xlu0 %v1237
      %v1239 = vpop.xlane.xlu0 %1238
      %v1240 = vsel %vm1130, %v1218, -inf
      %1241 = vmax.xlane.f32.xlu0 %v1240
      %v1242 = vpop.xlane.xlu0 %1241
      %v1243 = vsub.f32 %v1211, %v1221
      %v1244 = vsub.f32 %v1212, %v1224
      %v1245 = vsub.f32 %v1213, %v1227
      %v1246 = vsub.f32 %v1214, %v1230
      %v1247 = vsub.f32 %v1215, %v1233
      %v1248 = vsub.f32 %v1216, %v1236
      %v1249 = vsub.f32 %v1217, %v1239
      %v1250 = vsub.f32 %v1218, %v1242
      %v1251 = vmul.f32 %v1243, 1.442695
      %v1252 = vpow.pop %v1251
      %v1253 = vmul.f32 %v1244, 1.442695
      %v1254 = vpow.pop %v1253
      %v1255 = vmul.f32 %v1245, 1.442695
      %v1256 = vpow.pop %v1255
      %v1257 = vmul.f32 %v1246, 1.442695
      %v1258 = vpow.pop %v1257
      %v1259 = vmul.f32 %v1247, 1.442695
      %v1260 = vpow.pop %v1259
      %v1261 = vmul.f32 %v1248, 1.442695
      %v1262 = vpow.pop %v1261
      %v1263 = vmul.f32 %v1249, 1.442695
      %v1264 = vpow.pop %v1263
      %v1265 = vmul.f32 %v1250, 1.442695
      %v1266 = vpow.pop %v1265
      %v1267 = vsel %vm1130, %v1252, 0.0
      %1268 = vadd.xlane.f32.xlu0 %v1267
      %v1269 = vpop.xlane.xlu0 %1268
      %v1270 = vsel %vm1130, %v1254, 0.0
      %1271 = vadd.xlane.f32.xlu0 %v1270
      %v1272 = vpop.xlane.xlu0 %1271
      %v1273 = vsel %vm1130, %v1256, 0.0
      %1274 = vadd.xlane.f32.xlu0 %v1273
      %v1275 = vpop.xlane.xlu0 %1274
      %v1276 = vsel %vm1130, %v1258, 0.0
      %1277 = vadd.xlane.f32.xlu0 %v1276
      %v1278 = vpop.xlane.xlu0 %1277
      %v1279 = vsel %vm1130, %v1260, 0.0
      %1280 = vadd.xlane.f32.xlu0 %v1279
      %v1281 = vpop.xlane.xlu0 %1280
      %v1282 = vsel %vm1130, %v1262, 0.0
      %1283 = vadd.xlane.f32.xlu0 %v1282
      %v1284 = vpop.xlane.xlu0 %1283
      %v1285 = vsel %vm1130, %v1264, 0.0
      %1286 = vadd.xlane.f32.xlu0 %v1285
      %v1287 = vpop.xlane.xlu0 %1286
      %v1288 = vsel %vm1130, %v1266, 0.0
      %1289 = vadd.xlane.f32.xlu0 %v1288
      %v1290 = vpop.xlane.xlu0 %1289
      %v1291 = vrcp.pop %v1269
      %v1292 = vrcp.pop %v1272
      %v1293 = vrcp.pop %v1275
      %v1294 = vrcp.pop %v1278
      %v1295 = vrcp.pop %v1281
      %v1296 = vrcp.pop %v1284
      %v1297 = vrcp.pop %v1287
      %v1298 = vrcp.pop %v1290
      %v1299 = vmul.f32 %v1252, %v1291
      %v1300 = vmul.f32 %v1254, %v1292
      %v1301 = vmul.f32 %v1256, %v1293
      %v1302 = vmul.f32 %v1258, %v1294
      %v1303 = vmul.f32 %v1260, %v1295
      %v1304 = vmul.f32 %v1262, %v1296
      %v1305 = vmul.f32 %v1264, %v1297
      %v1306 = vmul.f32 %v1266, %v1298
      %v1307 = vpack.c.bf16 %v1299, %v1299
      %v1308 = vpack.c.bf16 %v1300, %v1300
      %v1309 = vpack.c.bf16 %v1301, %v1301
      %v1310 = vpack.c.bf16 %v1302, %v1302
      %v1311 = vpack.c.bf16 %v1303, %v1303
      %v1312 = vpack.c.bf16 %v1304, %v1304
      %v1313 = vpack.c.bf16 %v1305, %v1305
      %v1314 = vpack.c.bf16 %v1306, %v1306
      %v1316 = vsel %vm1130, %v1307, 0
      %1318 = vmatprep.subr.bf16.mxu0 0
      %1319 = vmatpush1.bf16.msra.mxu0 0
      %1320 = vmatprep.subr.bf16.mxu0 0
      %1321 = vmatpush1.bf16.msra.mxu0 0
      %1322 = vmatprep.subr.bf16.mxu0 0
      %1323 = vmatpush1.bf16.msra.mxu0 0
      %1324 = vmatprep.subr.bf16.mxu0 0
      %1325 = vmatpush1.bf16.msra.mxu0 0
      %1326 = vmatprep.subr.bf16.mxu0 0
      %1327 = vmatpush1.bf16.msra.mxu0 0
      %1328 = vmatprep.subr.bf16.mxu0 0
      %1329 = vmatpush1.bf16.msra.mxu0 0
      %1330 = vmatprep.subr.bf16.mxu0 0
      %1331 = vmatpush1.bf16.msra.mxu0 0
      %1332 = vmatprep.subr.bf16.mxu0 0
      %1333 = vmatpush1.bf16.msra.mxu0 %v766
      %1334 = vmatprep.subr.bf16.mxu0 0
      %1335 = vmatpush2.bf16.msra.mxu0 0
      %1336 = vmatprep.subr.bf16.mxu0 0
      %1337 = vmatpush2.bf16.msra.mxu0 0
      %1338 = vmatprep.subr.bf16.mxu0 0
      %1339 = vmatpush2.bf16.msra.mxu0 0
      %1340 = vmatprep.subr.bf16.mxu0 0
      %1341 = vmatpush2.bf16.msra.mxu0 0
      %1342 = vmatprep.subr.bf16.mxu0 0
      %1343 = vmatpush2.bf16.msra.mxu0 0
      %1344 = vmatprep.subr.bf16.mxu0 0
      %1345 = vmatpush2.bf16.msra.mxu0 0
      %1346 = vmatprep.subr.bf16.mxu0 0
      %1347 = vmatpush2.bf16.msra.mxu0 0
      %1348 = vmatprep.subr.bf16.mxu0 0
      %1349 = vmatpush2.bf16.msra.mxu0 0
      %1350 = vmatprep.mubr.bf16.mxu0 0
      %1351 = vmatmul.mubr.bf16.gmra.mxu0 %v1316
      %v1352 = vpop.f32.mrf.mxu0
      %v1353 = vadd.f32 0.0, %v1352
      %v1354 = vpop.f32.mrf.mxu0
      %v1355 = vpop.f32.mrf.mxu0
      %v1356 = vpop.f32.mrf.mxu0
      %1357 = vdwg.mxu0
      %v1359 = vsel %vm1130, %v1308, 0
      %1361 = vmatprep.subr.bf16.mxu0 0
      %1362 = vmatpush1.bf16.msra.mxu0 0
      %1363 = vmatprep.subr.bf16.mxu0 0
      %1364 = vmatpush1.bf16.msra.mxu0 0
      %1365 = vmatprep.subr.bf16.mxu0 0
      %1366 = vmatpush1.bf16.msra.mxu0 0
      %1367 = vmatprep.subr.bf16.mxu0 0
      %1368 = vmatpush1.bf16.msra.mxu0 0
      %1369 = vmatprep.subr.bf16.mxu0 0
      %1370 = vmatpush1.bf16.msra.mxu0 0
      %1371 = vmatprep.subr.bf16.mxu0 0
      %1372 = vmatpush1.bf16.msra.mxu0 0
      %1373 = vmatprep.subr.bf16.mxu0 0
      %1374 = vmatpush1.bf16.msra.mxu0 0
      %1375 = vmatprep.subr.bf16.mxu0 0
      %1376 = vmatpush1.bf16.msra.mxu0 %v767
      %1377 = vmatprep.subr.bf16.mxu0 0
      %1378 = vmatpush2.bf16.msra.mxu0 0
      %1379 = vmatprep.subr.bf16.mxu0 0
      %1380 = vmatpush2.bf16.msra.mxu0 0
      %1381 = vmatprep.subr.bf16.mxu0 0
      %1382 = vmatpush2.bf16.msra.mxu0 0
      %1383 = vmatprep.subr.bf16.mxu0 0
      %1384 = vmatpush2.bf16.msra.mxu0 0
      %1385 = vmatprep.subr.bf16.mxu0 0
      %1386 = vmatpush2.bf16.msra.mxu0 0
      %1387 = vmatprep.subr.bf16.mxu0 0
      %1388 = vmatpush2.bf16.msra.mxu0 0
      %1389 = vmatprep.subr.bf16.mxu0 0
      %1390 = vmatpush2.bf16.msra.mxu0 0
      %1391 = vmatprep.subr.bf16.mxu0 0
      %1392 = vmatpush2.bf16.msra.mxu0 0
      %1393 = vmatprep.mubr.bf16.mxu0 0
      %1394 = vmatmul.mubr.bf16.gmra.mxu0 %v1359
      %v1395 = vpop.f32.mrf.mxu0
      %v1396 = vadd.f32 0.0, %v1395
      %v1397 = vpop.f32.mrf.mxu0
      %v1398 = vpop.f32.mrf.mxu0
      %v1399 = vpop.f32.mrf.mxu0
      %1400 = vdwg.mxu0
      %v1402 = vsel %vm1130, %v1309, 0
      %1404 = vmatprep.subr.bf16.mxu0 0
      %1405 = vmatpush1.bf16.msra.mxu0 0
      %1406 = vmatprep.subr.bf16.mxu0 0
      %1407 = vmatpush1.bf16.msra.mxu0 0
      %1408 = vmatprep.subr.bf16.mxu0 0
      %1409 = vmatpush1.bf16.msra.mxu0 0
      %1410 = vmatprep.subr.bf16.mxu0 0
      %1411 = vmatpush1.bf16.msra.mxu0 0
      %1412 = vmatprep.subr.bf16.mxu0 0
      %1413 = vmatpush1.bf16.msra.mxu0 0
      %1414 = vmatprep.subr.bf16.mxu0 0
      %1415 = vmatpush1.bf16.msra.mxu0 0
      %1416 = vmatprep.subr.bf16.mxu0 0
      %1417 = vmatpush1.bf16.msra.mxu0 0
      %1418 = vmatprep.subr.bf16.mxu0 0
      %1419 = vmatpush1.bf16.msra.mxu0 %v768
      %1420 = vmatprep.subr.bf16.mxu0 0
      %1421 = vmatpush2.bf16.msra.mxu0 0
      %1422 = vmatprep.subr.bf16.mxu0 0
      %1423 = vmatpush2.bf16.msra.mxu0 0
      %1424 = vmatprep.subr.bf16.mxu0 0
      %1425 = vmatpush2.bf16.msra.mxu0 0
      %1426 = vmatprep.subr.bf16.mxu0 0
      %1427 = vmatpush2.bf16.msra.mxu0 0
      %1428 = vmatprep.subr.bf16.mxu0 0
      %1429 = vmatpush2.bf16.msra.mxu0 0
      %1430 = vmatprep.subr.bf16.mxu0 0
      %1431 = vmatpush2.bf16.msra.mxu0 0
      %1432 = vmatprep.subr.bf16.mxu0 0
      %1433 = vmatpush2.bf16.msra.mxu0 0
      %1434 = vmatprep.subr.bf16.mxu0 0
      %1435 = vmatpush2.bf16.msra.mxu0 0
      %1436 = vmatprep.mubr.bf16.mxu0 0
      %1437 = vmatmul.mubr.bf16.gmra.mxu0 %v1402
      %v1438 = vpop.f32.mrf.mxu0
      %v1439 = vadd.f32 0.0, %v1438
      %v1440 = vpop.f32.mrf.mxu0
      %v1441 = vpop.f32.mrf.mxu0
      %v1442 = vpop.f32.mrf.mxu0
      %1443 = vdwg.mxu0
      %v1445 = vsel %vm1130, %v1310, 0
      %1447 = vmatprep.subr.bf16.mxu0 0
      %1448 = vmatpush1.bf16.msra.mxu0 0
      %1449 = vmatprep.subr.bf16.mxu0 0
      %1450 = vmatpush1.bf16.msra.mxu0 0
      %1451 = vmatprep.subr.bf16.mxu0 0
      %1452 = vmatpush1.bf16.msra.mxu0 0
      %1453 = vmatprep.subr.bf16.mxu0 0
      %1454 = vmatpush1.bf16.msra.mxu0 0
      %1455 = vmatprep.subr.bf16.mxu0 0
      %1456 = vmatpush1.bf16.msra.mxu0 0
      %1457 = vmatprep.subr.bf16.mxu0 0
      %1458 = vmatpush1.bf16.msra.mxu0 0
      %1459 = vmatprep.subr.bf16.mxu0 0
      %1460 = vmatpush1.bf16.msra.mxu0 0
      %1461 = vmatprep.subr.bf16.mxu0 0
      %1462 = vmatpush1.bf16.msra.mxu0 %v769
      %1463 = vmatprep.subr.bf16.mxu0 0
      %1464 = vmatpush2.bf16.msra.mxu0 0
      %1465 = vmatprep.subr.bf16.mxu0 0
      %1466 = vmatpush2.bf16.msra.mxu0 0
      %1467 = vmatprep.subr.bf16.mxu0 0
      %1468 = vmatpush2.bf16.msra.mxu0 0
      %1469 = vmatprep.subr.bf16.mxu0 0
      %1470 = vmatpush2.bf16.msra.mxu0 0
      %1471 = vmatprep.subr.bf16.mxu0 0
      %1472 = vmatpush2.bf16.msra.mxu0 0
      %1473 = vmatprep.subr.bf16.mxu0 0
      %1474 = vmatpush2.bf16.msra.mxu0 0
      %1475 = vmatprep.subr.bf16.mxu0 0
      %1476 = vmatpush2.bf16.msra.mxu0 0
      %1477 = vmatprep.subr.bf16.mxu0 0
      %1478 = vmatpush2.bf16.msra.mxu0 0
      %1479 = vmatprep.mubr.bf16.mxu0 0
      %1480 = vmatmul.mubr.bf16.gmra.mxu0 %v1445
      %v1481 = vpop.f32.mrf.mxu0
      %v1482 = vadd.f32 0.0, %v1481
      %v1483 = vpop.f32.mrf.mxu0
      %v1484 = vpop.f32.mrf.mxu0
      %v1485 = vpop.f32.mrf.mxu0
      %1486 = vdwg.mxu0
      %v1488 = vsel %vm1130, %v1311, 0
      %1490 = vmatprep.subr.bf16.mxu0 0
      %1491 = vmatpush1.bf16.msra.mxu0 0
      %1492 = vmatprep.subr.bf16.mxu0 0
      %1493 = vmatpush1.bf16.msra.mxu0 0
      %1494 = vmatprep.subr.bf16.mxu0 0
      %1495 = vmatpush1.bf16.msra.mxu0 0
      %1496 = vmatprep.subr.bf16.mxu0 0
      %1497 = vmatpush1.bf16.msra.mxu0 0
      %1498 = vmatprep.subr.bf16.mxu0 0
      %1499 = vmatpush1.bf16.msra.mxu0 0
      %1500 = vmatprep.subr.bf16.mxu0 0
      %1501 = vmatpush1.bf16.msra.mxu0 0
      %1502 = vmatprep.subr.bf16.mxu0 0
      %1503 = vmatpush1.bf16.msra.mxu0 0
      %1504 = vmatprep.subr.bf16.mxu0 0
      %1505 = vmatpush1.bf16.msra.mxu0 %v770
      %1506 = vmatprep.subr.bf16.mxu0 0
      %1507 = vmatpush2.bf16.msra.mxu0 0
      %1508 = vmatprep.subr.bf16.mxu0 0
      %1509 = vmatpush2.bf16.msra.mxu0 0
      %1510 = vmatprep.subr.bf16.mxu0 0
      %1511 = vmatpush2.bf16.msra.mxu0 0
      %1512 = vmatprep.subr.bf16.mxu0 0
      %1513 = vmatpush2.bf16.msra.mxu0 0
      %1514 = vmatprep.subr.bf16.mxu0 0
      %1515 = vmatpush2.bf16.msra.mxu0 0
      %1516 = vmatprep.subr.bf16.mxu0 0
      %1517 = vmatpush2.bf16.msra.mxu0 0
      %1518 = vmatprep.subr.bf16.mxu0 0
      %1519 = vmatpush2.bf16.msra.mxu0 0
      %1520 = vmatprep.subr.bf16.mxu0 0
      %1521 = vmatpush2.bf16.msra.mxu0 0
      %1522 = vmatprep.mubr.bf16.mxu0 0
      %1523 = vmatmul.mubr.bf16.gmra.mxu0 %v1488
      %v1524 = vpop.f32.mrf.mxu0
      %v1525 = vadd.f32 0.0, %v1524
      %v1526 = vpop.f32.mrf.mxu0
      %v1527 = vpop.f32.mrf.mxu0
      %v1528 = vpop.f32.mrf.mxu0
      %1529 = vdwg.mxu0
      %v1531 = vsel %vm1130, %v1312, 0
      %1533 = vmatprep.subr.bf16.mxu0 0
      %1534 = vmatpush1.bf16.msra.mxu0 0
      %1535 = vmatprep.subr.bf16.mxu0 0
      %1536 = vmatpush1.bf16.msra.mxu0 0
      %1537 = vmatprep.subr.bf16.mxu0 0
      %1538 = vmatpush1.bf16.msra.mxu0 0
      %1539 = vmatprep.subr.bf16.mxu0 0
      %1540 = vmatpush1.bf16.msra.mxu0 0
      %1541 = vmatprep.subr.bf16.mxu0 0
      %1542 = vmatpush1.bf16.msra.mxu0 0
      %1543 = vmatprep.subr.bf16.mxu0 0
      %1544 = vmatpush1.bf16.msra.mxu0 0
      %1545 = vmatprep.subr.bf16.mxu0 0
      %1546 = vmatpush1.bf16.msra.mxu0 0
      %1547 = vmatprep.subr.bf16.mxu0 0
      %1548 = vmatpush1.bf16.msra.mxu0 %v771
      %1549 = vmatprep.subr.bf16.mxu0 0
      %1550 = vmatpush2.bf16.msra.mxu0 0
      %1551 = vmatprep.subr.bf16.mxu0 0
      %1552 = vmatpush2.bf16.msra.mxu0 0
      %1553 = vmatprep.subr.bf16.mxu0 0
      %1554 = vmatpush2.bf16.msra.mxu0 0
      %1555 = vmatprep.subr.bf16.mxu0 0
      %1556 = vmatpush2.bf16.msra.mxu0 0
      %1557 = vmatprep.subr.bf16.mxu0 0
      %1558 = vmatpush2.bf16.msra.mxu0 0
      %1559 = vmatprep.subr.bf16.mxu0 0
      %1560 = vmatpush2.bf16.msra.mxu0 0
      %1561 = vmatprep.subr.bf16.mxu0 0
      %1562 = vmatpush2.bf16.msra.mxu0 0
      %1563 = vmatprep.subr.bf16.mxu0 0
      %1564 = vmatpush2.bf16.msra.mxu0 0
      %1565 = vmatprep.mubr.bf16.mxu0 0
      %1566 = vmatmul.mubr.bf16.gmra.mxu0 %v1531
      %v1567 = vpop.f32.mrf.mxu0
      %v1568 = vadd.f32 0.0, %v1567
      %v1569 = vpop.f32.mrf.mxu0
      %v1570 = vpop.f32.mrf.mxu0
      %v1571 = vpop.f32.mrf.mxu0
      %1572 = vdwg.mxu0
      %v1574 = vsel %vm1130, %v1313, 0
      %1576 = vmatprep.subr.bf16.mxu0 0
      %1577 = vmatpush1.bf16.msra.mxu0 0
      %1578 = vmatprep.subr.bf16.mxu0 0
      %1579 = vmatpush1.bf16.msra.mxu0 0
      %1580 = vmatprep.subr.bf16.mxu0 0
      %1581 = vmatpush1.bf16.msra.mxu0 0
      %1582 = vmatprep.subr.bf16.mxu0 0
      %1583 = vmatpush1.bf16.msra.mxu0 0
      %1584 = vmatprep.subr.bf16.mxu0 0
      %1585 = vmatpush1.bf16.msra.mxu0 0
      %1586 = vmatprep.subr.bf16.mxu0 0
      %1587 = vmatpush1.bf16.msra.mxu0 0
      %1588 = vmatprep.subr.bf16.mxu0 0
      %1589 = vmatpush1.bf16.msra.mxu0 0
      %1590 = vmatprep.subr.bf16.mxu0 0
      %1591 = vmatpush1.bf16.msra.mxu0 %v772
      %1592 = vmatprep.subr.bf16.mxu0 0
      %1593 = vmatpush2.bf16.msra.mxu0 0
      %1594 = vmatprep.subr.bf16.mxu0 0
      %1595 = vmatpush2.bf16.msra.mxu0 0
      %1596 = vmatprep.subr.bf16.mxu0 0
      %1597 = vmatpush2.bf16.msra.mxu0 0
      %1598 = vmatprep.subr.bf16.mxu0 0
      %1599 = vmatpush2.bf16.msra.mxu0 0
      %1600 = vmatprep.subr.bf16.mxu0 0
      %1601 = vmatpush2.bf16.msra.mxu0 0
      %1602 = vmatprep.subr.bf16.mxu0 0
      %1603 = vmatpush2.bf16.msra.mxu0 0
      %1604 = vmatprep.subr.bf16.mxu0 0
      %1605 = vmatpush2.bf16.msra.mxu0 0
      %1606 = vmatprep.subr.bf16.mxu0 0
      %1607 = vmatpush2.bf16.msra.mxu0 0
      %1608 = vmatprep.mubr.bf16.mxu0 0
      %1609 = vmatmul.mubr.bf16.gmra.mxu0 %v1574
      %v1610 = vpop.f32.mrf.mxu0
      %v1611 = vadd.f32 0.0, %v1610
      %v1612 = vpop.f32.mrf.mxu0
      %v1613 = vpop.f32.mrf.mxu0
      %v1614 = vpop.f32.mrf.mxu0
      %1615 = vdwg.mxu0
      %v1617 = vsel %vm1130, %v1314, 0
      %1619 = vmatprep.subr.bf16.mxu0 0
      %1620 = vmatpush1.bf16.msra.mxu0 0
      %1621 = vmatprep.subr.bf16.mxu0 0
      %1622 = vmatpush1.bf16.msra.mxu0 0
      %1623 = vmatprep.subr.bf16.mxu0 0
      %1624 = vmatpush1.bf16.msra.mxu0 0
      %1625 = vmatprep.subr.bf16.mxu0 0
      %1626 = vmatpush1.bf16.msra.mxu0 0
      %1627 = vmatprep.subr.bf16.mxu0 0
      %1628 = vmatpush1.bf16.msra.mxu0 0
      %1629 = vmatprep.subr.bf16.mxu0 0
      %1630 = vmatpush1.bf16.msra.mxu0 0
      %1631 = vmatprep.subr.bf16.mxu0 0
      %1632 = vmatpush1.bf16.msra.mxu0 0
      %1633 = vmatprep.subr.bf16.mxu0 0
      %1634 = vmatpush1.bf16.msra.mxu0 %v773
      %1635 = vmatprep.subr.bf16.mxu0 0
      %1636 = vmatpush2.bf16.msra.mxu0 0
      %1637 = vmatprep.subr.bf16.mxu0 0
      %1638 = vmatpush2.bf16.msra.mxu0 0
      %1639 = vmatprep.subr.bf16.mxu0 0
      %1640 = vmatpush2.bf16.msra.mxu0 0
      %1641 = vmatprep.subr.bf16.mxu0 0
      %1642 = vmatpush2.bf16.msra.mxu0 0
      %1643 = vmatprep.subr.bf16.mxu0 0
      %1644 = vmatpush2.bf16.msra.mxu0 0
      %1645 = vmatprep.subr.bf16.mxu0 0
      %1646 = vmatpush2.bf16.msra.mxu0 0
      %1647 = vmatprep.subr.bf16.mxu0 0
      %1648 = vmatpush2.bf16.msra.mxu0 0
      %1649 = vmatprep.subr.bf16.mxu0 0
      %1650 = vmatpush2.bf16.msra.mxu0 0
      %1651 = vmatprep.mubr.bf16.mxu0 0
      %1652 = vmatmul.mubr.bf16.gmra.mxu0 %v1617
      %v1653 = vpop.f32.mrf.mxu0
      %v1654 = vadd.f32 0.0, %v1653
      %v1655 = vpop.f32.mrf.mxu0
      %v1656 = vpop.f32.mrf.mxu0
      %v1657 = vpop.f32.mrf.mxu0
      %1658 = vdwg.mxu0
      %v1659 = vmul.f32 %v1353, %v1353
      %v1660 = vmul.f32 %v1396, %v1396
      %v1661 = vmul.f32 %v1439, %v1439
      %v1662 = vmul.f32 %v1482, %v1482
      %v1663 = vmul.f32 %v1525, %v1525
      %v1664 = vmul.f32 %v1568, %v1568
      %v1665 = vmul.f32 %v1611, %v1611
      %v1666 = vmul.f32 %v1654, %v1654
      %v1667 = vsel %vm342, %v1659, 0.0
      %v1668 = vrot.slane %v1667, 4
      %v1669 = vadd.f32 %v1667, %v1668
      %v1670 = vrot.slane %v1669, 2
      %v1671 = vadd.f32 %v1669, %v1670
      %v1672 = vrot.slane %v1671, 1
      %v1673 = vadd.f32 %v1671, %v1672
      %v1674 = vsel %vm342, %v1660, 0.0
      %v1675 = vrot.slane %v1674, 4
      %v1676 = vadd.f32 %v1674, %v1675
      %v1677 = vrot.slane %v1676, 2
      %v1678 = vadd.f32 %v1676, %v1677
      %v1679 = vrot.slane %v1678, 1
      %v1680 = vadd.f32 %v1678, %v1679
      %v1681 = vsel %vm342, %v1661, 0.0
      %v1682 = vrot.slane %v1681, 4
      %v1683 = vadd.f32 %v1681, %v1682
      %v1684 = vrot.slane %v1683, 2
      %v1685 = vadd.f32 %v1683, %v1684
      %v1686 = vrot.slane %v1685, 1
      %v1687 = vadd.f32 %v1685, %v1686
      %v1688 = vsel %vm342, %v1662, 0.0
      %v1689 = vrot.slane %v1688, 4
      %v1690 = vadd.f32 %v1688, %v1689
      %v1691 = vrot.slane %v1690, 2
      %v1692 = vadd.f32 %v1690, %v1691
      %v1693 = vrot.slane %v1692, 1
      %v1694 = vadd.f32 %v1692, %v1693
      %v1695 = vsel %vm342, %v1663, 0.0
      %v1696 = vrot.slane %v1695, 4
      %v1697 = vadd.f32 %v1695, %v1696
      %v1698 = vrot.slane %v1697, 2
      %v1699 = vadd.f32 %v1697, %v1698
      %v1700 = vrot.slane %v1699, 1
      %v1701 = vadd.f32 %v1699, %v1700
      %v1702 = vsel %vm342, %v1664, 0.0
      %v1703 = vrot.slane %v1702, 4
      %v1704 = vadd.f32 %v1702, %v1703
      %v1705 = vrot.slane %v1704, 2
      %v1706 = vadd.f32 %v1704, %v1705
      %v1707 = vrot.slane %v1706, 1
      %v1708 = vadd.f32 %v1706, %v1707
      %v1709 = vsel %vm342, %v1665, 0.0
      %v1710 = vrot.slane %v1709, 4
      %v1711 = vadd.f32 %v1709, %v1710
      %v1712 = vrot.slane %v1711, 2
      %v1713 = vadd.f32 %v1711, %v1712
      %v1714 = vrot.slane %v1713, 1
      %v1715 = vadd.f32 %v1713, %v1714
      %v1716 = vsel %vm342, %v1666, 0.0
      %v1717 = vrot.slane %v1716, 4
      %v1718 = vadd.f32 %v1716, %v1717
      %v1719 = vrot.slane %v1718, 2
      %v1720 = vadd.f32 %v1718, %v1719
      %v1721 = vrot.slane %v1720, 1
      %v1722 = vadd.f32 %v1720, %v1721
      %v1723 = vmax.f32 %v1673, 1e-24
      %v1724 = vmax.f32 %v1680, 1e-24
      %v1725 = vmax.f32 %v1687, 1e-24
      %v1726 = vmax.f32 %v1694, 1e-24
      %v1727 = vmax.f32 %v1701, 1e-24
      %v1728 = vmax.f32 %v1708, 1e-24
      %v1729 = vmax.f32 %v1715, 1e-24
      %v1730 = vmax.f32 %v1722, 1e-24
      %v1731 = vrsqrt.pop %v1723
      %v1732 = vrsqrt.pop %v1724
      %v1733 = vrsqrt.pop %v1725
      %v1734 = vrsqrt.pop %v1726
      %v1735 = vrsqrt.pop %v1727
      %v1736 = vrsqrt.pop %v1728
      %v1737 = vrsqrt.pop %v1729
      %v1738 = vrsqrt.pop %v1730
      %v1739 = vmul.f32 %v1353, %v1731
      %v1740 = vmul.f32 %v1396, %v1732
      %v1741 = vmul.f32 %v1439, %v1733
      %v1742 = vmul.f32 %v1482, %v1734
      %v1743 = vmul.f32 %v1525, %v1735
      %v1744 = vmul.f32 %v1568, %v1736
      %v1745 = vmul.f32 %v1611, %v1737
      %v1746 = vmul.f32 %v1654, %v1738
      %v1747 = vld [vmem:[%s7] sm:$0xf]
      %v1748 = vunpack.c.l.bf16 %v1747
      %v1749 = vmul.f32 %v1748, %v1739
      %v1750 = vmul.f32 %v1748, %v1740
      %v1751 = vmul.f32 %v1748, %v1741
      %v1752 = vmul.f32 %v1748, %v1742
      %v1753 = vmul.f32 %v1748, %v1743
      %v1754 = vmul.f32 %v1748, %v1744
      %v1755 = vmul.f32 %v1748, %v1745
      %v1756 = vmul.f32 %v1748, %v1746
      %v1757 = vsel %vm342, %v1749, 0.0
      %1758 = vadd.xlane.f32.xlu0 %v1757
      %v1759 = vpop.xlane.xlu0 %1758
      %v1760 = vsel %vm342, %v1750, 0.0
      %1761 = vadd.xlane.f32.xlu0 %v1760
      %v1762 = vpop.xlane.xlu0 %1761
      %v1763 = vsel %vm342, %v1751, 0.0
      %1764 = vadd.xlane.f32.xlu0 %v1763
      %v1765 = vpop.xlane.xlu0 %1764
      %v1766 = vsel %vm342, %v1752, 0.0
      %1767 = vadd.xlane.f32.xlu0 %v1766
      %v1768 = vpop.xlane.xlu0 %1767
      %v1769 = vsel %vm342, %v1753, 0.0
      %1770 = vadd.xlane.f32.xlu0 %v1769
      %v1771 = vpop.xlane.xlu0 %1770
      %v1772 = vsel %vm342, %v1754, 0.0
      %1773 = vadd.xlane.f32.xlu0 %v1772
      %v1774 = vpop.xlane.xlu0 %1773
      %v1775 = vsel %vm342, %v1755, 0.0
      %1776 = vadd.xlane.f32.xlu0 %v1775
      %v1777 = vpop.xlane.xlu0 %1776
      %v1778 = vsel %vm342, %v1756, 0.0
      %1779 = vadd.xlane.f32.xlu0 %v1778
      %v1780 = vpop.xlane.xlu0 %1779
      %v1781 = vmul.f32 %v1759, %v1759
      %v1782 = vmul.f32 %v1762, %v1762
      %v1783 = vmul.f32 %v1765, %v1765
      %v1784 = vmul.f32 %v1768, %v1768
      %v1785 = vmul.f32 %v1771, %v1771
      %v1786 = vmul.f32 %v1774, %v1774
      %v1787 = vmul.f32 %v1777, %v1777
      %v1788 = vmul.f32 %v1780, %v1780
      %v1797 = vlaneseq
      %v1798 = vand.u32 %v1797, 127
      %v1799 = vlaneseq
      %v1800 = vshrl.u32 %v1799, 7
      %v1801 = vsub.s32 %v1798, %v1800
      %v1802 = vrot.slane %v1781, %v1801
      %v1803 = vlaneseq
      %v1804 = vshrl.u32 %v1803, 7
      %v1805 = vsub.s32 %v1798, %v1804
      %v1806 = vrot.slane %v1782, %v1805
      %v1807 = vlaneseq
      %v1808 = vshrl.u32 %v1807, 7
      %v1809 = vsub.s32 %v1798, %v1808
      %v1810 = vrot.slane %v1783, %v1809
      %v1811 = vlaneseq
      %v1812 = vshrl.u32 %v1811, 7
      %v1813 = vsub.s32 %v1798, %v1812
      %v1814 = vrot.slane %v1784, %v1813
      %v1815 = vlaneseq
      %v1816 = vshrl.u32 %v1815, 7
      %v1817 = vsub.s32 %v1798, %v1816
      %v1818 = vrot.slane %v1785, %v1817
      %v1819 = vlaneseq
      %v1820 = vshrl.u32 %v1819, 7
      %v1821 = vsub.s32 %v1798, %v1820
      %v1822 = vrot.slane %v1786, %v1821
      %v1823 = vlaneseq
      %v1824 = vshrl.u32 %v1823, 7
      %v1825 = vsub.s32 %v1798, %v1824
      %v1826 = vrot.slane %v1787, %v1825
      %v1827 = vlaneseq
      %v1828 = vshrl.u32 %v1827, 7
      %v1829 = vsub.s32 %v1798, %v1828
      %v1830 = vrot.slane %v1788, %v1829
      %vm1831 = vcmask 1041409
      %v1832 = vsel %vm1831, %v1806, %v1802
      %vm1833 = vcmask 1042434
      %v1834 = vsel %vm1833, %v1810, %v1832
      %vm1835 = vcmask 1043459
      %v1836 = vsel %vm1835, %v1814, %v1834
      %vm1837 = vcmask 1044484
      %v1838 = vsel %vm1837, %v1818, %v1836
      %vm1839 = vcmask 1045509
      %v1840 = vsel %vm1839, %v1822, %v1838
      %vm1841 = vcmask 1046534
      %v1842 = vsel %vm1841, %v1826, %v1840
      %vm1843 = vcmask 1047559
      %v1844 = vsel %vm1843, %v1830, %v1842
      %vm1846 = vcmask 64512
      %v1847 = vsel %vm1846, %v1844, 0.0
      %1848 = vadd.xlane.f32.xlu0 %v1847
      %v1849 = vpop.xlane.xlu0 %1848
      %v1850 = vadd.f32 %v1849, 1e-12
      %v1851 = vrsqrt.pop %v1850
      %v1853 = vlaneseq
      %v1854 = vshrl.u32 %v1853, 7
      %v1855 = vsub.s32 0, %v1854
      %v1856 = vrot.slane %v1851, %v1855
      %v1857 = vlaneseq
      %v1858 = vshrl.u32 %v1857, 7
      %v1859 = vsub.s32 1, %v1858
      %v1860 = vrot.slane %v1851, %v1859
      %v1861 = vlaneseq
      %v1862 = vshrl.u32 %v1861, 7
      %v1863 = vsub.s32 2, %v1862
      %v1864 = vrot.slane %v1851, %v1863
      %v1865 = vlaneseq
      %v1866 = vshrl.u32 %v1865, 7
      %v1867 = vsub.s32 3, %v1866
      %v1868 = vrot.slane %v1851, %v1867
      %v1869 = vlaneseq
      %v1870 = vshrl.u32 %v1869, 7
      %v1871 = vsub.s32 4, %v1870
      %v1872 = vrot.slane %v1851, %v1871
      %v1873 = vlaneseq
      %v1874 = vshrl.u32 %v1873, 7
      %v1875 = vsub.s32 5, %v1874
      %v1876 = vrot.slane %v1851, %v1875
      %v1877 = vlaneseq
      %v1878 = vshrl.u32 %v1877, 7
      %v1879 = vsub.s32 6, %v1878
      %v1880 = vrot.slane %v1851, %v1879
      %v1881 = vlaneseq
      %v1882 = vshrl.u32 %v1881, 7
      %v1883 = vsub.s32 7, %v1882
      %v1884 = vrot.slane %v1851, %v1883
      %v1893 = vmul.f32 %v1759, %v1856
      %v1894 = vmul.f32 %v1762, %v1860
      %v1895 = vmul.f32 %v1765, %v1864
      %v1896 = vmul.f32 %v1768, %v1868
      %v1897 = vmul.f32 %v1771, %v1872
      %v1898 = vmul.f32 %v1774, %v1876
      %v1899 = vmul.f32 %v1777, %v1880
      %v1900 = vmul.f32 %v1780, %v1884
      %1909 = vset.pattern.permute.xlu0 0
      %1910 = vperm.xlu0 %1909, %v1893
      %v1911 = vpop.permute.xlu0 %1910
      %1912 = vset.pattern.permute.xlu0 0
      %1913 = vperm.xlu0 %1912, %v1894
      %v1914 = vpop.permute.xlu0 %1913
      %1915 = vset.pattern.permute.xlu0 0
      %1916 = vperm.xlu0 %1915, %v1895
      %v1917 = vpop.permute.xlu0 %1916
      %1918 = vset.pattern.permute.xlu0 0
      %1919 = vperm.xlu0 %1918, %v1896
      %v1920 = vpop.permute.xlu0 %1919
      %1921 = vset.pattern.permute.xlu0 0
      %1922 = vperm.xlu0 %1921, %v1897
      %v1923 = vpop.permute.xlu0 %1922
      %1924 = vset.pattern.permute.xlu0 0
      %1925 = vperm.xlu0 %1924, %v1898
      %v1926 = vpop.permute.xlu0 %1925
      %1927 = vset.pattern.permute.xlu0 0
      %1928 = vperm.xlu0 %1927, %v1899
      %v1929 = vpop.permute.xlu0 %1928
      %1930 = vset.pattern.permute.xlu0 0
      %1931 = vperm.xlu0 %1930, %v1900
      %v1932 = vpop.permute.xlu0 %1931
      %v1933 = vlaneseq
      %v1934 = vshrl.u32 %v1933, 7
      %v1935 = vsub.s32 %v1798, %v1934
      %v1936 = vrot.slane %v1911, %v1935
      %v1937 = vlaneseq
      %v1938 = vshrl.u32 %v1937, 7
      %v1939 = vsub.s32 %v1798, %v1938
      %v1940 = vrot.slane %v1914, %v1939
      %v1941 = vlaneseq
      %v1942 = vshrl.u32 %v1941, 7
      %v1943 = vsub.s32 %v1798, %v1942
      %v1944 = vrot.slane %v1917, %v1943
      %v1945 = vlaneseq
      %v1946 = vshrl.u32 %v1945, 7
      %v1947 = vsub.s32 %v1798, %v1946
      %v1948 = vrot.slane %v1920, %v1947
      %v1949 = vlaneseq
      %v1950 = vshrl.u32 %v1949, 7
      %v1951 = vsub.s32 %v1798, %v1950
      %v1952 = vrot.slane %v1923, %v1951
      %v1953 = vlaneseq
      %v1954 = vshrl.u32 %v1953, 7
      %v1955 = vsub.s32 %v1798, %v1954
      %v1956 = vrot.slane %v1926, %v1955
      %v1957 = vlaneseq
      %v1958 = vshrl.u32 %v1957, 7
      %v1959 = vsub.s32 %v1798, %v1958
      %v1960 = vrot.slane %v1929, %v1959
      %v1961 = vlaneseq
      %v1962 = vshrl.u32 %v1961, 7
      %v1963 = vsub.s32 %v1798, %v1962
      %v1964 = vrot.slane %v1932, %v1963
      %v1965 = vsel %vm1831, %v1940, %v1936
      %v1966 = vsel %vm1833, %v1944, %v1965
      %v1967 = vsel %vm1835, %v1948, %v1966
      %v1968 = vsel %vm1837, %v1952, %v1967
      %v1969 = vsel %vm1839, %v1956, %v1968
      %v1970 = vsel %vm1841, %v1960, %v1969
      %v1971 = vsel %vm1843, %v1964, %v1970
      %1973 = vst.msk [vmem:[%s308] sm:$0xff] %vm1846, %v1971
      %p1974 = scmp.lt.s32.totalorder %s19, 1
      %s1975 = scalar_select %p1974, %s19, 1
      %s1976 = smul.addr %s1975, 8
      %s1977 = scalar_lea.vmem %s8, %s1976
      // Predicated region
      $region53: #{cmn_forward.1} parent=51 // pred_check
        %p1978 = pneg %p210
      $region54: #{cmn_forward.1} parent=51 // pred_check_branch
        %1980 = sbr.rel (%p1978) target = $region56
      $region55: #{cmn_forward.1} parent=51 // pred_region
        _
      $region56: #{cmn_forward.1} parent=51 // pred_fallthru
        _
    $region52: #{cmn_forward.1} parent=5 // pred_fallthru
      _
    %p1981 = scmp.le.s32.totalorder 2, %s14
    // Predicated region
    $region57: #{cmn_forward.1} parent=5 // pred_check
      %p1982 = pneg %p1981
    $region58: #{cmn_forward.1} parent=5 // pred_check_branch
      %1984 = sbr.rel (%p1982) target = $region60
    $region59: #{cmn_forward.1} parent=5 // pred_region
      %s1985 = ssub.s32 %s14, 2
      // Predicated region
      $region61: #{cmn_forward.1} parent=59 // pred_check
        %p1986 = pneg %p216
      $region62: #{cmn_forward.1} parent=59 // pred_check_branch
        %1988 = sbr.rel (%p1986) target = $region64
      $region63: #{cmn_forward.1} parent=59 // pred_region
        %p1989 = scmp.lt.s32.totalorder %s20, 1
        %s1990 = scalar_select %p1989, %s20, 1
        %s1991 = smul.addr %s1990, 8
        %s1992 = scalar_lea.vmem %s8, %s1991
      $region64: #{cmn_forward.1} parent=59 // pred_fallthru
        _
    $region60: #{cmn_forward.1} parent=5 // pred_fallthru
      _
  $region6: #{cmn_forward.1} parent=0 // loop_footer
    %s18 = sadd.s32 1, %s14
  $region7: #{cmn_forward.1} parent=0 // loop_footer_branch
    %13 = sbr.rel target = $region3
  $region8: #{cmn_forward.1} parent=0 // loop_exit
    _

// kernel: cmn_forward.1
$region0: #{cmn_forward.1}
  #allocation0 [shape = 'u32[]', space=smem, size = 0x4, offset = 0x4, fixed_abs, tag = 'smem constant byte address 0x4 - core index']
  #allocation1 [shape = 'u32[144,128]{1,0:T(1,128)}', space=vmem, size = 0x12000, scoped, tag = 'internal scratch']
  %s0 = inlined_call_operand.vmem [shape: bf16[16,16,64], index: 0, kind: input, shape index: {}]
  %s1 = inlined_call_operand.vmem [shape: f32[1,64], index: 1, kind: input, shape index: {}]
  %s2 = inlined_call_operand.vmem [shape: f32[1,64], index: 2, kind: input, shape index: {}]
  %s3 = inlined_call_operand.vmem [shape: bf16[64,64], index: 3, kind: input, shape index: {}]
  %s4 = inlined_call_operand.vmem [shape: f32[1,64], index: 4, kind: input, shape index: {}]
  %s5 = inlined_call_operand.vmem [shape: bf16[64,8], index: 5, kind: input, shape index: {}]
  %s6 = inlined_call_operand.vmem [shape: bf16[8,64], index: 6, kind: input, shape index: {}]
  %s7 = inlined_call_operand.vmem [shape: bf16[8,64], index: 7, kind: input, shape index: {}]
  %s8 = inlined_call_operand.vmem [shape: f32[16,8], index: 8, kind: output, shape index: {}]
  %s9 = sld [smem:[#allocation0]]
  $region65: #{cmn_forward.1} parent=0
    _
  %s11 = ssub.s32 1, %s9
  %s12 = scalar_select 0, %s11, %s9
  loop: start=0, step=1, limit=4
  $region2: #{cmn_forward.1} parent=0 // loop_pre_header
    _
  $region3: #{cmn_forward.1} parent=0 // loop_header
    %s14 = sphi 0, %s18
    %p15 = scmp.ge.s32.totalorder %s14, 4
    %s24 = sphi 0, %s26
    %s27 = sphi 0, %s24
    %s28 = sphi 0, %s27
    %s44 = sphi 0, %s28
    %s48 = sphi 0, %s48
    %s50 = sphi 0, %s48
    %s51 = sphi 0, %s50
    %s65 = sphi 0, %s51
    %s69 = sphi 0, %s69
    %s71 = sphi 0, %s69
    %s72 = sphi 0, %s71
    %s86 = sphi 0, %s72
    %s90 = sphi 0, %s90
    %s92 = sphi 0, %s90
    %s93 = sphi 0, %s92
    %s107 = sphi 0, %s93
    %s111 = sphi 0, %s111
    %s113 = sphi 0, %s111
    %s114 = sphi 0, %s113
    %s128 = sphi 0, %s114
    %s132 = sphi 0, %s132
    %s134 = sphi 0, %s132
    %s135 = sphi 0, %s134
    %s149 = sphi 0, %s135
    %s153 = sphi 0, %s153
    %s155 = sphi 0, %s153
    %s156 = sphi 0, %s155
    %s170 = sphi 0, %s156
    %s174 = sphi 0, %s174
    %s176 = sphi 0, %s174
    %s177 = sphi 0, %s176
    %s191 = sphi 0, %s177
    %s197 = sphi 0, %s199
    %s200 = sphi 0, %s197
    %s201 = sphi 0, %s200
    %s217 = sphi 0, %s201
  $region4: #{cmn_forward.1} parent=0 // loop_header_branch
    %17 = sbr.rel (%p15) target = $region8
  $region5: #{cmn_forward.1} parent=0 // loop_body
    %s19 = ssub.s32 %s14, 1
    %s20 = ssub.s32 %s14, 2
    %s21 = sadd.s32 %s14, 1
    %s22 = ssub.s32 %s14, %s21
    %p23 = scmp.eq.s32.totalorder %s22, 0
    %s25 = sadd.s32 %s24, 1
    %s26 = scalar_select %p23, %s24, %s25
    %p29 = pneg %p23
    %p30 = scmp.eq.s32.totalorder %s14, 1
    %p31 = por %p29, %p30
    %p32 = scmp.ne.s32.totalorder %s24, %s27
    %p33 = scmp.eq.s32.totalorder %s14, 0
    %p34 = por %p32, %p33
    %p35 = scmp.ne.s32.totalorder %s24, %s27
    %p36 = scmp.eq.s32.totalorder %s19, 1
    %p37 = por %p35, %p36
    %p38 = scmp.ne.s32.totalorder %s27, %s28
    %p39 = scmp.eq.s32.totalorder %s19, 0
    %p40 = por %p38, %p39
    %p41 = scmp.ne.s32.totalorder %s27, %s28
    %p42 = scmp.eq.s32.totalorder %s20, 1
    %p43 = por %p41, %p42
    %p45 = scmp.ne.s32.totalorder %s28, %s44
    %p46 = scmp.eq.s32.totalorder %s20, 0
    %p47 = por %p45, %p46
    %s49 = sadd.s32 %s48, 1
    %p52 = scmp.eq.s32.totalorder %s14, 1
    %p53 = scmp.ne.s32.totalorder %s48, %s50
    %p54 = scmp.eq.s32.totalorder %s14, 0
    %p55 = por %p53, %p54
    %p56 = scmp.ne.s32.totalorder %s48, %s50
    %p57 = scmp.eq.s32.totalorder %s19, 1
    %p58 = por %p56, %p57
    %p59 = scmp.ne.s32.totalorder %s50, %s51
    %p60 = scmp.eq.s32.totalorder %s19, 0
    %p61 = por %p59, %p60
    %p62 = scmp.ne.s32.totalorder %s50, %s51
    %p63 = scmp.eq.s32.totalorder %s20, 1
    %p64 = por %p62, %p63
    %p66 = scmp.ne.s32.totalorder %s51, %s65
    %p67 = scmp.eq.s32.totalorder %s20, 0
    %p68 = por %p66, %p67
    %s70 = sadd.s32 %s69, 1
    %p73 = scmp.eq.s32.totalorder %s14, 1
    %p74 = scmp.ne.s32.totalorder %s69, %s71
    %p75 = scmp.eq.s32.totalorder %s14, 0
    %p76 = por %p74, %p75
    %p77 = scmp.ne.s32.totalorder %s69, %s71
    %p78 = scmp.eq.s32.totalorder %s19, 1
    %p79 = por %p77, %p78
    %p80 = scmp.ne.s32.totalorder %s71, %s72
    %p81 = scmp.eq.s32.totalorder %s19, 0
    %p82 = por %p80, %p81
    %p83 = scmp.ne.s32.totalorder %s71, %s72
    %p84 = scmp.eq.s32.totalorder %s20, 1
    %p85 = por %p83, %p84
    %p87 = scmp.ne.s32.totalorder %s72, %s86
    %p88 = scmp.eq.s32.totalorder %s20, 0
    %p89 = por %p87, %p88
    %s91 = sadd.s32 %s90, 1
    %p94 = scmp.eq.s32.totalorder %s14, 1
    %p95 = scmp.ne.s32.totalorder %s90, %s92
    %p96 = scmp.eq.s32.totalorder %s14, 0
    %p97 = por %p95, %p96
    %p98 = scmp.ne.s32.totalorder %s90, %s92
    %p99 = scmp.eq.s32.totalorder %s19, 1
    %p100 = por %p98, %p99
    %p101 = scmp.ne.s32.totalorder %s92, %s93
    %p102 = scmp.eq.s32.totalorder %s19, 0
    %p103 = por %p101, %p102
    %p104 = scmp.ne.s32.totalorder %s92, %s93
    %p105 = scmp.eq.s32.totalorder %s20, 1
    %p106 = por %p104, %p105
    %p108 = scmp.ne.s32.totalorder %s93, %s107
    %p109 = scmp.eq.s32.totalorder %s20, 0
    %p110 = por %p108, %p109
    %s112 = sadd.s32 %s111, 1
    %p115 = scmp.eq.s32.totalorder %s14, 1
    %p116 = scmp.ne.s32.totalorder %s111, %s113
    %p117 = scmp.eq.s32.totalorder %s14, 0
    %p118 = por %p116, %p117
    %p119 = scmp.ne.s32.totalorder %s111, %s113
    %p120 = scmp.eq.s32.totalorder %s19, 1
    %p121 = por %p119, %p120
    %p122 = scmp.ne.s32.totalorder %s113, %s114
    %p123 = scmp.eq.s32.totalorder %s19, 0
    %p124 = por %p122, %p123
    %p125 = scmp.ne.s32.totalorder %s113, %s114
    %p126 = scmp.eq.s32.totalorder %s20, 1
    %p127 = por %p125, %p126
    %p129 = scmp.ne.s32.totalorder %s114, %s128
    %p130 = scmp.eq.s32.totalorder %s20, 0
    %p131 = por %p129, %p130
    %s133 = sadd.s32 %s132, 1
    %p136 = scmp.eq.s32.totalorder %s14, 1
    %p137 = scmp.ne.s32.totalorder %s132, %s134
    %p138 = scmp.eq.s32.totalorder %s14, 0
    %p139 = por %p137, %p138
    %p140 = scmp.ne.s32.totalorder %s132, %s134
    %p141 = scmp.eq.s32.totalorder %s19, 1
    %p142 = por %p140, %p141
    %p143 = scmp.ne.s32.totalorder %s134, %s135
    %p144 = scmp.eq.s32.totalorder %s19, 0
    %p145 = por %p143, %p144
    %p146 = scmp.ne.s32.totalorder %s134, %s135
    %p147 = scmp.eq.s32.totalorder %s20, 1
    %p148 = por %p146, %p147
    %p150 = scmp.ne.s32.totalorder %s135, %s149
    %p151 = scmp.eq.s32.totalorder %s20, 0
    %p152 = por %p150, %p151
    %s154 = sadd.s32 %s153, 1
    %p157 = scmp.eq.s32.totalorder %s14, 1
    %p158 = scmp.ne.s32.totalorder %s153, %s155
    %p159 = scmp.eq.s32.totalorder %s14, 0
    %p160 = por %p158, %p159
    %p161 = scmp.ne.s32.totalorder %s153, %s155
    %p162 = scmp.eq.s32.totalorder %s19, 1
    %p163 = por %p161, %p162
    %p164 = scmp.ne.s32.totalorder %s155, %s156
    %p165 = scmp.eq.s32.totalorder %s19, 0
    %p166 = por %p164, %p165
    %p167 = scmp.ne.s32.totalorder %s155, %s156
    %p168 = scmp.eq.s32.totalorder %s20, 1
    %p169 = por %p167, %p168
    %p171 = scmp.ne.s32.totalorder %s156, %s170
    %p172 = scmp.eq.s32.totalorder %s20, 0
    %p173 = por %p171, %p172
    %s175 = sadd.s32 %s174, 1
    %p178 = scmp.eq.s32.totalorder %s14, 1
    %p179 = scmp.ne.s32.totalorder %s174, %s176
    %p180 = scmp.eq.s32.totalorder %s14, 0
    %p181 = por %p179, %p180
    %p182 = scmp.ne.s32.totalorder %s174, %s176
    %p183 = scmp.eq.s32.totalorder %s19, 1
    %p184 = por %p182, %p183
    %p185 = scmp.ne.s32.totalorder %s176, %s177
    %p186 = scmp.eq.s32.totalorder %s19, 0
    %p187 = por %p185, %p186
    %p188 = scmp.ne.s32.totalorder %s176, %s177
    %p189 = scmp.eq.s32.totalorder %s20, 1
    %p190 = por %p188, %p189
    %p192 = scmp.ne.s32.totalorder %s177, %s191
    %p193 = scmp.eq.s32.totalorder %s20, 0
    %p194 = por %p192, %p193
    %s195 = ssub.s32 %s14, %s21
    %p196 = scmp.eq.s32.totalorder %s195, 0
    %s198 = sadd.s32 %s197, 1
    %s199 = scalar_select %p196, %s197, %s198
    %p202 = pneg %p196
    %p203 = scmp.eq.s32.totalorder %s14, 1
    %p204 = por %p202, %p203
    %p205 = scmp.ne.s32.totalorder %s197, %s200
    %p206 = scmp.eq.s32.totalorder %s14, 0
    %p207 = por %p205, %p206
    %p208 = scmp.ne.s32.totalorder %s197, %s200
    %p209 = scmp.eq.s32.totalorder %s19, 1
    %p210 = por %p208, %p209
    %p211 = scmp.ne.s32.totalorder %s200, %s201
    %p212 = scmp.eq.s32.totalorder %s19, 0
    %p213 = por %p211, %p212
    %p214 = scmp.ne.s32.totalorder %s200, %s201
    %p215 = scmp.eq.s32.totalorder %s20, 1
    %p216 = por %p214, %p215
    %p218 = scmp.ne.s32.totalorder %s201, %s217
    %p219 = scmp.eq.s32.totalorder %s20, 0
    %p220 = por %p218, %p219
    %p221 = scmp.le.s32.totalorder 1, %s14
    %p222 = scmp.lt.s32.totalorder %s14, 3
    %p223 = pnand %p221, %p222
    %p224 = pneg %p223
    // Predicated region
    $region9: #{cmn_forward.1} parent=5 // pred_check
      _
    $region10: #{cmn_forward.1} parent=5 // pred_check_branch
      %226 = sbr.rel (%p223) target = $region12
    $region11: #{cmn_forward.1} parent=5 // pred_region
      %s227 = ssub.s32 %s14, 1
      // Predicated region
      $region13: #{cmn_forward.1} parent=11 // pred_check
        %p228 = pneg %p61
      $region14: #{cmn_forward.1} parent=11 // pred_check_branch
        %230 = sbr.rel (%p228) target = $region16
      $region15: #{cmn_forward.1} parent=11 // pred_region
        _
      $region16: #{cmn_forward.1} parent=11 // pred_fallthru
        _
      // Predicated region
      $region17: #{cmn_forward.1} parent=11 // pred_check
        %p231 = pneg %p82
      $region18: #{cmn_forward.1} parent=11 // pred_check_branch
        %233 = sbr.rel (%p231) target = $region20
      $region19: #{cmn_forward.1} parent=11 // pred_region
        _
      $region20: #{cmn_forward.1} parent=11 // pred_fallthru
        _
      // Predicated region
      $region21: #{cmn_forward.1} parent=11 // pred_check
        %p234 = pneg %p103
      $region22: #{cmn_forward.1} parent=11 // pred_check_branch
        %236 = sbr.rel (%p234) target = $region24
      $region23: #{cmn_forward.1} parent=11 // pred_region
        _
      $region24: #{cmn_forward.1} parent=11 // pred_fallthru
        _
      // Predicated region
      $region25: #{cmn_forward.1} parent=11 // pred_check
        %p237 = pneg %p124
      $region26: #{cmn_forward.1} parent=11 // pred_check_branch
        %239 = sbr.rel (%p237) target = $region28
      $region27: #{cmn_forward.1} parent=11 // pred_region
        _
      $region28: #{cmn_forward.1} parent=11 // pred_fallthru
        _
      // Predicated region
      $region29: #{cmn_forward.1} parent=11 // pred_check
        %p240 = pneg %p145
      $region30: #{cmn_forward.1} parent=11 // pred_check_branch
        %242 = sbr.rel (%p240) target = $region32
      $region31: #{cmn_forward.1} parent=11 // pred_region
        _
      $region32: #{cmn_forward.1} parent=11 // pred_fallthru
        _
      // Predicated region
      $region33: #{cmn_forward.1} parent=11 // pred_check
        %p243 = pneg %p166
      $region34: #{cmn_forward.1} parent=11 // pred_check_branch
        %245 = sbr.rel (%p243) target = $region36
      $region35: #{cmn_forward.1} parent=11 // pred_region
        _
      $region36: #{cmn_forward.1} parent=11 // pred_fallthru
        _
      // Predicated region
      $region37: #{cmn_forward.1} parent=11 // pred_check
        %p246 = pneg %p187
      $region38: #{cmn_forward.1} parent=11 // pred_check_branch
        %248 = sbr.rel (%p246) target = $region40
      $region39: #{cmn_forward.1} parent=11 // pred_region
        _
      $region40: #{cmn_forward.1} parent=11 // pred_fallthru
        _
    $region12: #{cmn_forward.1} parent=5 // pred_fallthru
      _
    %p249 = scmp.lt.s32.totalorder %s14, 2
    // Predicated region
    $region41: #{cmn_forward.1} parent=5 // pred_check
      %p250 = pneg %p249
    $region42: #{cmn_forward.1} parent=5 // pred_check_branch
      %252 = sbr.rel (%p250) target = $region44
    $region43: #{cmn_forward.1} parent=5 // pred_region
      // Predicated region
      $region45: #{cmn_forward.1} parent=43 // pred_check
        %p253 = pneg %p34
      $region46: #{cmn_forward.1} parent=43 // pred_check_branch
        %255 = sbr.rel (%p253) target = $region48
      $region47: #{cmn_forward.1} parent=43 // pred_region
        %s256 = smul.u32 8, %s14
        %p257 = scmp.lt.s32.totalorder %s256, 15
        %s258 = scalar_select %p257, %s256, 15
        %s259 = smul.addr %s258, 2
        %s260 = smul.addr %s259, 4
        %s261 = scalar_lea.vmem %s0, %s260
        %s262 = smul.u32 8, %s14
      $region48: #{cmn_forward.1} parent=43 // pred_fallthru
        _
    $region44: #{cmn_forward.1} parent=5 // pred_fallthru
      _
    %p263 = scmp.le.s32.totalorder 1, %s14
    %p264 = scmp.lt.s32.totalorder %s14, 3
    %p265 = pnand %p263, %p264
    %p266 = pneg %p265
    // Predicated region
    $region49: #{cmn_forward.1} parent=5 // pred_check
      _
    $region50: #{cmn_forward.1} parent=5 // pred_check_branch
      %268 = sbr.rel (%p265) target = $region52
    $region51: #{cmn_forward.1} parent=5 // pred_region
      %s269 = ssub.s32 %s14, 1
      %s270 = smul.u32 8, %s19
      %p271 = scmp.lt.s32.totalorder %s270, 15
      %s272 = scalar_select %p271, %s270, 15
      %s273 = smul.addr %s272, 2
      %s274 = smul.addr %s273, 4
      %s275 = scalar_lea.vmem %s0, %s274
      %p276 = pneg %p40
      %p277 = pneg %p37
      %p278 = pneg %p61
      %p279 = pneg %p58
      %p280 = pneg %p82
      %p281 = pneg %p79
      %p282 = pneg %p103
      %p283 = pneg %p100
      %p284 = pneg %p124
      %p285 = pneg %p121
      %p286 = pneg %p145
      %p287 = pneg %p142
      %p288 = pneg %p166
      %p289 = pneg %p163
      %p290 = pneg %p187
      %p291 = pneg %p184
      %p292 = pneg %p213
      %p293 = pneg %p210
      %p294 = scmp.lt.s32.totalorder %s19, 1
      %s295 = scalar_select %p294, %s19, 1
      %s296 = smul.addr %s295, 8
      %s297 = scalar_lea.vmem %s8, %s296
      %s298 = smul.u32 8, %s19
      %p299 = scmp.lt.s32.totalorder %s298, 15
      %s300 = scalar_select %p299, %s298, 15
      %s301 = smul.addr %s300, 2
      %s302 = smul.addr %s301, 4
      %s303 = scalar_lea.vmem %s0, %s302
      %s304 = smul.u32 8, %s19
      %p305 = scmp.lt.s32.totalorder %s19, 1
      %s306 = scalar_select %p305, %s19, 1
      %s307 = smul.addr %s306, 8
      %s308 = scalar_lea.vmem %s8, %s307
      %v310 = vld [vmem:[%s303] sm:$0xf]
      %v311 = vld [vmem:[%s303 + $0x4] sm:$0xf]
      %v312 = vld [vmem:[%s303 + $0x8] sm:$0xf]
      %v313 = vld [vmem:[%s303 + $0xc] sm:$0xf]
      %v314 = vld [vmem:[%s303 + $0x10] sm:$0xf]
      %v315 = vld [vmem:[%s303 + $0x14] sm:$0xf]
      %v316 = vld [vmem:[%s303 + $0x18] sm:$0xf]
      %v317 = vld [vmem:[%s303 + $0x1c] sm:$0xf]
      %v318 = vld [vmem:[%s303 + $0x20] sm:$0xf]
      %v319 = vld [vmem:[%s303 + $0x24] sm:$0xf]
      %v320 = vld [vmem:[%s303 + $0x28] sm:$0xf]
      %v321 = vld [vmem:[%s303 + $0x2c] sm:$0xf]
      %v322 = vld [vmem:[%s303 + $0x30] sm:$0xf]
      %v323 = vld [vmem:[%s303 + $0x34] sm:$0xf]
      %v324 = vld [vmem:[%s303 + $0x38] sm:$0xf]
      %v325 = vld [vmem:[%s303 + $0x3c] sm:$0xf]
      %v326 = vunpack.c.l.bf16 %v310
      %v327 = vunpack.c.l.bf16 %v311
      %v328 = vunpack.c.l.bf16 %v312
      %v329 = vunpack.c.l.bf16 %v313
      %v330 = vunpack.c.l.bf16 %v314
      %v331 = vunpack.c.l.bf16 %v315
      %v332 = vunpack.c.l.bf16 %v316
      %v333 = vunpack.c.l.bf16 %v317
      %v334 = vunpack.c.l.bf16 %v318
      %v335 = vunpack.c.l.bf16 %v319
      %v336 = vunpack.c.l.bf16 %v320
      %v337 = vunpack.c.l.bf16 %v321
      %v338 = vunpack.c.l.bf16 %v322
      %v339 = vunpack.c.l.bf16 %v323
      %v340 = vunpack.c.l.bf16 %v324
      %v341 = vunpack.c.l.bf16 %v325
      %vm342 = vcmask 523264
      %v343 = vsel %vm342, %v326, 0.0
      %344 = vadd.xlane.f32.xlu0 %v343
      %v345 = vpop.xlane.xlu0 %344
      %v346 = vsel %vm342, %v327, 0.0
      %347 = vadd.xlane.f32.xlu0 %v346
      %v348 = vpop.xlane.xlu0 %347
      %v349 = vsel %vm342, %v328, 0.0
      %350 = vadd.xlane.f32.xlu0 %v349
      %v351 = vpop.xlane.xlu0 %350
      %v352 = vsel %vm342, %v329, 0.0
      %353 = vadd.xlane.f32.xlu0 %v352
      %v354 = vpop.xlane.xlu0 %353
      %v355 = vsel %vm342, %v330, 0.0
      %356 = vadd.xlane.f32.xlu0 %v355
      %v357 = vpop.xlane.xlu0 %356
      %v358 = vsel %vm342, %v331, 0.0
      %359 = vadd.xlane.f32.xlu0 %v358
      %v360 = vpop.xlane.xlu0 %359
      %v361 = vsel %vm342, %v332, 0.0
      %362 = vadd.xlane.f32.xlu0 %v361
      %v363 = vpop.xlane.xlu0 %362
      %v364 = vsel %vm342, %v333, 0.0
      %365 = vadd.xlane.f32.xlu0 %v364
      %v366 = vpop.xlane.xlu0 %365
      %v367 = vsel %vm342, %v334, 0.0
      %368 = vadd.xlane.f32.xlu0 %v367
      %v369 = vpop.xlane.xlu0 %368
      %v370 = vsel %vm342, %v335, 0.0
      %371 = vadd.xlane.f32.xlu0 %v370
      %v372 = vpop.xlane.xlu0 %371
      %v373 = vsel %vm342, %v336, 0.0
      %374 = vadd.xlane.f32.xlu0 %v373
      %v375 = vpop.xlane.xlu0 %374
      %v376 = vsel %vm342, %v337, 0.0
      %377 = vadd.xlane.f32.xlu0 %v376
      %v378 = vpop.xlane.xlu0 %377
      %v379 = vsel %vm342, %v338, 0.0
      %380 = vadd.xlane.f32.xlu0 %v379
      %v381 = vpop.xlane.xlu0 %380
      %v382 = vsel %vm342, %v339, 0.0
      %383 = vadd.xlane.f32.xlu0 %v382
      %v384 = vpop.xlane.xlu0 %383
      %v385 = vsel %vm342, %v340, 0.0
      %386 = vadd.xlane.f32.xlu0 %v385
      %v387 = vpop.xlane.xlu0 %386
      %v388 = vsel %vm342, %v341, 0.0
      %389 = vadd.xlane.f32.xlu0 %v388
      %v390 = vpop.xlane.xlu0 %389
      %v391 = vrcp.pop 64.0
      %v392 = vmul.f32 %v345, %v391
      %v393 = vmul.f32 %v348, %v391
      %v394 = vmul.f32 %v351, %v391
      %v395 = vmul.f32 %v354, %v391
      %v396 = vmul.f32 %v357, %v391
      %v397 = vmul.f32 %v360, %v391
      %v398 = vmul.f32 %v363, %v391
      %v399 = vmul.f32 %v366, %v391
      %v400 = vmul.f32 %v369, %v391
      %v401 = vmul.f32 %v372, %v391
      %v402 = vmul.f32 %v375, %v391
      %v403 = vmul.f32 %v378, %v391
      %v404 = vmul.f32 %v381, %v391
      %v405 = vmul.f32 %v384, %v391
      %v406 = vmul.f32 %v387, %v391
      %v407 = vmul.f32 %v390, %v391
      %v408 = vsub.f32 %v326, %v392
      %v409 = vsub.f32 %v327, %v393
      %v410 = vsub.f32 %v328, %v394
      %v411 = vsub.f32 %v329, %v395
      %v412 = vsub.f32 %v330, %v396
      %v413 = vsub.f32 %v331, %v397
      %v414 = vsub.f32 %v332, %v398
      %v415 = vsub.f32 %v333, %v399
      %v416 = vsub.f32 %v334, %v400
      %v417 = vsub.f32 %v335, %v401
      %v418 = vsub.f32 %v336, %v402
      %v419 = vsub.f32 %v337, %v403
      %v420 = vsub.f32 %v338, %v404
      %v421 = vsub.f32 %v339, %v405
      %v422 = vsub.f32 %v340, %v406
      %v423 = vsub.f32 %v341, %v407
      %v424 = vmul.f32 %v408, %v408
      %v425 = vmul.f32 %v409, %v409
      %v426 = vmul.f32 %v410, %v410
      %v427 = vmul.f32 %v411, %v411
      %v428 = vmul.f32 %v412, %v412
      %v429 = vmul.f32 %v413, %v413
      %v430 = vmul.f32 %v414, %v414
      %v431 = vmul.f32 %v415, %v415
      %v432 = vmul.f32 %v416, %v416
      %v433 = vmul.f32 %v417, %v417
      %v434 = vmul.f32 %v418, %v418
      %v435 = vmul.f32 %v419, %v419
      %v436 = vmul.f32 %v420, %v420
      %v437 = vmul.f32 %v421, %v421
      %v438 = vmul.f32 %v422, %v422
      %v439 = vmul.f32 %v423, %v423
      %v440 = vsel %vm342, %v424, 0.0
      %441 = vadd.xlane.f32.xlu0 %v440
      %v442 = vpop.xlane.xlu0 %441
      %v443 = vsel %vm342, %v425, 0.0
      %444 = vadd.xlane.f32.xlu0 %v443
      %v445 = vpop.xlane.xlu0 %444
      %v446 = vsel %vm342, %v426, 0.0
      %447 = vadd.xlane.f32.xlu0 %v446
      %v448 = vpop.xlane.xlu0 %447
      %v449 = vsel %vm342, %v427, 0.0
      %450 = vadd.xlane.f32.xlu0 %v449
      %v451 = vpop.xlane.xlu0 %450
      %v452 = vsel %vm342, %v428, 0.0
      %453 = vadd.xlane.f32.xlu0 %v452
      %v454 = vpop.xlane.xlu0 %453
      %v455 = vsel %vm342, %v429, 0.0
      %456 = vadd.xlane.f32.xlu0 %v455
      %v457 = vpop.xlane.xlu0 %456
      %v458 = vsel %vm342, %v430, 0.0
      %459 = vadd.xlane.f32.xlu0 %v458
      %v460 = vpop.xlane.xlu0 %459
      %v461 = vsel %vm342, %v431, 0.0
      %462 = vadd.xlane.f32.xlu0 %v461
      %v463 = vpop.xlane.xlu0 %462
      %v464 = vsel %vm342, %v432, 0.0
      %465 = vadd.xlane.f32.xlu0 %v464
      %v466 = vpop.xlane.xlu0 %465
      %v467 = vsel %vm342, %v433, 0.0
      %468 = vadd.xlane.f32.xlu0 %v467
      %v469 = vpop.xlane.xlu0 %468
      %v470 = vsel %vm342, %v434, 0.0
      %471 = vadd.xlane.f32.xlu0 %v470
      %v472 = vpop.xlane.xlu0 %471
      %v473 = vsel %vm342, %v435, 0.0
      %474 = vadd.xlane.f32.xlu0 %v473
      %v475 = vpop.xlane.xlu0 %474
      %v476 = vsel %vm342, %v436, 0.0
      %477 = vadd.xlane.f32.xlu0 %v476
      %v478 = vpop.xlane.xlu0 %477
      %v479 = vsel %vm342, %v437, 0.0
      %480 = vadd.xlane.f32.xlu0 %v479
      %v481 = vpop.xlane.xlu0 %480
      %v482 = vsel %vm342, %v438, 0.0
      %483 = vadd.xlane.f32.xlu0 %v482
      %v484 = vpop.xlane.xlu0 %483
      %v485 = vsel %vm342, %v439, 0.0
      %486 = vadd.xlane.f32.xlu0 %v485
      %v487 = vpop.xlane.xlu0 %486
      %v488 = vmul.f32 %v442, %v391
      %v489 = vmul.f32 %v445, %v391
      %v490 = vmul.f32 %v448, %v391
      %v491 = vmul.f32 %v451, %v391
      %v492 = vmul.f32 %v454, %v391
      %v493 = vmul.f32 %v457, %v391
      %v494 = vmul.f32 %v460, %v391
      %v495 = vmul.f32 %v463, %v391
      %v496 = vmul.f32 %v466, %v391
      %v497 = vmul.f32 %v469, %v391
      %v498 = vmul.f32 %v472, %v391
      %v499 = vmul.f32 %v475, %v391
      %v500 = vmul.f32 %v478, %v391
      %v501 = vmul.f32 %v481, %v391
      %v502 = vmul.f32 %v484, %v391
      %v503 = vmul.f32 %v487, %v391
      %v504 = vadd.f32 %v488, 1e-05
      %v505 = vadd.f32 %v489, 1e-05
      %v506 = vadd.f32 %v490, 1e-05
      %v507 = vadd.f32 %v491, 1e-05
      %v508 = vadd.f32 %v492, 1e-05
      %v509 = vadd.f32 %v493, 1e-05
      %v510 = vadd.f32 %v494, 1e-05
      %v511 = vadd.f32 %v495, 1e-05
      %v512 = vadd.f32 %v496, 1e-05
      %v513 = vadd.f32 %v497, 1e-05
      %v514 = vadd.f32 %v498, 1e-05
      %v515 = vadd.f32 %v499, 1e-05
      %v516 = vadd.f32 %v500, 1e-05
      %v517 = vadd.f32 %v501, 1e-05
      %v518 = vadd.f32 %v502, 1e-05
      %v519 = vadd.f32 %v503, 1e-05
      %v520 = vrsqrt.pop %v504
      %v521 = vrsqrt.pop %v505
      %v522 = vrsqrt.pop %v506
      %v523 = vrsqrt.pop %v507
      %v524 = vrsqrt.pop %v508
      %v525 = vrsqrt.pop %v509
      %v526 = vrsqrt.pop %v510
      %v527 = vrsqrt.pop %v511
      %v528 = vrsqrt.pop %v512
      %v529 = vrsqrt.pop %v513
      %v530 = vrsqrt.pop %v514
      %v531 = vrsqrt.pop %v515
      %v532 = vrsqrt.pop %v516
      %v533 = vrsqrt.pop %v517
      %v534 = vrsqrt.pop %v518
      %v535 = vrsqrt.pop %v519
      %v536 = vmul.f32 %v408, %v520
      %v537 = vmul.f32 %v409, %v521
      %v538 = vmul.f32 %v410, %v522
      %v539 = vmul.f32 %v411, %v523
      %v540 = vmul.f32 %v412, %v524
      %v541 = vmul.f32 %v413, %v525
      %v542 = vmul.f32 %v414, %v526
      %v543 = vmul.f32 %v415, %v527
      %v544 = vmul.f32 %v416, %v528
      %v545 = vmul.f32 %v417, %v529
      %v546 = vmul.f32 %v418, %v530
      %v547 = vmul.f32 %v419, %v531
      %v548 = vmul.f32 %v420, %v532
      %v549 = vmul.f32 %v421, %v533
      %v550 = vmul.f32 %v422, %v534
      %v551 = vmul.f32 %v423, %v535
      %v552 = vld [vmem:[%s1] sm:$0x1]
      %v554 = vlaneseq
      %v555 = vshrl.u32 %v554, 7
      %v556 = vsub.s32 0, %v555
      %v557 = vrot.slane %v552, %v556
      %v559 = vmul.f32 %v536, %v557
      %v560 = vmul.f32 %v537, %v557
      %v561 = vmul.f32 %v538, %v557
      %v562 = vmul.f32 %v539, %v557
      %v563 = vmul.f32 %v540, %v557
      %v564 = vmul.f32 %v541, %v557
      %v565 = vmul.f32 %v542, %v557
      %v566 = vmul.f32 %v543, %v557
      %v567 = vmul.f32 %v544, %v557
      %v568 = vmul.f32 %v545, %v557
      %v569 = vmul.f32 %v546, %v557
      %v570 = vmul.f32 %v547, %v557
      %v571 = vmul.f32 %v548, %v557
      %v572 = vmul.f32 %v549, %v557
      %v573 = vmul.f32 %v550, %v557
      %v574 = vmul.f32 %v551, %v557
      %v575 = vld [vmem:[%s2] sm:$0x1]
      %v577 = vlaneseq
      %v578 = vshrl.u32 %v577, 7
      %v579 = vsub.s32 0, %v578
      %v580 = vrot.slane %v575, %v579
      %v582 = vadd.f32 %v559, %v580
      %v583 = vadd.f32 %v560, %v580
      %v584 = vadd.f32 %v561, %v580
      %v585 = vadd.f32 %v562, %v580
      %v586 = vadd.f32 %v563, %v580
      %v587 = vadd.f32 %v564, %v580
      %v588 = vadd.f32 %v565, %v580
      %v589 = vadd.f32 %v566, %v580
      %v590 = vadd.f32 %v567, %v580
      %v591 = vadd.f32 %v568, %v580
      %v592 = vadd.f32 %v569, %v580
      %v593 = vadd.f32 %v570, %v580
      %v594 = vadd.f32 %v571, %v580
      %v595 = vadd.f32 %v572, %v580
      %v596 = vadd.f32 %v573, %v580
      %v597 = vadd.f32 %v574, %v580
      %v598 = vpack.c.bf16 %v583, %v582
      %v599 = vpack.c.bf16 %v585, %v584
      %v600 = vpack.c.bf16 %v587, %v586
      %v601 = vpack.c.bf16 %v589, %v588
      %v602 = vpack.c.bf16 %v591, %v590
      %v603 = vpack.c.bf16 %v593, %v592
      %v604 = vpack.c.bf16 %v595, %v594
      %v605 = vpack.c.bf16 %v597, %v596
      %v606 = vld [vmem:[%s3] sm:$0xf]
      %v607 = vld [vmem:[%s3 + $0x4] sm:$0xf]
      %v608 = vld [vmem:[%s3 + $0x8] sm:$0xf]
      %v609 = vld [vmem:[%s3 + $0xc] sm:$0xf]
      %v610 = vld [vmem:[%s3 + $0x10] sm:$0xf]
      %v611 = vld [vmem:[%s3 + $0x14] sm:$0xf]
      %v612 = vld [vmem:[%s3 + $0x18] sm:$0xf]
      %v613 = vld [vmem:[%s3 + $0x1c] sm:$0xf]
      %v614 = vld [vmem:[%s4] sm:$0x1]
      %v616 = vlaneseq
      %v617 = vshrl.u32 %v616, 7
      %v618 = vsub.s32 0, %v617
      %v619 = vrot.slane %v614, %v618
      %v629 = vunpack.c.l.b16 %v606
      %v630 = vunpack.c.l.b16 %v607
      %v631 = vunpack.c.l.b16 %v608
      %v632 = vunpack.c.l.b16 %v609
      %v633 = vunpack.c.l.b16 %v610
      %v634 = vunpack.c.l.b16 %v611
      %v635 = vunpack.c.l.b16 %v612
      %v636 = vunpack.c.l.b16 %v613
      %v637 = vpack.c.b16 %v630, %v629
      %v638 = vpack.c.b16 %v632, %v631
      %v639 = vpack.c.b16 %v634, %v633
      %v640 = vpack.c.b16 %v636, %v635
      %v646 = vsel %vm342, %v598, 0
      %v649 = vsel %vm342, %v599, 0
      %v652 = vsel %vm342, %v600, 0
      %v655 = vsel %vm342, %v601, 0
      %v658 = vsel %vm342, %v602, 0
      %v661 = vsel %vm342, %v603, 0
      %v664 = vsel %vm342, %v604, 0
      %v667 = vsel %vm342, %v605, 0
      %669 = vmatprep.subr.bf16.mxu0 0
      %670 = vmatpush1.bf16.msra.mxu0 0
      %671 = vmatprep.subr.bf16.mxu0 0
      %672 = vmatpush1.bf16.msra.mxu0 0
      %673 = vmatprep.subr.bf16.mxu0 0
      %674 = vmatpush1.bf16.msra.mxu0 0
      %675 = vmatprep.subr.bf16.mxu0 0
      %676 = vmatpush1.bf16.msra.mxu0 0
      %677 = vmatprep.subr.bf16.mxu0 0
      %678 = vmatpush1.bf16.msra.mxu0 %v640
      %679 = vmatprep.subr.bf16.mxu0 0
      %680 = vmatpush1.bf16.msra.mxu0 %v639
      %681 = vmatprep.subr.bf16.mxu0 0
      %682 = vmatpush1.bf16.msra.mxu0 %v638
      %683 = vmatprep.subr.bf16.mxu0 0
      %684 = vmatpush1.bf16.msra.mxu0 %v637
      %685 = vmatprep.subr.bf16.mxu0 0
      %686 = vmatpush2.bf16.msra.mxu0 0
      %687 = vmatprep.subr.bf16.mxu0 0
      %688 = vmatpush2.bf16.msra.mxu0 0
      %689 = vmatprep.subr.bf16.mxu0 0
      %690 = vmatpush2.bf16.msra.mxu0 0
      %691 = vmatprep.subr.bf16.mxu0 0
      %692 = vmatpush2.bf16.msra.mxu0 0
      %693 = vmatprep.subr.bf16.mxu0 0
      %694 = vmatpush2.bf16.msra.mxu0 0
      %695 = vmatprep.subr.bf16.mxu0 0
      %696 = vmatpush2.bf16.msra.mxu0 0
      %697 = vmatprep.subr.bf16.mxu0 0
      %698 = vmatpush2.bf16.msra.mxu0 0
      %699 = vmatprep.subr.bf16.mxu0 0
      %700 = vmatpush2.bf16.msra.mxu0 0
      %701 = vmatprep.mubr.bf16.mxu0 0
      %702 = vmatmul.mubr.bf16.gmra.mxu0 %v646
      %v703 = vpop.f32.mrf.mxu0
      %v704 = vadd.f32 %v619, %v703
      %v705 = vpop.f32.mrf.mxu0
      %v706 = vpop.f32.mrf.mxu0
      %v707 = vadd.f32 %v619, %v706
      %v708 = vpop.f32.mrf.mxu0
      %709 = vmatprep.mubr.bf16.mxu0 0
      %710 = vmatmul.mubr.bf16.gmra.mxu0 %v649
      %v711 = vpop.f32.mrf.mxu0
      %v712 = vadd.f32 %v619, %v711
      %v713 = vpop.f32.mrf.mxu0
      %v714 = vpop.f32.mrf.mxu0
      %v715 = vadd.f32 %v619, %v714
      %v716 = vpop.f32.mrf.mxu0
      %717 = vmatprep.mubr.bf16.mxu0 0
      %718 = vmatmul.mubr.bf16.gmra.mxu0 %v652
      %v719 = vpop.f32.mrf.mxu0
      %v720 = vadd.f32 %v619, %v719
      %v721 = vpop.f32.mrf.mxu0
      %v722 = vpop.f32.mrf.mxu0
      %v723 = vadd.f32 %v619, %v722
      %v724 = vpop.f32.mrf.mxu0
      %725 = vmatprep.mubr.bf16.mxu0 0
      %726 = vmatmul.mubr.bf16.gmra.mxu0 %v655
      %v727 = vpop.f32.mrf.mxu0
      %v728 = vadd.f32 %v619, %v727
      %v729 = vpop.f32.mrf.mxu0
      %v730 = vpop.f32.mrf.mxu0
      %v731 = vadd.f32 %v619, %v730
      %v732 = vpop.f32.mrf.mxu0
      %733 = vmatprep.mubr.bf16.mxu0 0
      %734 = vmatmul.mubr.bf16.gmra.mxu0 %v658
      %v735 = vpop.f32.mrf.mxu0
      %v736 = vadd.f32 %v619, %v735
      %v737 = vpop.f32.mrf.mxu0
      %v738 = vpop.f32.mrf.mxu0
      %v739 = vadd.f32 %v619, %v738
      %v740 = vpop.f32.mrf.mxu0
      %741 = vmatprep.mubr.bf16.mxu0 0
      %742 = vmatmul.mubr.bf16.gmra.mxu0 %v661
      %v743 = vpop.f32.mrf.mxu0
      %v744 = vadd.f32 %v619, %v743
      %v745 = vpop.f32.mrf.mxu0
      %v746 = vpop.f32.mrf.mxu0
      %v747 = vadd.f32 %v619, %v746
      %v748 = vpop.f32.mrf.mxu0
      %749 = vmatprep.mubr.bf16.mxu0 0
      %750 = vmatmul.mubr.bf16.gmra.mxu0 %v664
      %v751 = vpop.f32.mrf.mxu0
      %v752 = vadd.f32 %v619, %v751
      %v753 = vpop.f32.mrf.mxu0
      %v754 = vpop.f32.mrf.mxu0
      %v755 = vadd.f32 %v619, %v754
      %v756 = vpop.f32.mrf.mxu0
      %757 = vmatprep.mubr.bf16.mxu0 0
      %758 = vmatmul.mubr.bf16.gmra.mxu0 %v667
      %v759 = vpop.f32.mrf.mxu0
      %v760 = vadd.f32 %v619, %v759
      %v761 = vpop.f32.mrf.mxu0
      %v762 = vpop.f32.mrf.mxu0
      %v763 = vadd.f32 %v619, %v762
      %v764 = vpop.f32.mrf.mxu0
      %765 = vdwg.mxu0
      %v766 = vpack.c.bf16 %v707, %v704
      %v767 = vpack.c.bf16 %v715, %v712
      %v768 = vpack.c.bf16 %v723, %v720
      %v769 = vpack.c.bf16 %v731, %v728
      %v770 = vpack.c.bf16 %v739, %v736
      %v771 = vpack.c.bf16 %v747, %v744
      %v772 = vpack.c.bf16 %v755, %v752
      %v773 = vpack.c.bf16 %v763, %v760
      %v774 = vld [vmem:[%s6] sm:$0xf]
      %v776 = vsel %vm342, %v774, 0
      %v779 = vsel %vm342, %v766, 0
      %781 = vmatprep.subr.bf16.mxu0 0
      %782 = vmatpush1.bf16.xpose.msra.mxu0 0
      %783 = vmatprep.subr.bf16.mxu0 0
      %784 = vmatpush1.bf16.xpose.msra.mxu0 0
      %785 = vmatprep.subr.bf16.mxu0 0
      %786 = vmatpush1.bf16.xpose.msra.mxu0 0
      %787 = vmatprep.subr.bf16.mxu0 0
      %788 = vmatpush1.bf16.xpose.msra.mxu0 0
      %789 = vmatprep.subr.bf16.mxu0 0
      %790 = vmatpush1.bf16.xpose.msra.mxu0 0
      %791 = vmatprep.subr.bf16.mxu0 0
      %792 = vmatpush1.bf16.xpose.msra.mxu0 0
      %793 = vmatprep.subr.bf16.mxu0 0
      %794 = vmatpush1.bf16.xpose.msra.mxu0 0
      %795 = vmatprep.subr.bf16.mxu0 0
      %796 = vmatpush1.bf16.xpose.msra.mxu0 %v779
      %797 = vmatprep.subr.bf16.mxu0 0
      %798 = vmatpush2.bf16.xpose.msra.mxu0 0
      %799 = vmatprep.subr.bf16.mxu0 0
      %800 = vmatpush2.bf16.xpose.msra.mxu0 0
      %801 = vmatprep.subr.bf16.mxu0 0
      %802 = vmatpush2.bf16.xpose.msra.mxu0 0
      %803 = vmatprep.subr.bf16.mxu0 0
      %804 = vmatpush2.bf16.xpose.msra.mxu0 0
      %805 = vmatprep.subr.bf16.mxu0 0
      %806 = vmatpush2.bf16.xpose.msra.mxu0 0
      %807 = vmatprep.subr.bf16.mxu0 0
      %808 = vmatpush2.bf16.xpose.msra.mxu0 0
      %809 = vmatprep.subr.bf16.mxu0 0
      %810 = vmatpush2.bf16.xpose.msra.mxu0 0
      %811 = vmatprep.subr.bf16.mxu0 0
      %812 = vmatpush2.bf16.xpose.msra.mxu0 0
      %813 = vmatprep.mubr.bf16.mxu0 0
      %814 = vmatmul.mubr.bf16.gmra.mxu0 %v776
      %v815 = vpop.f32.mrf.mxu0
      %v816 = vadd.f32 0.0, %v815
      %v817 = vpop.f32.mrf.mxu0
      %v818 = vpop.f32.mrf.mxu0
      %v819 = vpop.f32.mrf.mxu0
      %820 = vdwg.mxu0
      %v822 = vsel %vm342, %v767, 0
      %824 = vmatprep.subr.bf16.mxu0 0
      %825 = vmatpush1.bf16.xpose.msra.mxu0 0
      %826 = vmatprep.subr.bf16.mxu0 0
      %827 = vmatpush1.bf16.xpose.msra.mxu0 0
      %828 = vmatprep.subr.bf16.mxu0 0
      %829 = vmatpush1.bf16.xpose.msra.mxu0 0
      %830 = vmatprep.subr.bf16.mxu0 0
      %831 = vmatpush1.bf16.xpose.msra.mxu0 0
      %832 = vmatprep.subr.bf16.mxu0 0
      %833 = vmatpush1.bf16.xpose.msra.mxu0 0
      %834 = vmatprep.subr.bf16.mxu0 0
      %835 = vmatpush1.bf16.xpose.msra.mxu0 0
      %836 = vmatprep.subr.bf16.mxu0 0
      %837 = vmatpush1.bf16.xpose.msra.mxu0 0
      %838 = vmatprep.subr.bf16.mxu0 0
      %839 = vmatpush1.bf16.xpose.msra.mxu0 %v822
      %840 = vmatprep.subr.bf16.mxu0 0
      %841 = vmatpush2.bf16.xpose.msra.mxu0 0
      %842 = vmatprep.subr.bf16.mxu0 0
      %843 = vmatpush2.bf16.xpose.msra.mxu0 0
      %844 = vmatprep.subr.bf16.mxu0 0
      %845 = vmatpush2.bf16.xpose.msra.mxu0 0
      %846 = vmatprep.subr.bf16.mxu0 0
      %847 = vmatpush2.bf16.xpose.msra.mxu0 0
      %848 = vmatprep.subr.bf16.mxu0 0
      %849 = vmatpush2.bf16.xpose.msra.mxu0 0
      %850 = vmatprep.subr.bf16.mxu0 0
      %851 = vmatpush2.bf16.xpose.msra.mxu0 0
      %852 = vmatprep.subr.bf16.mxu0 0
      %853 = vmatpush2.bf16.xpose.msra.mxu0 0
      %854 = vmatprep.subr.bf16.mxu0 0
      %855 = vmatpush2.bf16.xpose.msra.mxu0 0
      %856 = vmatprep.mubr.bf16.mxu0 0
      %857 = vmatmul.mubr.bf16.gmra.mxu0 %v776
      %v858 = vpop.f32.mrf.mxu0
      %v859 = vadd.f32 0.0, %v858
      %v860 = vpop.f32.mrf.mxu0
      %v861 = vpop.f32.mrf.mxu0
      %v862 = vpop.f32.mrf.mxu0
      %863 = vdwg.mxu0
      %v865 = vsel %vm342, %v768, 0
      %867 = vmatprep.subr.bf16.mxu0 0
      %868 = vmatpush1.bf16.xpose.msra.mxu0 0
      %869 = vmatprep.subr.bf16.mxu0 0
      %870 = vmatpush1.bf16.xpose.msra.mxu0 0
      %871 = vmatprep.subr.bf16.mxu0 0
      %872 = vmatpush1.bf16.xpose.msra.mxu0 0
      %873 = vmatprep.subr.bf16.mxu0 0
      %874 = vmatpush1.bf16.xpose.msra.mxu0 0
      %875 = vmatprep.subr.bf16.mxu0 0
      %876 = vmatpush1.bf16.xpose.msra.mxu0 0
      %877 = vmatprep.subr.bf16.mxu0 0
      %878 = vmatpush1.bf16.xpose.msra.mxu0 0
      %879 = vmatprep.subr.bf16.mxu0 0
      %880 = vmatpush1.bf16.xpose.msra.mxu0 0
      %881 = vmatprep.subr.bf16.mxu0 0
      %882 = vmatpush1.bf16.xpose.msra.mxu0 %v865
      %883 = vmatprep.subr.bf16.mxu0 0
      %884 = vmatpush2.bf16.xpose.msra.mxu0 0
      %885 = vmatprep.subr.bf16.mxu0 0
      %886 = vmatpush2.bf16.xpose.msra.mxu0 0
      %887 = vmatprep.subr.bf16.mxu0 0
      %888 = vmatpush2.bf16.xpose.msra.mxu0 0
      %889 = vmatprep.subr.bf16.mxu0 0
      %890 = vmatpush2.bf16.xpose.msra.mxu0 0
      %891 = vmatprep.subr.bf16.mxu0 0
      %892 = vmatpush2.bf16.xpose.msra.mxu0 0
      %893 = vmatprep.subr.bf16.mxu0 0
      %894 = vmatpush2.bf16.xpose.msra.mxu0 0
      %895 = vmatprep.subr.bf16.mxu0 0
      %896 = vmatpush2.bf16.xpose.msra.mxu0 0
      %897 = vmatprep.subr.bf16.mxu0 0
      %898 = vmatpush2.bf16.xpose.msra.mxu0 0
      %899 = vmatprep.mubr.bf16.mxu0 0
      %900 = vmatmul.mubr.bf16.gmra.mxu0 %v776
      %v901 = vpop.f32.mrf.mxu0
      %v902 = vadd.f32 0.0, %v901
      %v903 = vpop.f32.mrf.mxu0
      %v904 = vpop.f32.mrf.mxu0
      %v905 = vpop.f32.mrf.mxu0
      %906 = vdwg.mxu0
      %v908 = vsel %vm342, %v769, 0
      %910 = vmatprep.subr.bf16.mxu0 0
      %911 = vmatpush1.bf16.xpose.msra.mxu0 0
      %912 = vmatprep.subr.bf16.mxu0 0
      %913 = vmatpush1.bf16.xpose.msra.mxu0 0
      %914 = vmatprep.subr.bf16.mxu0 0
      %915 = vmatpush1.bf16.xpose.msra.mxu0 0
      %916 = vmatprep.subr.bf16.mxu0 0
      %917 = vmatpush1.bf16.xpose.msra.mxu0 0
      %918 = vmatprep.subr.bf16.mxu0 0
      %919 = vmatpush1.bf16.xpose.msra.mxu0 0
      %920 = vmatprep.subr.bf16.mxu0 0
      %921 = vmatpush1.bf16.xpose.msra.mxu0 0
      %922 = vmatprep.subr.bf16.mxu0 0
      %923 = vmatpush1.bf16.xpose.msra.mxu0 0
      %924 = vmatprep.subr.bf16.mxu0 0
      %925 = vmatpush1.bf16.xpose.msra.mxu0 %v908
      %926 = vmatprep.subr.bf16.mxu0 0
      %927 = vmatpush2.bf16.xpose.msra.mxu0 0
      %928 = vmatprep.subr.bf16.mxu0 0
      %929 = vmatpush2.bf16.xpose.msra.mxu0 0
      %930 = vmatprep.subr.bf16.mxu0 0
      %931 = vmatpush2.bf16.xpose.msra.mxu0 0
      %932 = vmatprep.subr.bf16.mxu0 0
      %933 = vmatpush2.bf16.xpose.msra.mxu0 0
      %934 = vmatprep.subr.bf16.mxu0 0
      %935 = vmatpush2.bf16.xpose.msra.mxu0 0
      %936 = vmatprep.subr.bf16.mxu0 0
      %937 = vmatpush2.bf16.xpose.msra.mxu0 0
      %938 = vmatprep.subr.bf16.mxu0 0
      %939 = vmatpush2.bf16.xpose.msra.mxu0 0
      %940 = vmatprep.subr.bf16.mxu0 0
      %941 = vmatpush2.bf16.xpose.msra.mxu0 0
      %942 = vmatprep.mubr.bf16.mxu0 0
      %943 = vmatmul.mubr.bf16.gmra.mxu0 %v776
      %v944 = vpop.f32.mrf.mxu0
      %v945 = vadd.f32 0.0, %v944
      %v946 = vpop.f32.mrf.mxu0
      %v947 = vpop.f32.mrf.mxu0
      %v948 = vpop.f32.mrf.mxu0
      %949 = vdwg.mxu0
      %v951 = vsel %vm342, %v770, 0
      %953 = vmatprep.subr.bf16.mxu0 0
      %954 = vmatpush1.bf16.xpose.msra.mxu0 0
      %955 = vmatprep.subr.bf16.mxu0 0
      %956 = vmatpush1.bf16.xpose.msra.mxu0 0
      %957 = vmatprep.subr.bf16.mxu0 0
      %958 = vmatpush1.bf16.xpose.msra.mxu0 0
      %959 = vmatprep.subr.bf16.mxu0 0
      %960 = vmatpush1.bf16.xpose.msra.mxu0 0
      %961 = vmatprep.subr.bf16.mxu0 0
      %962 = vmatpush1.bf16.xpose.msra.mxu0 0
      %963 = vmatprep.subr.bf16.mxu0 0
      %964 = vmatpush1.bf16.xpose.msra.mxu0 0
      %965 = vmatprep.subr.bf16.mxu0 0
      %966 = vmatpush1.bf16.xpose.msra.mxu0 0
      %967 = vmatprep.subr.bf16.mxu0 0
      %968 = vmatpush1.bf16.xpose.msra.mxu0 %v951
      %969 = vmatprep.subr.bf16.mxu0 0
      %970 = vmatpush2.bf16.xpose.msra.mxu0 0
      %971 = vmatprep.subr.bf16.mxu0 0
      %972 = vmatpush2.bf16.xpose.msra.mxu0 0
      %973 = vmatprep.subr.bf16.mxu0 0
      %974 = vmatpush2.bf16.xpose.msra.mxu0 0
      %975 = vmatprep.subr.bf16.mxu0 0
      %976 = vmatpush2.bf16.xpose.msra.mxu0 0
      %977 = vmatprep.subr.bf16.mxu0 0
      %978 = vmatpush2.bf16.xpose.msra.mxu0 0
      %979 = vmatprep.subr.bf16.mxu0 0
      %980 = vmatpush2.bf16.xpose.msra.mxu0 0
      %981 = vmatprep.subr.bf16.mxu0 0
      %982 = vmatpush2.bf16.xpose.msra.mxu0 0
      %983 = vmatprep.subr.bf16.mxu0 0
      %984 = vmatpush2.bf16.xpose.msra.mxu0 0
      %985 = vmatprep.mubr.bf16.mxu0 0
      %986 = vmatmul.mubr.bf16.gmra.mxu0 %v776
      %v987 = vpop.f32.mrf.mxu0
      %v988 = vadd.f32 0.0, %v987
      %v989 = vpop.f32.mrf.mxu0
      %v990 = vpop.f32.mrf.mxu0
      %v991 = vpop.f32.mrf.mxu0
      %992 = vdwg.mxu0
      %v994 = vsel %vm342, %v771, 0
      %996 = vmatprep.subr.bf16.mxu0 0
      %997 = vmatpush1.bf16.xpose.msra.mxu0 0
      %998 = vmatprep.subr.bf16.mxu0 0
      %999 = vmatpush1.bf16.xpose.msra.mxu0 0
      %1000 = vmatprep.subr.bf16.mxu0 0
      %1001 = vmatpush1.bf16.xpose.msra.mxu0 0
      %1002 = vmatprep.subr.bf16.mxu0 0
      %1003 = vmatpush1.bf16.xpose.msra.mxu0 0
      %1004 = vmatprep.subr.bf16.mxu0 0
      %1005 = vmatpush1.bf16.xpose.msra.mxu0 0
      %1006 = vmatprep.subr.bf16.mxu0 0
      %1007 = vmatpush1.bf16.xpose.msra.mxu0 0
      %1008 = vmatprep.subr.bf16.mxu0 0
      %1009 = vmatpush1.bf16.xpose.msra.mxu0 0
      %1010 = vmatprep.subr.bf16.mxu0 0
      %1011 = vmatpush1.bf16.xpose.msra.mxu0 %v994
      %1012 = vmatprep.subr.bf16.mxu0 0
      %1013 = vmatpush2.bf16.xpose.msra.mxu0 0
      %1014 = vmatprep.subr.bf16.mxu0 0
      %1015 = vmatpush2.bf16.xpose.msra.mxu0 0
      %1016 = vmatprep.subr.bf16.mxu0 0
      %1017 = vmatpush2.bf16.xpose.msra.mxu0 0
      %1018 = vmatprep.subr.bf16.mxu0 0
      %1019 = vmatpush2.bf16.xpose.msra.mxu0 0
      %1020 = vmatprep.subr.bf16.mxu0 0
      %1021 = vmatpush2.bf16.xpose.msra.mxu0 0
      %1022 = vmatprep.subr.bf16.mxu0 0
      %1023 = vmatpush2.bf16.xpose.msra.mxu0 0
      %1024 = vmatprep.subr.bf16.mxu0 0
      %1025 = vmatpush2.bf16.xpose.msra.mxu0 0
      %1026 = vmatprep.subr.bf16.mxu0 0
      %1027 = vmatpush2.bf16.xpose.msra.mxu0 0
      %1028 = vmatprep.mubr.bf16.mxu0 0
      %1029 = vmatmul.mubr.bf16.gmra.mxu0 %v776
      %v1030 = vpop.f32.mrf.mxu0
      %v1031 = vadd.f32 0.0, %v1030
      %v1032 = vpop.f32.mrf.mxu0
      %v1033 = vpop.f32.mrf.mxu0
      %v1034 = vpop.f32.mrf.mxu0
      %1035 = vdwg.mxu0
      %v1037 = vsel %vm342, %v772, 0
      %1039 = vmatprep.subr.bf16.mxu0 0
      %1040 = vmatpush1.bf16.xpose.msra.mxu0 0
      %1041 = vmatprep.subr.bf16.mxu0 0
      %1042 = vmatpush1.bf16.xpose.msra.mxu0 0
      %1043 = vmatprep.subr.bf16.mxu0 0
      %1044 = vmatpush1.bf16.xpose.msra.mxu0 0
      %1045 = vmatprep.subr.bf16.mxu0 0
      %1046 = vmatpush1.bf16.xpose.msra.mxu0 0
      %1047 = vmatprep.subr.bf16.mxu0 0
      %1048 = vmatpush1.bf16.xpose.msra.mxu0 0
      %1049 = vmatprep.subr.bf16.mxu0 0
      %1050 = vmatpush1.bf16.xpose.msra.mxu0 0
      %1051 = vmatprep.subr.bf16.mxu0 0
      %1052 = vmatpush1.bf16.xpose.msra.mxu0 0
      %1053 = vmatprep.subr.bf16.mxu0 0
      %1054 = vmatpush1.bf16.xpose.msra.mxu0 %v1037
      %1055 = vmatprep.subr.bf16.mxu0 0
      %1056 = vmatpush2.bf16.xpose.msra.mxu0 0
      %1057 = vmatprep.subr.bf16.mxu0 0
      %1058 = vmatpush2.bf16.xpose.msra.mxu0 0
      %1059 = vmatprep.subr.bf16.mxu0 0
      %1060 = vmatpush2.bf16.xpose.msra.mxu0 0
      %1061 = vmatprep.subr.bf16.mxu0 0
      %1062 = vmatpush2.bf16.xpose.msra.mxu0 0
      %1063 = vmatprep.subr.bf16.mxu0 0
      %1064 = vmatpush2.bf16.xpose.msra.mxu0 0
      %1065 = vmatprep.subr.bf16.mxu0 0
      %1066 = vmatpush2.bf16.xpose.msra.mxu0 0
      %1067 = vmatprep.subr.bf16.mxu0 0
      %1068 = vmatpush2.bf16.xpose.msra.mxu0 0
      %1069 = vmatprep.subr.bf16.mxu0 0
      %1070 = vmatpush2.bf16.xpose.msra.mxu0 0
      %1071 = vmatprep.mubr.bf16.mxu0 0
      %1072 = vmatmul.mubr.bf16.gmra.mxu0 %v776
      %v1073 = vpop.f32.mrf.mxu0
      %v1074 = vadd.f32 0.0, %v1073
      %v1075 = vpop.f32.mrf.mxu0
      %v1076 = vpop.f32.mrf.mxu0
      %v1077 = vpop.f32.mrf.mxu0
      %1078 = vdwg.mxu0
      %v1080 = vsel %vm342, %v773, 0
      %1082 = vmatprep.subr.bf16.mxu0 0
      %1083 = vmatpush1.bf16.xpose.msra.mxu0 0
      %1084 = vmatprep.subr.bf16.mxu0 0
      %1085 = vmatpush1.bf16.xpose.msra.mxu0 0
      %1086 = vmatprep.subr.bf16.mxu0 0
      %1087 = vmatpush1.bf16.xpose.msra.mxu0 0
      %1088 = vmatprep.subr.bf16.mxu0 0
      %1089 = vmatpush1.bf16.xpose.msra.mxu0 0
      %1090 = vmatprep.subr.bf16.mxu0 0
      %1091 = vmatpush1.bf16.xpose.msra.mxu0 0
      %1092 = vmatprep.subr.bf16.mxu0 0
      %1093 = vmatpush1.bf16.xpose.msra.mxu0 0
      %1094 = vmatprep.subr.bf16.mxu0 0
      %1095 = vmatpush1.bf16.xpose.msra.mxu0 0
      %1096 = vmatprep.subr.bf16.mxu0 0
      %1097 = vmatpush1.bf16.xpose.msra.mxu0 %v1080
      %1098 = vmatprep.subr.bf16.mxu0 0
      %1099 = vmatpush2.bf16.xpose.msra.mxu0 0
      %1100 = vmatprep.subr.bf16.mxu0 0
      %1101 = vmatpush2.bf16.xpose.msra.mxu0 0
      %1102 = vmatprep.subr.bf16.mxu0 0
      %1103 = vmatpush2.bf16.xpose.msra.mxu0 0
      %1104 = vmatprep.subr.bf16.mxu0 0
      %1105 = vmatpush2.bf16.xpose.msra.mxu0 0
      %1106 = vmatprep.subr.bf16.mxu0 0
      %1107 = vmatpush2.bf16.xpose.msra.mxu0 0
      %1108 = vmatprep.subr.bf16.mxu0 0
      %1109 = vmatpush2.bf16.xpose.msra.mxu0 0
      %1110 = vmatprep.subr.bf16.mxu0 0
      %1111 = vmatpush2.bf16.xpose.msra.mxu0 0
      %1112 = vmatprep.subr.bf16.mxu0 0
      %1113 = vmatpush2.bf16.xpose.msra.mxu0 0
      %1114 = vmatprep.mubr.bf16.mxu0 0
      %1115 = vmatmul.mubr.bf16.gmra.mxu0 %v776
      %v1116 = vpop.f32.mrf.mxu0
      %v1117 = vadd.f32 0.0, %v1116
      %v1118 = vpop.f32.mrf.mxu0
      %v1119 = vpop.f32.mrf.mxu0
      %v1120 = vpop.f32.mrf.mxu0
      %1121 = vdwg.mxu0
      %v1122 = vmul.f32 %v816, %v816
      %v1123 = vmul.f32 %v859, %v859
      %v1124 = vmul.f32 %v902, %v902
      %v1125 = vmul.f32 %v945, %v945
      %v1126 = vmul.f32 %v988, %v988
      %v1127 = vmul.f32 %v1031, %v1031
      %v1128 = vmul.f32 %v1074, %v1074
      %v1129 = vmul.f32 %v1117, %v1117
      %vm1130 = vcmask 130048
      %v1131 = vsel %vm1130, %v1122, 0.0
      %v1132 = vrot.slane %v1131, 4
      %v1133 = vadd.f32 %v1131, %v1132
      %v1134 = vrot.slane %v1133, 2
      %v1135 = vadd.f32 %v1133, %v1134
      %v1136 = vrot.slane %v1135, 1
      %v1137 = vadd.f32 %v1135, %v1136
      %v1138 = vsel %vm1130, %v1123, 0.0
      %v1139 = vrot.slane %v1138, 4
      %v1140 = vadd.f32 %v1138, %v1139
      %v1141 = vrot.slane %v1140, 2
      %v1142 = vadd.f32 %v1140, %v1141
      %v1143 = vrot.slane %v1142, 1
      %v1144 = vadd.f32 %v1142, %v1143
      %v1145 = vsel %vm1130, %v1124, 0.0
      %v1146 = vrot.slane %v1145, 4
      %v1147 = vadd.f32 %v1145, %v1146
      %v1148 = vrot.slane %v1147, 2
      %v1149 = vadd.f32 %v1147, %v1148
      %v1150 = vrot.slane %v1149, 1
      %v1151 = vadd.f32 %v1149, %v1150
      %v1152 = vsel %vm1130, %v1125, 0.0
      %v1153 = vrot.slane %v1152, 4
      %v1154 = vadd.f32 %v1152, %v1153
      %v1155 = vrot.slane %v1154, 2
      %v1156 = vadd.f32 %v1154, %v1155
      %v1157 = vrot.slane %v1156, 1
      %v1158 = vadd.f32 %v1156, %v1157
      %v1159 = vsel %vm1130, %v1126, 0.0
      %v1160 = vrot.slane %v1159, 4
      %v1161 = vadd.f32 %v1159, %v1160
      %v1162 = vrot.slane %v1161, 2
      %v1163 = vadd.f32 %v1161, %v1162
      %v1164 = vrot.slane %v1163, 1
      %v1165 = vadd.f32 %v1163, %v1164
      %v1166 = vsel %vm1130, %v1127, 0.0
      %v1167 = vrot.slane %v1166, 4
      %v1168 = vadd.f32 %v1166, %v1167
      %v1169 = vrot.slane %v1168, 2
      %v1170 = vadd.f32 %v1168, %v1169
      %v1171 = vrot.slane %v1170, 1
      %v1172 = vadd.f32 %v1170, %v1171
      %v1173 = vsel %vm1130, %v1128, 0.0
      %v1174 = vrot.slane %v1173, 4
      %v1175 = vadd.f32 %v1173, %v1174
      %v1176 = vrot.slane %v1175, 2
      %v1177 = vadd.f32 %v1175, %v1176
      %v1178 = vrot.slane %v1177, 1
      %v1179 = vadd.f32 %v1177, %v1178
      %v1180 = vsel %vm1130, %v1129, 0.0
      %v1181 = vrot.slane %v1180, 4
      %v1182 = vadd.f32 %v1180, %v1181
      %v1183 = vrot.slane %v1182, 2
      %v1184 = vadd.f32 %v1182, %v1183
      %v1185 = vrot.slane %v1184, 1
      %v1186 = vadd.f32 %v1184, %v1185
      %v1187 = vmax.f32 %v1137, 1e-24
      %v1188 = vmax.f32 %v1144, 1e-24
      %v1189 = vmax.f32 %v1151, 1e-24
      %v1190 = vmax.f32 %v1158, 1e-24
      %v1191 = vmax.f32 %v1165, 1e-24
      %v1192 = vmax.f32 %v1172, 1e-24
      %v1193 = vmax.f32 %v1179, 1e-24
      %v1194 = vmax.f32 %v1186, 1e-24
      %v1195 = vrsqrt.pop %v1187
      %v1196 = vrsqrt.pop %v1188
      %v1197 = vrsqrt.pop %v1189
      %v1198 = vrsqrt.pop %v1190
      %v1199 = vrsqrt.pop %v1191
      %v1200 = vrsqrt.pop %v1192
      %v1201 = vrsqrt.pop %v1193
      %v1202 = vrsqrt.pop %v1194
      %v1203 = vmul.f32 %v816, %v1195
      %v1204 = vmul.f32 %v859, %v1196
      %v1205 = vmul.f32 %v902, %v1197
      %v1206 = vmul.f32 %v945, %v1198
      %v1207 = vmul.f32 %v988, %v1199
      %v1208 = vmul.f32 %v1031, %v1200
      %v1209 = vmul.f32 %v1074, %v1201
      %v1210 = vmul.f32 %v1117, %v1202
      %v1211 = vmul.f32 %v1203, 16.0
      %v1212 = vmul.f32 %v1204, 16.0
      %v1213 = vmul.f32 %v1205, 16.0
      %v1214 = vmul.f32 %v1206, 16.0
      %v1215 = vmul.f32 %v1207, 16.0
      %v1216 = vmul.f32 %v1208, 16.0
      %v1217 = vmul.f32 %v1209, 16.0
      %v1218 = vmul.f32 %v1210, 16.0
      %v1219 = vsel %vm1130, %v1211, -inf
      %1220 = vmax.xlane.f32.xlu0 %v1219
      %v1221 = vpop.xlane.xlu0 %1220
      %v1222 = vsel %vm1130, %v1212, -inf
      %1223 = vmax.xlane.f32.xlu0 %v1222
      %v1224 = vpop.xlane.xlu0 %1223
      %v1225 = vsel %vm1130, %v1213, -inf
      %1226 = vmax.xlane.f32.xlu0 %v1225
      %v1227 = vpop.xlane.xlu0 %1226
      %v1228 = vsel %vm1130, %v1214, -inf
      %1229 = vmax.xlane.f32.xlu0 %v1228
      %v1230 = vpop.xlane.xlu0 %1229
      %v1231 = vsel %vm1130, %v1215, -inf
      %1232 = vmax.xlane.f32.xlu0 %v1231
      %v1233 = vpop.xlane.xlu0 %1232
      %v1234 = vsel %vm1130, %v1216, -inf
      %1235 = vmax.xlane.f32.xlu0 %v1234
      %v1236 = vpop.xlane.xlu0 %1235
      %v1237 = vsel %vm1130, %v1217, -inf
      %1238 = vmax.xlane.f32.xlu0 %v1237
      %v1239 = vpop.xlane.xlu0 %1238
      %v1240 = vsel %vm1130, %v1218, -inf
      %1241 = vmax.xlane.f32.xlu0 %v1240
      %v1242 = vpop.xlane.xlu0 %1241
      %v1243 = vsub.f32 %v1211, %v1221
      %v1244 = vsub.f32 %v1212, %v1224
      %v1245 = vsub.f32 %v1213, %v1227
      %v1246 = vsub.f32 %v1214, %v1230
      %v1247 = vsub.f32 %v1215, %v1233
      %v1248 = vsub.f32 %v1216, %v1236
      %v1249 = vsub.f32 %v1217, %v1239
      %v1250 = vsub.f32 %v1218, %v1242
      %v1251 = vmul.f32 %v1243, 1.442695
      %v1252 = vpow.pop %v1251
      %v1253 = vmul.f32 %v1244, 1.442695
      %v1254 = vpow.pop %v1253
      %v1255 = vmul.f32 %v1245, 1.442695
      %v1256 = vpow.pop %v1255
      %v1257 = vmul.f32 %v1246, 1.442695
      %v1258 = vpow.pop %v1257
      %v1259 = vmul.f32 %v1247, 1.442695
      %v1260 = vpow.pop %v1259
      %v1261 = vmul.f32 %v1248, 1.442695
      %v1262 = vpow.pop %v1261
      %v1263 = vmul.f32 %v1249, 1.442695
      %v1264 = vpow.pop %v1263
      %v1265 = vmul.f32 %v1250, 1.442695
      %v1266 = vpow.pop %v1265
      %v1267 = vsel %vm1130, %v1252, 0.0
      %1268 = vadd.xlane.f32.xlu0 %v1267
      %v1269 = vpop.xlane.xlu0 %1268
      %v1270 = vsel %vm1130, %v1254, 0.0
      %1271 = vadd.xlane.f32.xlu0 %v1270
      %v1272 = vpop.xlane.xlu0 %1271
      %v1273 = vsel %vm1130, %v1256, 0.0
      %1274 = vadd.xlane.f32.xlu0 %v1273
      %v1275 = vpop.xlane.xlu0 %1274
      %v1276 = vsel %vm1130, %v1258, 0.0
      %1277 = vadd.xlane.f32.xlu0 %v1276
      %v1278 = vpop.xlane.xlu0 %1277
      %v1279 = vsel %vm1130, %v1260, 0.0
      %1280 = vadd.xlane.f32.xlu0 %v1279
      %v1281 = vpop.xlane.xlu0 %1280
      %v1282 = vsel %vm1130, %v1262, 0.0
      %1283 = vadd.xlane.f32.xlu0 %v1282
      %v1284 = vpop.xlane.xlu0 %1283
      %v1285 = vsel %vm1130, %v1264, 0.0
      %1286 = vadd.xlane.f32.xlu0 %v1285
      %v1287 = vpop.xlane.xlu0 %1286
      %v1288 = vsel %vm1130, %v1266, 0.0
      %1289 = vadd.xlane.f32.xlu0 %v1288
      %v1290 = vpop.xlane.xlu0 %1289
      %v1291 = vrcp.pop %v1269
      %v1292 = vrcp.pop %v1272
      %v1293 = vrcp.pop %v1275
      %v1294 = vrcp.pop %v1278
      %v1295 = vrcp.pop %v1281
      %v1296 = vrcp.pop %v1284
      %v1297 = vrcp.pop %v1287
      %v1298 = vrcp.pop %v1290
      %v1299 = vmul.f32 %v1252, %v1291
      %v1300 = vmul.f32 %v1254, %v1292
      %v1301 = vmul.f32 %v1256, %v1293
      %v1302 = vmul.f32 %v1258, %v1294
      %v1303 = vmul.f32 %v1260, %v1295
      %v1304 = vmul.f32 %v1262, %v1296
      %v1305 = vmul.f32 %v1264, %v1297
      %v1306 = vmul.f32 %v1266, %v1298
      %v1307 = vpack.c.bf16 %v1299, %v1299
      %v1308 = vpack.c.bf16 %v1300, %v1300
      %v1309 = vpack.c.bf16 %v1301, %v1301
      %v1310 = vpack.c.bf16 %v1302, %v1302
      %v1311 = vpack.c.bf16 %v1303, %v1303
      %v1312 = vpack.c.bf16 %v1304, %v1304
      %v1313 = vpack.c.bf16 %v1305, %v1305
      %v1314 = vpack.c.bf16 %v1306, %v1306
      %v1316 = vsel %vm1130, %v1307, 0
      %1318 = vmatprep.subr.bf16.mxu0 0
      %1319 = vmatpush1.bf16.msra.mxu0 0
      %1320 = vmatprep.subr.bf16.mxu0 0
      %1321 = vmatpush1.bf16.msra.mxu0 0
      %1322 = vmatprep.subr.bf16.mxu0 0
      %1323 = vmatpush1.bf16.msra.mxu0 0
      %1324 = vmatprep.subr.bf16.mxu0 0
      %1325 = vmatpush1.bf16.msra.mxu0 0
      %1326 = vmatprep.subr.bf16.mxu0 0
      %1327 = vmatpush1.bf16.msra.mxu0 0
      %1328 = vmatprep.subr.bf16.mxu0 0
      %1329 = vmatpush1.bf16.msra.mxu0 0
      %1330 = vmatprep.subr.bf16.mxu0 0
      %1331 = vmatpush1.bf16.msra.mxu0 0
      %1332 = vmatprep.subr.bf16.mxu0 0
      %1333 = vmatpush1.bf16.msra.mxu0 %v766
      %1334 = vmatprep.subr.bf16.mxu0 0
      %1335 = vmatpush2.bf16.msra.mxu0 0
      %1336 = vmatprep.subr.bf16.mxu0 0
      %1337 = vmatpush2.bf16.msra.mxu0 0
      %1338 = vmatprep.subr.bf16.mxu0 0
      %1339 = vmatpush2.bf16.msra.mxu0 0
      %1340 = vmatprep.subr.bf16.mxu0 0
      %1341 = vmatpush2.bf16.msra.mxu0 0
      %1342 = vmatprep.subr.bf16.mxu0 0
      %1343 = vmatpush2.bf16.msra.mxu0 0
      %1344 = vmatprep.subr.bf16.mxu0 0
      %1345 = vmatpush2.bf16.msra.mxu0 0
      %1346 = vmatprep.subr.bf16.mxu0 0
      %1347 = vmatpush2.bf16.msra.mxu0 0
      %1348 = vmatprep.subr.bf16.mxu0 0
      %1349 = vmatpush2.bf16.msra.mxu0 0
      %1350 = vmatprep.mubr.bf16.mxu0 0
      %1351 = vmatmul.mubr.bf16.gmra.mxu0 %v1316
      %v1352 = vpop.f32.mrf.mxu0
      %v1353 = vadd.f32 0.0, %v1352
      %v1354 = vpop.f32.mrf.mxu0
      %v1355 = vpop.f32.mrf.mxu0
      %v1356 = vpop.f32.mrf.mxu0
      %1357 = vdwg.mxu0
      %v1359 = vsel %vm1130, %v1308, 0
      %1361 = vmatprep.subr.bf16.mxu0 0
      %1362 = vmatpush1.bf16.msra.mxu0 0
      %1363 = vmatprep.subr.bf16.mxu0 0
      %1364 = vmatpush1.bf16.msra.mxu0 0
      %1365 = vmatprep.subr.bf16.mxu0 0
      %1366 = vmatpush1.bf16.msra.mxu0 0
      %1367 = vmatprep.subr.bf16.mxu0 0
      %1368 = vmatpush1.bf16.msra.mxu0 0
      %1369 = vmatprep.subr.bf16.mxu0 0
      %1370 = vmatpush1.bf16.msra.mxu0 0
      %1371 = vmatprep.subr.bf16.mxu0 0
      %1372 = vmatpush1.bf16.msra.mxu0 0
      %1373 = vmatprep.subr.bf16.mxu0 0
      %1374 = vmatpush1.bf16.msra.mxu0 0
      %1375 = vmatprep.subr.bf16.mxu0 0
      %1376 = vmatpush1.bf16.msra.mxu0 %v767
      %1377 = vmatprep.subr.bf16.mxu0 0
      %1378 = vmatpush2.bf16.msra.mxu0 0
      %1379 = vmatprep.subr.bf16.mxu0 0
      %1380 = vmatpush2.bf16.msra.mxu0 0
      %1381 = vmatprep.subr.bf16.mxu0 0
      %1382 = vmatpush2.bf16.msra.mxu0 0
      %1383 = vmatprep.subr.bf16.mxu0 0
      %1384 = vmatpush2.bf16.msra.mxu0 0
      %1385 = vmatprep.subr.bf16.mxu0 0
      %1386 = vmatpush2.bf16.msra.mxu0 0
      %1387 = vmatprep.subr.bf16.mxu0 0
      %1388 = vmatpush2.bf16.msra.mxu0 0
      %1389 = vmatprep.subr.bf16.mxu0 0
      %1390 = vmatpush2.bf16.msra.mxu0 0
      %1391 = vmatprep.subr.bf16.mxu0 0
      %1392 = vmatpush2.bf16.msra.mxu0 0
      %1393 = vmatprep.mubr.bf16.mxu0 0
      %1394 = vmatmul.mubr.bf16.gmra.mxu0 %v1359
      %v1395 = vpop.f32.mrf.mxu0
      %v1396 = vadd.f32 0.0, %v1395
      %v1397 = vpop.f32.mrf.mxu0
      %v1398 = vpop.f32.mrf.mxu0
      %v1399 = vpop.f32.mrf.mxu0
      %1400 = vdwg.mxu0
      %v1402 = vsel %vm1130, %v1309, 0
      %1404 = vmatprep.subr.bf16.mxu0 0
      %1405 = vmatpush1.bf16.msra.mxu0 0
      %1406 = vmatprep.subr.bf16.mxu0 0
      %1407 = vmatpush1.bf16.msra.mxu0 0
      %1408 = vmatprep.subr.bf16.mxu0 0
      %1409 = vmatpush1.bf16.msra.mxu0 0
      %1410 = vmatprep.subr.bf16.mxu0 0
      %1411 = vmatpush1.bf16.msra.mxu0 0
      %1412 = vmatprep.subr.bf16.mxu0 0
      %1413 = vmatpush1.bf16.msra.mxu0 0
      %1414 = vmatprep.subr.bf16.mxu0 0
      %1415 = vmatpush1.bf16.msra.mxu0 0
      %1416 = vmatprep.subr.bf16.mxu0 0
      %1417 = vmatpush1.bf16.msra.mxu0 0
      %1418 = vmatprep.subr.bf16.mxu0 0
      %1419 = vmatpush1.bf16.msra.mxu0 %v768
      %1420 = vmatprep.subr.bf16.mxu0 0
      %1421 = vmatpush2.bf16.msra.mxu0 0
      %1422 = vmatprep.subr.bf16.mxu0 0
      %1423 = vmatpush2.bf16.msra.mxu0 0
      %1424 = vmatprep.subr.bf16.mxu0 0
      %1425 = vmatpush2.bf16.msra.mxu0 0
      %1426 = vmatprep.subr.bf16.mxu0 0
      %1427 = vmatpush2.bf16.msra.mxu0 0
      %1428 = vmatprep.subr.bf16.mxu0 0
      %1429 = vmatpush2.bf16.msra.mxu0 0
      %1430 = vmatprep.subr.bf16.mxu0 0
      %1431 = vmatpush2.bf16.msra.mxu0 0
      %1432 = vmatprep.subr.bf16.mxu0 0
      %1433 = vmatpush2.bf16.msra.mxu0 0
      %1434 = vmatprep.subr.bf16.mxu0 0
      %1435 = vmatpush2.bf16.msra.mxu0 0
      %1436 = vmatprep.mubr.bf16.mxu0 0
      %1437 = vmatmul.mubr.bf16.gmra.mxu0 %v1402
      %v1438 = vpop.f32.mrf.mxu0
      %v1439 = vadd.f32 0.0, %v1438
      %v1440 = vpop.f32.mrf.mxu0
      %v1441 = vpop.f32.mrf.mxu0
      %v1442 = vpop.f32.mrf.mxu0
      %1443 = vdwg.mxu0
      %v1445 = vsel %vm1130, %v1310, 0
      %1447 = vmatprep.subr.bf16.mxu0 0
      %1448 = vmatpush1.bf16.msra.mxu0 0
      %1449 = vmatprep.subr.bf16.mxu0 0
      %1450 = vmatpush1.bf16.msra.mxu0 0
      %1451 = vmatprep.subr.bf16.mxu0 0
      %1452 = vmatpush1.bf16.msra.mxu0 0
      %1453 = vmatprep.subr.bf16.mxu0 0
      %1454 = vmatpush1.bf16.msra.mxu0 0
      %1455 = vmatprep.subr.bf16.mxu0 0
      %1456 = vmatpush1.bf16.msra.mxu0 0
      %1457 = vmatprep.subr.bf16.mxu0 0
      %1458 = vmatpush1.bf16.msra.mxu0 0
      %1459 = vmatprep.subr.bf16.mxu0 0
      %1460 = vmatpush1.bf16.msra.mxu0 0
      %1461 = vmatprep.subr.bf16.mxu0 0
      %1462 = vmatpush1.bf16.msra.mxu0 %v769
      %1463 = vmatprep.subr.bf16.mxu0 0
      %1464 = vmatpush2.bf16.msra.mxu0 0
      %1465 = vmatprep.subr.bf16.mxu0 0
      %1466 = vmatpush2.bf16.msra.mxu0 0
      %1467 = vmatprep.subr.bf16.mxu0 0
      %1468 = vmatpush2.bf16.msra.mxu0 0
      %1469 = vmatprep.subr.bf16.mxu0 0
      %1470 = vmatpush2.bf16.msra.mxu0 0
      %1471 = vmatprep.subr.bf16.mxu0 0
      %1472 = vmatpush2.bf16.msra.mxu0 0
      %1473 = vmatprep.subr.bf16.mxu0 0
      %1474 = vmatpush2.bf16.msra.mxu0 0
      %1475 = vmatprep.subr.bf16.mxu0 0
      %1476 = vmatpush2.bf16.msra.mxu0 0
      %1477 = vmatprep.subr.bf16.mxu0 0
      %1478 = vmatpush2.bf16.msra.mxu0 0
      %1479 = vmatprep.mubr.bf16.mxu0 0
      %1480 = vmatmul.mubr.bf16.gmra.mxu0 %v1445
      %v1481 = vpop.f32.mrf.mxu0
      %v1482 = vadd.f32 0.0, %v1481
      %v1483 = vpop.f32.mrf.mxu0
      %v1484 = vpop.f32.mrf.mxu0
      %v1485 = vpop.f32.mrf.mxu0
      %1486 = vdwg.mxu0
      %v1488 = vsel %vm1130, %v1311, 0
      %1490 = vmatprep.subr.bf16.mxu0 0
      %1491 = vmatpush1.bf16.msra.mxu0 0
      %1492 = vmatprep.subr.bf16.mxu0 0
      %1493 = vmatpush1.bf16.msra.mxu0 0
      %1494 = vmatprep.subr.bf16.mxu0 0
      %1495 = vmatpush1.bf16.msra.mxu0 0
      %1496 = vmatprep.subr.bf16.mxu0 0
      %1497 = vmatpush1.bf16.msra.mxu0 0
      %1498 = vmatprep.subr.bf16.mxu0 0
      %1499 = vmatpush1.bf16.msra.mxu0 0
      %1500 = vmatprep.subr.bf16.mxu0 0
      %1501 = vmatpush1.bf16.msra.mxu0 0
      %1502 = vmatprep.subr.bf16.mxu0 0
      %1503 = vmatpush1.bf16.msra.mxu0 0
      %1504 = vmatprep.subr.bf16.mxu0 0
      %1505 = vmatpush1.bf16.msra.mxu0 %v770
      %1506 = vmatprep.subr.bf16.mxu0 0
      %1507 = vmatpush2.bf16.msra.mxu0 0
      %1508 = vmatprep.subr.bf16.mxu0 0
      %1509 = vmatpush2.bf16.msra.mxu0 0
      %1510 = vmatprep.subr.bf16.mxu0 0
      %1511 = vmatpush2.bf16.msra.mxu0 0
      %1512 = vmatprep.subr.bf16.mxu0 0
      %1513 = vmatpush2.bf16.msra.mxu0 0
      %1514 = vmatprep.subr.bf16.mxu0 0
      %1515 = vmatpush2.bf16.msra.mxu0 0
      %1516 = vmatprep.subr.bf16.mxu0 0
      %1517 = vmatpush2.bf16.msra.mxu0 0
      %1518 = vmatprep.subr.bf16.mxu0 0
      %1519 = vmatpush2.bf16.msra.mxu0 0
      %1520 = vmatprep.subr.bf16.mxu0 0
      %1521 = vmatpush2.bf16.msra.mxu0 0
      %1522 = vmatprep.mubr.bf16.mxu0 0
      %1523 = vmatmul.mubr.bf16.gmra.mxu0 %v1488
      %v1524 = vpop.f32.mrf.mxu0
      %v1525 = vadd.f32 0.0, %v1524
      %v1526 = vpop.f32.mrf.mxu0
      %v1527 = vpop.f32.mrf.mxu0
      %v1528 = vpop.f32.mrf.mxu0
      %1529 = vdwg.mxu0
      %v1531 = vsel %vm1130, %v1312, 0
      %1533 = vmatprep.subr.bf16.mxu0 0
      %1534 = vmatpush1.bf16.msra.mxu0 0
      %1535 = vmatprep.subr.bf16.mxu0 0
      %1536 = vmatpush1.bf16.msra.mxu0 0
      %1537 = vmatprep.subr.bf16.mxu0 0
      %1538 = vmatpush1.bf16.msra.mxu0 0
      %1539 = vmatprep.subr.bf16.mxu0 0
      %1540 = vmatpush1.bf16.msra.mxu0 0
      %1541 = vmatprep.subr.bf16.mxu0 0
      %1542 = vmatpush1.bf16.msra.mxu0 0
      %1543 = vmatprep.subr.bf16.mxu0 0
      %1544 = vmatpush1.bf16.msra.mxu0 0
      %1545 = vmatprep.subr.bf16.mxu0 0
      %1546 = vmatpush1.bf16.msra.mxu0 0
      %1547 = vmatprep.subr.bf16.mxu0 0
      %1548 = vmatpush1.bf16.msra.mxu0 %v771
      %1549 = vmatprep.subr.bf16.mxu0 0
      %1550 = vmatpush2.bf16.msra.mxu0 0
      %1551 = vmatprep.subr.bf16.mxu0 0
      %1552 = vmatpush2.bf16.msra.mxu0 0
      %1553 = vmatprep.subr.bf16.mxu0 0
      %1554 = vmatpush2.bf16.msra.mxu0 0
      %1555 = vmatprep.subr.bf16.mxu0 0
      %1556 = vmatpush2.bf16.msra.mxu0 0
      %1557 = vmatprep.subr.bf16.mxu0 0
      %1558 = vmatpush2.bf16.msra.mxu0 0
      %1559 = vmatprep.subr.bf16.mxu0 0
      %1560 = vmatpush2.bf16.msra.mxu0 0
      %1561 = vmatprep.subr.bf16.mxu0 0
      %1562 = vmatpush2.bf16.msra.mxu0 0
      %1563 = vmatprep.subr.bf16.mxu0 0
      %1564 = vmatpush2.bf16.msra.mxu0 0
      %1565 = vmatprep.mubr.bf16.mxu0 0
      %1566 = vmatmul.mubr.bf16.gmra.mxu0 %v1531
      %v1567 = vpop.f32.mrf.mxu0
      %v1568 = vadd.f32 0.0, %v1567
      %v1569 = vpop.f32.mrf.mxu0
      %v1570 = vpop.f32.mrf.mxu0
      %v1571 = vpop.f32.mrf.mxu0
      %1572 = vdwg.mxu0
      %v1574 = vsel %vm1130, %v1313, 0
      %1576 = vmatprep.subr.bf16.mxu0 0
      %1577 = vmatpush1.bf16.msra.mxu0 0
      %1578 = vmatprep.subr.bf16.mxu0 0
      %1579 = vmatpush1.bf16.msra.mxu0 0
      %1580 = vmatprep.subr.bf16.mxu0 0
      %1581 = vmatpush1.bf16.msra.mxu0 0
      %1582 = vmatprep.subr.bf16.mxu0 0
      %1583 = vmatpush1.bf16.msra.mxu0 0
      %1584 = vmatprep.subr.bf16.mxu0 0
      %1585 = vmatpush1.bf16.msra.mxu0 0
      %1586 = vmatprep.subr.bf16.mxu0 0
      %1587 = vmatpush1.bf16.msra.mxu0 0
      %1588 = vmatprep.subr.bf16.mxu0 0
      %1589 = vmatpush1.bf16.msra.mxu0 0
      %1590 = vmatprep.subr.bf16.mxu0 0
      %1591 = vmatpush1.bf16.msra.mxu0 %v772
      %1592 = vmatprep.subr.bf16.mxu0 0
      %1593 = vmatpush2.bf16.msra.mxu0 0
      %1594 = vmatprep.subr.bf16.mxu0 0
      %1595 = vmatpush2.bf16.msra.mxu0 0
      %1596 = vmatprep.subr.bf16.mxu0 0
      %1597 = vmatpush2.bf16.msra.mxu0 0
      %1598 = vmatprep.subr.bf16.mxu0 0
      %1599 = vmatpush2.bf16.msra.mxu0 0
      %1600 = vmatprep.subr.bf16.mxu0 0
      %1601 = vmatpush2.bf16.msra.mxu0 0
      %1602 = vmatprep.subr.bf16.mxu0 0
      %1603 = vmatpush2.bf16.msra.mxu0 0
      %1604 = vmatprep.subr.bf16.mxu0 0
      %1605 = vmatpush2.bf16.msra.mxu0 0
      %1606 = vmatprep.subr.bf16.mxu0 0
      %1607 = vmatpush2.bf16.msra.mxu0 0
      %1608 = vmatprep.mubr.bf16.mxu0 0
      %1609 = vmatmul.mubr.bf16.gmra.mxu0 %v1574
      %v1610 = vpop.f32.mrf.mxu0
      %v1611 = vadd.f32 0.0, %v1610
      %v1612 = vpop.f32.mrf.mxu0
      %v1613 = vpop.f32.mrf.mxu0
      %v1614 = vpop.f32.mrf.mxu0
      %1615 = vdwg.mxu0
      %v1617 = vsel %vm1130, %v1314, 0
      %1619 = vmatprep.subr.bf16.mxu0 0
      %1620 = vmatpush1.bf16.msra.mxu0 0
      %1621 = vmatprep.subr.bf16.mxu0 0
      %1622 = vmatpush1.bf16.msra.mxu0 0
      %1623 = vmatprep.subr.bf16.mxu0 0
      %1624 = vmatpush1.bf16.msra.mxu0 0
      %1625 = vmatprep.subr.bf16.mxu0 0
      %1626 = vmatpush1.bf16.msra.mxu0 0
      %1627 = vmatprep.subr.bf16.mxu0 0
      %1628 = vmatpush1.bf16.msra.mxu0 0
      %1629 = vmatprep.subr.bf16.mxu0 0
      %1630 = vmatpush1.bf16.msra.mxu0 0
      %1631 = vmatprep.subr.bf16.mxu0 0
      %1632 = vmatpush1.bf16.msra.mxu0 0
      %1633 = vmatprep.subr.bf16.mxu0 0
      %1634 = vmatpush1.bf16.msra.mxu0 %v773
      %1635 = vmatprep.subr.bf16.mxu0 0
      %1636 = vmatpush2.bf16.msra.mxu0 0
      %1637 = vmatprep.subr.bf16.mxu0 0
      %1638 = vmatpush2.bf16.msra.mxu0 0
      %1639 = vmatprep.subr.bf16.mxu0 0
      %1640 = vmatpush2.bf16.msra.mxu0 0
      %1641 = vmatprep.subr.bf16.mxu0 0
      %1642 = vmatpush2.bf16.msra.mxu0 0
      %1643 = vmatprep.subr.bf16.mxu0 0
      %1644 = vmatpush2.bf16.msra.mxu0 0
      %1645 = vmatprep.subr.bf16.mxu0 0
      %1646 = vmatpush2.bf16.msra.mxu0 0
      %1647 = vmatprep.subr.bf16.mxu0 0
      %1648 = vmatpush2.bf16.msra.mxu0 0
      %1649 = vmatprep.subr.bf16.mxu0 0
      %1650 = vmatpush2.bf16.msra.mxu0 0
      %1651 = vmatprep.mubr.bf16.mxu0 0
      %1652 = vmatmul.mubr.bf16.gmra.mxu0 %v1617
      %v1653 = vpop.f32.mrf.mxu0
      %v1654 = vadd.f32 0.0, %v1653
      %v1655 = vpop.f32.mrf.mxu0
      %v1656 = vpop.f32.mrf.mxu0
      %v1657 = vpop.f32.mrf.mxu0
      %1658 = vdwg.mxu0
      %v1659 = vmul.f32 %v1353, %v1353
      %v1660 = vmul.f32 %v1396, %v1396
      %v1661 = vmul.f32 %v1439, %v1439
      %v1662 = vmul.f32 %v1482, %v1482
      %v1663 = vmul.f32 %v1525, %v1525
      %v1664 = vmul.f32 %v1568, %v1568
      %v1665 = vmul.f32 %v1611, %v1611
      %v1666 = vmul.f32 %v1654, %v1654
      %v1667 = vsel %vm342, %v1659, 0.0
      %v1668 = vrot.slane %v1667, 4
      %v1669 = vadd.f32 %v1667, %v1668
      %v1670 = vrot.slane %v1669, 2
      %v1671 = vadd.f32 %v1669, %v1670
      %v1672 = vrot.slane %v1671, 1
      %v1673 = vadd.f32 %v1671, %v1672
      %v1674 = vsel %vm342, %v1660, 0.0
      %v1675 = vrot.slane %v1674, 4
      %v1676 = vadd.f32 %v1674, %v1675
      %v1677 = vrot.slane %v1676, 2
      %v1678 = vadd.f32 %v1676, %v1677
      %v1679 = vrot.slane %v1678, 1
      %v1680 = vadd.f32 %v1678, %v1679
      %v1681 = vsel %vm342, %v1661, 0.0
      %v1682 = vrot.slane %v1681, 4
      %v1683 = vadd.f32 %v1681, %v1682
      %v1684 = vrot.slane %v1683, 2
      %v1685 = vadd.f32 %v1683, %v1684
      %v1686 = vrot.slane %v1685, 1
      %v1687 = vadd.f32 %v1685, %v1686
      %v1688 = vsel %vm342, %v1662, 0.0
      %v1689 = vrot.slane %v1688, 4
      %v1690 = vadd.f32 %v1688, %v1689
      %v1691 = vrot.slane %v1690, 2
      %v1692 = vadd.f32 %v1690, %v1691
      %v1693 = vrot.slane %v1692, 1
      %v1694 = vadd.f32 %v1692, %v1693
      %v1695 = vsel %vm342, %v1663, 0.0
      %v1696 = vrot.slane %v1695, 4
      %v1697 = vadd.f32 %v1695, %v1696
      %v1698 = vrot.slane %v1697, 2
      %v1699 = vadd.f32 %v1697, %v1698
      %v1700 = vrot.slane %v1699, 1
      %v1701 = vadd.f32 %v1699, %v1700
      %v1702 = vsel %vm342, %v1664, 0.0
      %v1703 = vrot.slane %v1702, 4
      %v1704 = vadd.f32 %v1702, %v1703
      %v1705 = vrot.slane %v1704, 2
      %v1706 = vadd.f32 %v1704, %v1705
      %v1707 = vrot.slane %v1706, 1
      %v1708 = vadd.f32 %v1706, %v1707
      %v1709 = vsel %vm342, %v1665, 0.0
      %v1710 = vrot.slane %v1709, 4
      %v1711 = vadd.f32 %v1709, %v1710
      %v1712 = vrot.slane %v1711, 2
      %v1713 = vadd.f32 %v1711, %v1712
      %v1714 = vrot.slane %v1713, 1
      %v1715 = vadd.f32 %v1713, %v1714
      %v1716 = vsel %vm342, %v1666, 0.0
      %v1717 = vrot.slane %v1716, 4
      %v1718 = vadd.f32 %v1716, %v1717
      %v1719 = vrot.slane %v1718, 2
      %v1720 = vadd.f32 %v1718, %v1719
      %v1721 = vrot.slane %v1720, 1
      %v1722 = vadd.f32 %v1720, %v1721
      %v1723 = vmax.f32 %v1673, 1e-24
      %v1724 = vmax.f32 %v1680, 1e-24
      %v1725 = vmax.f32 %v1687, 1e-24
      %v1726 = vmax.f32 %v1694, 1e-24
      %v1727 = vmax.f32 %v1701, 1e-24
      %v1728 = vmax.f32 %v1708, 1e-24
      %v1729 = vmax.f32 %v1715, 1e-24
      %v1730 = vmax.f32 %v1722, 1e-24
      %v1731 = vrsqrt.pop %v1723
      %v1732 = vrsqrt.pop %v1724
      %v1733 = vrsqrt.pop %v1725
      %v1734 = vrsqrt.pop %v1726
      %v1735 = vrsqrt.pop %v1727
      %v1736 = vrsqrt.pop %v1728
      %v1737 = vrsqrt.pop %v1729
      %v1738 = vrsqrt.pop %v1730
      %v1739 = vmul.f32 %v1353, %v1731
      %v1740 = vmul.f32 %v1396, %v1732
      %v1741 = vmul.f32 %v1439, %v1733
      %v1742 = vmul.f32 %v1482, %v1734
      %v1743 = vmul.f32 %v1525, %v1735
      %v1744 = vmul.f32 %v1568, %v1736
      %v1745 = vmul.f32 %v1611, %v1737
      %v1746 = vmul.f32 %v1654, %v1738
      %v1747 = vld [vmem:[%s7] sm:$0xf]
      %v1748 = vunpack.c.l.bf16 %v1747
      %v1749 = vmul.f32 %v1748, %v1739
      %v1750 = vmul.f32 %v1748, %v1740
      %v1751 = vmul.f32 %v1748, %v1741
      %v1752 = vmul.f32 %v1748, %v1742
      %v1753 = vmul.f32 %v1748, %v1743
      %v1754 = vmul.f32 %v1748, %v1744
      %v1755 = vmul.f32 %v1748, %v1745
      %v1756 = vmul.f32 %v1748, %v1746
      %v1757 = vsel %vm342, %v1749, 0.0
      %1758 = vadd.xlane.f32.xlu0 %v1757
      %v1759 = vpop.xlane.xlu0 %1758
      %v1760 = vsel %vm342, %v1750, 0.0
      %1761 = vadd.xlane.f32.xlu0 %v1760
      %v1762 = vpop.xlane.xlu0 %1761
      %v1763 = vsel %vm342, %v1751, 0.0
      %1764 = vadd.xlane.f32.xlu0 %v1763
      %v1765 = vpop.xlane.xlu0 %1764
      %v1766 = vsel %vm342, %v1752, 0.0
      %1767 = vadd.xlane.f32.xlu0 %v1766
      %v1768 = vpop.xlane.xlu0 %1767
      %v1769 = vsel %vm342, %v1753, 0.0
      %1770 = vadd.xlane.f32.xlu0 %v1769
      %v1771 = vpop.xlane.xlu0 %1770
      %v1772 = vsel %vm342, %v1754, 0.0
      %1773 = vadd.xlane.f32.xlu0 %v1772
      %v1774 = vpop.xlane.xlu0 %1773
      %v1775 = vsel %vm342, %v1755, 0.0
      %1776 = vadd.xlane.f32.xlu0 %v1775
      %v1777 = vpop.xlane.xlu0 %1776
      %v1778 = vsel %vm342, %v1756, 0.0
      %1779 = vadd.xlane.f32.xlu0 %v1778
      %v1780 = vpop.xlane.xlu0 %1779
      %v1781 = vmul.f32 %v1759, %v1759
      %v1782 = vmul.f32 %v1762, %v1762
      %v1783 = vmul.f32 %v1765, %v1765
      %v1784 = vmul.f32 %v1768, %v1768
      %v1785 = vmul.f32 %v1771, %v1771
      %v1786 = vmul.f32 %v1774, %v1774
      %v1787 = vmul.f32 %v1777, %v1777
      %v1788 = vmul.f32 %v1780, %v1780
      %v1797 = vlaneseq
      %v1798 = vand.u32 %v1797, 127
      %v1799 = vlaneseq
      %v1800 = vshrl.u32 %v1799, 7
      %v1801 = vsub.s32 %v1798, %v1800
      %v1802 = vrot.slane %v1781, %v1801
      %v1803 = vlaneseq
      %v1804 = vshrl.u32 %v1803, 7
      %v1805 = vsub.s32 %v1798, %v1804
      %v1806 = vrot.slane %v1782, %v1805
      %v1807 = vlaneseq
      %v1808 = vshrl.u32 %v1807, 7
      %v1809 = vsub.s32 %v1798, %v1808
      %v1810 = vrot.slane %v1783, %v1809
      %v1811 = vlaneseq
      %v1812 = vshrl.u32 %v1811, 7
      %v1813 = vsub.s32 %v1798, %v1812
      %v1814 = vrot.slane %v1784, %v1813
      %v1815 = vlaneseq
      %v1816 = vshrl.u32 %v1815, 7
      %v1817 = vsub.s32 %v1798, %v1816
      %v1818 = vrot.slane %v1785, %v1817
      %v1819 = vlaneseq
      %v1820 = vshrl.u32 %v1819, 7
      %v1821 = vsub.s32 %v1798, %v1820
      %v1822 = vrot.slane %v1786, %v1821
      %v1823 = vlaneseq
      %v1824 = vshrl.u32 %v1823, 7
      %v1825 = vsub.s32 %v1798, %v1824
      %v1826 = vrot.slane %v1787, %v1825
      %v1827 = vlaneseq
      %v1828 = vshrl.u32 %v1827, 7
      %v1829 = vsub.s32 %v1798, %v1828
      %v1830 = vrot.slane %v1788, %v1829
      %vm1831 = vcmask 1041409
      %v1832 = vsel %vm1831, %v1806, %v1802
      %vm1833 = vcmask 1042434
      %v1834 = vsel %vm1833, %v1810, %v1832
      %vm1835 = vcmask 1043459
      %v1836 = vsel %vm1835, %v1814, %v1834
      %vm1837 = vcmask 1044484
      %v1838 = vsel %vm1837, %v1818, %v1836
      %vm1839 = vcmask 1045509
      %v1840 = vsel %vm1839, %v1822, %v1838
      %vm1841 = vcmask 1046534
      %v1842 = vsel %vm1841, %v1826, %v1840
      %vm1843 = vcmask 1047559
      %v1844 = vsel %vm1843, %v1830, %v1842
      %vm1846 = vcmask 64512
      %v1847 = vsel %vm1846, %v1844, 0.0
      %1848 = vadd.xlane.f32.xlu0 %v1847
      %v1849 = vpop.xlane.xlu0 %1848
      %v1850 = vadd.f32 %v1849, 1e-12
      %v1851 = vrsqrt.pop %v1850
      %v1853 = vlaneseq
      %v1854 = vshrl.u32 %v1853, 7
      %v1855 = vsub.s32 0, %v1854
      %v1856 = vrot.slane %v1851, %v1855
      %v1857 = vlaneseq
      %v1858 = vshrl.u32 %v1857, 7
      %v1859 = vsub.s32 1, %v1858
      %v1860 = vrot.slane %v1851, %v1859
      %v1861 = vlaneseq
      %v1862 = vshrl.u32 %v1861, 7
      %v1863 = vsub.s32 2, %v1862
      %v1864 = vrot.slane %v1851, %v1863
      %v1865 = vlaneseq
      %v1866 = vshrl.u32 %v1865, 7
      %v1867 = vsub.s32 3, %v1866
      %v1868 = vrot.slane %v1851, %v1867
      %v1869 = vlaneseq
      %v1870 = vshrl.u32 %v1869, 7
      %v1871 = vsub.s32 4, %v1870
      %v1872 = vrot.slane %v1851, %v1871
      %v1873 = vlaneseq
      %v1874 = vshrl.u32 %v1873, 7
      %v1875 = vsub.s32 5, %v1874
      %v1876 = vrot.slane %v1851, %v1875
      %v1877 = vlaneseq
      %v1878 = vshrl.u32 %v1877, 7
      %v1879 = vsub.s32 6, %v1878
      %v1880 = vrot.slane %v1851, %v1879
      %v1881 = vlaneseq
      %v1882 = vshrl.u32 %v1881, 7
      %v1883 = vsub.s32 7, %v1882
      %v1884 = vrot.slane %v1851, %v1883
      %v1893 = vmul.f32 %v1759, %v1856
      %v1894 = vmul.f32 %v1762, %v1860
      %v1895 = vmul.f32 %v1765, %v1864
      %v1896 = vmul.f32 %v1768, %v1868
      %v1897 = vmul.f32 %v1771, %v1872
      %v1898 = vmul.f32 %v1774, %v1876
      %v1899 = vmul.f32 %v1777, %v1880
      %v1900 = vmul.f32 %v1780, %v1884
      %1909 = vset.pattern.permute.xlu0 0
      %1910 = vperm.xlu0 %1909, %v1893
      %v1911 = vpop.permute.xlu0 %1910
      %1912 = vset.pattern.permute.xlu0 0
      %1913 = vperm.xlu0 %1912, %v1894
      %v1914 = vpop.permute.xlu0 %1913
      %1915 = vset.pattern.permute.xlu0 0
      %1916 = vperm.xlu0 %1915, %v1895
      %v1917 = vpop.permute.xlu0 %1916
      %1918 = vset.pattern.permute.xlu0 0
      %1919 = vperm.xlu0 %1918, %v1896
      %v1920 = vpop.permute.xlu0 %1919
      %1921 = vset.pattern.permute.xlu0 0
      %1922 = vperm.xlu0 %1921, %v1897
      %v1923 = vpop.permute.xlu0 %1922
      %1924 = vset.pattern.permute.xlu0 0
      %1925 = vperm.xlu0 %1924, %v1898
      %v1926 = vpop.permute.xlu0 %1925
      %1927 = vset.pattern.permute.xlu0 0
      %1928 = vperm.xlu0 %1927, %v1899
      %v1929 = vpop.permute.xlu0 %1928
      %1930 = vset.pattern.permute.xlu0 0
      %1931 = vperm.xlu0 %1930, %v1900
      %v1932 = vpop.permute.xlu0 %1931
      %v1933 = vlaneseq
      %v1934 = vshrl.u32 %v1933, 7
      %v1935 = vsub.s32 %v1798, %v1934
      %v1936 = vrot.slane %v1911, %v1935
      %v1937 = vlaneseq
      %v1938 = vshrl.u32 %v1937, 7
      %v1939 = vsub.s32 %v1798, %v1938
      %v1940 = vrot.slane %v1914, %v1939
      %v1941 = vlaneseq
      %v1942 = vshrl.u32 %v1941, 7
      %v1943 = vsub.s32 %v1798, %v1942
      %v1944 = vrot.slane %v1917, %v1943
      %v1945 = vlaneseq
      %v1946 = vshrl.u32 %v1945, 7
      %v1947 = vsub.s32 %v1798, %v1946
      %v1948 = vrot.slane %v1920, %v1947
      %v1949 = vlaneseq
      %v1950 = vshrl.u32 %v1949, 7
      %v1951 = vsub.s32 %v1798, %v1950
      %v1952 = vrot.slane %v1923, %v1951
      %v1953 = vlaneseq
      %v1954 = vshrl.u32 %v1953, 7
      %v1955 = vsub.s32 %v1798, %v1954
      %v1956 = vrot.slane %v1926, %v1955
      %v1957 = vlaneseq
      %v1958 = vshrl.u32 %v1957, 7
      %v1959 = vsub.s32 %v1798, %v1958
      %v1960 = vrot.slane %v1929, %v1959
      %v1961 = vlaneseq
      %v1962 = vshrl.u32 %v1961, 7
      %v1963 = vsub.s32 %v1798, %v1962
      %v1964 = vrot.slane %v1932, %v1963
      %v1965 = vsel %vm1831, %v1940, %v1936
      %v1966 = vsel %vm1833, %v1944, %v1965
      %v1967 = vsel %vm1835, %v1948, %v1966
      %v1968 = vsel %vm1837, %v1952, %v1967
      %v1969 = vsel %vm1839, %v1956, %v1968
      %v1970 = vsel %vm1841, %v1960, %v1969
      %v1971 = vsel %vm1843, %v1964, %v1970
      %1973 = vst.msk [vmem:[%s308] sm:$0xff] %vm1846, %v1971
      %p1974 = scmp.lt.s32.totalorder %s19, 1
      %s1975 = scalar_select %p1974, %s19, 1
      %s1976 = smul.addr %s1975, 8
      %s1977 = scalar_lea.vmem %s8, %s1976
      // Predicated region
      $region53: #{cmn_forward.1} parent=51 // pred_check
        %p1978 = pneg %p210
      $region54: #{cmn_forward.1} parent=51 // pred_check_branch
        %1980 = sbr.rel (%p1978) target = $region56
      $region55: #{cmn_forward.1} parent=51 // pred_region
        _
      $region56: #{cmn_forward.1} parent=51 // pred_fallthru
        _
    $region52: #{cmn_forward.1} parent=5 // pred_fallthru
      _
    %p1981 = scmp.le.s32.totalorder 2, %s14
    // Predicated region
    $region57: #{cmn_forward.1} parent=5 // pred_check
      %p1982 = pneg %p1981
    $region58: #{cmn_forward.1} parent=5 // pred_check_branch
      %1984 = sbr.rel (%p1982) target = $region60
    $region59: #{cmn_forward.1} parent=5 // pred_region
      %s1985 = ssub.s32 %s14, 2
      // Predicated region
      $region61: #{cmn_forward.1} parent=59 // pred_check
        %p1986 = pneg %p216
      $region62: #{cmn_forward.1} parent=59 // pred_check_branch
        %1988 = sbr.rel (%p1986) target = $region64
      $region63: #{cmn_forward.1} parent=59 // pred_region
        %p1989 = scmp.lt.s32.totalorder %s20, 1
        %s1990 = scalar_select %p1989, %s20, 1
        %s1991 = smul.addr %s1990, 8
        %s1992 = scalar_lea.vmem %s8, %s1991
      $region64: #{cmn_forward.1} parent=59 // pred_fallthru
        _
    $region60: #{cmn_forward.1} parent=5 // pred_fallthru
      _
  $region6: #{cmn_forward.1} parent=0 // loop_footer
    %s18 = sadd.s32 1, %s14
  $region7: #{cmn_forward.1} parent=0 // loop_footer_branch
    %13 = sbr.rel target = $region3
  $region8: #{cmn_forward.1} parent=0 // loop_exit
    _

</llo_original>
